<compile_context>
chip_gen: v7x
topology: tpu7x:2x2x1
jax: 0.10.0
libtpu: 0.0.40
codegen_flags: <defaults>
</compile_context>

<pallas_src>
import functools

import jax
import jax.numpy as jnp
from jax.experimental import pallas as pl
from jax.experimental.pallas import tpu as pltpu

BN_EPS = 1e-5


# ---------------------------------------------------------------------------
# Pallas kernels
# ---------------------------------------------------------------------------
def pool_conv_stats_kernel(x_ref, w_ref, b_ref, z_ref, s_ref, ss_ref, xp_ref,
                           *, wp, wpd):
    """MaxPool2x2 + zero-pad + 3x3 conv (+bias) + BN partial stats, one image.

    x_ref : (Hp, 2, Wp, 2, Cin) f32   -- 2x2 pool phases of one image
    w_ref : (9, Cin, Cout)      bf16  -- tap-major conv weights
    b_ref : (1, Cout)           f32
    z_ref : (Hp*Wpd, Cout)      f32   -- conv+bias rows (cols >= Wp are garbage)
    s_ref, ss_ref: (1, 1, Cout) f32   -- per-image sum / sum-of-squares
    xp_ref: (Hpd*Wpd, Cin)      bf16  -- VMEM scratch: padded flat input slab
    """
    hp = x_ref.shape[0]
    nrows, cout = z_ref.shape

    # MaxPool2d(2): reduce the two 2x2-phase axes.
    p = jnp.max(x_ref[...], axis=3)
    p = jnp.max(p, axis=1)                       # (Hp, Wp, Cin) f32
    p = p.astype(xp_ref.dtype)

    # Build the zero-padded, row-flattened slab entirely in VMEM scratch.
    xp_ref[...] = jnp.zeros(xp_ref.shape, xp_ref.dtype)
    for r in range(hp):                          # pooled row r -> padded row r+1
        base = (r + 1) * wpd + 1
        xp_ref[base:base + wp, :] = p[r]

    # 3x3 conv (stride 1, pad 1) as 9 shifted MXU matmuls, f32 accumulation.
    acc = jnp.zeros((nrows, cout), jnp.float32)
    for ky in range(3):
        for kx in range(3):
            shift = ky * wpd + kx
            acc = acc + jnp.dot(xp_ref[shift:shift + nrows, :],
                                w_ref[3 * ky + kx],
                                preferred_element_type=jnp.float32)
    z = acc + b_ref[...]
    z_ref[...] = z

    # BatchNorm partial statistics over valid pixels only.
    rows = jax.lax.broadcasted_iota(jnp.int32, (nrows, 1), 0)
    valid = (rows % wpd) < wp
    zm = jnp.where(valid, z, 0.0)
    s_ref[0] = jnp.sum(zm, axis=0, keepdims=True)
    ss_ref[0] = jnp.sum(zm * zm, axis=0, keepdims=True)


def bn_relu_conv_stats_kernel(z1_ref, sc_ref, sh_ref, w_ref, b_ref,
                              z2_ref, s_ref, ss_ref, xp_ref, *, wp, wpd):
    """BN (scale/shift) + ReLU on conv1 output, zero-pad, conv2 (+bias) + stats.

    z1_ref: (Hp*Wpd, Cmid) f32 ; sc_ref/sh_ref: (1, Cmid) f32
    w_ref : (9, Cmid, Cout) bf16 ; b_ref: (1, Cout) f32
    z2_ref: (Hp*Wpd, Cout) f32  ; s_ref/ss_ref: (1, 1, Cout) f32
    xp_ref: (Hpd*Wpd, Cmid) bf16 VMEM scratch (padded flat mid-activation slab)
    """
    nrows = z1_ref.shape[0]
    cout = z2_ref.shape[1]

    rows = jax.lax.broadcasted_iota(jnp.int32, (nrows, 1), 0)
    valid = (rows % wpd) < wp

    y = jnp.maximum(z1_ref[...] * sc_ref[...] + sh_ref[...], 0.0)
    y = jnp.where(valid, y, 0.0)                 # garbage cols become pad zeros

    # Padded slab: valid row j = r*Wpd + c lands at flat index (r+1)*Wpd+(c+1).
    xp_ref[...] = jnp.zeros(xp_ref.shape, xp_ref.dtype)
    xp_ref[wpd + 1:wpd + 1 + nrows, :] = y.astype(xp_ref.dtype)

    acc = jnp.zeros((nrows, cout), jnp.float32)
    for ky in range(3):
        for kx in range(3):
            shift = ky * wpd + kx
            acc = acc + jnp.dot(xp_ref[shift:shift + nrows, :],
                                w_ref[3 * ky + kx],
                                preferred_element_type=jnp.float32)
    z2 = acc + b_ref[...]
    z2_ref[...] = z2

    zm = jnp.where(valid, z2, 0.0)
    s_ref[0] = jnp.sum(zm, axis=0, keepdims=True)
    ss_ref[0] = jnp.sum(zm * zm, axis=0, keepdims=True)


def bn_relu_kernel(z_ref, sc_ref, sh_ref, o_ref):
    """Final BN + ReLU (garbage columns are sliced away outside)."""
    o_ref[...] = jnp.maximum(
        z_ref[...] * sc_ref[...] + sh_ref[...], 0.0).astype(o_ref.dtype)


# ---------------------------------------------------------------------------
# Wrapper
# ---------------------------------------------------------------------------
def _padded_dims(hp, wp):
    # Need >= 1 top/left and >= 2 bottom/right zero rows/cols for the flat-shift
    # conv, and 8-divisible row counts for the TPU block tiling.
    hpd, wpd = hp + 3, wp + 3
    while (hpd * wpd) % 8 or (hp * wpd) % 8:
        wpd += 1
    return hpd, wpd


def _bn_scale_shift(s, ss, gamma, beta, count):
    mean = jnp.sum(s, axis=(0, 1)) / count
    var = jnp.sum(ss, axis=(0, 1)) / count - mean * mean
    scale = gamma * jax.lax.rsqrt(var + BN_EPS)
    shift = beta - mean * scale
    c = scale.shape[0]
    return (scale.reshape(1, c).astype(jnp.float32),
            shift.reshape(1, c).astype(jnp.float32))


@jax.jit
def down_forward(x_nchw, params):
    n, cin, h, w = x_nchw.shape
    hp, wp = h // 2, w // 2
    hpd, wpd = _padded_dims(hp, wp)
    mid = params["w1"].shape[0]
    cout = params["w2"].shape[0]

    # One layout transpose at the module boundary, then free reshapes only.
    x = jnp.transpose(x_nchw, (0, 2, 3, 1))              # NHWC
    x5 = x.reshape(n * hp, 2, wp, 2, cin)                # 2x2 pool phases

    w1m = jnp.transpose(params["w1"], (2, 3, 1, 0)).reshape(9, cin, mid)
    w1m = w1m.astype(jnp.bfloat16)
    b1 = params["b1"].reshape(1, mid).astype(jnp.float32)
    w2m = jnp.transpose(params["w2"], (2, 3, 1, 0)).reshape(9, mid, cout)
    w2m = w2m.astype(jnp.bfloat16)
    b2 = params["b2"].reshape(1, cout).astype(jnp.float32)

    cparams = pltpu.CompilerParams(dimension_semantics=("parallel",),
                                   vmem_limit_bytes=32 * 1024 * 1024)

    # --- Kernel 1: MaxPool(2) + pad + Conv1 + bias + BN1 partial stats ------
    k1 = functools.partial(pool_conv_stats_kernel, wp=wp, wpd=wpd)
    z1, s1, ss1 = pl.pallas_call(
        k1,
        out_shape=(
            jax.ShapeDtypeStruct((n * hp * wpd, mid), jnp.float32),
            jax.ShapeDtypeStruct((n, 1, mid), jnp.float32),
            jax.ShapeDtypeStruct((n, 1, mid), jnp.float32),
        ),
        grid=(n,),
        in_specs=[
            pl.BlockSpec((hp, 2, wp, 2, cin), lambda i: (i, 0, 0, 0, 0)),
            pl.BlockSpec((9, cin, mid), lambda i: (0, 0, 0)),
            pl.BlockSpec((1, mid), lambda i: (0, 0)),
        ],
        out_specs=(
            pl.BlockSpec((hp * wpd, mid), lambda i: (i, 0)),
            pl.BlockSpec((1, 1, mid), lambda i: (i, 0, 0)),
            pl.BlockSpec((1, 1, mid), lambda i: (i, 0, 0)),
        ),
        scratch_shapes=[pltpu.VMEM((hpd * wpd, cin), jnp.bfloat16)],
        compiler_params=cparams,
    )(x5, w1m, b1)

    count = n * hp * wp
    sc1, sh1 = _bn_scale_shift(s1, ss1, params["g1"], params["bt1"], count)

    # --- Kernel 2: BN1 apply + ReLU + pad + Conv2 + bias + BN2 partial stats
    k2 = functools.partial(bn_relu_conv_stats_kernel, wp=wp, wpd=wpd)
    z2, s2, ss2 = pl.pallas_call(
        k2,
        out_shape=(
            jax.ShapeDtypeStruct((n * hp * wpd, cout), jnp.float32),
            jax.ShapeDtypeStruct((n, 1, cout), jnp.float32),
            jax.ShapeDtypeStruct((n, 1, cout), jnp.float32),
        ),
        grid=(n,),
        in_specs=[
            pl.BlockSpec((hp * wpd, mid), lambda i: (i, 0)),
            pl.BlockSpec((1, mid), lambda i: (0, 0)),
            pl.BlockSpec((1, mid), lambda i: (0, 0)),
            pl.BlockSpec((9, mid, cout), lambda i: (0, 0, 0)),
            pl.BlockSpec((1, cout), lambda i: (0, 0)),
        ],
        out_specs=(
            pl.BlockSpec((hp * wpd, cout), lambda i: (i, 0)),
            pl.BlockSpec((1, 1, cout), lambda i: (i, 0, 0)),
            pl.BlockSpec((1, 1, cout), lambda i: (i, 0, 0)),
        ),
        scratch_shapes=[pltpu.VMEM((hpd * wpd, mid), jnp.bfloat16)],
        compiler_params=cparams,
    )(z1, sc1, sh1, w2m, b2)

    sc2, sh2 = _bn_scale_shift(s2, ss2, params["g2"], params["bt2"], count)

    # --- Kernel 3: final BN2 apply + ReLU -----------------------------------
    y = pl.pallas_call(
        bn_relu_kernel,
        out_shape=jax.ShapeDtypeStruct((n * hp * wpd, cout), jnp.float32),
        grid=(n,),
        in_specs=[
            pl.BlockSpec((hp * wpd, cout), lambda i: (i, 0)),
            pl.BlockSpec((1, cout), lambda i: (0, 0)),
            pl.BlockSpec((1, cout), lambda i: (0, 0)),
        ],
        out_specs=pl.BlockSpec((hp * wpd, cout), lambda i: (i, 0)),
        compiler_params=pltpu.CompilerParams(dimension_semantics=("parallel",)),
    )(z2, sc2, sh2)

    y4 = y.reshape(n, hp, wpd, cout)[:, :, :wp, :]       # drop filler columns
    return jnp.transpose(y4, (0, 3, 1, 2))               # back to NCHW


# ---------------------------------------------------------------------------
# Pure-JAX reference (train-mode BN, bf16 conv operands / f32 accumulation,
# matching the kernel's numerics).
# ---------------------------------------------------------------------------
def reference_down(x_nchw, params):
    n, c, h, w = x_nchw.shape
    pooled = x_nchw.reshape(n, c, h // 2, 2, w // 2, 2).max(axis=(3, 5))

    def conv_bn_relu(feat, wgt, b, g, beta):
        y = jax.lax.conv_general_dilated(
            feat.astype(jnp.bfloat16), wgt.astype(jnp.bfloat16),
            window_strides=(1, 1), padding=((1, 1), (1, 1)),
            dimension_numbers=("NCHW", "OIHW", "NCHW"),
            preferred_element_type=jnp.float32,
        ) + b[None, :, None, None]
        mean = jnp.mean(y, axis=(0, 2, 3), keepdims=True)
        var = jnp.mean((y - mean) ** 2, axis=(0, 2, 3), keepdims=True)
        yn = (y - mean) * jax.lax.rsqrt(var + BN_EPS) * g[None, :, None, None] \
            + beta[None, :, None, None]
        return jnp.maximum(yn, 0.0)

    h1 = conv_bn_relu(pooled, params["w1"], params["b1"], params["g1"], params["bt1"])
    return conv_bn_relu(h1, params["w2"], params["b2"], params["g2"], params["bt2"])


# ---------------------------------------------------------------------------
if __name__ == "__main__":
    in_ch, out_ch = 4, 8
    mid_ch = out_ch
    N, H, W = 2, 16, 16

    key = jax.random.PRNGKey(0)
    ks = jax.random.split(key, 9)
    params = {
        "w1": 0.1 * jax.random.normal(ks[0], (mid_ch, in_ch, 3, 3), jnp.float32),
        "b1": 0.1 * jax.random.normal(ks[1], (mid_ch,), jnp.float32),
        "g1": 1.0 + 0.1 * jax.random.normal(ks[2], (mid_ch,), jnp.float32),
        "bt1": 0.1 * jax.random.normal(ks[3], (mid_ch,), jnp.float32),
        "w2": 0.1 * jax.random.normal(ks[4], (out_ch, mid_ch, 3, 3), jnp.float32),
        "b2": 0.1 * jax.random.normal(ks[5], (out_ch,), jnp.float32),
        "g2": 1.0 + 0.1 * jax.random.normal(ks[6], (out_ch,), jnp.float32),
        "bt2": 0.1 * jax.random.normal(ks[7], (out_ch,), jnp.float32),
    }
    x = jax.random.normal(ks[8], (N, in_ch, H, W), jnp.float32)

    out = jax.block_until_ready(down_forward(x, params))
    ref = jax.block_until_ready(reference_down(x, params))

    assert out.shape == (N, out_ch, H // 2, W // 2), out.shape
    assert jnp.allclose(out, ref, atol=1e-2, rtol=1e-2), \
        float(jnp.max(jnp.abs(out - ref)))
    print("KERNEL_OK")
</pallas_src>

<mosaic_0001>
module attributes {stable_mosaic.version = 11 : i64} {
  func.func @pool_conv_stats_kernel(%arg0: i32, %arg1: memref<8x2x8x2x4xf32, #tpu.memory_space<vmem>>, %arg2: memref<9x4x8xbf16, #tpu.memory_space<vmem>>, %arg3: memref<1x8xf32, #tpu.memory_space<vmem>>, %arg4: memref<128x8xf32, #tpu.memory_space<vmem>>, %arg5: memref<1x1x8xf32, #tpu.memory_space<vmem>>, %arg6: memref<1x1x8xf32, #tpu.memory_space<vmem>>, %arg7: memref<176x4xbf16, #tpu.memory_space<vmem>>) attributes {dimension_semantics = [#tpu.dimension_semantics<parallel>], iteration_bounds = array<i64: 2>, scalar_prefetch = 0 : i64, scratch_operands = 1 : i64, tpu.core_type = #tpu.core_type<tc>, window_params = [{transform_indices = @transform_0, window_bounds = array<i64: 8, 2, 8, 2, 4>}, {pipeline_mode = #tpu.pipeline_mode<synchronous>, transform_indices = @transform_1, window_bounds = array<i64: 9, 4, 8>}, {pipeline_mode = #tpu.pipeline_mode<synchronous>, transform_indices = @transform_2, window_bounds = array<i64: 1, 8>}, {transform_indices = @transform_3, window_bounds = array<i64: 128, 8>}, {transform_indices = @transform_4, window_bounds = array<i64: 1, 1, 8>}, {transform_indices = @transform_5, window_bounds = array<i64: 1, 1, 8>}]} {
    %c0 = arith.constant 0 : index
    %c0_0 = arith.constant 0 : index
    %c0_1 = arith.constant 0 : index
    %c0_2 = arith.constant 0 : index
    %c0_3 = arith.constant 0 : index
    %0 = vector.load %arg1[%c0, %c0_0, %c0_1, %c0_2, %c0_3] : memref<8x2x8x2x4xf32, #tpu.memory_space<vmem>>, vector<8x2x8x2x4xf32>
    %cst = arith.constant dense<0xFF800000> : vector<8x2x8x4xf32>
    %1 = vector.multi_reduction <maximumf>, %0, %cst [3] : vector<8x2x8x2x4xf32> to vector<8x2x8x4xf32>
    %cst_4 = arith.constant dense<0xFF800000> : vector<8x8x4xf32>
    %2 = vector.multi_reduction <maximumf>, %1, %cst_4 [1] : vector<8x2x8x4xf32> to vector<8x8x4xf32>
    %3 = arith.truncf %2 : vector<8x8x4xf32> to vector<8x8x4xbf16>
    %cst_5 = arith.constant 0.000000e+00 : bf16
    %4 = vector.broadcast %cst_5 : bf16 to vector<176x4xbf16>
    %c0_6 = arith.constant 0 : index
    %c0_7 = arith.constant 0 : index
    %5 = vector.load %arg7[%c0_6, %c0_7] : memref<176x4xbf16, #tpu.memory_space<vmem>>, vector<176x4xbf16>
    tpu.vector_store %arg7[%c0_6, %c0_7], %4 {strides = array<i32>} : memref<176x4xbf16, #tpu.memory_space<vmem>>, vector<176x4xbf16>,
    %6 = vector.extract_strided_slice %3 {offsets = [0, 0, 0], sizes = [1, 8, 4], strides = [1, 1, 1]} : vector<8x8x4xbf16> to vector<1x8x4xbf16>
    %7 = vector.shape_cast %6 : vector<1x8x4xbf16> to vector<8x4xbf16>
    %c17 = arith.constant 17 : index
    %c0_8 = arith.constant 0 : index
    %8 = vector.load %arg7[%c17, %c0_8] : memref<176x4xbf16, #tpu.memory_space<vmem>>, vector<8x4xbf16>
    tpu.vector_store %arg7[%c17, %c0_8], %7 {strides = array<i32>} : memref<176x4xbf16, #tpu.memory_space<vmem>>, vector<8x4xbf16>,
    %9 = vector.extract_strided_slice %3 {offsets = [1, 0, 0], sizes = [1, 8, 4], strides = [1, 1, 1]} : vector<8x8x4xbf16> to vector<1x8x4xbf16>
    %10 = vector.shape_cast %9 : vector<1x8x4xbf16> to vector<8x4xbf16>
    %c33 = arith.constant 33 : index
    %c0_9 = arith.constant 0 : index
    %11 = vector.load %arg7[%c33, %c0_9] : memref<176x4xbf16, #tpu.memory_space<vmem>>, vector<8x4xbf16>
    tpu.vector_store %arg7[%c33, %c0_9], %10 {strides = array<i32>} : memref<176x4xbf16, #tpu.memory_space<vmem>>, vector<8x4xbf16>,
    %12 = vector.extract_strided_slice %3 {offsets = [2, 0, 0], sizes = [1, 8, 4], strides = [1, 1, 1]} : vector<8x8x4xbf16> to vector<1x8x4xbf16>
    %13 = vector.shape_cast %12 : vector<1x8x4xbf16> to vector<8x4xbf16>
    %c49 = arith.constant 49 : index
    %c0_10 = arith.constant 0 : index
    %14 = vector.load %arg7[%c49, %c0_10] : memref<176x4xbf16, #tpu.memory_space<vmem>>, vector<8x4xbf16>
    tpu.vector_store %arg7[%c49, %c0_10], %13 {strides = array<i32>} : memref<176x4xbf16, #tpu.memory_space<vmem>>, vector<8x4xbf16>,
    %15 = vector.extract_strided_slice %3 {offsets = [3, 0, 0], sizes = [1, 8, 4], strides = [1, 1, 1]} : vector<8x8x4xbf16> to vector<1x8x4xbf16>
    %16 = vector.shape_cast %15 : vector<1x8x4xbf16> to vector<8x4xbf16>
    %c65 = arith.constant 65 : index
    %c0_11 = arith.constant 0 : index
    %17 = vector.load %arg7[%c65, %c0_11] : memref<176x4xbf16, #tpu.memory_space<vmem>>, vector<8x4xbf16>
    tpu.vector_store %arg7[%c65, %c0_11], %16 {strides = array<i32>} : memref<176x4xbf16, #tpu.memory_space<vmem>>, vector<8x4xbf16>,
    %18 = vector.extract_strided_slice %3 {offsets = [4, 0, 0], sizes = [1, 8, 4], strides = [1, 1, 1]} : vector<8x8x4xbf16> to vector<1x8x4xbf16>
    %19 = vector.shape_cast %18 : vector<1x8x4xbf16> to vector<8x4xbf16>
    %c81 = arith.constant 81 : index
    %c0_12 = arith.constant 0 : index
    %20 = vector.load %arg7[%c81, %c0_12] : memref<176x4xbf16, #tpu.memory_space<vmem>>, vector<8x4xbf16>
    tpu.vector_store %arg7[%c81, %c0_12], %19 {strides = array<i32>} : memref<176x4xbf16, #tpu.memory_space<vmem>>, vector<8x4xbf16>,
    %21 = vector.extract_strided_slice %3 {offsets = [5, 0, 0], sizes = [1, 8, 4], strides = [1, 1, 1]} : vector<8x8x4xbf16> to vector<1x8x4xbf16>
    %22 = vector.shape_cast %21 : vector<1x8x4xbf16> to vector<8x4xbf16>
    %c97 = arith.constant 97 : index
    %c0_13 = arith.constant 0 : index
    %23 = vector.load %arg7[%c97, %c0_13] : memref<176x4xbf16, #tpu.memory_space<vmem>>, vector<8x4xbf16>
    tpu.vector_store %arg7[%c97, %c0_13], %22 {strides = array<i32>} : memref<176x4xbf16, #tpu.memory_space<vmem>>, vector<8x4xbf16>,
    %24 = vector.extract_strided_slice %3 {offsets = [6, 0, 0], sizes = [1, 8, 4], strides = [1, 1, 1]} : vector<8x8x4xbf16> to vector<1x8x4xbf16>
    %25 = vector.shape_cast %24 : vector<1x8x4xbf16> to vector<8x4xbf16>
    %c113 = arith.constant 113 : index
    %c0_14 = arith.constant 0 : index
    %26 = vector.load %arg7[%c113, %c0_14] : memref<176x4xbf16, #tpu.memory_space<vmem>>, vector<8x4xbf16>
    tpu.vector_store %arg7[%c113, %c0_14], %25 {strides = array<i32>} : memref<176x4xbf16, #tpu.memory_space<vmem>>, vector<8x4xbf16>,
    %27 = vector.extract_strided_slice %3 {offsets = [7, 0, 0], sizes = [1, 8, 4], strides = [1, 1, 1]} : vector<8x8x4xbf16> to vector<1x8x4xbf16>
    %28 = vector.shape_cast %27 : vector<1x8x4xbf16> to vector<8x4xbf16>
    %c129 = arith.constant 129 : index
    %c0_15 = arith.constant 0 : index
    %29 = vector.load %arg7[%c129, %c0_15] : memref<176x4xbf16, #tpu.memory_space<vmem>>, vector<8x4xbf16>
    tpu.vector_store %arg7[%c129, %c0_15], %28 {strides = array<i32>} : memref<176x4xbf16, #tpu.memory_space<vmem>>, vector<8x4xbf16>,
    %cst_16 = arith.constant 0.000000e+00 : f32
    %30 = vector.broadcast %cst_16 : f32 to vector<128x8xf32>
    %c0_17 = arith.constant 0 : index
    %c0_18 = arith.constant 0 : index
    %31 = vector.load %arg7[%c0_17, %c0_18] : memref<176x4xbf16, #tpu.memory_space<vmem>>, vector<128x4xbf16>
    %c0_19 = arith.constant 0 : index
    %c0_20 = arith.constant 0 : index
    %c0_21 = arith.constant 0 : index
    %32 = vector.load %arg2[%c0_19, %c0_20, %c0_21] : memref<9x4x8xbf16, #tpu.memory_space<vmem>>, vector<1x4x8xbf16>
    %33 = vector.shape_cast %32 : vector<1x4x8xbf16> to vector<4x8xbf16>
    %cst_22 = arith.constant dense<0.000000e+00> : vector<128x8xf32>
    %34 = tpu.matmul %31, %33, %cst_22 {dimension_numbers = #tpu.dot_dimension_numbers<[1], [0], [0], [1], [0, 0, 1, 1], [], []>} : vector<128x4xbf16>, vector<4x8xbf16>, vector<128x8xf32> -> vector<128x8xf32>
    %35 = arith.addf %30, %34 : vector<128x8xf32>
    %c1 = arith.constant 1 : index
    %c0_23 = arith.constant 0 : index
    %36 = vector.load %arg7[%c1, %c0_23] : memref<176x4xbf16, #tpu.memory_space<vmem>>, vector<128x4xbf16>
    %c1_24 = arith.constant 1 : index
    %c0_25 = arith.constant 0 : index
    %c0_26 = arith.constant 0 : index
    %37 = vector.load %arg2[%c1_24, %c0_25, %c0_26] : memref<9x4x8xbf16, #tpu.memory_space<vmem>>, vector<1x4x8xbf16>
    %38 = vector.shape_cast %37 : vector<1x4x8xbf16> to vector<4x8xbf16>
    %cst_27 = arith.constant dense<0.000000e+00> : vector<128x8xf32>
    %39 = tpu.matmul %36, %38, %cst_27 {dimension_numbers = #tpu.dot_dimension_numbers<[1], [0], [0], [1], [0, 0, 1, 1], [], []>} : vector<128x4xbf16>, vector<4x8xbf16>, vector<128x8xf32> -> vector<128x8xf32>
    %40 = arith.addf %35, %39 : vector<128x8xf32>
    %c2 = arith.constant 2 : index
    %c0_28 = arith.constant 0 : index
    %41 = vector.load %arg7[%c2, %c0_28] : memref<176x4xbf16, #tpu.memory_space<vmem>>, vector<128x4xbf16>
    %c2_29 = arith.constant 2 : index
    %c0_30 = arith.constant 0 : index
    %c0_31 = arith.constant 0 : index
    %42 = vector.load %arg2[%c2_29, %c0_30, %c0_31] : memref<9x4x8xbf16, #tpu.memory_space<vmem>>, vector<1x4x8xbf16>
    %43 = vector.shape_cast %42 : vector<1x4x8xbf16> to vector<4x8xbf16>
    %cst_32 = arith.constant dense<0.000000e+00> : vector<128x8xf32>
    %44 = tpu.matmul %41, %43, %cst_32 {dimension_numbers = #tpu.dot_dimension_numbers<[1], [0], [0], [1], [0, 0, 1, 1], [], []>} : vector<128x4xbf16>, vector<4x8xbf16>, vector<128x8xf32> -> vector<128x8xf32>
    %45 = arith.addf %40, %44 : vector<128x8xf32>
    %c16 = arith.constant 16 : index
    %c0_33 = arith.constant 0 : index
    %46 = vector.load %arg7[%c16, %c0_33] : memref<176x4xbf16, #tpu.memory_space<vmem>>, vector<128x4xbf16>
    %c3 = arith.constant 3 : index
    %c0_34 = arith.constant 0 : index
    %c0_35 = arith.constant 0 : index
    %47 = vector.load %arg2[%c3, %c0_34, %c0_35] : memref<9x4x8xbf16, #tpu.memory_space<vmem>>, vector<1x4x8xbf16>
    %48 = vector.shape_cast %47 : vector<1x4x8xbf16> to vector<4x8xbf16>
    %cst_36 = arith.constant dense<0.000000e+00> : vector<128x8xf32>
    %49 = tpu.matmul %46, %48, %cst_36 {dimension_numbers = #tpu.dot_dimension_numbers<[1], [0], [0], [1], [0, 0, 1, 1], [], []>} : vector<128x4xbf16>, vector<4x8xbf16>, vector<128x8xf32> -> vector<128x8xf32>
    %50 = arith.addf %45, %49 : vector<128x8xf32>
    %c17_37 = arith.constant 17 : index
    %c0_38 = arith.constant 0 : index
    %51 = vector.load %arg7[%c17_37, %c0_38] : memref<176x4xbf16, #tpu.memory_space<vmem>>, vector<128x4xbf16>
    %c4 = arith.constant 4 : index
    %c0_39 = arith.constant 0 : index
    %c0_40 = arith.constant 0 : index
    %52 = vector.load %arg2[%c4, %c0_39, %c0_40] : memref<9x4x8xbf16, #tpu.memory_space<vmem>>, vector<1x4x8xbf16>
    %53 = vector.shape_cast %52 : vector<1x4x8xbf16> to vector<4x8xbf16>
    %cst_41 = arith.constant dense<0.000000e+00> : vector<128x8xf32>
    %54 = tpu.matmul %51, %53, %cst_41 {dimension_numbers = #tpu.dot_dimension_numbers<[1], [0], [0], [1], [0, 0, 1, 1], [], []>} : vector<128x4xbf16>, vector<4x8xbf16>, vector<128x8xf32> -> vector<128x8xf32>
    %55 = arith.addf %50, %54 : vector<128x8xf32>
    %c18 = arith.constant 18 : index
    %c0_42 = arith.constant 0 : index
    %56 = vector.load %arg7[%c18, %c0_42] : memref<176x4xbf16, #tpu.memory_space<vmem>>, vector<128x4xbf16>
    %c5 = arith.constant 5 : index
    %c0_43 = arith.constant 0 : index
    %c0_44 = arith.constant 0 : index
    %57 = vector.load %arg2[%c5, %c0_43, %c0_44] : memref<9x4x8xbf16, #tpu.memory_space<vmem>>, vector<1x4x8xbf16>
    %58 = vector.shape_cast %57 : vector<1x4x8xbf16> to vector<4x8xbf16>
    %cst_45 = arith.constant dense<0.000000e+00> : vector<128x8xf32>
    %59 = tpu.matmul %56, %58, %cst_45 {dimension_numbers = #tpu.dot_dimension_numbers<[1], [0], [0], [1], [0, 0, 1, 1], [], []>} : vector<128x4xbf16>, vector<4x8xbf16>, vector<128x8xf32> -> vector<128x8xf32>
    %60 = arith.addf %55, %59 : vector<128x8xf32>
    %c32 = arith.constant 32 : index
    %c0_46 = arith.constant 0 : index
    %61 = vector.load %arg7[%c32, %c0_46] : memref<176x4xbf16, #tpu.memory_space<vmem>>, vector<128x4xbf16>
    %c6 = arith.constant 6 : index
    %c0_47 = arith.constant 0 : index
    %c0_48 = arith.constant 0 : index
    %62 = vector.load %arg2[%c6, %c0_47, %c0_48] : memref<9x4x8xbf16, #tpu.memory_space<vmem>>, vector<1x4x8xbf16>
    %63 = vector.shape_cast %62 : vector<1x4x8xbf16> to vector<4x8xbf16>
    %cst_49 = arith.constant dense<0.000000e+00> : vector<128x8xf32>
    %64 = tpu.matmul %61, %63, %cst_49 {dimension_numbers = #tpu.dot_dimension_numbers<[1], [0], [0], [1], [0, 0, 1, 1], [], []>} : vector<128x4xbf16>, vector<4x8xbf16>, vector<128x8xf32> -> vector<128x8xf32>
    %65 = arith.addf %60, %64 : vector<128x8xf32>
    %c33_50 = arith.constant 33 : index
    %c0_51 = arith.constant 0 : index
    %66 = vector.load %arg7[%c33_50, %c0_51] : memref<176x4xbf16, #tpu.memory_space<vmem>>, vector<128x4xbf16>
    %c7 = arith.constant 7 : index
    %c0_52 = arith.constant 0 : index
    %c0_53 = arith.constant 0 : index
    %67 = vector.load %arg2[%c7, %c0_52, %c0_53] : memref<9x4x8xbf16, #tpu.memory_space<vmem>>, vector<1x4x8xbf16>
    %68 = vector.shape_cast %67 : vector<1x4x8xbf16> to vector<4x8xbf16>
    %cst_54 = arith.constant dense<0.000000e+00> : vector<128x8xf32>
    %69 = tpu.matmul %66, %68, %cst_54 {dimension_numbers = #tpu.dot_dimension_numbers<[1], [0], [0], [1], [0, 0, 1, 1], [], []>} : vector<128x4xbf16>, vector<4x8xbf16>, vector<128x8xf32> -> vector<128x8xf32>
    %70 = arith.addf %65, %69 : vector<128x8xf32>
    %c34 = arith.constant 34 : index
    %c0_55 = arith.constant 0 : index
    %71 = vector.load %arg7[%c34, %c0_55] : memref<176x4xbf16, #tpu.memory_space<vmem>>, vector<128x4xbf16>
    %c8 = arith.constant 8 : index
    %c0_56 = arith.constant 0 : index
    %c0_57 = arith.constant 0 : index
    %72 = vector.load %arg2[%c8, %c0_56, %c0_57] : memref<9x4x8xbf16, #tpu.memory_space<vmem>>, vector<1x4x8xbf16>
    %73 = vector.shape_cast %72 : vector<1x4x8xbf16> to vector<4x8xbf16>
    %cst_58 = arith.constant dense<0.000000e+00> : vector<128x8xf32>
    %74 = tpu.matmul %71, %73, %cst_58 {dimension_numbers = #tpu.dot_dimension_numbers<[1], [0], [0], [1], [0, 0, 1, 1], [], []>} : vector<128x4xbf16>, vector<4x8xbf16>, vector<128x8xf32> -> vector<128x8xf32>
    %75 = arith.addf %70, %74 : vector<128x8xf32>
    %c0_59 = arith.constant 0 : index
    %c0_60 = arith.constant 0 : index
    %76 = vector.load %arg3[%c0_59, %c0_60] : memref<1x8xf32, #tpu.memory_space<vmem>>, vector<1x8xf32>
    %77 = vector.broadcast %76 : vector<1x8xf32> to vector<128x8xf32>
    %78 = arith.addf %75, %77 : vector<128x8xf32>
    %c0_61 = arith.constant 0 : index
    %c0_62 = arith.constant 0 : index
    %79 = vector.load %arg4[%c0_61, %c0_62] : memref<128x8xf32, #tpu.memory_space<vmem>>, vector<128x8xf32>
    tpu.vector_store %arg4[%c0_61, %c0_62], %78 {strides = array<i32>} : memref<128x8xf32, #tpu.memory_space<vmem>>, vector<128x8xf32>,
    %80 = tpu.iota {dimensions = array<i32: 0>} : vector<128x1xi32>
    %c16_i32 = arith.constant 16 : i32
    %c0_i32 = arith.constant 0 : i32
    %81 = arith.cmpi eq, %c16_i32, %c0_i32 : i32
    %c1_i32 = arith.constant 1 : i32
    %82 = arith.select %81, %c1_i32, %c16_i32 : i32
    %83 = vector.broadcast %82 : i32 to vector<128x1xi32>
    %84 = arith.remsi %80, %83 : vector<128x1xi32>
    %c0_i32_63 = arith.constant 0 : i32
    %85 = vector.broadcast %c0_i32_63 : i32 to vector<128x1xi32>
    %86 = arith.cmpi ne, %84, %85 : vector<128x1xi32>
    %c0_i32_64 = arith.constant 0 : i32
    %87 = vector.broadcast %c0_i32_64 : i32 to vector<128x1xi32>
    %88 = arith.cmpi slt, %84, %87 : vector<128x1xi32>
    %c0_i32_65 = arith.constant 0 : i32
    %89 = arith.cmpi slt, %82, %c0_i32_65 : i32
    %90 = vector.broadcast %89 : i1 to vector<128x1xi1>
    %91 = vector.broadcast %90 : vector<128x1xi1> to vector<128x1xi1>
    %92 = arith.xori %88, %91 : vector<128x1xi1>
    %93 = arith.andi %92, %86 : vector<128x1xi1>
    %94 = vector.broadcast %82 : i32 to vector<128x1xi32>
    %95 = arith.addi %84, %94 : vector<128x1xi32>
    %96 = arith.select %93, %95, %84 : vector<128x1xi1>, vector<128x1xi32>
    %c8_i32 = arith.constant 8 : i32
    %97 = vector.broadcast %c8_i32 : i32 to vector<128x1xi32>
    %98 = arith.cmpi slt, %96, %97 : vector<128x1xi32>
    %cst_66 = arith.constant 0.000000e+00 : f32
    %99 = vector.shape_cast %98 : vector<128x1xi1> to vector<128x1xi1>
    %100 = vector.broadcast %99 : vector<128x1xi1> to vector<128x8xi1>
    %101 = vector.broadcast %cst_66 : f32 to vector<128x8xf32>
    %102 = arith.select %100, %78, %101 : vector<128x8xi1>, vector<128x8xf32>
    %cst_67 = arith.constant dense<0.000000e+00> : vector<8xf32>
    %103 = vector.multi_reduction <add>, %102, %cst_67 [0] : vector<128x8xf32> to vector<8xf32>
    %104 = vector.shape_cast %103 : vector<8xf32> to vector<1x8xf32>
    %c0_68 = arith.constant 0 : index
    %c0_69 = arith.constant 0 : index
    %c0_70 = arith.constant 0 : index
    %105 = vector.load %arg5[%c0_68, %c0_69, %c0_70] : memref<1x1x8xf32, #tpu.memory_space<vmem>>, vector<1x1x8xf32>
    %106 = vector.shape_cast %105 : vector<1x1x8xf32> to vector<1x8xf32>
    %107 = vector.shape_cast %104 : vector<1x8xf32> to vector<1x1x8xf32>
    tpu.vector_store %arg5[%c0_68, %c0_69, %c0_70], %107 {strides = array<i32>} : memref<1x1x8xf32, #tpu.memory_space<vmem>>, vector<1x1x8xf32>,
    %108 = arith.mulf %102, %102 : vector<128x8xf32>
    %cst_71 = arith.constant dense<0.000000e+00> : vector<8xf32>
    %109 = vector.multi_reduction <add>, %108, %cst_71 [0] : vector<128x8xf32> to vector<8xf32>
    %110 = vector.shape_cast %109 : vector<8xf32> to vector<1x8xf32>
    %c0_72 = arith.constant 0 : index
    %c0_73 = arith.constant 0 : index
    %c0_74 = arith.constant 0 : index
    %111 = vector.load %arg6[%c0_72, %c0_73, %c0_74] : memref<1x1x8xf32, #tpu.memory_space<vmem>>, vector<1x1x8xf32>
    %112 = vector.shape_cast %111 : vector<1x1x8xf32> to vector<1x8xf32>
    %113 = vector.shape_cast %110 : vector<1x8xf32> to vector<1x1x8xf32>
    tpu.vector_store %arg6[%c0_72, %c0_73, %c0_74], %113 {strides = array<i32>} : memref<1x1x8xf32, #tpu.memory_space<vmem>>, vector<1x1x8xf32>,
    return
  }
  func.func @transform_0(%arg0: i32) -> (i32, i32, i32, i32, i32) {
    %c0_i32 = arith.constant 0 : i32
    %c0_i32_0 = arith.constant 0 : i32
    %c0_i32_1 = arith.constant 0 : i32
    %c0_i32_2 = arith.constant 0 : i32
    %c0_i32_3 = arith.constant 0 : i32
    return %arg0, %c0_i32, %c0_i32_0, %c0_i32_1, %c0_i32_2 : i32, i32, i32, i32, i32
  }
  func.func @transform_1(%arg0: i32) -> (i32, i32, i32) {
    %c0_i32 = arith.constant 0 : i32
    %c0_i32_0 = arith.constant 0 : i32
    %c0_i32_1 = arith.constant 0 : i32
    %c0_i32_2 = arith.constant 0 : i32
    return %c0_i32, %c0_i32_0, %c0_i32_1 : i32, i32, i32
  }
  func.func @transform_2(%arg0: i32) -> (i32, i32) {
    %c0_i32 = arith.constant 0 : i32
    %c0_i32_0 = arith.constant 0 : i32
    %c0_i32_1 = arith.constant 0 : i32
    return %c0_i32, %c0_i32_0 : i32, i32
  }
  func.func @transform_3(%arg0: i32) -> (i32, i32) {
    %c0_i32 = arith.constant 0 : i32
    %c0_i32_0 = arith.constant 0 : i32
    return %arg0, %c0_i32 : i32, i32
  }
  func.func @transform_4(%arg0: i32) -> (i32, i32, i32) {
    %c0_i32 = arith.constant 0 : i32
    %c0_i32_0 = arith.constant 0 : i32
    %c0_i32_1 = arith.constant 0 : i32
    return %arg0, %c0_i32, %c0_i32_0 : i32, i32, i32
  }
  func.func @transform_5(%arg0: i32) -> (i32, i32, i32) {
    %c0_i32 = arith.constant 0 : i32
    %c0_i32_0 = arith.constant 0 : i32
    %c0_i32_1 = arith.constant 0 : i32
    return %arg0, %c0_i32, %c0_i32_0 : i32, i32, i32
  }
}

module attributes {stable_mosaic.version = 11 : i64} {
  func.func @bn_relu_kernel(%arg0: i32, %arg1: memref<128x8xf32, #tpu.memory_space<vmem>>, %arg2: memref<1x8xf32, #tpu.memory_space<vmem>>, %arg3: memref<1x8xf32, #tpu.memory_space<vmem>>, %arg4: memref<128x8xf32, #tpu.memory_space<vmem>>) attributes {dimension_semantics = [#tpu.dimension_semantics<parallel>], iteration_bounds = array<i64: 2>, scalar_prefetch = 0 : i64, scratch_operands = 0 : i64, tpu.core_type = #tpu.core_type<tc>, window_params = [{transform_indices = @transform_0, window_bounds = array<i64: 128, 8>}, {pipeline_mode = #tpu.pipeline_mode<synchronous>, transform_indices = @transform_1, window_bounds = array<i64: 1, 8>}, {pipeline_mode = #tpu.pipeline_mode<synchronous>, transform_indices = @transform_2, window_bounds = array<i64: 1, 8>}, {transform_indices = @transform_3, window_bounds = array<i64: 128, 8>}]} {
    %c0 = arith.constant 0 : index
    %c0_0 = arith.constant 0 : index
    %0 = vector.load %arg1[%c0, %c0_0] : memref<128x8xf32, #tpu.memory_space<vmem>>, vector<128x8xf32>
    %c0_1 = arith.constant 0 : index
    %c0_2 = arith.constant 0 : index
    %1 = vector.load %arg2[%c0_1, %c0_2] : memref<1x8xf32, #tpu.memory_space<vmem>>, vector<1x8xf32>
    %2 = vector.broadcast %1 : vector<1x8xf32> to vector<128x8xf32>
    %3 = arith.mulf %0, %2 : vector<128x8xf32>
    %c0_3 = arith.constant 0 : index
    %c0_4 = arith.constant 0 : index
    %4 = vector.load %arg3[%c0_3, %c0_4] : memref<1x8xf32, #tpu.memory_space<vmem>>, vector<1x8xf32>
    %5 = vector.broadcast %4 : vector<1x8xf32> to vector<128x8xf32>
    %6 = arith.addf %3, %5 : vector<128x8xf32>
    %cst = arith.constant 0.000000e+00 : f32
    %7 = vector.broadcast %cst : f32 to vector<128x8xf32>
    %8 = arith.maximumf %6, %7 : vector<128x8xf32>
    %c0_5 = arith.constant 0 : index
    %c0_6 = arith.constant 0 : index
    %9 = vector.load %arg4[%c0_5, %c0_6] : memref<128x8xf32, #tpu.memory_space<vmem>>, vector<128x8xf32>
    tpu.vector_store %arg4[%c0_5, %c0_6], %8 {strides = array<i32>} : memref<128x8xf32, #tpu.memory_space<vmem>>, vector<128x8xf32>,
    return
  }
  func.func @transform_0(%arg0: i32) -> (i32, i32) {
    %c0_i32 = arith.constant 0 : i32
    %c0_i32_0 = arith.constant 0 : i32
    return %arg0, %c0_i32 : i32, i32
  }
  func.func @transform_1(%arg0: i32) -> (i32, i32) {
    %c0_i32 = arith.constant 0 : i32
    %c0_i32_0 = arith.constant 0 : i32
    %c0_i32_1 = arith.constant 0 : i32
    return %c0_i32, %c0_i32_0 : i32, i32
  }
  func.func @transform_2(%arg0: i32) -> (i32, i32) {
    %c0_i32 = arith.constant 0 : i32
    %c0_i32_0 = arith.constant 0 : i32
    %c0_i32_1 = arith.constant 0 : i32
    return %c0_i32, %c0_i32_0 : i32, i32
  }
  func.func @transform_3(%arg0: i32) -> (i32, i32) {
    %c0_i32 = arith.constant 0 : i32
    %c0_i32_0 = arith.constant 0 : i32
    return %arg0, %c0_i32 : i32, i32
  }
}

module attributes {stable_mosaic.version = 11 : i64} {
  func.func @bn_relu_conv_stats_kernel(%arg0: i32, %arg1: memref<128x8xf32, #tpu.memory_space<vmem>>, %arg2: memref<1x8xf32, #tpu.memory_space<vmem>>, %arg3: memref<1x8xf32, #tpu.memory_space<vmem>>, %arg4: memref<9x8x8xbf16, #tpu.memory_space<vmem>>, %arg5: memref<1x8xf32, #tpu.memory_space<vmem>>, %arg6: memref<128x8xf32, #tpu.memory_space<vmem>>, %arg7: memref<1x1x8xf32, #tpu.memory_space<vmem>>, %arg8: memref<1x1x8xf32, #tpu.memory_space<vmem>>, %arg9: memref<176x8xbf16, #tpu.memory_space<vmem>>) attributes {dimension_semantics = [#tpu.dimension_semantics<parallel>], iteration_bounds = array<i64: 2>, scalar_prefetch = 0 : i64, scratch_operands = 1 : i64, tpu.core_type = #tpu.core_type<tc>, window_params = [{transform_indices = @transform_0, window_bounds = array<i64: 128, 8>}, {pipeline_mode = #tpu.pipeline_mode<synchronous>, transform_indices = @transform_1, window_bounds = array<i64: 1, 8>}, {pipeline_mode = #tpu.pipeline_mode<synchronous>, transform_indices = @transform_2, window_bounds = array<i64: 1, 8>}, {pipeline_mode = #tpu.pipeline_mode<synchronous>, transform_indices = @transform_3, window_bounds = array<i64: 9, 8, 8>}, {pipeline_mode = #tpu.pipeline_mode<synchronous>, transform_indices = @transform_4, window_bounds = array<i64: 1, 8>}, {transform_indices = @transform_5, window_bounds = array<i64: 128, 8>}, {transform_indices = @transform_6, window_bounds = array<i64: 1, 1, 8>}, {transform_indices = @transform_7, window_bounds = array<i64: 1, 1, 8>}]} {
    %0 = tpu.iota {dimensions = array<i32: 0>} : vector<128x1xi32>
    %c16_i32 = arith.constant 16 : i32
    %c0_i32 = arith.constant 0 : i32
    %1 = arith.cmpi eq, %c16_i32, %c0_i32 : i32
    %c1_i32 = arith.constant 1 : i32
    %2 = arith.select %1, %c1_i32, %c16_i32 : i32
    %3 = vector.broadcast %2 : i32 to vector<128x1xi32>
    %4 = arith.remsi %0, %3 : vector<128x1xi32>
    %c0_i32_0 = arith.constant 0 : i32
    %5 = vector.broadcast %c0_i32_0 : i32 to vector<128x1xi32>
    %6 = arith.cmpi ne, %4, %5 : vector<128x1xi32>
    %c0_i32_1 = arith.constant 0 : i32
    %7 = vector.broadcast %c0_i32_1 : i32 to vector<128x1xi32>
    %8 = arith.cmpi slt, %4, %7 : vector<128x1xi32>
    %c0_i32_2 = arith.constant 0 : i32
    %9 = arith.cmpi slt, %2, %c0_i32_2 : i32
    %10 = vector.broadcast %9 : i1 to vector<128x1xi1>
    %11 = vector.broadcast %10 : vector<128x1xi1> to vector<128x1xi1>
    %12 = arith.xori %8, %11 : vector<128x1xi1>
    %13 = arith.andi %12, %6 : vector<128x1xi1>
    %14 = vector.broadcast %2 : i32 to vector<128x1xi32>
    %15 = arith.addi %4, %14 : vector<128x1xi32>
    %16 = arith.select %13, %15, %4 : vector<128x1xi1>, vector<128x1xi32>
    %c8_i32 = arith.constant 8 : i32
    %17 = vector.broadcast %c8_i32 : i32 to vector<128x1xi32>
    %18 = arith.cmpi slt, %16, %17 : vector<128x1xi32>
    %c0 = arith.constant 0 : index
    %c0_3 = arith.constant 0 : index
    %19 = vector.load %arg1[%c0, %c0_3] : memref<128x8xf32, #tpu.memory_space<vmem>>, vector<128x8xf32>
    %c0_4 = arith.constant 0 : index
    %c0_5 = arith.constant 0 : index
    %20 = vector.load %arg2[%c0_4, %c0_5] : memref<1x8xf32, #tpu.memory_space<vmem>>, vector<1x8xf32>
    %21 = vector.broadcast %20 : vector<1x8xf32> to vector<128x8xf32>
    %22 = arith.mulf %19, %21 : vector<128x8xf32>
    %c0_6 = arith.constant 0 : index
    %c0_7 = arith.constant 0 : index
    %23 = vector.load %arg3[%c0_6, %c0_7] : memref<1x8xf32, #tpu.memory_space<vmem>>, vector<1x8xf32>
    %24 = vector.broadcast %23 : vector<1x8xf32> to vector<128x8xf32>
    %25 = arith.addf %22, %24 : vector<128x8xf32>
    %cst = arith.constant 0.000000e+00 : f32
    %26 = vector.broadcast %cst : f32 to vector<128x8xf32>
    %27 = arith.maximumf %25, %26 : vector<128x8xf32>
    %cst_8 = arith.constant 0.000000e+00 : f32
    %28 = vector.shape_cast %18 : vector<128x1xi1> to vector<128x1xi1>
    %29 = vector.broadcast %28 : vector<128x1xi1> to vector<128x8xi1>
    %30 = vector.broadcast %cst_8 : f32 to vector<128x8xf32>
    %31 = arith.select %29, %27, %30 : vector<128x8xi1>, vector<128x8xf32>
    %cst_9 = arith.constant 0.000000e+00 : bf16
    %32 = vector.broadcast %cst_9 : bf16 to vector<176x8xbf16>
    %c0_10 = arith.constant 0 : index
    %c0_11 = arith.constant 0 : index
    %33 = vector.load %arg9[%c0_10, %c0_11] : memref<176x8xbf16, #tpu.memory_space<vmem>>, vector<176x8xbf16>
    tpu.vector_store %arg9[%c0_10, %c0_11], %32 {strides = array<i32>} : memref<176x8xbf16, #tpu.memory_space<vmem>>, vector<176x8xbf16>,
    %34 = arith.truncf %31 : vector<128x8xf32> to vector<128x8xbf16>
    %c17 = arith.constant 17 : index
    %c0_12 = arith.constant 0 : index
    %35 = vector.load %arg9[%c17, %c0_12] : memref<176x8xbf16, #tpu.memory_space<vmem>>, vector<128x8xbf16>
    tpu.vector_store %arg9[%c17, %c0_12], %34 {strides = array<i32>} : memref<176x8xbf16, #tpu.memory_space<vmem>>, vector<128x8xbf16>,
    %cst_13 = arith.constant 0.000000e+00 : f32
    %36 = vector.broadcast %cst_13 : f32 to vector<128x8xf32>
    %c0_14 = arith.constant 0 : index
    %c0_15 = arith.constant 0 : index
    %37 = vector.load %arg9[%c0_14, %c0_15] : memref<176x8xbf16, #tpu.memory_space<vmem>>, vector<128x8xbf16>
    %c0_16 = arith.constant 0 : index
    %c0_17 = arith.constant 0 : index
    %c0_18 = arith.constant 0 : index
    %38 = vector.load %arg4[%c0_16, %c0_17, %c0_18] : memref<9x8x8xbf16, #tpu.memory_space<vmem>>, vector<1x8x8xbf16>
    %39 = vector.shape_cast %38 : vector<1x8x8xbf16> to vector<8x8xbf16>
    %cst_19 = arith.constant dense<0.000000e+00> : vector<128x8xf32>
    %40 = tpu.matmul %37, %39, %cst_19 {dimension_numbers = #tpu.dot_dimension_numbers<[1], [0], [0], [1], [0, 0, 1, 1], [], []>} : vector<128x8xbf16>, vector<8x8xbf16>, vector<128x8xf32> -> vector<128x8xf32>
    %41 = arith.addf %36, %40 : vector<128x8xf32>
    %c1 = arith.constant 1 : index
    %c0_20 = arith.constant 0 : index
    %42 = vector.load %arg9[%c1, %c0_20] : memref<176x8xbf16, #tpu.memory_space<vmem>>, vector<128x8xbf16>
    %c1_21 = arith.constant 1 : index
    %c0_22 = arith.constant 0 : index
    %c0_23 = arith.constant 0 : index
    %43 = vector.load %arg4[%c1_21, %c0_22, %c0_23] : memref<9x8x8xbf16, #tpu.memory_space<vmem>>, vector<1x8x8xbf16>
    %44 = vector.shape_cast %43 : vector<1x8x8xbf16> to vector<8x8xbf16>
    %cst_24 = arith.constant dense<0.000000e+00> : vector<128x8xf32>
    %45 = tpu.matmul %42, %44, %cst_24 {dimension_numbers = #tpu.dot_dimension_numbers<[1], [0], [0], [1], [0, 0, 1, 1], [], []>} : vector<128x8xbf16>, vector<8x8xbf16>, vector<128x8xf32> -> vector<128x8xf32>
    %46 = arith.addf %41, %45 : vector<128x8xf32>
    %c2 = arith.constant 2 : index
    %c0_25 = arith.constant 0 : index
    %47 = vector.load %arg9[%c2, %c0_25] : memref<176x8xbf16, #tpu.memory_space<vmem>>, vector<128x8xbf16>
    %c2_26 = arith.constant 2 : index
    %c0_27 = arith.constant 0 : index
    %c0_28 = arith.constant 0 : index
    %48 = vector.load %arg4[%c2_26, %c0_27, %c0_28] : memref<9x8x8xbf16, #tpu.memory_space<vmem>>, vector<1x8x8xbf16>
    %49 = vector.shape_cast %48 : vector<1x8x8xbf16> to vector<8x8xbf16>
    %cst_29 = arith.constant dense<0.000000e+00> : vector<128x8xf32>
    %50 = tpu.matmul %47, %49, %cst_29 {dimension_numbers = #tpu.dot_dimension_numbers<[1], [0], [0], [1], [0, 0, 1, 1], [], []>} : vector<128x8xbf16>, vector<8x8xbf16>, vector<128x8xf32> -> vector<128x8xf32>
    %51 = arith.addf %46, %50 : vector<128x8xf32>
    %c16 = arith.constant 16 : index
    %c0_30 = arith.constant 0 : index
    %52 = vector.load %arg9[%c16, %c0_30] : memref<176x8xbf16, #tpu.memory_space<vmem>>, vector<128x8xbf16>
    %c3 = arith.constant 3 : index
    %c0_31 = arith.constant 0 : index
    %c0_32 = arith.constant 0 : index
    %53 = vector.load %arg4[%c3, %c0_31, %c0_32] : memref<9x8x8xbf16, #tpu.memory_space<vmem>>, vector<1x8x8xbf16>
    %54 = vector.shape_cast %53 : vector<1x8x8xbf16> to vector<8x8xbf16>
    %cst_33 = arith.constant dense<0.000000e+00> : vector<128x8xf32>
    %55 = tpu.matmul %52, %54, %cst_33 {dimension_numbers = #tpu.dot_dimension_numbers<[1], [0], [0], [1], [0, 0, 1, 1], [], []>} : vector<128x8xbf16>, vector<8x8xbf16>, vector<128x8xf32> -> vector<128x8xf32>
    %56 = arith.addf %51, %55 : vector<128x8xf32>
    %c17_34 = arith.constant 17 : index
    %c0_35 = arith.constant 0 : index
    %57 = vector.load %arg9[%c17_34, %c0_35] : memref<176x8xbf16, #tpu.memory_space<vmem>>, vector<128x8xbf16>
    %c4 = arith.constant 4 : index
    %c0_36 = arith.constant 0 : index
    %c0_37 = arith.constant 0 : index
    %58 = vector.load %arg4[%c4, %c0_36, %c0_37] : memref<9x8x8xbf16, #tpu.memory_space<vmem>>, vector<1x8x8xbf16>
    %59 = vector.shape_cast %58 : vector<1x8x8xbf16> to vector<8x8xbf16>
    %cst_38 = arith.constant dense<0.000000e+00> : vector<128x8xf32>
    %60 = tpu.matmul %57, %59, %cst_38 {dimension_numbers = #tpu.dot_dimension_numbers<[1], [0], [0], [1], [0, 0, 1, 1], [], []>} : vector<128x8xbf16>, vector<8x8xbf16>, vector<128x8xf32> -> vector<128x8xf32>
    %61 = arith.addf %56, %60 : vector<128x8xf32>
    %c18 = arith.constant 18 : index
    %c0_39 = arith.constant 0 : index
    %62 = vector.load %arg9[%c18, %c0_39] : memref<176x8xbf16, #tpu.memory_space<vmem>>, vector<128x8xbf16>
    %c5 = arith.constant 5 : index
    %c0_40 = arith.constant 0 : index
    %c0_41 = arith.constant 0 : index
    %63 = vector.load %arg4[%c5, %c0_40, %c0_41] : memref<9x8x8xbf16, #tpu.memory_space<vmem>>, vector<1x8x8xbf16>
    %64 = vector.shape_cast %63 : vector<1x8x8xbf16> to vector<8x8xbf16>
    %cst_42 = arith.constant dense<0.000000e+00> : vector<128x8xf32>
    %65 = tpu.matmul %62, %64, %cst_42 {dimension_numbers = #tpu.dot_dimension_numbers<[1], [0], [0], [1], [0, 0, 1, 1], [], []>} : vector<128x8xbf16>, vector<8x8xbf16>, vector<128x8xf32> -> vector<128x8xf32>
    %66 = arith.addf %61, %65 : vector<128x8xf32>
    %c32 = arith.constant 32 : index
    %c0_43 = arith.constant 0 : index
    %67 = vector.load %arg9[%c32, %c0_43] : memref<176x8xbf16, #tpu.memory_space<vmem>>, vector<128x8xbf16>
    %c6 = arith.constant 6 : index
    %c0_44 = arith.constant 0 : index
    %c0_45 = arith.constant 0 : index
    %68 = vector.load %arg4[%c6, %c0_44, %c0_45] : memref<9x8x8xbf16, #tpu.memory_space<vmem>>, vector<1x8x8xbf16>
    %69 = vector.shape_cast %68 : vector<1x8x8xbf16> to vector<8x8xbf16>
    %cst_46 = arith.constant dense<0.000000e+00> : vector<128x8xf32>
    %70 = tpu.matmul %67, %69, %cst_46 {dimension_numbers = #tpu.dot_dimension_numbers<[1], [0], [0], [1], [0, 0, 1, 1], [], []>} : vector<128x8xbf16>, vector<8x8xbf16>, vector<128x8xf32> -> vector<128x8xf32>
    %71 = arith.addf %66, %70 : vector<128x8xf32>
    %c33 = arith.constant 33 : index
    %c0_47 = arith.constant 0 : index
    %72 = vector.load %arg9[%c33, %c0_47] : memref<176x8xbf16, #tpu.memory_space<vmem>>, vector<128x8xbf16>
    %c7 = arith.constant 7 : index
    %c0_48 = arith.constant 0 : index
    %c0_49 = arith.constant 0 : index
    %73 = vector.load %arg4[%c7, %c0_48, %c0_49] : memref<9x8x8xbf16, #tpu.memory_space<vmem>>, vector<1x8x8xbf16>
    %74 = vector.shape_cast %73 : vector<1x8x8xbf16> to vector<8x8xbf16>
    %cst_50 = arith.constant dense<0.000000e+00> : vector<128x8xf32>
    %75 = tpu.matmul %72, %74, %cst_50 {dimension_numbers = #tpu.dot_dimension_numbers<[1], [0], [0], [1], [0, 0, 1, 1], [], []>} : vector<128x8xbf16>, vector<8x8xbf16>, vector<128x8xf32> -> vector<128x8xf32>
    %76 = arith.addf %71, %75 : vector<128x8xf32>
    %c34 = arith.constant 34 : index
    %c0_51 = arith.constant 0 : index
    %77 = vector.load %arg9[%c34, %c0_51] : memref<176x8xbf16, #tpu.memory_space<vmem>>, vector<128x8xbf16>
    %c8 = arith.constant 8 : index
    %c0_52 = arith.constant 0 : index
    %c0_53 = arith.constant 0 : index
    %78 = vector.load %arg4[%c8, %c0_52, %c0_53] : memref<9x8x8xbf16, #tpu.memory_space<vmem>>, vector<1x8x8xbf16>
    %79 = vector.shape_cast %78 : vector<1x8x8xbf16> to vector<8x8xbf16>
    %cst_54 = arith.constant dense<0.000000e+00> : vector<128x8xf32>
    %80 = tpu.matmul %77, %79, %cst_54 {dimension_numbers = #tpu.dot_dimension_numbers<[1], [0], [0], [1], [0, 0, 1, 1], [], []>} : vector<128x8xbf16>, vector<8x8xbf16>, vector<128x8xf32> -> vector<128x8xf32>
    %81 = arith.addf %76, %80 : vector<128x8xf32>
    %c0_55 = arith.constant 0 : index
    %c0_56 = arith.constant 0 : index
    %82 = vector.load %arg5[%c0_55, %c0_56] : memref<1x8xf32, #tpu.memory_space<vmem>>, vector<1x8xf32>
    %83 = vector.broadcast %82 : vector<1x8xf32> to vector<128x8xf32>
    %84 = arith.addf %81, %83 : vector<128x8xf32>
    %c0_57 = arith.constant 0 : index
    %c0_58 = arith.constant 0 : index
    %85 = vector.load %arg6[%c0_57, %c0_58] : memref<128x8xf32, #tpu.memory_space<vmem>>, vector<128x8xf32>
    tpu.vector_store %arg6[%c0_57, %c0_58], %84 {strides = array<i32>} : memref<128x8xf32, #tpu.memory_space<vmem>>, vector<128x8xf32>,
    %cst_59 = arith.constant 0.000000e+00 : f32
    %86 = vector.shape_cast %18 : vector<128x1xi1> to vector<128x1xi1>
    %87 = vector.broadcast %86 : vector<128x1xi1> to vector<128x8xi1>
    %88 = vector.broadcast %cst_59 : f32 to vector<128x8xf32>
    %89 = arith.select %87, %84, %88 : vector<128x8xi1>, vector<128x8xf32>
    %cst_60 = arith.constant dense<0.000000e+00> : vector<8xf32>
    %90 = vector.multi_reduction <add>, %89, %cst_60 [0] : vector<128x8xf32> to vector<8xf32>
    %91 = vector.shape_cast %90 : vector<8xf32> to vector<1x8xf32>
    %c0_61 = arith.constant 0 : index
    %c0_62 = arith.constant 0 : index
    %c0_63 = arith.constant 0 : index
    %92 = vector.load %arg7[%c0_61, %c0_62, %c0_63] : memref<1x1x8xf32, #tpu.memory_space<vmem>>, vector<1x1x8xf32>
    %93 = vector.shape_cast %92 : vector<1x1x8xf32> to vector<1x8xf32>
    %94 = vector.shape_cast %91 : vector<1x8xf32> to vector<1x1x8xf32>
    tpu.vector_store %arg7[%c0_61, %c0_62, %c0_63], %94 {strides = array<i32>} : memref<1x1x8xf32, #tpu.memory_space<vmem>>, vector<1x1x8xf32>,
    %95 = arith.mulf %89, %89 : vector<128x8xf32>
    %cst_64 = arith.constant dense<0.000000e+00> : vector<8xf32>
    %96 = vector.multi_reduction <add>, %95, %cst_64 [0] : vector<128x8xf32> to vector<8xf32>
    %97 = vector.shape_cast %96 : vector<8xf32> to vector<1x8xf32>
    %c0_65 = arith.constant 0 : index
    %c0_66 = arith.constant 0 : index
    %c0_67 = arith.constant 0 : index
    %98 = vector.load %arg8[%c0_65, %c0_66, %c0_67] : memref<1x1x8xf32, #tpu.memory_space<vmem>>, vector<1x1x8xf32>
    %99 = vector.shape_cast %98 : vector<1x1x8xf32> to vector<1x8xf32>
    %100 = vector.shape_cast %97 : vector<1x8xf32> to vector<1x1x8xf32>
    tpu.vector_store %arg8[%c0_65, %c0_66, %c0_67], %100 {strides = array<i32>} : memref<1x1x8xf32, #tpu.memory_space<vmem>>, vector<1x1x8xf32>,
    return
  }
  func.func @transform_0(%arg0: i32) -> (i32, i32) {
    %c0_i32 = arith.constant 0 : i32
    %c0_i32_0 = arith.constant 0 : i32
    return %arg0, %c0_i32 : i32, i32
  }
  func.func @transform_1(%arg0: i32) -> (i32, i32) {
    %c0_i32 = arith.constant 0 : i32
    %c0_i32_0 = arith.constant 0 : i32
    %c0_i32_1 = arith.constant 0 : i32
    return %c0_i32, %c0_i32_0 : i32, i32
  }
  func.func @transform_2(%arg0: i32) -> (i32, i32) {
    %c0_i32 = arith.constant 0 : i32
    %c0_i32_0 = arith.constant 0 : i32
    %c0_i32_1 = arith.constant 0 : i32
    return %c0_i32, %c0_i32_0 : i32, i32
  }
  func.func @transform_3(%arg0: i32) -> (i32, i32, i32) {
    %c0_i32 = arith.constant 0 : i32
    %c0_i32_0 = arith.constant 0 : i32
    %c0_i32_1 = arith.constant 0 : i32
    %c0_i32_2 = arith.constant 0 : i32
    return %c0_i32, %c0_i32_0, %c0_i32_1 : i32, i32, i32
  }
  func.func @transform_4(%arg0: i32) -> (i32, i32) {
    %c0_i32 = arith.constant 0 : i32
    %c0_i32_0 = arith.constant 0 : i32
    %c0_i32_1 = arith.constant 0 : i32
    return %c0_i32, %c0_i32_0 : i32, i32
  }
  func.func @transform_5(%arg0: i32) -> (i32, i32) {
    %c0_i32 = arith.constant 0 : i32
    %c0_i32_0 = arith.constant 0 : i32
    return %arg0, %c0_i32 : i32, i32
  }
  func.func @transform_6(%arg0: i32) -> (i32, i32, i32) {
    %c0_i32 = arith.constant 0 : i32
    %c0_i32_0 = arith.constant 0 : i32
    %c0_i32_1 = arith.constant 0 : i32
    return %arg0, %c0_i32, %c0_i32_0 : i32, i32, i32
  }
  func.func @transform_7(%arg0: i32) -> (i32, i32, i32) {
    %c0_i32 = arith.constant 0 : i32
    %c0_i32_0 = arith.constant 0 : i32
    %c0_i32_1 = arith.constant 0 : i32
    return %arg0, %c0_i32, %c0_i32_0 : i32, i32, i32
  }
}

</mosaic_0001>

<llo_original>
// kernel: down_forward.5
$region0: #{down_forward.5}
  #allocation0 [shape = 'u32[]', space=smem, size = 0x4, offset = 0x4, fixed_abs, tag = 'smem constant byte address 0x4 - core index']
  #allocation1 [shape = 'u32[144,128]{1,0:T(1,128)}', space=vmem, size = 0x12000, scoped, tag = 'internal scratch']
  %s0 = inlined_call_operand.vmem [shape: f32[256,8], index: 0, kind: input, shape index: {}]
  %s1 = inlined_call_operand.vmem [shape: f32[1,8], index: 1, kind: input, shape index: {}]
  %s2 = inlined_call_operand.vmem [shape: f32[1,8], index: 2, kind: input, shape index: {}]
  %s3 = inlined_call_operand.vmem [shape: f32[256,8], index: 3, kind: output, shape index: {}]
  %s4 = sld [smem:[#allocation0]]
  $region45: #{down_forward.5} parent=0
    _
  %s6 = ssub.s32 1, %s4
  %s7 = scalar_select 0, %s6, %s4
  loop: start=0, step=1, limit=4
  $region2: #{down_forward.5} parent=0 // loop_pre_header
    _
  $region3: #{down_forward.5} parent=0 // loop_header
    %s9 = sphi 0, %s13
    %p10 = scmp.ge.s32.totalorder %s9, 4
    %s19 = sphi 0, %s21
    %s22 = sphi 0, %s19
    %s23 = sphi 0, %s22
    %s39 = sphi 0, %s23
    %s43 = sphi 0, %s43
    %s45 = sphi 0, %s43
    %s46 = sphi 0, %s45
    %s60 = sphi 0, %s46
    %s64 = sphi 0, %s64
    %s66 = sphi 0, %s64
    %s67 = sphi 0, %s66
    %s81 = sphi 0, %s67
    %s87 = sphi 0, %s89
    %s90 = sphi 0, %s87
    %s91 = sphi 0, %s90
    %s107 = sphi 0, %s91
  $region4: #{down_forward.5} parent=0 // loop_header_branch
    %12 = sbr.rel (%p10) target = $region8
  $region5: #{down_forward.5} parent=0 // loop_body
    %s14 = ssub.s32 %s9, 1
    %s15 = ssub.s32 %s9, 2
    %s16 = sadd.s32 %s9, 1
    %s17 = ssub.s32 %s9, %s16
    %p18 = scmp.eq.s32.totalorder %s17, 0
    %s20 = sadd.s32 %s19, 1
    %s21 = scalar_select %p18, %s19, %s20
    %p24 = pneg %p18
    %p25 = scmp.eq.s32.totalorder %s9, 1
    %p26 = por %p24, %p25
    %p27 = scmp.ne.s32.totalorder %s19, %s22
    %p28 = scmp.eq.s32.totalorder %s9, 0
    %p29 = por %p27, %p28
    %p30 = scmp.ne.s32.totalorder %s19, %s22
    %p31 = scmp.eq.s32.totalorder %s14, 1
    %p32 = por %p30, %p31
    %p33 = scmp.ne.s32.totalorder %s22, %s23
    %p34 = scmp.eq.s32.totalorder %s14, 0
    %p35 = por %p33, %p34
    %p36 = scmp.ne.s32.totalorder %s22, %s23
    %p37 = scmp.eq.s32.totalorder %s15, 1
    %p38 = por %p36, %p37
    %p40 = scmp.ne.s32.totalorder %s23, %s39
    %p41 = scmp.eq.s32.totalorder %s15, 0
    %p42 = por %p40, %p41
    %s44 = sadd.s32 %s43, 1
    %p47 = scmp.eq.s32.totalorder %s9, 1
    %p48 = scmp.ne.s32.totalorder %s43, %s45
    %p49 = scmp.eq.s32.totalorder %s9, 0
    %p50 = por %p48, %p49
    %p51 = scmp.ne.s32.totalorder %s43, %s45
    %p52 = scmp.eq.s32.totalorder %s14, 1
    %p53 = por %p51, %p52
    %p54 = scmp.ne.s32.totalorder %s45, %s46
    %p55 = scmp.eq.s32.totalorder %s14, 0
    %p56 = por %p54, %p55
    %p57 = scmp.ne.s32.totalorder %s45, %s46
    %p58 = scmp.eq.s32.totalorder %s15, 1
    %p59 = por %p57, %p58
    %p61 = scmp.ne.s32.totalorder %s46, %s60
    %p62 = scmp.eq.s32.totalorder %s15, 0
    %p63 = por %p61, %p62
    %s65 = sadd.s32 %s64, 1
    %p68 = scmp.eq.s32.totalorder %s9, 1
    %p69 = scmp.ne.s32.totalorder %s64, %s66
    %p70 = scmp.eq.s32.totalorder %s9, 0
    %p71 = por %p69, %p70
    %p72 = scmp.ne.s32.totalorder %s64, %s66
    %p73 = scmp.eq.s32.totalorder %s14, 1
    %p74 = por %p72, %p73
    %p75 = scmp.ne.s32.totalorder %s66, %s67
    %p76 = scmp.eq.s32.totalorder %s14, 0
    %p77 = por %p75, %p76
    %p78 = scmp.ne.s32.totalorder %s66, %s67
    %p79 = scmp.eq.s32.totalorder %s15, 1
    %p80 = por %p78, %p79
    %p82 = scmp.ne.s32.totalorder %s67, %s81
    %p83 = scmp.eq.s32.totalorder %s15, 0
    %p84 = por %p82, %p83
    %s85 = ssub.s32 %s9, %s16
    %p86 = scmp.eq.s32.totalorder %s85, 0
    %s88 = sadd.s32 %s87, 1
    %s89 = scalar_select %p86, %s87, %s88
    %p92 = pneg %p86
    %p93 = scmp.eq.s32.totalorder %s9, 1
    %p94 = por %p92, %p93
    %p95 = scmp.ne.s32.totalorder %s87, %s90
    %p96 = scmp.eq.s32.totalorder %s9, 0
    %p97 = por %p95, %p96
    %p98 = scmp.ne.s32.totalorder %s87, %s90
    %p99 = scmp.eq.s32.totalorder %s14, 1
    %p100 = por %p98, %p99
    %p101 = scmp.ne.s32.totalorder %s90, %s91
    %p102 = scmp.eq.s32.totalorder %s14, 0
    %p103 = por %p101, %p102
    %p104 = scmp.ne.s32.totalorder %s90, %s91
    %p105 = scmp.eq.s32.totalorder %s15, 1
    %p106 = por %p104, %p105
    %p108 = scmp.ne.s32.totalorder %s91, %s107
    %p109 = scmp.eq.s32.totalorder %s15, 0
    %p110 = por %p108, %p109
    %p111 = scmp.le.s32.totalorder 1, %s9
    %p112 = scmp.lt.s32.totalorder %s9, 3
    %p113 = pnand %p111, %p112
    %p114 = pneg %p113
    // Predicated region
    $region9: #{down_forward.5} parent=5 // pred_check
      _
    $region10: #{down_forward.5} parent=5 // pred_check_branch
      %116 = sbr.rel (%p113) target = $region12
    $region11: #{down_forward.5} parent=5 // pred_region
      %s117 = ssub.s32 %s9, 1
      // Predicated region
      $region13: #{down_forward.5} parent=11 // pred_check
        %p118 = pneg %p56
      $region14: #{down_forward.5} parent=11 // pred_check_branch
        %120 = sbr.rel (%p118) target = $region16
      $region15: #{down_forward.5} parent=11 // pred_region
        _
      $region16: #{down_forward.5} parent=11 // pred_fallthru
        _
      // Predicated region
      $region17: #{down_forward.5} parent=11 // pred_check
        %p121 = pneg %p77
      $region18: #{down_forward.5} parent=11 // pred_check_branch
        %123 = sbr.rel (%p121) target = $region20
      $region19: #{down_forward.5} parent=11 // pred_region
        _
      $region20: #{down_forward.5} parent=11 // pred_fallthru
        _
    $region12: #{down_forward.5} parent=5 // pred_fallthru
      _
    %p124 = scmp.lt.s32.totalorder %s9, 2
    // Predicated region
    $region21: #{down_forward.5} parent=5 // pred_check
      %p125 = pneg %p124
    $region22: #{down_forward.5} parent=5 // pred_check_branch
      %127 = sbr.rel (%p125) target = $region24
    $region23: #{down_forward.5} parent=5 // pred_region
      // Predicated region
      $region25: #{down_forward.5} parent=23 // pred_check
        %p128 = pneg %p29
      $region26: #{down_forward.5} parent=23 // pred_check_branch
        %130 = sbr.rel (%p128) target = $region28
      $region27: #{down_forward.5} parent=23 // pred_region
        %s131 = smul.u32 16, %s9
        %p132 = scmp.lt.s32.totalorder %s131, 31
        %s133 = scalar_select %p132, %s131, 31
        %s134 = smul.addr %s133, 8
        %s135 = scalar_lea.vmem %s0, %s134
        %s136 = smul.u32 16, %s9
      $region28: #{down_forward.5} parent=23 // pred_fallthru
        _
    $region24: #{down_forward.5} parent=5 // pred_fallthru
      _
    %p137 = scmp.le.s32.totalorder 1, %s9
    %p138 = scmp.lt.s32.totalorder %s9, 3
    %p139 = pnand %p137, %p138
    %p140 = pneg %p139
    // Predicated region
    $region29: #{down_forward.5} parent=5 // pred_check
      _
    $region30: #{down_forward.5} parent=5 // pred_check_branch
      %142 = sbr.rel (%p139) target = $region32
    $region31: #{down_forward.5} parent=5 // pred_region
      %s143 = ssub.s32 %s9, 1
      %s144 = smul.u32 16, %s14
      %p145 = scmp.lt.s32.totalorder %s144, 31
      %s146 = scalar_select %p145, %s144, 31
      %s147 = smul.addr %s146, 8
      %s148 = scalar_lea.vmem %s0, %s147
      %p149 = pneg %p35
      %p150 = pneg %p32
      %p151 = pneg %p56
      %p152 = pneg %p53
      %p153 = pneg %p77
      %p154 = pneg %p74
      %p155 = pneg %p103
      %p156 = pneg %p100
      %s157 = smul.u32 16, %s14
      %p158 = scmp.lt.s32.totalorder %s157, 31
      %s159 = scalar_select %p158, %s157, 31
      %s160 = smul.addr %s159, 8
      %s161 = scalar_lea.vmem %s3, %s160
      %s162 = smul.u32 16, %s14
      %p163 = scmp.lt.s32.totalorder %s162, 31
      %s164 = scalar_select %p163, %s162, 31
      %s165 = smul.addr %s164, 8
      %s166 = scalar_lea.vmem %s0, %s165
      %s167 = smul.u32 16, %s14
      %s168 = smul.u32 16, %s14
      %p169 = scmp.lt.s32.totalorder %s168, 31
      %s170 = scalar_select %p169, %s168, 31
      %s171 = smul.addr %s170, 8
      %s172 = scalar_lea.vmem %s3, %s171
      %s173 = smul.u32 16, %s14
      %v174 = vld [vmem:[%s166] sm:$0xff]
      %v175 = vld [vmem:[%s166 + $0x8] sm:$0xff]
      %v176 = vld [vmem:[%s166 + $0x10] sm:$0xff]
      %v177 = vld [vmem:[%s166 + $0x18] sm:$0xff]
      %v178 = vld [vmem:[%s166 + $0x20] sm:$0xff]
      %v179 = vld [vmem:[%s166 + $0x28] sm:$0xff]
      %v180 = vld [vmem:[%s166 + $0x30] sm:$0xff]
      %v181 = vld [vmem:[%s166 + $0x38] sm:$0xff]
      %v182 = vld [vmem:[%s166 + $0x40] sm:$0xff]
      %v183 = vld [vmem:[%s166 + $0x48] sm:$0xff]
      %v184 = vld [vmem:[%s166 + $0x50] sm:$0xff]
      %v185 = vld [vmem:[%s166 + $0x58] sm:$0xff]
      %v186 = vld [vmem:[%s166 + $0x60] sm:$0xff]
      %v187 = vld [vmem:[%s166 + $0x68] sm:$0xff]
      %v188 = vld [vmem:[%s166 + $0x70] sm:$0xff]
      %v189 = vld [vmem:[%s166 + $0x78] sm:$0xff]
      %v190 = vld [vmem:[%s1] sm:$0x1]
      %v192 = vlaneseq
      %v193 = vshrl.u32 %v192, 7
      %v194 = vsub.s32 0, %v193
      %v195 = vrot.slane %v190, %v194
      %v197 = vmul.f32 %v174, %v195
      %v198 = vmul.f32 %v175, %v195
      %v199 = vmul.f32 %v176, %v195
      %v200 = vmul.f32 %v177, %v195
      %v201 = vmul.f32 %v178, %v195
      %v202 = vmul.f32 %v179, %v195
      %v203 = vmul.f32 %v180, %v195
      %v204 = vmul.f32 %v181, %v195
      %v205 = vmul.f32 %v182, %v195
      %v206 = vmul.f32 %v183, %v195
      %v207 = vmul.f32 %v184, %v195
      %v208 = vmul.f32 %v185, %v195
      %v209 = vmul.f32 %v186, %v195
      %v210 = vmul.f32 %v187, %v195
      %v211 = vmul.f32 %v188, %v195
      %v212 = vmul.f32 %v189, %v195
      %v213 = vld [vmem:[%s2] sm:$0x1]
      %v215 = vlaneseq
      %v216 = vshrl.u32 %v215, 7
      %v217 = vsub.s32 0, %v216
      %v218 = vrot.slane %v213, %v217
      %v220 = vadd.f32 %v197, %v218
      %v221 = vadd.f32 %v198, %v218
      %v222 = vadd.f32 %v199, %v218
      %v223 = vadd.f32 %v200, %v218
      %v224 = vadd.f32 %v201, %v218
      %v225 = vadd.f32 %v202, %v218
      %v226 = vadd.f32 %v203, %v218
      %v227 = vadd.f32 %v204, %v218
      %v228 = vadd.f32 %v205, %v218
      %v229 = vadd.f32 %v206, %v218
      %v230 = vadd.f32 %v207, %v218
      %v231 = vadd.f32 %v208, %v218
      %v232 = vadd.f32 %v209, %v218
      %v233 = vadd.f32 %v210, %v218
      %v234 = vadd.f32 %v211, %v218
      %v235 = vadd.f32 %v212, %v218
      %v236 = vmax.f32 %v220, 0.0
      %v237 = vmax.f32 %v221, 0.0
      %v238 = vmax.f32 %v222, 0.0
      %v239 = vmax.f32 %v223, 0.0
      %v240 = vmax.f32 %v224, 0.0
      %v241 = vmax.f32 %v225, 0.0
      %v242 = vmax.f32 %v226, 0.0
      %v243 = vmax.f32 %v227, 0.0
      %v244 = vmax.f32 %v228, 0.0
      %v245 = vmax.f32 %v229, 0.0
      %v246 = vmax.f32 %v230, 0.0
      %v247 = vmax.f32 %v231, 0.0
      %v248 = vmax.f32 %v232, 0.0
      %v249 = vmax.f32 %v233, 0.0
      %v250 = vmax.f32 %v234, 0.0
      %v251 = vmax.f32 %v235, 0.0
      %vm252 = vcmask 64512
      %253 = vst.msk [vmem:[%s172] sm:$0xff] %vm252, %v236
      %254 = vst.msk [vmem:[%s172 + $0x8] sm:$0xff] %vm252, %v237
      %255 = vst.msk [vmem:[%s172 + $0x10] sm:$0xff] %vm252, %v238
      %256 = vst.msk [vmem:[%s172 + $0x18] sm:$0xff] %vm252, %v239
      %257 = vst.msk [vmem:[%s172 + $0x20] sm:$0xff] %vm252, %v240
      %258 = vst.msk [vmem:[%s172 + $0x28] sm:$0xff] %vm252, %v241
      %259 = vst.msk [vmem:[%s172 + $0x30] sm:$0xff] %vm252, %v242
      %260 = vst.msk [vmem:[%s172 + $0x38] sm:$0xff] %vm252, %v243
      %261 = vst.msk [vmem:[%s172 + $0x40] sm:$0xff] %vm252, %v244
      %262 = vst.msk [vmem:[%s172 + $0x48] sm:$0xff] %vm252, %v245
      %263 = vst.msk [vmem:[%s172 + $0x50] sm:$0xff] %vm252, %v246
      %264 = vst.msk [vmem:[%s172 + $0x58] sm:$0xff] %vm252, %v247
      %265 = vst.msk [vmem:[%s172 + $0x60] sm:$0xff] %vm252, %v248
      %266 = vst.msk [vmem:[%s172 + $0x68] sm:$0xff] %vm252, %v249
      %267 = vst.msk [vmem:[%s172 + $0x70] sm:$0xff] %vm252, %v250
      %268 = vst.msk [vmem:[%s172 + $0x78] sm:$0xff] %vm252, %v251
      %s269 = smul.u32 16, %s14
      %p270 = scmp.lt.s32.totalorder %s269, 31
      %s271 = scalar_select %p270, %s269, 31
      %s272 = smul.addr %s271, 8
      %s273 = scalar_lea.vmem %s3, %s272
      // Predicated region
      $region33: #{down_forward.5} parent=31 // pred_check
        %p274 = pneg %p100
      $region34: #{down_forward.5} parent=31 // pred_check_branch
        %276 = sbr.rel (%p274) target = $region36
      $region35: #{down_forward.5} parent=31 // pred_region
        %s277 = smul.u32 16, %s14
      $region36: #{down_forward.5} parent=31 // pred_fallthru
        _
    $region32: #{down_forward.5} parent=5 // pred_fallthru
      _
    %p278 = scmp.le.s32.totalorder 2, %s9
    // Predicated region
    $region37: #{down_forward.5} parent=5 // pred_check
      %p279 = pneg %p278
    $region38: #{down_forward.5} parent=5 // pred_check_branch
      %281 = sbr.rel (%p279) target = $region40
    $region39: #{down_forward.5} parent=5 // pred_region
      %s282 = ssub.s32 %s9, 2
      // Predicated region
      $region41: #{down_forward.5} parent=39 // pred_check
        %p283 = pneg %p106
      $region42: #{down_forward.5} parent=39 // pred_check_branch
        %285 = sbr.rel (%p283) target = $region44
      $region43: #{down_forward.5} parent=39 // pred_region
        %s286 = smul.u32 16, %s15
        %p287 = scmp.lt.s32.totalorder %s286, 31
        %s288 = scalar_select %p287, %s286, 31
        %s289 = smul.addr %s288, 8
        %s290 = scalar_lea.vmem %s3, %s289
      $region44: #{down_forward.5} parent=39 // pred_fallthru
        _
    $region40: #{down_forward.5} parent=5 // pred_fallthru
      _
  $region6: #{down_forward.5} parent=0 // loop_footer
    %s13 = sadd.s32 1, %s9
  $region7: #{down_forward.5} parent=0 // loop_footer_branch
    %8 = sbr.rel target = $region3
  $region8: #{down_forward.5} parent=0 // loop_exit
    _

// kernel: down_forward.4
$region0: #{down_forward.4}
  #allocation0 [shape = 'u32[]', space=smem, size = 0x4, offset = 0x4, fixed_abs, tag = 'smem constant byte address 0x4 - core index']
  #allocation1 [shape = 'u32[144,128]{1,0:T(1,128)}', space=vmem, size = 0x12000, scoped, tag = 'internal scratch']
  #allocation2 [shape = 'bf16[176,8]{1,0:T(16,128)(2,1)}', space=vmem, size = 0xb000, scoped, tag = 'scratch operand']
  %s0 = inlined_call_operand.vmem [shape: f32[256,8], index: 0, kind: input, shape index: {}]
  %s1 = inlined_call_operand.vmem [shape: f32[1,8], index: 1, kind: input, shape index: {}]
  %s2 = inlined_call_operand.vmem [shape: f32[1,8], index: 2, kind: input, shape index: {}]
  %s3 = inlined_call_operand.vmem [shape: bf16[9,8,8], index: 3, kind: input, shape index: {}]
  %s4 = inlined_call_operand.vmem [shape: f32[1,8], index: 4, kind: input, shape index: {}]
  %s5 = inlined_call_operand.vmem [shape: f32[256,8], index: 5, kind: output, shape index: {0}]
  %s6 = inlined_call_operand.vmem [shape: f32[2,1,8], index: 6, kind: output, shape index: {1}]
  %s7 = inlined_call_operand.vmem [shape: f32[2,1,8], index: 7, kind: output, shape index: {2}]
  %8 = xla_tuple %s5, %s6, %s7
  %s9 = sld [smem:[#allocation0]]
  $region69: #{down_forward.4} parent=0
    _
  %s11 = ssub.s32 1, %s9
  %s12 = scalar_select 0, %s11, %s9
  loop: start=0, step=1, limit=4
  $region2: #{down_forward.4} parent=0 // loop_pre_header
    _
  $region3: #{down_forward.4} parent=0 // loop_header
    %s14 = sphi 0, %s18
    %p15 = scmp.ge.s32.totalorder %s14, 4
    %s24 = sphi 0, %s26
    %s27 = sphi 0, %s24
    %s28 = sphi 0, %s27
    %s44 = sphi 0, %s28
    %s48 = sphi 0, %s48
    %s50 = sphi 0, %s48
    %s51 = sphi 0, %s50
    %s65 = sphi 0, %s51
    %s69 = sphi 0, %s69
    %s71 = sphi 0, %s69
    %s72 = sphi 0, %s71
    %s86 = sphi 0, %s72
    %s90 = sphi 0, %s90
    %s92 = sphi 0, %s90
    %s93 = sphi 0, %s92
    %s107 = sphi 0, %s93
    %s111 = sphi 0, %s111
    %s113 = sphi 0, %s111
    %s114 = sphi 0, %s113
    %s128 = sphi 0, %s114
    %s134 = sphi 0, %s136
    %s137 = sphi 0, %s134
    %s138 = sphi 0, %s137
    %s154 = sphi 0, %s138
    %s160 = sphi 0, %s162
    %s163 = sphi 0, %s160
    %s164 = sphi 0, %s163
    %s180 = sphi 0, %s164
    %s186 = sphi 0, %s188
    %s189 = sphi 0, %s186
    %s190 = sphi 0, %s189
    %s206 = sphi 0, %s190
  $region4: #{down_forward.4} parent=0 // loop_header_branch
    %17 = sbr.rel (%p15) target = $region8
  $region5: #{down_forward.4} parent=0 // loop_body
    %s19 = ssub.s32 %s14, 1
    %s20 = ssub.s32 %s14, 2
    %s21 = sadd.s32 %s14, 1
    %s22 = ssub.s32 %s14, %s21
    %p23 = scmp.eq.s32.totalorder %s22, 0
    %s25 = sadd.s32 %s24, 1
    %s26 = scalar_select %p23, %s24, %s25
    %p29 = pneg %p23
    %p30 = scmp.eq.s32.totalorder %s14, 1
    %p31 = por %p29, %p30
    %p32 = scmp.ne.s32.totalorder %s24, %s27
    %p33 = scmp.eq.s32.totalorder %s14, 0
    %p34 = por %p32, %p33
    %p35 = scmp.ne.s32.totalorder %s24, %s27
    %p36 = scmp.eq.s32.totalorder %s19, 1
    %p37 = por %p35, %p36
    %p38 = scmp.ne.s32.totalorder %s27, %s28
    %p39 = scmp.eq.s32.totalorder %s19, 0
    %p40 = por %p38, %p39
    %p41 = scmp.ne.s32.totalorder %s27, %s28
    %p42 = scmp.eq.s32.totalorder %s20, 1
    %p43 = por %p41, %p42
    %p45 = scmp.ne.s32.totalorder %s28, %s44
    %p46 = scmp.eq.s32.totalorder %s20, 0
    %p47 = por %p45, %p46
    %s49 = sadd.s32 %s48, 1
    %p52 = scmp.eq.s32.totalorder %s14, 1
    %p53 = scmp.ne.s32.totalorder %s48, %s50
    %p54 = scmp.eq.s32.totalorder %s14, 0
    %p55 = por %p53, %p54
    %p56 = scmp.ne.s32.totalorder %s48, %s50
    %p57 = scmp.eq.s32.totalorder %s19, 1
    %p58 = por %p56, %p57
    %p59 = scmp.ne.s32.totalorder %s50, %s51
    %p60 = scmp.eq.s32.totalorder %s19, 0
    %p61 = por %p59, %p60
    %p62 = scmp.ne.s32.totalorder %s50, %s51
    %p63 = scmp.eq.s32.totalorder %s20, 1
    %p64 = por %p62, %p63
    %p66 = scmp.ne.s32.totalorder %s51, %s65
    %p67 = scmp.eq.s32.totalorder %s20, 0
    %p68 = por %p66, %p67
    %s70 = sadd.s32 %s69, 1
    %p73 = scmp.eq.s32.totalorder %s14, 1
    %p74 = scmp.ne.s32.totalorder %s69, %s71
    %p75 = scmp.eq.s32.totalorder %s14, 0
    %p76 = por %p74, %p75
    %p77 = scmp.ne.s32.totalorder %s69, %s71
    %p78 = scmp.eq.s32.totalorder %s19, 1
    %p79 = por %p77, %p78
    %p80 = scmp.ne.s32.totalorder %s71, %s72
    %p81 = scmp.eq.s32.totalorder %s19, 0
    %p82 = por %p80, %p81
    %p83 = scmp.ne.s32.totalorder %s71, %s72
    %p84 = scmp.eq.s32.totalorder %s20, 1
    %p85 = por %p83, %p84
    %p87 = scmp.ne.s32.totalorder %s72, %s86
    %p88 = scmp.eq.s32.totalorder %s20, 0
    %p89 = por %p87, %p88
    %s91 = sadd.s32 %s90, 1
    %p94 = scmp.eq.s32.totalorder %s14, 1
    %p95 = scmp.ne.s32.totalorder %s90, %s92
    %p96 = scmp.eq.s32.totalorder %s14, 0
    %p97 = por %p95, %p96
    %p98 = scmp.ne.s32.totalorder %s90, %s92
    %p99 = scmp.eq.s32.totalorder %s19, 1
    %p100 = por %p98, %p99
    %p101 = scmp.ne.s32.totalorder %s92, %s93
    %p102 = scmp.eq.s32.totalorder %s19, 0
    %p103 = por %p101, %p102
    %p104 = scmp.ne.s32.totalorder %s92, %s93
    %p105 = scmp.eq.s32.totalorder %s20, 1
    %p106 = por %p104, %p105
    %p108 = scmp.ne.s32.totalorder %s93, %s107
    %p109 = scmp.eq.s32.totalorder %s20, 0
    %p110 = por %p108, %p109
    %s112 = sadd.s32 %s111, 1
    %p115 = scmp.eq.s32.totalorder %s14, 1
    %p116 = scmp.ne.s32.totalorder %s111, %s113
    %p117 = scmp.eq.s32.totalorder %s14, 0
    %p118 = por %p116, %p117
    %p119 = scmp.ne.s32.totalorder %s111, %s113
    %p120 = scmp.eq.s32.totalorder %s19, 1
    %p121 = por %p119, %p120
    %p122 = scmp.ne.s32.totalorder %s113, %s114
    %p123 = scmp.eq.s32.totalorder %s19, 0
    %p124 = por %p122, %p123
    %p125 = scmp.ne.s32.totalorder %s113, %s114
    %p126 = scmp.eq.s32.totalorder %s20, 1
    %p127 = por %p125, %p126
    %p129 = scmp.ne.s32.totalorder %s114, %s128
    %p130 = scmp.eq.s32.totalorder %s20, 0
    %p131 = por %p129, %p130
    %s132 = ssub.s32 %s14, %s21
    %p133 = scmp.eq.s32.totalorder %s132, 0
    %s135 = sadd.s32 %s134, 1
    %s136 = scalar_select %p133, %s134, %s135
    %p139 = pneg %p133
    %p140 = scmp.eq.s32.totalorder %s14, 1
    %p141 = por %p139, %p140
    %p142 = scmp.ne.s32.totalorder %s134, %s137
    %p143 = scmp.eq.s32.totalorder %s14, 0
    %p144 = por %p142, %p143
    %p145 = scmp.ne.s32.totalorder %s134, %s137
    %p146 = scmp.eq.s32.totalorder %s19, 1
    %p147 = por %p145, %p146
    %p148 = scmp.ne.s32.totalorder %s137, %s138
    %p149 = scmp.eq.s32.totalorder %s19, 0
    %p150 = por %p148, %p149
    %p151 = scmp.ne.s32.totalorder %s137, %s138
    %p152 = scmp.eq.s32.totalorder %s20, 1
    %p153 = por %p151, %p152
    %p155 = scmp.ne.s32.totalorder %s138, %s154
    %p156 = scmp.eq.s32.totalorder %s20, 0
    %p157 = por %p155, %p156
    %s158 = ssub.s32 %s14, %s21
    %p159 = scmp.eq.s32.totalorder %s158, 0
    %s161 = sadd.s32 %s160, 1
    %s162 = scalar_select %p159, %s160, %s161
    %p165 = pneg %p159
    %p166 = scmp.eq.s32.totalorder %s14, 1
    %p167 = por %p165, %p166
    %p168 = scmp.ne.s32.totalorder %s160, %s163
    %p169 = scmp.eq.s32.totalorder %s14, 0
    %p170 = por %p168, %p169
    %p171 = scmp.ne.s32.totalorder %s160, %s163
    %p172 = scmp.eq.s32.totalorder %s19, 1
    %p173 = por %p171, %p172
    %p174 = scmp.ne.s32.totalorder %s163, %s164
    %p175 = scmp.eq.s32.totalorder %s19, 0
    %p176 = por %p174, %p175
    %p177 = scmp.ne.s32.totalorder %s163, %s164
    %p178 = scmp.eq.s32.totalorder %s20, 1
    %p179 = por %p177, %p178
    %p181 = scmp.ne.s32.totalorder %s164, %s180
    %p182 = scmp.eq.s32.totalorder %s20, 0
    %p183 = por %p181, %p182
    %s184 = ssub.s32 %s14, %s21
    %p185 = scmp.eq.s32.totalorder %s184, 0
    %s187 = sadd.s32 %s186, 1
    %s188 = scalar_select %p185, %s186, %s187
    %p191 = pneg %p185
    %p192 = scmp.eq.s32.totalorder %s14, 1
    %p193 = por %p191, %p192
    %p194 = scmp.ne.s32.totalorder %s186, %s189
    %p195 = scmp.eq.s32.totalorder %s14, 0
    %p196 = por %p194, %p195
    %p197 = scmp.ne.s32.totalorder %s186, %s189
    %p198 = scmp.eq.s32.totalorder %s19, 1
    %p199 = por %p197, %p198
    %p200 = scmp.ne.s32.totalorder %s189, %s190
    %p201 = scmp.eq.s32.totalorder %s19, 0
    %p202 = por %p200, %p201
    %p203 = scmp.ne.s32.totalorder %s189, %s190
    %p204 = scmp.eq.s32.totalorder %s20, 1
    %p205 = por %p203, %p204
    %p207 = scmp.ne.s32.totalorder %s190, %s206
    %p208 = scmp.eq.s32.totalorder %s20, 0
    %p209 = por %p207, %p208
    %p210 = scmp.le.s32.totalorder 1, %s14
    %p211 = scmp.lt.s32.totalorder %s14, 3
    %p212 = pnand %p210, %p211
    %p213 = pneg %p212
    // Predicated region
    $region9: #{down_forward.4} parent=5 // pred_check
      _
    $region10: #{down_forward.4} parent=5 // pred_check_branch
      %215 = sbr.rel (%p212) target = $region12
    $region11: #{down_forward.4} parent=5 // pred_region
      %s216 = ssub.s32 %s14, 1
      // Predicated region
      $region13: #{down_forward.4} parent=11 // pred_check
        %p217 = pneg %p61
      $region14: #{down_forward.4} parent=11 // pred_check_branch
        %219 = sbr.rel (%p217) target = $region16
      $region15: #{down_forward.4} parent=11 // pred_region
        _
      $region16: #{down_forward.4} parent=11 // pred_fallthru
        _
      // Predicated region
      $region17: #{down_forward.4} parent=11 // pred_check
        %p220 = pneg %p82
      $region18: #{down_forward.4} parent=11 // pred_check_branch
        %222 = sbr.rel (%p220) target = $region20
      $region19: #{down_forward.4} parent=11 // pred_region
        _
      $region20: #{down_forward.4} parent=11 // pred_fallthru
        _
      // Predicated region
      $region21: #{down_forward.4} parent=11 // pred_check
        %p223 = pneg %p103
      $region22: #{down_forward.4} parent=11 // pred_check_branch
        %225 = sbr.rel (%p223) target = $region24
      $region23: #{down_forward.4} parent=11 // pred_region
        _
      $region24: #{down_forward.4} parent=11 // pred_fallthru
        _
      // Predicated region
      $region25: #{down_forward.4} parent=11 // pred_check
        %p226 = pneg %p124
      $region26: #{down_forward.4} parent=11 // pred_check_branch
        %228 = sbr.rel (%p226) target = $region28
      $region27: #{down_forward.4} parent=11 // pred_region
        _
      $region28: #{down_forward.4} parent=11 // pred_fallthru
        _
    $region12: #{down_forward.4} parent=5 // pred_fallthru
      _
    %p229 = scmp.lt.s32.totalorder %s14, 2
    // Predicated region
    $region29: #{down_forward.4} parent=5 // pred_check
      %p230 = pneg %p229
    $region30: #{down_forward.4} parent=5 // pred_check_branch
      %232 = sbr.rel (%p230) target = $region32
    $region31: #{down_forward.4} parent=5 // pred_region
      // Predicated region
      $region33: #{down_forward.4} parent=31 // pred_check
        %p233 = pneg %p34
      $region34: #{down_forward.4} parent=31 // pred_check_branch
        %235 = sbr.rel (%p233) target = $region36
      $region35: #{down_forward.4} parent=31 // pred_region
        %s236 = smul.u32 16, %s14
        %p237 = scmp.lt.s32.totalorder %s236, 31
        %s238 = scalar_select %p237, %s236, 31
        %s239 = smul.addr %s238, 8
        %s240 = scalar_lea.vmem %s0, %s239
        %s241 = smul.u32 16, %s14
      $region36: #{down_forward.4} parent=31 // pred_fallthru
        _
    $region32: #{down_forward.4} parent=5 // pred_fallthru
      _
    %p242 = scmp.le.s32.totalorder 1, %s14
    %p243 = scmp.lt.s32.totalorder %s14, 3
    %p244 = pnand %p242, %p243
    %p245 = pneg %p244
    // Predicated region
    $region37: #{down_forward.4} parent=5 // pred_check
      _
    $region38: #{down_forward.4} parent=5 // pred_check_branch
      %247 = sbr.rel (%p244) target = $region40
    $region39: #{down_forward.4} parent=5 // pred_region
      %s248 = ssub.s32 %s14, 1
      %s249 = smul.u32 16, %s19
      %p250 = scmp.lt.s32.totalorder %s249, 31
      %s251 = scalar_select %p250, %s249, 31
      %s252 = smul.addr %s251, 8
      %s253 = scalar_lea.vmem %s0, %s252
      %p254 = pneg %p40
      %p255 = pneg %p37
      %p256 = pneg %p61
      %p257 = pneg %p58
      %p258 = pneg %p82
      %p259 = pneg %p79
      %p260 = pneg %p103
      %p261 = pneg %p100
      %p262 = pneg %p124
      %p263 = pneg %p121
      %p264 = pneg %p150
      %p265 = pneg %p147
      %s266 = smul.u32 16, %s19
      %p267 = scmp.lt.s32.totalorder %s266, 31
      %s268 = scalar_select %p267, %s266, 31
      %s269 = smul.addr %s268, 8
      %s270 = scalar_lea.vmem %s5, %s269
      %p271 = pneg %p176
      %p272 = pneg %p173
      %p273 = scmp.lt.s32.totalorder %s19, 1
      %s274 = scalar_select %p273, %s19, 1
      %s275 = scalar_lea.vmem %s6, %s274
      %p276 = pneg %p202
      %p277 = pneg %p199
      %p278 = scmp.lt.s32.totalorder %s19, 1
      %s279 = scalar_select %p278, %s19, 1
      %s280 = scalar_lea.vmem %s7, %s279
      %s281 = smul.u32 16, %s19
      %p282 = scmp.lt.s32.totalorder %s281, 31
      %s283 = scalar_select %p282, %s281, 31
      %s284 = smul.addr %s283, 8
      %s285 = scalar_lea.vmem %s0, %s284
      %s286 = smul.u32 16, %s19
      %s287 = smul.u32 16, %s19
      %p288 = scmp.lt.s32.totalorder %s287, 31
      %s289 = scalar_select %p288, %s287, 31
      %s290 = smul.addr %s289, 8
      %s291 = scalar_lea.vmem %s5, %s290
      %s292 = smul.u32 16, %s19
      %p293 = scmp.lt.s32.totalorder %s19, 1
      %s294 = scalar_select %p293, %s19, 1
      %s295 = scalar_lea.vmem %s6, %s294
      %p296 = scmp.lt.s32.totalorder %s19, 1
      %s297 = scalar_select %p296, %s19, 1
      %s298 = scalar_lea.vmem %s7, %s297
      %v300 = vlaneseq
      %v301 = vshrl.u32 %v300, 7
      %v302 = vadd.s32 %v301, 8
      %v303 = vadd.s32 %v301, 16
      %v304 = vadd.s32 %v301, 24
      %v305 = vadd.s32 %v301, 32
      %v306 = vadd.s32 %v301, 40
      %v307 = vadd.s32 %v301, 48
      %v308 = vadd.s32 %v301, 56
      %v309 = vadd.s32 %v301, 64
      %v310 = vadd.s32 %v301, 72
      %v311 = vadd.s32 %v301, 80
      %v312 = vadd.s32 %v301, 88
      %v313 = vadd.s32 %v301, 96
      %v314 = vadd.s32 %v301, 104
      %v315 = vadd.s32 %v301, 112
      %v316 = vadd.s32 %v301, 120
      %vm317 = vcmp.lt.s32.totalorder %v301, 0
      %v318 = vsub.s32 0, %v301
      %v319 = vsel %vm317, %v318, %v301
      %v320 = vshrl.u32 %v319, 4
      %v321 = vand.u32 %v319, 15
      %v322 = vsub.s32 0, %v321
      %v323 = vsel %vm317, %v322, %v321
      %vm324 = vcmp.lt.s32.totalorder %v302, 0
      %v325 = vsub.s32 0, %v302
      %v326 = vsel %vm324, %v325, %v302
      %v327 = vshrl.u32 %v326, 4
      %v328 = vand.u32 %v326, 15
      %v329 = vsub.s32 0, %v328
      %v330 = vsel %vm324, %v329, %v328
      %vm331 = vcmp.lt.s32.totalorder %v303, 0
      %v332 = vsub.s32 0, %v303
      %v333 = vsel %vm331, %v332, %v303
      %v334 = vshrl.u32 %v333, 4
      %v335 = vand.u32 %v333, 15
      %v336 = vsub.s32 0, %v335
      %v337 = vsel %vm331, %v336, %v335
      %vm338 = vcmp.lt.s32.totalorder %v304, 0
      %v339 = vsub.s32 0, %v304
      %v340 = vsel %vm338, %v339, %v304
      %v341 = vshrl.u32 %v340, 4
      %v342 = vand.u32 %v340, 15
      %v343 = vsub.s32 0, %v342
      %v344 = vsel %vm338, %v343, %v342
      %vm345 = vcmp.lt.s32.totalorder %v305, 0
      %v346 = vsub.s32 0, %v305
      %v347 = vsel %vm345, %v346, %v305
      %v348 = vshrl.u32 %v347, 4
      %v349 = vand.u32 %v347, 15
      %v350 = vsub.s32 0, %v349
      %v351 = vsel %vm345, %v350, %v349
      %vm352 = vcmp.lt.s32.totalorder %v306, 0
      %v353 = vsub.s32 0, %v306
      %v354 = vsel %vm352, %v353, %v306
      %v355 = vshrl.u32 %v354, 4
      %v356 = vand.u32 %v354, 15
      %v357 = vsub.s32 0, %v356
      %v358 = vsel %vm352, %v357, %v356
      %vm359 = vcmp.lt.s32.totalorder %v307, 0
      %v360 = vsub.s32 0, %v307
      %v361 = vsel %vm359, %v360, %v307
      %v362 = vshrl.u32 %v361, 4
      %v363 = vand.u32 %v361, 15
      %v364 = vsub.s32 0, %v363
      %v365 = vsel %vm359, %v364, %v363
      %vm366 = vcmp.lt.s32.totalorder %v308, 0
      %v367 = vsub.s32 0, %v308
      %v368 = vsel %vm366, %v367, %v308
      %v369 = vshrl.u32 %v368, 4
      %v370 = vand.u32 %v368, 15
      %v371 = vsub.s32 0, %v370
      %v372 = vsel %vm366, %v371, %v370
      %vm373 = vcmp.lt.s32.totalorder %v309, 0
      %v374 = vsub.s32 0, %v309
      %v375 = vsel %vm373, %v374, %v309
      %v376 = vshrl.u32 %v375, 4
      %v377 = vand.u32 %v375, 15
      %v378 = vsub.s32 0, %v377
      %v379 = vsel %vm373, %v378, %v377
      %vm380 = vcmp.lt.s32.totalorder %v310, 0
      %v381 = vsub.s32 0, %v310
      %v382 = vsel %vm380, %v381, %v310
      %v383 = vshrl.u32 %v382, 4
      %v384 = vand.u32 %v382, 15
      %v385 = vsub.s32 0, %v384
      %v386 = vsel %vm380, %v385, %v384
      %vm387 = vcmp.lt.s32.totalorder %v311, 0
      %v388 = vsub.s32 0, %v311
      %v389 = vsel %vm387, %v388, %v311
      %v390 = vshrl.u32 %v389, 4
      %v391 = vand.u32 %v389, 15
      %v392 = vsub.s32 0, %v391
      %v393 = vsel %vm387, %v392, %v391
      %vm394 = vcmp.lt.s32.totalorder %v312, 0
      %v395 = vsub.s32 0, %v312
      %v396 = vsel %vm394, %v395, %v312
      %v397 = vshrl.u32 %v396, 4
      %v398 = vand.u32 %v396, 15
      %v399 = vsub.s32 0, %v398
      %v400 = vsel %vm394, %v399, %v398
      %vm401 = vcmp.lt.s32.totalorder %v313, 0
      %v402 = vsub.s32 0, %v313
      %v403 = vsel %vm401, %v402, %v313
      %v404 = vshrl.u32 %v403, 4
      %v405 = vand.u32 %v403, 15
      %v406 = vsub.s32 0, %v405
      %v407 = vsel %vm401, %v406, %v405
      %vm408 = vcmp.lt.s32.totalorder %v314, 0
      %v409 = vsub.s32 0, %v314
      %v410 = vsel %vm408, %v409, %v314
      %v411 = vshrl.u32 %v410, 4
      %v412 = vand.u32 %v410, 15
      %v413 = vsub.s32 0, %v412
      %v414 = vsel %vm408, %v413, %v412
      %vm415 = vcmp.lt.s32.totalorder %v315, 0
      %v416 = vsub.s32 0, %v315
      %v417 = vsel %vm415, %v416, %v315
      %v418 = vshrl.u32 %v417, 4
      %v419 = vand.u32 %v417, 15
      %v420 = vsub.s32 0, %v419
      %v421 = vsel %vm415, %v420, %v419
      %vm422 = vcmp.lt.s32.totalorder %v316, 0
      %v423 = vsub.s32 0, %v316
      %v424 = vsel %vm422, %v423, %v316
      %v425 = vshrl.u32 %v424, 4
      %v426 = vand.u32 %v424, 15
      %v427 = vsub.s32 0, %v426
      %v428 = vsel %vm422, %v427, %v426
      %vm429 = vcmp.ne.s32.totalorder %v323, 0
      %vm430 = vcmp.ne.s32.totalorder %v330, 0
      %vm431 = vcmp.ne.s32.totalorder %v337, 0
      %vm432 = vcmp.ne.s32.totalorder %v344, 0
      %vm433 = vcmp.ne.s32.totalorder %v351, 0
      %vm434 = vcmp.ne.s32.totalorder %v358, 0
      %vm435 = vcmp.ne.s32.totalorder %v365, 0
      %vm436 = vcmp.ne.s32.totalorder %v372, 0
      %vm437 = vcmp.ne.s32.totalorder %v379, 0
      %vm438 = vcmp.ne.s32.totalorder %v386, 0
      %vm439 = vcmp.ne.s32.totalorder %v393, 0
      %vm440 = vcmp.ne.s32.totalorder %v400, 0
      %vm441 = vcmp.ne.s32.totalorder %v407, 0
      %vm442 = vcmp.ne.s32.totalorder %v414, 0
      %vm443 = vcmp.ne.s32.totalorder %v421, 0
      %vm444 = vcmp.ne.s32.totalorder %v428, 0
      %vm445 = vcmp.lt.s32.totalorder %v323, 0
      %vm446 = vcmp.lt.s32.totalorder %v330, 0
      %vm447 = vcmp.lt.s32.totalorder %v337, 0
      %vm448 = vcmp.lt.s32.totalorder %v344, 0
      %vm449 = vcmp.lt.s32.totalorder %v351, 0
      %vm450 = vcmp.lt.s32.totalorder %v358, 0
      %vm451 = vcmp.lt.s32.totalorder %v365, 0
      %vm452 = vcmp.lt.s32.totalorder %v372, 0
      %vm453 = vcmp.lt.s32.totalorder %v379, 0
      %vm454 = vcmp.lt.s32.totalorder %v386, 0
      %vm455 = vcmp.lt.s32.totalorder %v393, 0
      %vm456 = vcmp.lt.s32.totalorder %v400, 0
      %vm457 = vcmp.lt.s32.totalorder %v407, 0
      %vm458 = vcmp.lt.s32.totalorder %v414, 0
      %vm459 = vcmp.lt.s32.totalorder %v421, 0
      %vm460 = vcmp.lt.s32.totalorder %v428, 0
      %vm461 = vmand %vm445, %vm429
      %vm462 = vmand %vm446, %vm430
      %vm463 = vmand %vm447, %vm431
      %vm464 = vmand %vm448, %vm432
      %vm465 = vmand %vm449, %vm433
      %vm466 = vmand %vm450, %vm434
      %vm467 = vmand %vm451, %vm435
      %vm468 = vmand %vm452, %vm436
      %vm469 = vmand %vm453, %vm437
      %vm470 = vmand %vm454, %vm438
      %vm471 = vmand %vm455, %vm439
      %vm472 = vmand %vm456, %vm440
      %vm473 = vmand %vm457, %vm441
      %vm474 = vmand %vm458, %vm442
      %vm475 = vmand %vm459, %vm443
      %vm476 = vmand %vm460, %vm444
      %v477 = vadd.s32 %v323, 16
      %v478 = vadd.s32 %v330, 16
      %v479 = vadd.s32 %v337, 16
      %v480 = vadd.s32 %v344, 16
      %v481 = vadd.s32 %v351, 16
      %v482 = vadd.s32 %v358, 16
      %v483 = vadd.s32 %v365, 16
      %v484 = vadd.s32 %v372, 16
      %v485 = vadd.s32 %v379, 16
      %v486 = vadd.s32 %v386, 16
      %v487 = vadd.s32 %v393, 16
      %v488 = vadd.s32 %v400, 16
      %v489 = vadd.s32 %v407, 16
      %v490 = vadd.s32 %v414, 16
      %v491 = vadd.s32 %v421, 16
      %v492 = vadd.s32 %v428, 16
      %v493 = vsel %vm461, %v477, %v323
      %v494 = vsel %vm462, %v478, %v330
      %v495 = vsel %vm463, %v479, %v337
      %v496 = vsel %vm464, %v480, %v344
      %v497 = vsel %vm465, %v481, %v351
      %v498 = vsel %vm466, %v482, %v358
      %v499 = vsel %vm467, %v483, %v365
      %v500 = vsel %vm468, %v484, %v372
      %v501 = vsel %vm469, %v485, %v379
      %v502 = vsel %vm470, %v486, %v386
      %v503 = vsel %vm471, %v487, %v393
      %v504 = vsel %vm472, %v488, %v400
      %v505 = vsel %vm473, %v489, %v407
      %v506 = vsel %vm474, %v490, %v414
      %v507 = vsel %vm475, %v491, %v421
      %v508 = vsel %vm476, %v492, %v428
      %vm509 = vcmp.lt.s32.totalorder %v493, 8
      %vm510 = vcmp.lt.s32.totalorder %v494, 8
      %vm511 = vcmp.lt.s32.totalorder %v495, 8
      %vm512 = vcmp.lt.s32.totalorder %v496, 8
      %vm513 = vcmp.lt.s32.totalorder %v497, 8
      %vm514 = vcmp.lt.s32.totalorder %v498, 8
      %vm515 = vcmp.lt.s32.totalorder %v499, 8
      %vm516 = vcmp.lt.s32.totalorder %v500, 8
      %vm517 = vcmp.lt.s32.totalorder %v501, 8
      %vm518 = vcmp.lt.s32.totalorder %v502, 8
      %vm519 = vcmp.lt.s32.totalorder %v503, 8
      %vm520 = vcmp.lt.s32.totalorder %v504, 8
      %vm521 = vcmp.lt.s32.totalorder %v505, 8
      %vm522 = vcmp.lt.s32.totalorder %v506, 8
      %vm523 = vcmp.lt.s32.totalorder %v507, 8
      %vm524 = vcmp.lt.s32.totalorder %v508, 8
      %v525 = vld [vmem:[%s285] sm:$0xff]
      %v526 = vld [vmem:[%s285 + $0x8] sm:$0xff]
      %v527 = vld [vmem:[%s285 + $0x10] sm:$0xff]
      %v528 = vld [vmem:[%s285 + $0x18] sm:$0xff]
      %v529 = vld [vmem:[%s285 + $0x20] sm:$0xff]
      %v530 = vld [vmem:[%s285 + $0x28] sm:$0xff]
      %v531 = vld [vmem:[%s285 + $0x30] sm:$0xff]
      %v532 = vld [vmem:[%s285 + $0x38] sm:$0xff]
      %v533 = vld [vmem:[%s285 + $0x40] sm:$0xff]
      %v534 = vld [vmem:[%s285 + $0x48] sm:$0xff]
      %v535 = vld [vmem:[%s285 + $0x50] sm:$0xff]
      %v536 = vld [vmem:[%s285 + $0x58] sm:$0xff]
      %v537 = vld [vmem:[%s285 + $0x60] sm:$0xff]
      %v538 = vld [vmem:[%s285 + $0x68] sm:$0xff]
      %v539 = vld [vmem:[%s285 + $0x70] sm:$0xff]
      %v540 = vld [vmem:[%s285 + $0x78] sm:$0xff]
      %v541 = vld [vmem:[%s1] sm:$0x1]
      %v543 = vlaneseq
      %v544 = vshrl.u32 %v543, 7
      %v545 = vsub.s32 0, %v544
      %v546 = vrot.slane %v541, %v545
      %v548 = vmul.f32 %v525, %v546
      %v549 = vmul.f32 %v526, %v546
      %v550 = vmul.f32 %v527, %v546
      %v551 = vmul.f32 %v528, %v546
      %v552 = vmul.f32 %v529, %v546
      %v553 = vmul.f32 %v530, %v546
      %v554 = vmul.f32 %v531, %v546
      %v555 = vmul.f32 %v532, %v546
      %v556 = vmul.f32 %v533, %v546
      %v557 = vmul.f32 %v534, %v546
      %v558 = vmul.f32 %v535, %v546
      %v559 = vmul.f32 %v536, %v546
      %v560 = vmul.f32 %v537, %v546
      %v561 = vmul.f32 %v538, %v546
      %v562 = vmul.f32 %v539, %v546
      %v563 = vmul.f32 %v540, %v546
      %v564 = vld [vmem:[%s2] sm:$0x1]
      %v566 = vlaneseq
      %v567 = vshrl.u32 %v566, 7
      %v568 = vsub.s32 0, %v567
      %v569 = vrot.slane %v564, %v568
      %v571 = vadd.f32 %v548, %v569
      %v572 = vadd.f32 %v549, %v569
      %v573 = vadd.f32 %v550, %v569
      %v574 = vadd.f32 %v551, %v569
      %v575 = vadd.f32 %v552, %v569
      %v576 = vadd.f32 %v553, %v569
      %v577 = vadd.f32 %v554, %v569
      %v578 = vadd.f32 %v555, %v569
      %v579 = vadd.f32 %v556, %v569
      %v580 = vadd.f32 %v557, %v569
      %v581 = vadd.f32 %v558, %v569
      %v582 = vadd.f32 %v559, %v569
      %v583 = vadd.f32 %v560, %v569
      %v584 = vadd.f32 %v561, %v569
      %v585 = vadd.f32 %v562, %v569
      %v586 = vadd.f32 %v563, %v569
      %v587 = vmax.f32 %v571, 0.0
      %v588 = vmax.f32 %v572, 0.0
      %v589 = vmax.f32 %v573, 0.0
      %v590 = vmax.f32 %v574, 0.0
      %v591 = vmax.f32 %v575, 0.0
      %v592 = vmax.f32 %v576, 0.0
      %v593 = vmax.f32 %v577, 0.0
      %v594 = vmax.f32 %v578, 0.0
      %v595 = vmax.f32 %v579, 0.0
      %v596 = vmax.f32 %v580, 0.0
      %v597 = vmax.f32 %v581, 0.0
      %v598 = vmax.f32 %v582, 0.0
      %v599 = vmax.f32 %v583, 0.0
      %v600 = vmax.f32 %v584, 0.0
      %v601 = vmax.f32 %v585, 0.0
      %v602 = vmax.f32 %v586, 0.0
      %v603 = vsel %vm509, 1, 0
      %v604 = vsel %vm510, 1, 0
      %v605 = vsel %vm511, 1, 0
      %v606 = vsel %vm512, 1, 0
      %v607 = vsel %vm513, 1, 0
      %v608 = vsel %vm514, 1, 0
      %v609 = vsel %vm515, 1, 0
      %v610 = vsel %vm516, 1, 0
      %v611 = vsel %vm517, 1, 0
      %v612 = vsel %vm518, 1, 0
      %v613 = vsel %vm519, 1, 0
      %v614 = vsel %vm520, 1, 0
      %v615 = vsel %vm521, 1, 0
      %v616 = vsel %vm522, 1, 0
      %v617 = vsel %vm523, 1, 0
      %v618 = vsel %vm524, 1, 0
      %vm619 = vcmp.eq.s32.totalorder %v603, 1
      %vm620 = vcmp.eq.s32.totalorder %v604, 1
      %vm621 = vcmp.eq.s32.totalorder %v605, 1
      %vm622 = vcmp.eq.s32.totalorder %v606, 1
      %vm623 = vcmp.eq.s32.totalorder %v607, 1
      %vm624 = vcmp.eq.s32.totalorder %v608, 1
      %vm625 = vcmp.eq.s32.totalorder %v609, 1
      %vm626 = vcmp.eq.s32.totalorder %v610, 1
      %vm627 = vcmp.eq.s32.totalorder %v611, 1
      %vm628 = vcmp.eq.s32.totalorder %v612, 1
      %vm629 = vcmp.eq.s32.totalorder %v613, 1
      %vm630 = vcmp.eq.s32.totalorder %v614, 1
      %vm631 = vcmp.eq.s32.totalorder %v615, 1
      %vm632 = vcmp.eq.s32.totalorder %v616, 1
      %vm633 = vcmp.eq.s32.totalorder %v617, 1
      %vm634 = vcmp.eq.s32.totalorder %v618, 1
      %v635 = vsel %vm619, %v587, 0.0
      %v636 = vsel %vm620, %v588, 0.0
      %v637 = vsel %vm621, %v589, 0.0
      %v638 = vsel %vm622, %v590, 0.0
      %v639 = vsel %vm623, %v591, 0.0
      %v640 = vsel %vm624, %v592, 0.0
      %v641 = vsel %vm625, %v593, 0.0
      %v642 = vsel %vm626, %v594, 0.0
      %v643 = vsel %vm627, %v595, 0.0
      %v644 = vsel %vm628, %v596, 0.0
      %v645 = vsel %vm629, %v597, 0.0
      %v646 = vsel %vm630, %v598, 0.0
      %v647 = vsel %vm631, %v599, 0.0
      %v648 = vsel %vm632, %v600, 0.0
      %v649 = vsel %vm633, %v601, 0.0
      %v650 = vsel %vm634, %v602, 0.0
      %vm651 = vcmask 64512
      %652 = vst.msk [vmem:[#allocation2] sm:$0xff] %vm651, 0
      %653 = vst.msk [vmem:[#allocation2 + $0x8] sm:$0xff] %vm651, 0
      %654 = vst.msk [vmem:[#allocation2 + $0x10] sm:$0xff] %vm651, 0
      %655 = vst.msk [vmem:[#allocation2 + $0x18] sm:$0xff] %vm651, 0
      %656 = vst.msk [vmem:[#allocation2 + $0x20] sm:$0xff] %vm651, 0
      %657 = vst.msk [vmem:[#allocation2 + $0x28] sm:$0xff] %vm651, 0
      %658 = vst.msk [vmem:[#allocation2 + $0x30] sm:$0xff] %vm651, 0
      %659 = vst.msk [vmem:[#allocation2 + $0x38] sm:$0xff] %vm651, 0
      %660 = vst.msk [vmem:[#allocation2 + $0x40] sm:$0xff] %vm651, 0
      %661 = vst.msk [vmem:[#allocation2 + $0x48] sm:$0xff] %vm651, 0
      %662 = vst.msk [vmem:[#allocation2 + $0x50] sm:$0xff] %vm651, 0
      %v663 = vpack.c.bf16 %v636, %v635
      %v664 = vpack.c.bf16 %v638, %v637
      %v665 = vpack.c.bf16 %v640, %v639
      %v666 = vpack.c.bf16 %v642, %v641
      %v667 = vpack.c.bf16 %v644, %v643
      %v668 = vpack.c.bf16 %v646, %v645
      %v669 = vpack.c.bf16 %v648, %v647
      %v670 = vpack.c.bf16 %v650, %v649
      %vm671 = vsmask.f32 256
      %v673 = vshrl.u32 %v663, 16
      %v675 = vrot.slane %v673, 7
      %v676 = vshll.u32 %v663, 16
      %v678 = vor.u32 %v675, %v676
      %v680 = vshrl.u32 %v664, 16
      %v682 = vrot.slane %v680, 7
      %v683 = vshll.u32 %v664, 16
      %v685 = vor.u32 %v682, %v683
      %v686 = vsel %vm671, %v675, %v685
      %v688 = vshrl.u32 %v665, 16
      %v690 = vrot.slane %v688, 7
      %v691 = vshll.u32 %v665, 16
      %v693 = vor.u32 %v690, %v691
      %v694 = vsel %vm671, %v682, %v693
      %v696 = vshrl.u32 %v666, 16
      %v698 = vrot.slane %v696, 7
      %v699 = vshll.u32 %v666, 16
      %v701 = vor.u32 %v698, %v699
      %v702 = vsel %vm671, %v690, %v701
      %v704 = vshrl.u32 %v667, 16
      %v706 = vrot.slane %v704, 7
      %v707 = vshll.u32 %v667, 16
      %v709 = vor.u32 %v706, %v707
      %v710 = vsel %vm671, %v698, %v709
      %v712 = vshrl.u32 %v668, 16
      %v714 = vrot.slane %v712, 7
      %v715 = vshll.u32 %v668, 16
      %v717 = vor.u32 %v714, %v715
      %v718 = vsel %vm671, %v706, %v717
      %v720 = vshrl.u32 %v669, 16
      %v722 = vrot.slane %v720, 7
      %v723 = vshll.u32 %v669, 16
      %v725 = vor.u32 %v722, %v723
      %v726 = vsel %vm671, %v714, %v725
      %v728 = vshrl.u32 %v670, 16
      %v730 = vrot.slane %v728, 7
      %v731 = vshll.u32 %v670, 16
      %v733 = vor.u32 %v730, %v731
      %v734 = vsel %vm671, %v722, %v733
      %vm744 = vcmask 64512
      %vm745 = vsmask.f32 7938
      %vm746 = vmand %vm744, %vm745
      %v747 = vld [vmem:[#allocation2 + $0x8] sm:$0xff]
      %v748 = vsel %vm746, %v678, %v747
      %749 = vst [vmem:[#allocation2 + $0x8] sm:$0xff] %v748
      %750 = vst.msk [vmem:[#allocation2 + $0x10] sm:$0xff] %vm651, %v686
      %751 = vst.msk [vmem:[#allocation2 + $0x18] sm:$0xff] %vm651, %v694
      %752 = vst.msk [vmem:[#allocation2 + $0x20] sm:$0xff] %vm651, %v702
      %753 = vst.msk [vmem:[#allocation2 + $0x28] sm:$0xff] %vm651, %v710
      %754 = vst.msk [vmem:[#allocation2 + $0x30] sm:$0xff] %vm651, %v718
      %755 = vst.msk [vmem:[#allocation2 + $0x38] sm:$0xff] %vm651, %v726
      %756 = vst.msk [vmem:[#allocation2 + $0x40] sm:$0xff] %vm651, %v734
      %vm757 = vcmask 57344
      %vm758 = vmand %vm757, %vm671
      %v759 = vld [vmem:[#allocation2 + $0x48] sm:$0x1]
      %v760 = vsel %vm758, %v730, %v759
      %761 = vst [vmem:[#allocation2 + $0x48] sm:$0x1] %v760
      %v762 = vld [vmem:[#allocation2] sm:$0xff]
      %v763 = vld [vmem:[#allocation2 + $0x8] sm:$0xff]
      %v764 = vld [vmem:[#allocation2 + $0x10] sm:$0xff]
      %v765 = vld [vmem:[#allocation2 + $0x18] sm:$0xff]
      %v766 = vld [vmem:[#allocation2 + $0x20] sm:$0xff]
      %v767 = vld [vmem:[#allocation2 + $0x28] sm:$0xff]
      %v768 = vld [vmem:[#allocation2 + $0x30] sm:$0xff]
      %v769 = vld [vmem:[#allocation2 + $0x38] sm:$0xff]
      %v770 = vld [vmem:[%s3] sm:$0xf]
      %v771 = vld [vmem:[#allocation2 + $0x40] sm:$0x1]
      %s772 = scalar_lea.vmem %s3, 4
      %v773 = vld [vmem:[%s772] sm:$0xf]
      %vm774 = vsmask.f32 7424
      %v776 = vshrl.u32 %v762, 16
      %v778 = vshll.u32 %v762, 16
      %v780 = vrot.slane %v778, 1
      %v781 = vor.u32 %v776, %v780
      %v783 = vshll.u32 %v763, 16
      %v785 = vrot.slane %v783, 1
      %v786 = vsel %vm774, %v781, %v785
      %v787 = vshrl.u32 %v763, 16
      %v789 = vor.u32 %v787, %v785
      %v791 = vshll.u32 %v764, 16
      %v793 = vrot.slane %v791, 1
      %v794 = vsel %vm774, %v789, %v793
      %v795 = vshrl.u32 %v764, 16
      %v797 = vor.u32 %v795, %v793
      %v799 = vshll.u32 %v765, 16
      %v801 = vrot.slane %v799, 1
      %v802 = vsel %vm774, %v797, %v801
      %v803 = vshrl.u32 %v765, 16
      %v805 = vor.u32 %v803, %v801
      %v807 = vshll.u32 %v766, 16
      %v809 = vrot.slane %v807, 1
      %v810 = vsel %vm774, %v805, %v809
      %v811 = vshrl.u32 %v766, 16
      %v813 = vor.u32 %v811, %v809
      %v815 = vshll.u32 %v767, 16
      %v817 = vrot.slane %v815, 1
      %v818 = vsel %vm774, %v813, %v817
      %v819 = vshrl.u32 %v767, 16
      %v821 = vor.u32 %v819, %v817
      %v823 = vshll.u32 %v768, 16
      %v825 = vrot.slane %v823, 1
      %v826 = vsel %vm774, %v821, %v825
      %v827 = vshrl.u32 %v768, 16
      %v829 = vor.u32 %v827, %v825
      %v831 = vshll.u32 %v769, 16
      %v833 = vrot.slane %v831, 1
      %v834 = vsel %vm774, %v829, %v833
      %v835 = vshrl.u32 %v769, 16
      %v837 = vor.u32 %v835, %v833
      %v839 = vshll.u32 %v771, 16
      %v841 = vrot.slane %v839, 1
      %v842 = vsel %vm774, %v837, %v841
      %v844 = vsel %vm651, %v786, 0
      %v847 = vsel %vm651, %v794, 0
      %v850 = vsel %vm651, %v802, 0
      %v853 = vsel %vm651, %v810, 0
      %v856 = vsel %vm651, %v818, 0
      %v859 = vsel %vm651, %v826, 0
      %v862 = vsel %vm651, %v834, 0
      %v865 = vsel %vm651, %v842, 0
      %vm867 = vcmask 1043456
      %v869 = vsel %vm867, %v773, 0
      %871 = vmatprep.subr.bf16.mxu0 0
      %872 = vmatpush1.bf16.msra.mxu0 %v869
      %873 = vmatprep.subr.bf16.mxu0 0
      %874 = vmatpush1.bf16.msra.mxu0 0
      %875 = vmatprep.subr.bf16.mxu0 0
      %876 = vmatpush1.bf16.msra.mxu0 0
      %877 = vmatprep.subr.bf16.mxu0 0
      %878 = vmatpush1.bf16.msra.mxu0 0
      %879 = vmatprep.subr.bf16.mxu0 0
      %880 = vmatpush1.bf16.msra.mxu0 0
      %881 = vmatprep.subr.bf16.mxu0 0
      %882 = vmatpush1.bf16.msra.mxu0 0
      %883 = vmatprep.subr.bf16.mxu0 0
      %884 = vmatpush1.bf16.msra.mxu0 0
      %885 = vmatprep.subr.bf16.mxu0 0
      %886 = vmatpush1.bf16.msra.mxu0 0
      %887 = vmatprep.subr.bf16.mxu0 0
      %888 = vmatpush1.bf16.msra.mxu0 0
      %889 = vmatprep.subr.bf16.mxu0 0
      %890 = vmatpush1.bf16.msra.mxu0 0
      %891 = vmatprep.subr.bf16.mxu0 0
      %892 = vmatpush1.bf16.msra.mxu0 0
      %893 = vmatprep.subr.bf16.mxu0 0
      %894 = vmatpush1.bf16.msra.mxu0 0
      %895 = vmatprep.subr.bf16.mxu0 0
      %896 = vmatpush1.bf16.msra.mxu0 0
      %897 = vmatprep.subr.bf16.mxu0 0
      %898 = vmatpush1.bf16.msra.mxu0 0
      %899 = vmatprep.subr.bf16.mxu0 0
      %900 = vmatpush1.bf16.msra.mxu0 0
      %901 = vmatprep.subr.bf16.mxu0 0
      %902 = vmatpush1.bf16.msra.mxu0 0
      %903 = vmatprep.mubr.bf16.mxu0 0
      %904 = vmatmul.mubr.bf16.gmra.mrb[0].mxu0 %v844
      %v905 = vpop.f32.mrb[0].mxu0
      %v906 = vadd.f32 0.0, %v905
      %v907 = vpop.f32.mrb[0].mxu0
      %v908 = vpop.f32.mrb[0].mxu0
      %v909 = vadd.f32 0.0, %v908
      %v910 = vpop.f32.mrb[0].mxu0
      %911 = vmatprep.mubr.bf16.mxu0 0
      %912 = vmatmul.mubr.bf16.gmra.mrb[0].mxu0 %v847
      %v913 = vpop.f32.mrb[0].mxu0
      %v914 = vadd.f32 0.0, %v913
      %v915 = vpop.f32.mrb[0].mxu0
      %v916 = vpop.f32.mrb[0].mxu0
      %v917 = vadd.f32 0.0, %v916
      %v918 = vpop.f32.mrb[0].mxu0
      %919 = vmatprep.mubr.bf16.mxu0 0
      %920 = vmatmul.mubr.bf16.gmra.mrb[0].mxu0 %v850
      %v921 = vpop.f32.mrb[0].mxu0
      %v922 = vadd.f32 0.0, %v921
      %v923 = vpop.f32.mrb[0].mxu0
      %v924 = vpop.f32.mrb[0].mxu0
      %v925 = vadd.f32 0.0, %v924
      %v926 = vpop.f32.mrb[0].mxu0
      %927 = vmatprep.mubr.bf16.mxu0 0
      %928 = vmatmul.mubr.bf16.gmra.mrb[0].mxu0 %v853
      %v929 = vpop.f32.mrb[0].mxu0
      %v930 = vadd.f32 0.0, %v929
      %v931 = vpop.f32.mrb[0].mxu0
      %v932 = vpop.f32.mrb[0].mxu0
      %v933 = vadd.f32 0.0, %v932
      %v934 = vpop.f32.mrb[0].mxu0
      %935 = vmatprep.mubr.bf16.mxu0 0
      %936 = vmatmul.mubr.bf16.gmra.mrb[0].mxu0 %v856
      %v937 = vpop.f32.mrb[0].mxu0
      %v938 = vadd.f32 0.0, %v937
      %v939 = vpop.f32.mrb[0].mxu0
      %v940 = vpop.f32.mrb[0].mxu0
      %v941 = vadd.f32 0.0, %v940
      %v942 = vpop.f32.mrb[0].mxu0
      %943 = vmatprep.mubr.bf16.mxu0 0
      %944 = vmatmul.mubr.bf16.gmra.mrb[0].mxu0 %v859
      %v945 = vpop.f32.mrb[0].mxu0
      %v946 = vadd.f32 0.0, %v945
      %v947 = vpop.f32.mrb[0].mxu0
      %v948 = vpop.f32.mrb[0].mxu0
      %v949 = vadd.f32 0.0, %v948
      %v950 = vpop.f32.mrb[0].mxu0
      %951 = vmatprep.mubr.bf16.mxu0 0
      %952 = vmatmul.mubr.bf16.gmra.mrb[0].mxu0 %v862
      %v953 = vpop.f32.mrb[0].mxu0
      %v954 = vadd.f32 0.0, %v953
      %v955 = vpop.f32.mrb[0].mxu0
      %v956 = vpop.f32.mrb[0].mxu0
      %v957 = vadd.f32 0.0, %v956
      %v958 = vpop.f32.mrb[0].mxu0
      %959 = vmatprep.mubr.bf16.mxu0 0
      %960 = vmatmul.mubr.bf16.gmra.mrb[0].mxu0 %v865
      %v961 = vpop.f32.mrb[0].mxu0
      %v962 = vadd.f32 0.0, %v961
      %v963 = vpop.f32.mrb[0].mxu0
      %v964 = vpop.f32.mrb[0].mxu0
      %v965 = vadd.f32 0.0, %v964
      %v966 = vpop.f32.mrb[0].mxu0
      %967 = vdwg.mxu0
      %v968 = vsel %vm651, %v762, 0
      %v970 = vsel %vm651, %v763, 0
      %v972 = vsel %vm651, %v764, 0
      %v974 = vsel %vm651, %v765, 0
      %v976 = vsel %vm651, %v766, 0
      %v978 = vsel %vm651, %v767, 0
      %v980 = vsel %vm651, %v768, 0
      %v982 = vsel %vm651, %v769, 0
      %v985 = vsel %vm867, %v770, 0
      %987 = vmatprep.subr.bf16.mxu0 0
      %988 = vmatpush1.bf16.msra.mxu0 %v985
      %989 = vmatprep.subr.bf16.mxu0 0
      %990 = vmatpush1.bf16.msra.mxu0 0
      %991 = vmatprep.subr.bf16.mxu0 0
      %992 = vmatpush1.bf16.msra.mxu0 0
      %993 = vmatprep.subr.bf16.mxu0 0
      %994 = vmatpush1.bf16.msra.mxu0 0
      %995 = vmatprep.subr.bf16.mxu0 0
      %996 = vmatpush1.bf16.msra.mxu0 0
      %997 = vmatprep.subr.bf16.mxu0 0
      %998 = vmatpush1.bf16.msra.mxu0 0
      %999 = vmatprep.subr.bf16.mxu0 0
      %1000 = vmatpush1.bf16.msra.mxu0 0
      %1001 = vmatprep.subr.bf16.mxu0 0
      %1002 = vmatpush1.bf16.msra.mxu0 0
      %1003 = vmatprep.subr.bf16.mxu0 0
      %1004 = vmatpush1.bf16.msra.mxu0 0
      %1005 = vmatprep.subr.bf16.mxu0 0
      %1006 = vmatpush1.bf16.msra.mxu0 0
      %1007 = vmatprep.subr.bf16.mxu0 0
      %1008 = vmatpush1.bf16.msra.mxu0 0
      %1009 = vmatprep.subr.bf16.mxu0 0
      %1010 = vmatpush1.bf16.msra.mxu0 0
      %1011 = vmatprep.subr.bf16.mxu0 0
      %1012 = vmatpush1.bf16.msra.mxu0 0
      %1013 = vmatprep.subr.bf16.mxu0 0
      %1014 = vmatpush1.bf16.msra.mxu0 0
      %1015 = vmatprep.subr.bf16.mxu0 0
      %1016 = vmatpush1.bf16.msra.mxu0 0
      %1017 = vmatprep.subr.bf16.mxu0 0
      %1018 = vmatpush1.bf16.msra.mxu0 0
      %1019 = vmatprep.mubr.bf16.mxu0 0
      %1020 = vmatmul.mubr.bf16.gmra.mrb[0].mxu0 %v968
      %v1021 = vpop.f32.mrb[0].mxu0
      %v1022 = vadd.f32 %v906, %v1021
      %v1023 = vpop.f32.mrb[0].mxu0
      %v1024 = vpop.f32.mrb[0].mxu0
      %v1025 = vadd.f32 %v909, %v1024
      %v1026 = vpop.f32.mrb[0].mxu0
      %1027 = vmatprep.mubr.bf16.mxu0 0
      %1028 = vmatmul.mubr.bf16.gmra.mrb[0].mxu0 %v970
      %v1029 = vpop.f32.mrb[0].mxu0
      %v1030 = vadd.f32 %v914, %v1029
      %v1031 = vpop.f32.mrb[0].mxu0
      %v1032 = vpop.f32.mrb[0].mxu0
      %v1033 = vadd.f32 %v917, %v1032
      %v1034 = vpop.f32.mrb[0].mxu0
      %1035 = vmatprep.mubr.bf16.mxu0 0
      %1036 = vmatmul.mubr.bf16.gmra.mrb[0].mxu0 %v972
      %v1037 = vpop.f32.mrb[0].mxu0
      %v1038 = vadd.f32 %v922, %v1037
      %v1039 = vpop.f32.mrb[0].mxu0
      %v1040 = vpop.f32.mrb[0].mxu0
      %v1041 = vadd.f32 %v925, %v1040
      %v1042 = vpop.f32.mrb[0].mxu0
      %1043 = vmatprep.mubr.bf16.mxu0 0
      %1044 = vmatmul.mubr.bf16.gmra.mrb[0].mxu0 %v974
      %v1045 = vpop.f32.mrb[0].mxu0
      %v1046 = vadd.f32 %v930, %v1045
      %v1047 = vpop.f32.mrb[0].mxu0
      %v1048 = vpop.f32.mrb[0].mxu0
      %v1049 = vadd.f32 %v933, %v1048
      %v1050 = vpop.f32.mrb[0].mxu0
      %1051 = vmatprep.mubr.bf16.mxu0 0
      %1052 = vmatmul.mubr.bf16.gmra.mrb[0].mxu0 %v976
      %v1053 = vpop.f32.mrb[0].mxu0
      %v1054 = vadd.f32 %v938, %v1053
      %v1055 = vpop.f32.mrb[0].mxu0
      %v1056 = vpop.f32.mrb[0].mxu0
      %v1057 = vadd.f32 %v941, %v1056
      %v1058 = vpop.f32.mrb[0].mxu0
      %1059 = vmatprep.mubr.bf16.mxu0 0
      %1060 = vmatmul.mubr.bf16.gmra.mrb[0].mxu0 %v978
      %v1061 = vpop.f32.mrb[0].mxu0
      %v1062 = vadd.f32 %v946, %v1061
      %v1063 = vpop.f32.mrb[0].mxu0
      %v1064 = vpop.f32.mrb[0].mxu0
      %v1065 = vadd.f32 %v949, %v1064
      %v1066 = vpop.f32.mrb[0].mxu0
      %1067 = vmatprep.mubr.bf16.mxu0 0
      %1068 = vmatmul.mubr.bf16.gmra.mrb[0].mxu0 %v980
      %v1069 = vpop.f32.mrb[0].mxu0
      %v1070 = vadd.f32 %v954, %v1069
      %v1071 = vpop.f32.mrb[0].mxu0
      %v1072 = vpop.f32.mrb[0].mxu0
      %v1073 = vadd.f32 %v957, %v1072
      %v1074 = vpop.f32.mrb[0].mxu0
      %1075 = vmatprep.mubr.bf16.mxu0 0
      %1076 = vmatmul.mubr.bf16.gmra.mrb[0].mxu0 %v982
      %v1077 = vpop.f32.mrb[0].mxu0
      %v1078 = vadd.f32 %v962, %v1077
      %v1079 = vpop.f32.mrb[0].mxu0
      %v1080 = vpop.f32.mrb[0].mxu0
      %v1081 = vadd.f32 %v965, %v1080
      %v1082 = vpop.f32.mrb[0].mxu0
      %1083 = vdwg.mxu0
      %v1084 = vld [vmem:[#allocation2] sm:$0xfe]
      %s1085 = scalar_lea.vmem %s3, 8
      %v1086 = vld [vmem:[%s1085] sm:$0xf]
      %vm1096 = vcmask 1046528
      %v1097 = vrot.slane %v1084, 1
      %v1098 = vrot.slane %v763, 1
      %v1099 = vsel %vm1096, %v1097, %v1098
      %v1100 = vrot.slane %v764, 1
      %v1101 = vsel %vm1096, %v1098, %v1100
      %v1102 = vrot.slane %v765, 1
      %v1103 = vsel %vm1096, %v1100, %v1102
      %v1104 = vrot.slane %v766, 1
      %v1105 = vsel %vm1096, %v1102, %v1104
      %v1106 = vrot.slane %v767, 1
      %v1107 = vsel %vm1096, %v1104, %v1106
      %v1108 = vrot.slane %v768, 1
      %v1109 = vsel %vm1096, %v1106, %v1108
      %v1110 = vrot.slane %v769, 1
      %v1111 = vsel %vm1096, %v1108, %v1110
      %v1112 = vrot.slane %v771, 1
      %v1113 = vsel %vm1096, %v1110, %v1112
      %v1115 = vsel %vm651, %v1099, 0
      %v1118 = vsel %vm651, %v1101, 0
      %v1121 = vsel %vm651, %v1103, 0
      %v1124 = vsel %vm651, %v1105, 0
      %v1127 = vsel %vm651, %v1107, 0
      %v1130 = vsel %vm651, %v1109, 0
      %v1133 = vsel %vm651, %v1111, 0
      %v1136 = vsel %vm651, %v1113, 0
      %v1139 = vsel %vm867, %v1086, 0
      %1141 = vmatprep.subr.bf16.mxu0 0
      %1142 = vmatpush1.bf16.msra.mxu0 %v1139
      %1143 = vmatprep.subr.bf16.mxu0 0
      %1144 = vmatpush1.bf16.msra.mxu0 0
      %1145 = vmatprep.subr.bf16.mxu0 0
      %1146 = vmatpush1.bf16.msra.mxu0 0
      %1147 = vmatprep.subr.bf16.mxu0 0
      %1148 = vmatpush1.bf16.msra.mxu0 0
      %1149 = vmatprep.subr.bf16.mxu0 0
      %1150 = vmatpush1.bf16.msra.mxu0 0
      %1151 = vmatprep.subr.bf16.mxu0 0
      %1152 = vmatpush1.bf16.msra.mxu0 0
      %1153 = vmatprep.subr.bf16.mxu0 0
      %1154 = vmatpush1.bf16.msra.mxu0 0
      %1155 = vmatprep.subr.bf16.mxu0 0
      %1156 = vmatpush1.bf16.msra.mxu0 0
      %1157 = vmatprep.subr.bf16.mxu0 0
      %1158 = vmatpush1.bf16.msra.mxu0 0
      %1159 = vmatprep.subr.bf16.mxu0 0
      %1160 = vmatpush1.bf16.msra.mxu0 0
      %1161 = vmatprep.subr.bf16.mxu0 0
      %1162 = vmatpush1.bf16.msra.mxu0 0
      %1163 = vmatprep.subr.bf16.mxu0 0
      %1164 = vmatpush1.bf16.msra.mxu0 0
      %1165 = vmatprep.subr.bf16.mxu0 0
      %1166 = vmatpush1.bf16.msra.mxu0 0
      %1167 = vmatprep.subr.bf16.mxu0 0
      %1168 = vmatpush1.bf16.msra.mxu0 0
      %1169 = vmatprep.subr.bf16.mxu0 0
      %1170 = vmatpush1.bf16.msra.mxu0 0
      %1171 = vmatprep.subr.bf16.mxu0 0
      %1172 = vmatpush1.bf16.msra.mxu0 0
      %1173 = vmatprep.mubr.bf16.mxu0 0
      %1174 = vmatmul.mubr.bf16.gmra.mrb[0].mxu0 %v1115
      %v1175 = vpop.f32.mrb[0].mxu0
      %v1176 = vadd.f32 0.0, %v1175
      %v1177 = vpop.f32.mrb[0].mxu0
      %v1178 = vpop.f32.mrb[0].mxu0
      %v1179 = vadd.f32 0.0, %v1178
      %v1180 = vpop.f32.mrb[0].mxu0
      %1181 = vmatprep.mubr.bf16.mxu0 0
      %1182 = vmatmul.mubr.bf16.gmra.mrb[0].mxu0 %v1118
      %v1183 = vpop.f32.mrb[0].mxu0
      %v1184 = vadd.f32 0.0, %v1183
      %v1185 = vpop.f32.mrb[0].mxu0
      %v1186 = vpop.f32.mrb[0].mxu0
      %v1187 = vadd.f32 0.0, %v1186
      %v1188 = vpop.f32.mrb[0].mxu0
      %1189 = vmatprep.mubr.bf16.mxu0 0
      %1190 = vmatmul.mubr.bf16.gmra.mrb[0].mxu0 %v1121
      %v1191 = vpop.f32.mrb[0].mxu0
      %v1192 = vadd.f32 0.0, %v1191
      %v1193 = vpop.f32.mrb[0].mxu0
      %v1194 = vpop.f32.mrb[0].mxu0
      %v1195 = vadd.f32 0.0, %v1194
      %v1196 = vpop.f32.mrb[0].mxu0
      %1197 = vmatprep.mubr.bf16.mxu0 0
      %1198 = vmatmul.mubr.bf16.gmra.mrb[0].mxu0 %v1124
      %v1199 = vpop.f32.mrb[0].mxu0
      %v1200 = vadd.f32 0.0, %v1199
      %v1201 = vpop.f32.mrb[0].mxu0
      %v1202 = vpop.f32.mrb[0].mxu0
      %v1203 = vadd.f32 0.0, %v1202
      %v1204 = vpop.f32.mrb[0].mxu0
      %1205 = vmatprep.mubr.bf16.mxu0 0
      %1206 = vmatmul.mubr.bf16.gmra.mrb[0].mxu0 %v1127
      %v1207 = vpop.f32.mrb[0].mxu0
      %v1208 = vadd.f32 0.0, %v1207
      %v1209 = vpop.f32.mrb[0].mxu0
      %v1210 = vpop.f32.mrb[0].mxu0
      %v1211 = vadd.f32 0.0, %v1210
      %v1212 = vpop.f32.mrb[0].mxu0
      %1213 = vmatprep.mubr.bf16.mxu0 0
      %1214 = vmatmul.mubr.bf16.gmra.mrb[0].mxu0 %v1130
      %v1215 = vpop.f32.mrb[0].mxu0
      %v1216 = vadd.f32 0.0, %v1215
      %v1217 = vpop.f32.mrb[0].mxu0
      %v1218 = vpop.f32.mrb[0].mxu0
      %v1219 = vadd.f32 0.0, %v1218
      %v1220 = vpop.f32.mrb[0].mxu0
      %1221 = vmatprep.mubr.bf16.mxu0 0
      %1222 = vmatmul.mubr.bf16.gmra.mrb[0].mxu0 %v1133
      %v1223 = vpop.f32.mrb[0].mxu0
      %v1224 = vadd.f32 0.0, %v1223
      %v1225 = vpop.f32.mrb[0].mxu0
      %v1226 = vpop.f32.mrb[0].mxu0
      %v1227 = vadd.f32 0.0, %v1226
      %v1228 = vpop.f32.mrb[0].mxu0
      %1229 = vmatprep.mubr.bf16.mxu0 0
      %1230 = vmatmul.mubr.bf16.gmra.mrb[0].mxu0 %v1136
      %v1231 = vpop.f32.mrb[0].mxu0
      %v1232 = vadd.f32 0.0, %v1231
      %v1233 = vpop.f32.mrb[0].mxu0
      %v1234 = vpop.f32.mrb[0].mxu0
      %v1235 = vadd.f32 0.0, %v1234
      %v1236 = vpop.f32.mrb[0].mxu0
      %1237 = vdwg.mxu0
      %v1238 = vadd.f32 %v1022, %v1176
      %v1239 = vadd.f32 %v1025, %v1179
      %v1240 = vadd.f32 %v1030, %v1184
      %v1241 = vadd.f32 %v1033, %v1187
      %v1242 = vadd.f32 %v1038, %v1192
      %v1243 = vadd.f32 %v1041, %v1195
      %v1244 = vadd.f32 %v1046, %v1200
      %v1245 = vadd.f32 %v1049, %v1203
      %v1246 = vadd.f32 %v1054, %v1208
      %v1247 = vadd.f32 %v1057, %v1211
      %v1248 = vadd.f32 %v1062, %v1216
      %v1249 = vadd.f32 %v1065, %v1219
      %v1250 = vadd.f32 %v1070, %v1224
      %v1251 = vadd.f32 %v1073, %v1227
      %v1252 = vadd.f32 %v1078, %v1232
      %v1253 = vadd.f32 %v1081, %v1235
      %v1254 = vld [vmem:[#allocation2 + $0x40] sm:$0xff]
      %s1255 = scalar_lea.vmem %s3, 12
      %v1256 = vld [vmem:[%s1255] sm:$0xf]
      %v1258 = vsel %vm651, %v1254, 0
      %v1261 = vsel %vm867, %v1256, 0
      %1263 = vmatprep.subr.bf16.mxu0 0
      %1264 = vmatpush1.bf16.msra.mxu0 %v1261
      %1265 = vmatprep.subr.bf16.mxu0 0
      %1266 = vmatpush1.bf16.msra.mxu0 0
      %1267 = vmatprep.subr.bf16.mxu0 0
      %1268 = vmatpush1.bf16.msra.mxu0 0
      %1269 = vmatprep.subr.bf16.mxu0 0
      %1270 = vmatpush1.bf16.msra.mxu0 0
      %1271 = vmatprep.subr.bf16.mxu0 0
      %1272 = vmatpush1.bf16.msra.mxu0 0
      %1273 = vmatprep.subr.bf16.mxu0 0
      %1274 = vmatpush1.bf16.msra.mxu0 0
      %1275 = vmatprep.subr.bf16.mxu0 0
      %1276 = vmatpush1.bf16.msra.mxu0 0
      %1277 = vmatprep.subr.bf16.mxu0 0
      %1278 = vmatpush1.bf16.msra.mxu0 0
      %1279 = vmatprep.subr.bf16.mxu0 0
      %1280 = vmatpush1.bf16.msra.mxu0 0
      %1281 = vmatprep.subr.bf16.mxu0 0
      %1282 = vmatpush1.bf16.msra.mxu0 0
      %1283 = vmatprep.subr.bf16.mxu0 0
      %1284 = vmatpush1.bf16.msra.mxu0 0
      %1285 = vmatprep.subr.bf16.mxu0 0
      %1286 = vmatpush1.bf16.msra.mxu0 0
      %1287 = vmatprep.subr.bf16.mxu0 0
      %1288 = vmatpush1.bf16.msra.mxu0 0
      %1289 = vmatprep.subr.bf16.mxu0 0
      %1290 = vmatpush1.bf16.msra.mxu0 0
      %1291 = vmatprep.subr.bf16.mxu0 0
      %1292 = vmatpush1.bf16.msra.mxu0 0
      %1293 = vmatprep.subr.bf16.mxu0 0
      %1294 = vmatpush1.bf16.msra.mxu0 0
      %1295 = vmatprep.mubr.bf16.mxu0 0
      %1296 = vmatmul.mubr.bf16.gmra.mrb[0].mxu0 %v970
      %v1297 = vpop.f32.mrb[0].mxu0
      %v1298 = vadd.f32 0.0, %v1297
      %v1299 = vpop.f32.mrb[0].mxu0
      %v1300 = vpop.f32.mrb[0].mxu0
      %v1301 = vadd.f32 0.0, %v1300
      %v1302 = vpop.f32.mrb[0].mxu0
      %1303 = vmatprep.mubr.bf16.mxu0 0
      %1304 = vmatmul.mubr.bf16.gmra.mrb[0].mxu0 %v972
      %v1305 = vpop.f32.mrb[0].mxu0
      %v1306 = vadd.f32 0.0, %v1305
      %v1307 = vpop.f32.mrb[0].mxu0
      %v1308 = vpop.f32.mrb[0].mxu0
      %v1309 = vadd.f32 0.0, %v1308
      %v1310 = vpop.f32.mrb[0].mxu0
      %1311 = vmatprep.mubr.bf16.mxu0 0
      %1312 = vmatmul.mubr.bf16.gmra.mrb[0].mxu0 %v974
      %v1313 = vpop.f32.mrb[0].mxu0
      %v1314 = vadd.f32 0.0, %v1313
      %v1315 = vpop.f32.mrb[0].mxu0
      %v1316 = vpop.f32.mrb[0].mxu0
      %v1317 = vadd.f32 0.0, %v1316
      %v1318 = vpop.f32.mrb[0].mxu0
      %1319 = vmatprep.mubr.bf16.mxu0 0
      %1320 = vmatmul.mubr.bf16.gmra.mrb[0].mxu0 %v976
      %v1321 = vpop.f32.mrb[0].mxu0
      %v1322 = vadd.f32 0.0, %v1321
      %v1323 = vpop.f32.mrb[0].mxu0
      %v1324 = vpop.f32.mrb[0].mxu0
      %v1325 = vadd.f32 0.0, %v1324
      %v1326 = vpop.f32.mrb[0].mxu0
      %1327 = vmatprep.mubr.bf16.mxu0 0
      %1328 = vmatmul.mubr.bf16.gmra.mrb[0].mxu0 %v978
      %v1329 = vpop.f32.mrb[0].mxu0
      %v1330 = vadd.f32 0.0, %v1329
      %v1331 = vpop.f32.mrb[0].mxu0
      %v1332 = vpop.f32.mrb[0].mxu0
      %v1333 = vadd.f32 0.0, %v1332
      %v1334 = vpop.f32.mrb[0].mxu0
      %1335 = vmatprep.mubr.bf16.mxu0 0
      %1336 = vmatmul.mubr.bf16.gmra.mrb[0].mxu0 %v980
      %v1337 = vpop.f32.mrb[0].mxu0
      %v1338 = vadd.f32 0.0, %v1337
      %v1339 = vpop.f32.mrb[0].mxu0
      %v1340 = vpop.f32.mrb[0].mxu0
      %v1341 = vadd.f32 0.0, %v1340
      %v1342 = vpop.f32.mrb[0].mxu0
      %1343 = vmatprep.mubr.bf16.mxu0 0
      %1344 = vmatmul.mubr.bf16.gmra.mrb[0].mxu0 %v982
      %v1345 = vpop.f32.mrb[0].mxu0
      %v1346 = vadd.f32 0.0, %v1345
      %v1347 = vpop.f32.mrb[0].mxu0
      %v1348 = vpop.f32.mrb[0].mxu0
      %v1349 = vadd.f32 0.0, %v1348
      %v1350 = vpop.f32.mrb[0].mxu0
      %1351 = vmatprep.mubr.bf16.mxu0 0
      %1352 = vmatmul.mubr.bf16.gmra.mrb[0].mxu0 %v1258
      %v1353 = vpop.f32.mrb[0].mxu0
      %v1354 = vadd.f32 0.0, %v1353
      %v1355 = vpop.f32.mrb[0].mxu0
      %v1356 = vpop.f32.mrb[0].mxu0
      %v1357 = vadd.f32 0.0, %v1356
      %v1358 = vpop.f32.mrb[0].mxu0
      %1359 = vdwg.mxu0
      %v1360 = vadd.f32 %v1238, %v1298
      %v1361 = vadd.f32 %v1239, %v1301
      %v1362 = vadd.f32 %v1240, %v1306
      %v1363 = vadd.f32 %v1241, %v1309
      %v1364 = vadd.f32 %v1242, %v1314
      %v1365 = vadd.f32 %v1243, %v1317
      %v1366 = vadd.f32 %v1244, %v1322
      %v1367 = vadd.f32 %v1245, %v1325
      %v1368 = vadd.f32 %v1246, %v1330
      %v1369 = vadd.f32 %v1247, %v1333
      %v1370 = vadd.f32 %v1248, %v1338
      %v1371 = vadd.f32 %v1249, %v1341
      %v1372 = vadd.f32 %v1250, %v1346
      %v1373 = vadd.f32 %v1251, %v1349
      %v1374 = vadd.f32 %v1252, %v1354
      %v1375 = vadd.f32 %v1253, %v1357
      %v1376 = vld [vmem:[#allocation2 + $0x8] sm:$0xff]
      %v1377 = vld [vmem:[#allocation2 + $0x10] sm:$0xff]
      %v1378 = vld [vmem:[#allocation2 + $0x18] sm:$0xff]
      %v1379 = vld [vmem:[#allocation2 + $0x20] sm:$0xff]
      %v1380 = vld [vmem:[#allocation2 + $0x28] sm:$0xff]
      %v1381 = vld [vmem:[#allocation2 + $0x30] sm:$0xff]
      %v1382 = vld [vmem:[#allocation2 + $0x38] sm:$0xff]
      %v1383 = vld [vmem:[#allocation2 + $0x40] sm:$0xff]
      %v1384 = vld [vmem:[#allocation2 + $0x48] sm:$0x1]
      %s1385 = scalar_lea.vmem %s3, 16
      %v1386 = vld [vmem:[%s1385] sm:$0xf]
      %v1388 = vshrl.u32 %v1376, 16
      %v1390 = vshll.u32 %v1376, 16
      %v1392 = vrot.slane %v1390, 1
      %v1393 = vor.u32 %v1388, %v1392
      %v1395 = vshll.u32 %v1377, 16
      %v1397 = vrot.slane %v1395, 1
      %v1398 = vsel %vm774, %v1393, %v1397
      %v1399 = vshrl.u32 %v1377, 16
      %v1401 = vor.u32 %v1399, %v1397
      %v1403 = vshll.u32 %v1378, 16
      %v1405 = vrot.slane %v1403, 1
      %v1406 = vsel %vm774, %v1401, %v1405
      %v1407 = vshrl.u32 %v1378, 16
      %v1409 = vor.u32 %v1407, %v1405
      %v1411 = vshll.u32 %v1379, 16
      %v1413 = vrot.slane %v1411, 1
      %v1414 = vsel %vm774, %v1409, %v1413
      %v1415 = vshrl.u32 %v1379, 16
      %v1417 = vor.u32 %v1415, %v1413
      %v1419 = vshll.u32 %v1380, 16
      %v1421 = vrot.slane %v1419, 1
      %v1422 = vsel %vm774, %v1417, %v1421
      %v1423 = vshrl.u32 %v1380, 16
      %v1425 = vor.u32 %v1423, %v1421
      %v1427 = vshll.u32 %v1381, 16
      %v1429 = vrot.slane %v1427, 1
      %v1430 = vsel %vm774, %v1425, %v1429
      %v1431 = vshrl.u32 %v1381, 16
      %v1433 = vor.u32 %v1431, %v1429
      %v1435 = vshll.u32 %v1382, 16
      %v1437 = vrot.slane %v1435, 1
      %v1438 = vsel %vm774, %v1433, %v1437
      %v1439 = vshrl.u32 %v1382, 16
      %v1441 = vor.u32 %v1439, %v1437
      %v1443 = vshll.u32 %v1383, 16
      %v1445 = vrot.slane %v1443, 1
      %v1446 = vsel %vm774, %v1441, %v1445
      %v1447 = vshrl.u32 %v1383, 16
      %v1449 = vor.u32 %v1447, %v1445
      %v1451 = vshll.u32 %v1384, 16
      %v1453 = vrot.slane %v1451, 1
      %v1454 = vsel %vm774, %v1449, %v1453
      %v1456 = vsel %vm651, %v1398, 0
      %v1459 = vsel %vm651, %v1406, 0
      %v1462 = vsel %vm651, %v1414, 0
      %v1465 = vsel %vm651, %v1422, 0
      %v1468 = vsel %vm651, %v1430, 0
      %v1471 = vsel %vm651, %v1438, 0
      %v1474 = vsel %vm651, %v1446, 0
      %v1477 = vsel %vm651, %v1454, 0
      %v1480 = vsel %vm867, %v1386, 0
      %1482 = vmatprep.subr.bf16.mxu0 0
      %1483 = vmatpush1.bf16.msra.mxu0 %v1480
      %1484 = vmatprep.subr.bf16.mxu0 0
      %1485 = vmatpush1.bf16.msra.mxu0 0
      %1486 = vmatprep.subr.bf16.mxu0 0
      %1487 = vmatpush1.bf16.msra.mxu0 0
      %1488 = vmatprep.subr.bf16.mxu0 0
      %1489 = vmatpush1.bf16.msra.mxu0 0
      %1490 = vmatprep.subr.bf16.mxu0 0
      %1491 = vmatpush1.bf16.msra.mxu0 0
      %1492 = vmatprep.subr.bf16.mxu0 0
      %1493 = vmatpush1.bf16.msra.mxu0 0
      %1494 = vmatprep.subr.bf16.mxu0 0
      %1495 = vmatpush1.bf16.msra.mxu0 0
      %1496 = vmatprep.subr.bf16.mxu0 0
      %1497 = vmatpush1.bf16.msra.mxu0 0
      %1498 = vmatprep.subr.bf16.mxu0 0
      %1499 = vmatpush1.bf16.msra.mxu0 0
      %1500 = vmatprep.subr.bf16.mxu0 0
      %1501 = vmatpush1.bf16.msra.mxu0 0
      %1502 = vmatprep.subr.bf16.mxu0 0
      %1503 = vmatpush1.bf16.msra.mxu0 0
      %1504 = vmatprep.subr.bf16.mxu0 0
      %1505 = vmatpush1.bf16.msra.mxu0 0
      %1506 = vmatprep.subr.bf16.mxu0 0
      %1507 = vmatpush1.bf16.msra.mxu0 0
      %1508 = vmatprep.subr.bf16.mxu0 0
      %1509 = vmatpush1.bf16.msra.mxu0 0
      %1510 = vmatprep.subr.bf16.mxu0 0
      %1511 = vmatpush1.bf16.msra.mxu0 0
      %1512 = vmatprep.subr.bf16.mxu0 0
      %1513 = vmatpush1.bf16.msra.mxu0 0
      %1514 = vmatprep.mubr.bf16.mxu0 0
      %1515 = vmatmul.mubr.bf16.gmra.mrb[0].mxu0 %v1456
      %v1516 = vpop.f32.mrb[0].mxu0
      %v1517 = vadd.f32 0.0, %v1516
      %v1518 = vpop.f32.mrb[0].mxu0
      %v1519 = vpop.f32.mrb[0].mxu0
      %v1520 = vadd.f32 0.0, %v1519
      %v1521 = vpop.f32.mrb[0].mxu0
      %1522 = vmatprep.mubr.bf16.mxu0 0
      %1523 = vmatmul.mubr.bf16.gmra.mrb[0].mxu0 %v1459
      %v1524 = vpop.f32.mrb[0].mxu0
      %v1525 = vadd.f32 0.0, %v1524
      %v1526 = vpop.f32.mrb[0].mxu0
      %v1527 = vpop.f32.mrb[0].mxu0
      %v1528 = vadd.f32 0.0, %v1527
      %v1529 = vpop.f32.mrb[0].mxu0
      %1530 = vmatprep.mubr.bf16.mxu0 0
      %1531 = vmatmul.mubr.bf16.gmra.mrb[0].mxu0 %v1462
      %v1532 = vpop.f32.mrb[0].mxu0
      %v1533 = vadd.f32 0.0, %v1532
      %v1534 = vpop.f32.mrb[0].mxu0
      %v1535 = vpop.f32.mrb[0].mxu0
      %v1536 = vadd.f32 0.0, %v1535
      %v1537 = vpop.f32.mrb[0].mxu0
      %1538 = vmatprep.mubr.bf16.mxu0 0
      %1539 = vmatmul.mubr.bf16.gmra.mrb[0].mxu0 %v1465
      %v1540 = vpop.f32.mrb[0].mxu0
      %v1541 = vadd.f32 0.0, %v1540
      %v1542 = vpop.f32.mrb[0].mxu0
      %v1543 = vpop.f32.mrb[0].mxu0
      %v1544 = vadd.f32 0.0, %v1543
      %v1545 = vpop.f32.mrb[0].mxu0
      %1546 = vmatprep.mubr.bf16.mxu0 0
      %1547 = vmatmul.mubr.bf16.gmra.mrb[0].mxu0 %v1468
      %v1548 = vpop.f32.mrb[0].mxu0
      %v1549 = vadd.f32 0.0, %v1548
      %v1550 = vpop.f32.mrb[0].mxu0
      %v1551 = vpop.f32.mrb[0].mxu0
      %v1552 = vadd.f32 0.0, %v1551
      %v1553 = vpop.f32.mrb[0].mxu0
      %1554 = vmatprep.mubr.bf16.mxu0 0
      %1555 = vmatmul.mubr.bf16.gmra.mrb[0].mxu0 %v1471
      %v1556 = vpop.f32.mrb[0].mxu0
      %v1557 = vadd.f32 0.0, %v1556
      %v1558 = vpop.f32.mrb[0].mxu0
      %v1559 = vpop.f32.mrb[0].mxu0
      %v1560 = vadd.f32 0.0, %v1559
      %v1561 = vpop.f32.mrb[0].mxu0
      %1562 = vmatprep.mubr.bf16.mxu0 0
      %1563 = vmatmul.mubr.bf16.gmra.mrb[0].mxu0 %v1474
      %v1564 = vpop.f32.mrb[0].mxu0
      %v1565 = vadd.f32 0.0, %v1564
      %v1566 = vpop.f32.mrb[0].mxu0
      %v1567 = vpop.f32.mrb[0].mxu0
      %v1568 = vadd.f32 0.0, %v1567
      %v1569 = vpop.f32.mrb[0].mxu0
      %1570 = vmatprep.mubr.bf16.mxu0 0
      %1571 = vmatmul.mubr.bf16.gmra.mrb[0].mxu0 %v1477
      %v1572 = vpop.f32.mrb[0].mxu0
      %v1573 = vadd.f32 0.0, %v1572
      %v1574 = vpop.f32.mrb[0].mxu0
      %v1575 = vpop.f32.mrb[0].mxu0
      %v1576 = vadd.f32 0.0, %v1575
      %v1577 = vpop.f32.mrb[0].mxu0
      %1578 = vdwg.mxu0
      %v1579 = vadd.f32 %v1360, %v1517
      %v1580 = vadd.f32 %v1361, %v1520
      %v1581 = vadd.f32 %v1362, %v1525
      %v1582 = vadd.f32 %v1363, %v1528
      %v1583 = vadd.f32 %v1364, %v1533
      %v1584 = vadd.f32 %v1365, %v1536
      %v1585 = vadd.f32 %v1366, %v1541
      %v1586 = vadd.f32 %v1367, %v1544
      %v1587 = vadd.f32 %v1368, %v1549
      %v1588 = vadd.f32 %v1369, %v1552
      %v1589 = vadd.f32 %v1370, %v1557
      %v1590 = vadd.f32 %v1371, %v1560
      %v1591 = vadd.f32 %v1372, %v1565
      %v1592 = vadd.f32 %v1373, %v1568
      %v1593 = vadd.f32 %v1374, %v1573
      %v1594 = vadd.f32 %v1375, %v1576
      %v1595 = vld [vmem:[#allocation2 + $0x8] sm:$0xfe]
      %s1596 = scalar_lea.vmem %s3, 20
      %v1597 = vld [vmem:[%s1596] sm:$0xf]
      %v1607 = vrot.slane %v1595, 1
      %v1608 = vrot.slane %v1377, 1
      %v1609 = vsel %vm1096, %v1607, %v1608
      %v1610 = vrot.slane %v1378, 1
      %v1611 = vsel %vm1096, %v1608, %v1610
      %v1612 = vrot.slane %v1379, 1
      %v1613 = vsel %vm1096, %v1610, %v1612
      %v1614 = vrot.slane %v1380, 1
      %v1615 = vsel %vm1096, %v1612, %v1614
      %v1616 = vrot.slane %v1381, 1
      %v1617 = vsel %vm1096, %v1614, %v1616
      %v1618 = vrot.slane %v1382, 1
      %v1619 = vsel %vm1096, %v1616, %v1618
      %v1620 = vrot.slane %v1383, 1
      %v1621 = vsel %vm1096, %v1618, %v1620
      %v1622 = vrot.slane %v1384, 1
      %v1623 = vsel %vm1096, %v1620, %v1622
      %v1625 = vsel %vm651, %v1609, 0
      %v1628 = vsel %vm651, %v1611, 0
      %v1631 = vsel %vm651, %v1613, 0
      %v1634 = vsel %vm651, %v1615, 0
      %v1637 = vsel %vm651, %v1617, 0
      %v1640 = vsel %vm651, %v1619, 0
      %v1643 = vsel %vm651, %v1621, 0
      %v1646 = vsel %vm651, %v1623, 0
      %v1649 = vsel %vm867, %v1597, 0
      %1651 = vmatprep.subr.bf16.mxu0 0
      %1652 = vmatpush1.bf16.msra.mxu0 %v1649
      %1653 = vmatprep.subr.bf16.mxu0 0
      %1654 = vmatpush1.bf16.msra.mxu0 0
      %1655 = vmatprep.subr.bf16.mxu0 0
      %1656 = vmatpush1.bf16.msra.mxu0 0
      %1657 = vmatprep.subr.bf16.mxu0 0
      %1658 = vmatpush1.bf16.msra.mxu0 0
      %1659 = vmatprep.subr.bf16.mxu0 0
      %1660 = vmatpush1.bf16.msra.mxu0 0
      %1661 = vmatprep.subr.bf16.mxu0 0
      %1662 = vmatpush1.bf16.msra.mxu0 0
      %1663 = vmatprep.subr.bf16.mxu0 0
      %1664 = vmatpush1.bf16.msra.mxu0 0
      %1665 = vmatprep.subr.bf16.mxu0 0
      %1666 = vmatpush1.bf16.msra.mxu0 0
      %1667 = vmatprep.subr.bf16.mxu0 0
      %1668 = vmatpush1.bf16.msra.mxu0 0
      %1669 = vmatprep.subr.bf16.mxu0 0
      %1670 = vmatpush1.bf16.msra.mxu0 0
      %1671 = vmatprep.subr.bf16.mxu0 0
      %1672 = vmatpush1.bf16.msra.mxu0 0
      %1673 = vmatprep.subr.bf16.mxu0 0
      %1674 = vmatpush1.bf16.msra.mxu0 0
      %1675 = vmatprep.subr.bf16.mxu0 0
      %1676 = vmatpush1.bf16.msra.mxu0 0
      %1677 = vmatprep.subr.bf16.mxu0 0
      %1678 = vmatpush1.bf16.msra.mxu0 0
      %1679 = vmatprep.subr.bf16.mxu0 0
      %1680 = vmatpush1.bf16.msra.mxu0 0
      %1681 = vmatprep.subr.bf16.mxu0 0
      %1682 = vmatpush1.bf16.msra.mxu0 0
      %1683 = vmatprep.mubr.bf16.mxu0 0
      %1684 = vmatmul.mubr.bf16.gmra.mrb[0].mxu0 %v1625
      %v1685 = vpop.f32.mrb[0].mxu0
      %v1686 = vadd.f32 0.0, %v1685
      %v1687 = vpop.f32.mrb[0].mxu0
      %v1688 = vpop.f32.mrb[0].mxu0
      %v1689 = vadd.f32 0.0, %v1688
      %v1690 = vpop.f32.mrb[0].mxu0
      %1691 = vmatprep.mubr.bf16.mxu0 0
      %1692 = vmatmul.mubr.bf16.gmra.mrb[0].mxu0 %v1628
      %v1693 = vpop.f32.mrb[0].mxu0
      %v1694 = vadd.f32 0.0, %v1693
      %v1695 = vpop.f32.mrb[0].mxu0
      %v1696 = vpop.f32.mrb[0].mxu0
      %v1697 = vadd.f32 0.0, %v1696
      %v1698 = vpop.f32.mrb[0].mxu0
      %1699 = vmatprep.mubr.bf16.mxu0 0
      %1700 = vmatmul.mubr.bf16.gmra.mrb[0].mxu0 %v1631
      %v1701 = vpop.f32.mrb[0].mxu0
      %v1702 = vadd.f32 0.0, %v1701
      %v1703 = vpop.f32.mrb[0].mxu0
      %v1704 = vpop.f32.mrb[0].mxu0
      %v1705 = vadd.f32 0.0, %v1704
      %v1706 = vpop.f32.mrb[0].mxu0
      %1707 = vmatprep.mubr.bf16.mxu0 0
      %1708 = vmatmul.mubr.bf16.gmra.mrb[0].mxu0 %v1634
      %v1709 = vpop.f32.mrb[0].mxu0
      %v1710 = vadd.f32 0.0, %v1709
      %v1711 = vpop.f32.mrb[0].mxu0
      %v1712 = vpop.f32.mrb[0].mxu0
      %v1713 = vadd.f32 0.0, %v1712
      %v1714 = vpop.f32.mrb[0].mxu0
      %1715 = vmatprep.mubr.bf16.mxu0 0
      %1716 = vmatmul.mubr.bf16.gmra.mrb[0].mxu0 %v1637
      %v1717 = vpop.f32.mrb[0].mxu0
      %v1718 = vadd.f32 0.0, %v1717
      %v1719 = vpop.f32.mrb[0].mxu0
      %v1720 = vpop.f32.mrb[0].mxu0
      %v1721 = vadd.f32 0.0, %v1720
      %v1722 = vpop.f32.mrb[0].mxu0
      %1723 = vmatprep.mubr.bf16.mxu0 0
      %1724 = vmatmul.mubr.bf16.gmra.mrb[0].mxu0 %v1640
      %v1725 = vpop.f32.mrb[0].mxu0
      %v1726 = vadd.f32 0.0, %v1725
      %v1727 = vpop.f32.mrb[0].mxu0
      %v1728 = vpop.f32.mrb[0].mxu0
      %v1729 = vadd.f32 0.0, %v1728
      %v1730 = vpop.f32.mrb[0].mxu0
      %1731 = vmatprep.mubr.bf16.mxu0 0
      %1732 = vmatmul.mubr.bf16.gmra.mrb[0].mxu0 %v1643
      %v1733 = vpop.f32.mrb[0].mxu0
      %v1734 = vadd.f32 0.0, %v1733
      %v1735 = vpop.f32.mrb[0].mxu0
      %v1736 = vpop.f32.mrb[0].mxu0
      %v1737 = vadd.f32 0.0, %v1736
      %v1738 = vpop.f32.mrb[0].mxu0
      %1739 = vmatprep.mubr.bf16.mxu0 0
      %1740 = vmatmul.mubr.bf16.gmra.mrb[0].mxu0 %v1646
      %v1741 = vpop.f32.mrb[0].mxu0
      %v1742 = vadd.f32 0.0, %v1741
      %v1743 = vpop.f32.mrb[0].mxu0
      %v1744 = vpop.f32.mrb[0].mxu0
      %v1745 = vadd.f32 0.0, %v1744
      %v1746 = vpop.f32.mrb[0].mxu0
      %1747 = vdwg.mxu0
      %v1748 = vadd.f32 %v1579, %v1686
      %v1749 = vadd.f32 %v1580, %v1689
      %v1750 = vadd.f32 %v1581, %v1694
      %v1751 = vadd.f32 %v1582, %v1697
      %v1752 = vadd.f32 %v1583, %v1702
      %v1753 = vadd.f32 %v1584, %v1705
      %v1754 = vadd.f32 %v1585, %v1710
      %v1755 = vadd.f32 %v1586, %v1713
      %v1756 = vadd.f32 %v1587, %v1718
      %v1757 = vadd.f32 %v1588, %v1721
      %v1758 = vadd.f32 %v1589, %v1726
      %v1759 = vadd.f32 %v1590, %v1729
      %v1760 = vadd.f32 %v1591, %v1734
      %v1761 = vadd.f32 %v1592, %v1737
      %v1762 = vadd.f32 %v1593, %v1742
      %v1763 = vadd.f32 %v1594, %v1745
      %v1764 = vld [vmem:[#allocation2 + $0x48] sm:$0xff]
      %s1765 = scalar_lea.vmem %s3, 24
      %v1766 = vld [vmem:[%s1765] sm:$0xf]
      %v1767 = vsel %vm651, %v1377, 0
      %v1769 = vsel %vm651, %v1378, 0
      %v1771 = vsel %vm651, %v1379, 0
      %v1773 = vsel %vm651, %v1380, 0
      %v1775 = vsel %vm651, %v1381, 0
      %v1777 = vsel %vm651, %v1382, 0
      %v1779 = vsel %vm651, %v1383, 0
      %v1782 = vsel %vm651, %v1764, 0
      %v1785 = vsel %vm867, %v1766, 0
      %1787 = vmatprep.subr.bf16.mxu0 0
      %1788 = vmatpush1.bf16.msra.mxu0 %v1785
      %1789 = vmatprep.subr.bf16.mxu0 0
      %1790 = vmatpush1.bf16.msra.mxu0 0
      %1791 = vmatprep.subr.bf16.mxu0 0
      %1792 = vmatpush1.bf16.msra.mxu0 0
      %1793 = vmatprep.subr.bf16.mxu0 0
      %1794 = vmatpush1.bf16.msra.mxu0 0
      %1795 = vmatprep.subr.bf16.mxu0 0
      %1796 = vmatpush1.bf16.msra.mxu0 0
      %1797 = vmatprep.subr.bf16.mxu0 0
      %1798 = vmatpush1.bf16.msra.mxu0 0
      %1799 = vmatprep.subr.bf16.mxu0 0
      %1800 = vmatpush1.bf16.msra.mxu0 0
      %1801 = vmatprep.subr.bf16.mxu0 0
      %1802 = vmatpush1.bf16.msra.mxu0 0
      %1803 = vmatprep.subr.bf16.mxu0 0
      %1804 = vmatpush1.bf16.msra.mxu0 0
      %1805 = vmatprep.subr.bf16.mxu0 0
      %1806 = vmatpush1.bf16.msra.mxu0 0
      %1807 = vmatprep.subr.bf16.mxu0 0
      %1808 = vmatpush1.bf16.msra.mxu0 0
      %1809 = vmatprep.subr.bf16.mxu0 0
      %1810 = vmatpush1.bf16.msra.mxu0 0
      %1811 = vmatprep.subr.bf16.mxu0 0
      %1812 = vmatpush1.bf16.msra.mxu0 0
      %1813 = vmatprep.subr.bf16.mxu0 0
      %1814 = vmatpush1.bf16.msra.mxu0 0
      %1815 = vmatprep.subr.bf16.mxu0 0
      %1816 = vmatpush1.bf16.msra.mxu0 0
      %1817 = vmatprep.subr.bf16.mxu0 0
      %1818 = vmatpush1.bf16.msra.mxu0 0
      %1819 = vmatprep.mubr.bf16.mxu0 0
      %1820 = vmatmul.mubr.bf16.gmra.mrb[0].mxu0 %v1767
      %v1821 = vpop.f32.mrb[0].mxu0
      %v1822 = vadd.f32 0.0, %v1821
      %v1823 = vpop.f32.mrb[0].mxu0
      %v1824 = vpop.f32.mrb[0].mxu0
      %v1825 = vadd.f32 0.0, %v1824
      %v1826 = vpop.f32.mrb[0].mxu0
      %1827 = vmatprep.mubr.bf16.mxu0 0
      %1828 = vmatmul.mubr.bf16.gmra.mrb[0].mxu0 %v1769
      %v1829 = vpop.f32.mrb[0].mxu0
      %v1830 = vadd.f32 0.0, %v1829
      %v1831 = vpop.f32.mrb[0].mxu0
      %v1832 = vpop.f32.mrb[0].mxu0
      %v1833 = vadd.f32 0.0, %v1832
      %v1834 = vpop.f32.mrb[0].mxu0
      %1835 = vmatprep.mubr.bf16.mxu0 0
      %1836 = vmatmul.mubr.bf16.gmra.mrb[0].mxu0 %v1771
      %v1837 = vpop.f32.mrb[0].mxu0
      %v1838 = vadd.f32 0.0, %v1837
      %v1839 = vpop.f32.mrb[0].mxu0
      %v1840 = vpop.f32.mrb[0].mxu0
      %v1841 = vadd.f32 0.0, %v1840
      %v1842 = vpop.f32.mrb[0].mxu0
      %1843 = vmatprep.mubr.bf16.mxu0 0
      %1844 = vmatmul.mubr.bf16.gmra.mrb[0].mxu0 %v1773
      %v1845 = vpop.f32.mrb[0].mxu0
      %v1846 = vadd.f32 0.0, %v1845
      %v1847 = vpop.f32.mrb[0].mxu0
      %v1848 = vpop.f32.mrb[0].mxu0
      %v1849 = vadd.f32 0.0, %v1848
      %v1850 = vpop.f32.mrb[0].mxu0
      %1851 = vmatprep.mubr.bf16.mxu0 0
      %1852 = vmatmul.mubr.bf16.gmra.mrb[0].mxu0 %v1775
      %v1853 = vpop.f32.mrb[0].mxu0
      %v1854 = vadd.f32 0.0, %v1853
      %v1855 = vpop.f32.mrb[0].mxu0
      %v1856 = vpop.f32.mrb[0].mxu0
      %v1857 = vadd.f32 0.0, %v1856
      %v1858 = vpop.f32.mrb[0].mxu0
      %1859 = vmatprep.mubr.bf16.mxu0 0
      %1860 = vmatmul.mubr.bf16.gmra.mrb[0].mxu0 %v1777
      %v1861 = vpop.f32.mrb[0].mxu0
      %v1862 = vadd.f32 0.0, %v1861
      %v1863 = vpop.f32.mrb[0].mxu0
      %v1864 = vpop.f32.mrb[0].mxu0
      %v1865 = vadd.f32 0.0, %v1864
      %v1866 = vpop.f32.mrb[0].mxu0
      %1867 = vmatprep.mubr.bf16.mxu0 0
      %1868 = vmatmul.mubr.bf16.gmra.mrb[0].mxu0 %v1779
      %v1869 = vpop.f32.mrb[0].mxu0
      %v1870 = vadd.f32 0.0, %v1869
      %v1871 = vpop.f32.mrb[0].mxu0
      %v1872 = vpop.f32.mrb[0].mxu0
      %v1873 = vadd.f32 0.0, %v1872
      %v1874 = vpop.f32.mrb[0].mxu0
      %1875 = vmatprep.mubr.bf16.mxu0 0
      %1876 = vmatmul.mubr.bf16.gmra.mrb[0].mxu0 %v1782
      %v1877 = vpop.f32.mrb[0].mxu0
      %v1878 = vadd.f32 0.0, %v1877
      %v1879 = vpop.f32.mrb[0].mxu0
      %v1880 = vpop.f32.mrb[0].mxu0
      %v1881 = vadd.f32 0.0, %v1880
      %v1882 = vpop.f32.mrb[0].mxu0
      %1883 = vdwg.mxu0
      %v1884 = vadd.f32 %v1748, %v1822
      %v1885 = vadd.f32 %v1749, %v1825
      %v1886 = vadd.f32 %v1750, %v1830
      %v1887 = vadd.f32 %v1751, %v1833
      %v1888 = vadd.f32 %v1752, %v1838
      %v1889 = vadd.f32 %v1753, %v1841
      %v1890 = vadd.f32 %v1754, %v1846
      %v1891 = vadd.f32 %v1755, %v1849
      %v1892 = vadd.f32 %v1756, %v1854
      %v1893 = vadd.f32 %v1757, %v1857
      %v1894 = vadd.f32 %v1758, %v1862
      %v1895 = vadd.f32 %v1759, %v1865
      %v1896 = vadd.f32 %v1760, %v1870
      %v1897 = vadd.f32 %v1761, %v1873
      %v1898 = vadd.f32 %v1762, %v1878
      %v1899 = vadd.f32 %v1763, %v1881
      %v1900 = vld [vmem:[#allocation2 + $0x10] sm:$0xff]
      %v1901 = vld [vmem:[#allocation2 + $0x18] sm:$0xff]
      %v1902 = vld [vmem:[#allocation2 + $0x20] sm:$0xff]
      %v1903 = vld [vmem:[#allocation2 + $0x28] sm:$0xff]
      %v1904 = vld [vmem:[#allocation2 + $0x30] sm:$0xff]
      %v1905 = vld [vmem:[#allocation2 + $0x38] sm:$0xff]
      %v1906 = vld [vmem:[#allocation2 + $0x40] sm:$0xff]
      %v1907 = vld [vmem:[#allocation2 + $0x48] sm:$0xff]
      %v1908 = vld [vmem:[#allocation2 + $0x50] sm:$0x1]
      %s1909 = scalar_lea.vmem %s3, 28
      %v1910 = vld [vmem:[%s1909] sm:$0xf]
      %v1912 = vshrl.u32 %v1900, 16
      %v1914 = vshll.u32 %v1900, 16
      %v1916 = vrot.slane %v1914, 1
      %v1917 = vor.u32 %v1912, %v1916
      %v1919 = vshll.u32 %v1901, 16
      %v1921 = vrot.slane %v1919, 1
      %v1922 = vsel %vm774, %v1917, %v1921
      %v1923 = vshrl.u32 %v1901, 16
      %v1925 = vor.u32 %v1923, %v1921
      %v1927 = vshll.u32 %v1902, 16
      %v1929 = vrot.slane %v1927, 1
      %v1930 = vsel %vm774, %v1925, %v1929
      %v1931 = vshrl.u32 %v1902, 16
      %v1933 = vor.u32 %v1931, %v1929
      %v1935 = vshll.u32 %v1903, 16
      %v1937 = vrot.slane %v1935, 1
      %v1938 = vsel %vm774, %v1933, %v1937
      %v1939 = vshrl.u32 %v1903, 16
      %v1941 = vor.u32 %v1939, %v1937
      %v1943 = vshll.u32 %v1904, 16
      %v1945 = vrot.slane %v1943, 1
      %v1946 = vsel %vm774, %v1941, %v1945
      %v1947 = vshrl.u32 %v1904, 16
      %v1949 = vor.u32 %v1947, %v1945
      %v1951 = vshll.u32 %v1905, 16
      %v1953 = vrot.slane %v1951, 1
      %v1954 = vsel %vm774, %v1949, %v1953
      %v1955 = vshrl.u32 %v1905, 16
      %v1957 = vor.u32 %v1955, %v1953
      %v1959 = vshll.u32 %v1906, 16
      %v1961 = vrot.slane %v1959, 1
      %v1962 = vsel %vm774, %v1957, %v1961
      %v1963 = vshrl.u32 %v1906, 16
      %v1965 = vor.u32 %v1963, %v1961
      %v1967 = vshll.u32 %v1907, 16
      %v1969 = vrot.slane %v1967, 1
      %v1970 = vsel %vm774, %v1965, %v1969
      %v1971 = vshrl.u32 %v1907, 16
      %v1973 = vor.u32 %v1971, %v1969
      %v1975 = vshll.u32 %v1908, 16
      %v1977 = vrot.slane %v1975, 1
      %v1978 = vsel %vm774, %v1973, %v1977
      %v1980 = vsel %vm651, %v1922, 0
      %v1983 = vsel %vm651, %v1930, 0
      %v1986 = vsel %vm651, %v1938, 0
      %v1989 = vsel %vm651, %v1946, 0
      %v1992 = vsel %vm651, %v1954, 0
      %v1995 = vsel %vm651, %v1962, 0
      %v1998 = vsel %vm651, %v1970, 0
      %v2001 = vsel %vm651, %v1978, 0
      %v2004 = vsel %vm867, %v1910, 0
      %2006 = vmatprep.subr.bf16.mxu0 0
      %2007 = vmatpush1.bf16.msra.mxu0 %v2004
      %2008 = vmatprep.subr.bf16.mxu0 0
      %2009 = vmatpush1.bf16.msra.mxu0 0
      %2010 = vmatprep.subr.bf16.mxu0 0
      %2011 = vmatpush1.bf16.msra.mxu0 0
      %2012 = vmatprep.subr.bf16.mxu0 0
      %2013 = vmatpush1.bf16.msra.mxu0 0
      %2014 = vmatprep.subr.bf16.mxu0 0
      %2015 = vmatpush1.bf16.msra.mxu0 0
      %2016 = vmatprep.subr.bf16.mxu0 0
      %2017 = vmatpush1.bf16.msra.mxu0 0
      %2018 = vmatprep.subr.bf16.mxu0 0
      %2019 = vmatpush1.bf16.msra.mxu0 0
      %2020 = vmatprep.subr.bf16.mxu0 0
      %2021 = vmatpush1.bf16.msra.mxu0 0
      %2022 = vmatprep.subr.bf16.mxu0 0
      %2023 = vmatpush1.bf16.msra.mxu0 0
      %2024 = vmatprep.subr.bf16.mxu0 0
      %2025 = vmatpush1.bf16.msra.mxu0 0
      %2026 = vmatprep.subr.bf16.mxu0 0
      %2027 = vmatpush1.bf16.msra.mxu0 0
      %2028 = vmatprep.subr.bf16.mxu0 0
      %2029 = vmatpush1.bf16.msra.mxu0 0
      %2030 = vmatprep.subr.bf16.mxu0 0
      %2031 = vmatpush1.bf16.msra.mxu0 0
      %2032 = vmatprep.subr.bf16.mxu0 0
      %2033 = vmatpush1.bf16.msra.mxu0 0
      %2034 = vmatprep.subr.bf16.mxu0 0
      %2035 = vmatpush1.bf16.msra.mxu0 0
      %2036 = vmatprep.subr.bf16.mxu0 0
      %2037 = vmatpush1.bf16.msra.mxu0 0
      %2038 = vmatprep.mubr.bf16.mxu0 0
      %2039 = vmatmul.mubr.bf16.gmra.mrb[0].mxu0 %v1980
      %v2040 = vpop.f32.mrb[0].mxu0
      %v2041 = vadd.f32 0.0, %v2040
      %v2042 = vpop.f32.mrb[0].mxu0
      %v2043 = vpop.f32.mrb[0].mxu0
      %v2044 = vadd.f32 0.0, %v2043
      %v2045 = vpop.f32.mrb[0].mxu0
      %2046 = vmatprep.mubr.bf16.mxu0 0
      %2047 = vmatmul.mubr.bf16.gmra.mrb[0].mxu0 %v1983
      %v2048 = vpop.f32.mrb[0].mxu0
      %v2049 = vadd.f32 0.0, %v2048
      %v2050 = vpop.f32.mrb[0].mxu0
      %v2051 = vpop.f32.mrb[0].mxu0
      %v2052 = vadd.f32 0.0, %v2051
      %v2053 = vpop.f32.mrb[0].mxu0
      %2054 = vmatprep.mubr.bf16.mxu0 0
      %2055 = vmatmul.mubr.bf16.gmra.mrb[0].mxu0 %v1986
      %v2056 = vpop.f32.mrb[0].mxu0
      %v2057 = vadd.f32 0.0, %v2056
      %v2058 = vpop.f32.mrb[0].mxu0
      %v2059 = vpop.f32.mrb[0].mxu0
      %v2060 = vadd.f32 0.0, %v2059
      %v2061 = vpop.f32.mrb[0].mxu0
      %2062 = vmatprep.mubr.bf16.mxu0 0
      %2063 = vmatmul.mubr.bf16.gmra.mrb[0].mxu0 %v1989
      %v2064 = vpop.f32.mrb[0].mxu0
      %v2065 = vadd.f32 0.0, %v2064
      %v2066 = vpop.f32.mrb[0].mxu0
      %v2067 = vpop.f32.mrb[0].mxu0
      %v2068 = vadd.f32 0.0, %v2067
      %v2069 = vpop.f32.mrb[0].mxu0
      %2070 = vmatprep.mubr.bf16.mxu0 0
      %2071 = vmatmul.mubr.bf16.gmra.mrb[0].mxu0 %v1992
      %v2072 = vpop.f32.mrb[0].mxu0
      %v2073 = vadd.f32 0.0, %v2072
      %v2074 = vpop.f32.mrb[0].mxu0
      %v2075 = vpop.f32.mrb[0].mxu0
      %v2076 = vadd.f32 0.0, %v2075
      %v2077 = vpop.f32.mrb[0].mxu0
      %2078 = vmatprep.mubr.bf16.mxu0 0
      %2079 = vmatmul.mubr.bf16.gmra.mrb[0].mxu0 %v1995
      %v2080 = vpop.f32.mrb[0].mxu0
      %v2081 = vadd.f32 0.0, %v2080
      %v2082 = vpop.f32.mrb[0].mxu0
      %v2083 = vpop.f32.mrb[0].mxu0
      %v2084 = vadd.f32 0.0, %v2083
      %v2085 = vpop.f32.mrb[0].mxu0
      %2086 = vmatprep.mubr.bf16.mxu0 0
      %2087 = vmatmul.mubr.bf16.gmra.mrb[0].mxu0 %v1998
      %v2088 = vpop.f32.mrb[0].mxu0
      %v2089 = vadd.f32 0.0, %v2088
      %v2090 = vpop.f32.mrb[0].mxu0
      %v2091 = vpop.f32.mrb[0].mxu0
      %v2092 = vadd.f32 0.0, %v2091
      %v2093 = vpop.f32.mrb[0].mxu0
      %2094 = vmatprep.mubr.bf16.mxu0 0
      %2095 = vmatmul.mubr.bf16.gmra.mrb[0].mxu0 %v2001
      %v2096 = vpop.f32.mrb[0].mxu0
      %v2097 = vadd.f32 0.0, %v2096
      %v2098 = vpop.f32.mrb[0].mxu0
      %v2099 = vpop.f32.mrb[0].mxu0
      %v2100 = vadd.f32 0.0, %v2099
      %v2101 = vpop.f32.mrb[0].mxu0
      %2102 = vdwg.mxu0
      %v2103 = vadd.f32 %v1884, %v2041
      %v2104 = vadd.f32 %v1885, %v2044
      %v2105 = vadd.f32 %v1886, %v2049
      %v2106 = vadd.f32 %v1887, %v2052
      %v2107 = vadd.f32 %v1888, %v2057
      %v2108 = vadd.f32 %v1889, %v2060
      %v2109 = vadd.f32 %v1890, %v2065
      %v2110 = vadd.f32 %v1891, %v2068
      %v2111 = vadd.f32 %v1892, %v2073
      %v2112 = vadd.f32 %v1893, %v2076
      %v2113 = vadd.f32 %v1894, %v2081
      %v2114 = vadd.f32 %v1895, %v2084
      %v2115 = vadd.f32 %v1896, %v2089
      %v2116 = vadd.f32 %v1897, %v2092
      %v2117 = vadd.f32 %v1898, %v2097
      %v2118 = vadd.f32 %v1899, %v2100
      %v2119 = vld [vmem:[#allocation2 + $0x10] sm:$0xfe]
      %s2120 = scalar_lea.vmem %s3, 32
      %v2121 = vld [vmem:[%s2120] sm:$0xf]
      %v2131 = vrot.slane %v2119, 1
      %v2132 = vrot.slane %v1901, 1
      %v2133 = vsel %vm1096, %v2131, %v2132
      %v2134 = vrot.slane %v1902, 1
      %v2135 = vsel %vm1096, %v2132, %v2134
      %v2136 = vrot.slane %v1903, 1
      %v2137 = vsel %vm1096, %v2134, %v2136
      %v2138 = vrot.slane %v1904, 1
      %v2139 = vsel %vm1096, %v2136, %v2138
      %v2140 = vrot.slane %v1905, 1
      %v2141 = vsel %vm1096, %v2138, %v2140
      %v2142 = vrot.slane %v1906, 1
      %v2143 = vsel %vm1096, %v2140, %v2142
      %v2144 = vrot.slane %v1907, 1
      %v2145 = vsel %vm1096, %v2142, %v2144
      %v2146 = vrot.slane %v1908, 1
      %v2147 = vsel %vm1096, %v2144, %v2146
      %v2149 = vsel %vm651, %v2133, 0
      %v2152 = vsel %vm651, %v2135, 0
      %v2155 = vsel %vm651, %v2137, 0
      %v2158 = vsel %vm651, %v2139, 0
      %v2161 = vsel %vm651, %v2141, 0
      %v2164 = vsel %vm651, %v2143, 0
      %v2167 = vsel %vm651, %v2145, 0
      %v2170 = vsel %vm651, %v2147, 0
      %v2173 = vsel %vm867, %v2121, 0
      %2175 = vmatprep.subr.bf16.mxu0 0
      %2176 = vmatpush1.bf16.msra.mxu0 %v2173
      %2177 = vmatprep.subr.bf16.mxu0 0
      %2178 = vmatpush1.bf16.msra.mxu0 0
      %2179 = vmatprep.subr.bf16.mxu0 0
      %2180 = vmatpush1.bf16.msra.mxu0 0
      %2181 = vmatprep.subr.bf16.mxu0 0
      %2182 = vmatpush1.bf16.msra.mxu0 0
      %2183 = vmatprep.subr.bf16.mxu0 0
      %2184 = vmatpush1.bf16.msra.mxu0 0
      %2185 = vmatprep.subr.bf16.mxu0 0
      %2186 = vmatpush1.bf16.msra.mxu0 0
      %2187 = vmatprep.subr.bf16.mxu0 0
      %2188 = vmatpush1.bf16.msra.mxu0 0
      %2189 = vmatprep.subr.bf16.mxu0 0
      %2190 = vmatpush1.bf16.msra.mxu0 0
      %2191 = vmatprep.subr.bf16.mxu0 0
      %2192 = vmatpush1.bf16.msra.mxu0 0
      %2193 = vmatprep.subr.bf16.mxu0 0
      %2194 = vmatpush1.bf16.msra.mxu0 0
      %2195 = vmatprep.subr.bf16.mxu0 0
      %2196 = vmatpush1.bf16.msra.mxu0 0
      %2197 = vmatprep.subr.bf16.mxu0 0
      %2198 = vmatpush1.bf16.msra.mxu0 0
      %2199 = vmatprep.subr.bf16.mxu0 0
      %2200 = vmatpush1.bf16.msra.mxu0 0
      %2201 = vmatprep.subr.bf16.mxu0 0
      %2202 = vmatpush1.bf16.msra.mxu0 0
      %2203 = vmatprep.subr.bf16.mxu0 0
      %2204 = vmatpush1.bf16.msra.mxu0 0
      %2205 = vmatprep.subr.bf16.mxu0 0
      %2206 = vmatpush1.bf16.msra.mxu0 0
      %2207 = vmatprep.mubr.bf16.mxu0 0
      %2208 = vmatmul.mubr.bf16.gmra.mrb[0].mxu0 %v2149
      %v2209 = vpop.f32.mrb[0].mxu0
      %v2210 = vadd.f32 0.0, %v2209
      %v2211 = vpop.f32.mrb[0].mxu0
      %v2212 = vpop.f32.mrb[0].mxu0
      %v2213 = vadd.f32 0.0, %v2212
      %v2214 = vpop.f32.mrb[0].mxu0
      %2215 = vmatprep.mubr.bf16.mxu0 0
      %2216 = vmatmul.mubr.bf16.gmra.mrb[0].mxu0 %v2152
      %v2217 = vpop.f32.mrb[0].mxu0
      %v2218 = vadd.f32 0.0, %v2217
      %v2219 = vpop.f32.mrb[0].mxu0
      %v2220 = vpop.f32.mrb[0].mxu0
      %v2221 = vadd.f32 0.0, %v2220
      %v2222 = vpop.f32.mrb[0].mxu0
      %2223 = vmatprep.mubr.bf16.mxu0 0
      %2224 = vmatmul.mubr.bf16.gmra.mrb[0].mxu0 %v2155
      %v2225 = vpop.f32.mrb[0].mxu0
      %v2226 = vadd.f32 0.0, %v2225
      %v2227 = vpop.f32.mrb[0].mxu0
      %v2228 = vpop.f32.mrb[0].mxu0
      %v2229 = vadd.f32 0.0, %v2228
      %v2230 = vpop.f32.mrb[0].mxu0
      %2231 = vmatprep.mubr.bf16.mxu0 0
      %2232 = vmatmul.mubr.bf16.gmra.mrb[0].mxu0 %v2158
      %v2233 = vpop.f32.mrb[0].mxu0
      %v2234 = vadd.f32 0.0, %v2233
      %v2235 = vpop.f32.mrb[0].mxu0
      %v2236 = vpop.f32.mrb[0].mxu0
      %v2237 = vadd.f32 0.0, %v2236
      %v2238 = vpop.f32.mrb[0].mxu0
      %2239 = vmatprep.mubr.bf16.mxu0 0
      %2240 = vmatmul.mubr.bf16.gmra.mrb[0].mxu0 %v2161
      %v2241 = vpop.f32.mrb[0].mxu0
      %v2242 = vadd.f32 0.0, %v2241
      %v2243 = vpop.f32.mrb[0].mxu0
      %v2244 = vpop.f32.mrb[0].mxu0
      %v2245 = vadd.f32 0.0, %v2244
      %v2246 = vpop.f32.mrb[0].mxu0
      %2247 = vmatprep.mubr.bf16.mxu0 0
      %2248 = vmatmul.mubr.bf16.gmra.mrb[0].mxu0 %v2164
      %v2249 = vpop.f32.mrb[0].mxu0
      %v2250 = vadd.f32 0.0, %v2249
      %v2251 = vpop.f32.mrb[0].mxu0
      %v2252 = vpop.f32.mrb[0].mxu0
      %v2253 = vadd.f32 0.0, %v2252
      %v2254 = vpop.f32.mrb[0].mxu0
      %2255 = vmatprep.mubr.bf16.mxu0 0
      %2256 = vmatmul.mubr.bf16.gmra.mrb[0].mxu0 %v2167
      %v2257 = vpop.f32.mrb[0].mxu0
      %v2258 = vadd.f32 0.0, %v2257
      %v2259 = vpop.f32.mrb[0].mxu0
      %v2260 = vpop.f32.mrb[0].mxu0
      %v2261 = vadd.f32 0.0, %v2260
      %v2262 = vpop.f32.mrb[0].mxu0
      %2263 = vmatprep.mubr.bf16.mxu0 0
      %2264 = vmatmul.mubr.bf16.gmra.mrb[0].mxu0 %v2170
      %v2265 = vpop.f32.mrb[0].mxu0
      %v2266 = vadd.f32 0.0, %v2265
      %v2267 = vpop.f32.mrb[0].mxu0
      %v2268 = vpop.f32.mrb[0].mxu0
      %v2269 = vadd.f32 0.0, %v2268
      %v2270 = vpop.f32.mrb[0].mxu0
      %2271 = vdwg.mxu0
      %v2272 = vadd.f32 %v2103, %v2210
      %v2273 = vadd.f32 %v2104, %v2213
      %v2274 = vadd.f32 %v2105, %v2218
      %v2275 = vadd.f32 %v2106, %v2221
      %v2276 = vadd.f32 %v2107, %v2226
      %v2277 = vadd.f32 %v2108, %v2229
      %v2278 = vadd.f32 %v2109, %v2234
      %v2279 = vadd.f32 %v2110, %v2237
      %v2280 = vadd.f32 %v2111, %v2242
      %v2281 = vadd.f32 %v2112, %v2245
      %v2282 = vadd.f32 %v2113, %v2250
      %v2283 = vadd.f32 %v2114, %v2253
      %v2284 = vadd.f32 %v2115, %v2258
      %v2285 = vadd.f32 %v2116, %v2261
      %v2286 = vadd.f32 %v2117, %v2266
      %v2287 = vadd.f32 %v2118, %v2269
      %v2288 = vld [vmem:[%s4] sm:$0x1]
      %v2290 = vlaneseq
      %v2291 = vshrl.u32 %v2290, 7
      %v2292 = vsub.s32 0, %v2291
      %v2293 = vrot.slane %v2288, %v2292
      %v2295 = vadd.f32 %v2272, %v2293
      %v2296 = vadd.f32 %v2273, %v2293
      %v2297 = vadd.f32 %v2274, %v2293
      %v2298 = vadd.f32 %v2275, %v2293
      %v2299 = vadd.f32 %v2276, %v2293
      %v2300 = vadd.f32 %v2277, %v2293
      %v2301 = vadd.f32 %v2278, %v2293
      %v2302 = vadd.f32 %v2279, %v2293
      %v2303 = vadd.f32 %v2280, %v2293
      %v2304 = vadd.f32 %v2281, %v2293
      %v2305 = vadd.f32 %v2282, %v2293
      %v2306 = vadd.f32 %v2283, %v2293
      %v2307 = vadd.f32 %v2284, %v2293
      %v2308 = vadd.f32 %v2285, %v2293
      %v2309 = vadd.f32 %v2286, %v2293
      %v2310 = vadd.f32 %v2287, %v2293
      %2311 = vst.msk [vmem:[%s291] sm:$0xff] %vm651, %v2295
      %2312 = vst.msk [vmem:[%s291 + $0x8] sm:$0xff] %vm651, %v2296
      %2313 = vst.msk [vmem:[%s291 + $0x10] sm:$0xff] %vm651, %v2297
      %2314 = vst.msk [vmem:[%s291 + $0x18] sm:$0xff] %vm651, %v2298
      %2315 = vst.msk [vmem:[%s291 + $0x20] sm:$0xff] %vm651, %v2299
      %2316 = vst.msk [vmem:[%s291 + $0x28] sm:$0xff] %vm651, %v2300
      %2317 = vst.msk [vmem:[%s291 + $0x30] sm:$0xff] %vm651, %v2301
      %2318 = vst.msk [vmem:[%s291 + $0x38] sm:$0xff] %vm651, %v2302
      %2319 = vst.msk [vmem:[%s291 + $0x40] sm:$0xff] %vm651, %v2303
      %2320 = vst.msk [vmem:[%s291 + $0x48] sm:$0xff] %vm651, %v2304
      %2321 = vst.msk [vmem:[%s291 + $0x50] sm:$0xff] %vm651, %v2305
      %2322 = vst.msk [vmem:[%s291 + $0x58] sm:$0xff] %vm651, %v2306
      %2323 = vst.msk [vmem:[%s291 + $0x60] sm:$0xff] %vm651, %v2307
      %2324 = vst.msk [vmem:[%s291 + $0x68] sm:$0xff] %vm651, %v2308
      %2325 = vst.msk [vmem:[%s291 + $0x70] sm:$0xff] %vm651, %v2309
      %2326 = vst.msk [vmem:[%s291 + $0x78] sm:$0xff] %vm651, %v2310
      %v2327 = vsel %vm619, %v2295, 0.0
      %v2328 = vsel %vm620, %v2296, 0.0
      %v2329 = vsel %vm621, %v2297, 0.0
      %v2330 = vsel %vm622, %v2298, 0.0
      %v2331 = vsel %vm623, %v2299, 0.0
      %v2332 = vsel %vm624, %v2300, 0.0
      %v2333 = vsel %vm625, %v2301, 0.0
      %v2334 = vsel %vm626, %v2302, 0.0
      %v2335 = vsel %vm627, %v2303, 0.0
      %v2336 = vsel %vm628, %v2304, 0.0
      %v2337 = vsel %vm629, %v2305, 0.0
      %v2338 = vsel %vm630, %v2306, 0.0
      %v2339 = vsel %vm631, %v2307, 0.0
      %v2340 = vsel %vm632, %v2308, 0.0
      %v2341 = vsel %vm633, %v2309, 0.0
      %v2342 = vsel %vm634, %v2310, 0.0
      %v2343 = vsel %vm651, %v2327, 0.0
      %v2344 = vsel %vm651, %v2328, 0.0
      %v2345 = vadd.f32 %v2343, %v2344
      %v2346 = vsel %vm651, %v2329, 0.0
      %v2347 = vadd.f32 %v2345, %v2346
      %v2348 = vsel %vm651, %v2330, 0.0
      %v2349 = vadd.f32 %v2347, %v2348
      %v2350 = vsel %vm651, %v2331, 0.0
      %v2351 = vadd.f32 %v2349, %v2350
      %v2352 = vsel %vm651, %v2332, 0.0
      %v2353 = vadd.f32 %v2351, %v2352
      %v2354 = vsel %vm651, %v2333, 0.0
      %v2355 = vadd.f32 %v2353, %v2354
      %v2356 = vsel %vm651, %v2334, 0.0
      %v2357 = vadd.f32 %v2355, %v2356
      %v2358 = vsel %vm651, %v2335, 0.0
      %v2359 = vadd.f32 %v2357, %v2358
      %v2360 = vsel %vm651, %v2336, 0.0
      %v2361 = vadd.f32 %v2359, %v2360
      %v2362 = vsel %vm651, %v2337, 0.0
      %v2363 = vadd.f32 %v2361, %v2362
      %v2364 = vsel %vm651, %v2338, 0.0
      %v2365 = vadd.f32 %v2363, %v2364
      %v2366 = vsel %vm651, %v2339, 0.0
      %v2367 = vadd.f32 %v2365, %v2366
      %v2368 = vsel %vm651, %v2340, 0.0
      %v2369 = vadd.f32 %v2367, %v2368
      %v2370 = vsel %vm651, %v2341, 0.0
      %v2371 = vadd.f32 %v2369, %v2370
      %v2372 = vsel %vm651, %v2342, 0.0
      %v2373 = vadd.f32 %v2371, %v2372
      %v2374 = vrot.slane %v2373, 4
      %v2375 = vadd.f32 %v2373, %v2374
      %v2376 = vrot.slane %v2375, 2
      %v2377 = vadd.f32 %v2375, %v2376
      %v2378 = vrot.slane %v2377, 1
      %v2379 = vadd.f32 %v2377, %v2378
      %vm2380 = vcmask 57344
      %2381 = vst.msk [vmem:[%s295] sm:$0x1] %vm2380, %v2379
      %v2382 = vmul.f32 %v2327, %v2327
      %v2383 = vmul.f32 %v2328, %v2328
      %v2384 = vmul.f32 %v2329, %v2329
      %v2385 = vmul.f32 %v2330, %v2330
      %v2386 = vmul.f32 %v2331, %v2331
      %v2387 = vmul.f32 %v2332, %v2332
      %v2388 = vmul.f32 %v2333, %v2333
      %v2389 = vmul.f32 %v2334, %v2334
      %v2390 = vmul.f32 %v2335, %v2335
      %v2391 = vmul.f32 %v2336, %v2336
      %v2392 = vmul.f32 %v2337, %v2337
      %v2393 = vmul.f32 %v2338, %v2338
      %v2394 = vmul.f32 %v2339, %v2339
      %v2395 = vmul.f32 %v2340, %v2340
      %v2396 = vmul.f32 %v2341, %v2341
      %v2397 = vmul.f32 %v2342, %v2342
      %v2398 = vsel %vm651, %v2382, 0.0
      %v2399 = vsel %vm651, %v2383, 0.0
      %v2400 = vadd.f32 %v2398, %v2399
      %v2401 = vsel %vm651, %v2384, 0.0
      %v2402 = vadd.f32 %v2400, %v2401
      %v2403 = vsel %vm651, %v2385, 0.0
      %v2404 = vadd.f32 %v2402, %v2403
      %v2405 = vsel %vm651, %v2386, 0.0
      %v2406 = vadd.f32 %v2404, %v2405
      %v2407 = vsel %vm651, %v2387, 0.0
      %v2408 = vadd.f32 %v2406, %v2407
      %v2409 = vsel %vm651, %v2388, 0.0
      %v2410 = vadd.f32 %v2408, %v2409
      %v2411 = vsel %vm651, %v2389, 0.0
      %v2412 = vadd.f32 %v2410, %v2411
      %v2413 = vsel %vm651, %v2390, 0.0
      %v2414 = vadd.f32 %v2412, %v2413
      %v2415 = vsel %vm651, %v2391, 0.0
      %v2416 = vadd.f32 %v2414, %v2415
      %v2417 = vsel %vm651, %v2392, 0.0
      %v2418 = vadd.f32 %v2416, %v2417
      %v2419 = vsel %vm651, %v2393, 0.0
      %v2420 = vadd.f32 %v2418, %v2419
      %v2421 = vsel %vm651, %v2394, 0.0
      %v2422 = vadd.f32 %v2420, %v2421
      %v2423 = vsel %vm651, %v2395, 0.0
      %v2424 = vadd.f32 %v2422, %v2423
      %v2425 = vsel %vm651, %v2396, 0.0
      %v2426 = vadd.f32 %v2424, %v2425
      %v2427 = vsel %vm651, %v2397, 0.0
      %v2428 = vadd.f32 %v2426, %v2427
      %v2429 = vrot.slane %v2428, 4
      %v2430 = vadd.f32 %v2428, %v2429
      %v2431 = vrot.slane %v2430, 2
      %v2432 = vadd.f32 %v2430, %v2431
      %v2433 = vrot.slane %v2432, 1
      %v2434 = vadd.f32 %v2432, %v2433
      %2435 = vst.msk [vmem:[%s298] sm:$0x1] %vm2380, %v2434
      %s2436 = smul.u32 16, %s19
      %p2437 = scmp.lt.s32.totalorder %s2436, 31
      %s2438 = scalar_select %p2437, %s2436, 31
      %s2439 = smul.addr %s2438, 8
      %s2440 = scalar_lea.vmem %s5, %s2439
      %p2441 = scmp.lt.s32.totalorder %s19, 1
      %s2442 = scalar_select %p2441, %s19, 1
      %s2443 = scalar_lea.vmem %s6, %s2442
      %p2444 = scmp.lt.s32.totalorder %s19, 1
      %s2445 = scalar_select %p2444, %s19, 1
      %s2446 = scalar_lea.vmem %s7, %s2445
      // Predicated region
      $region41: #{down_forward.4} parent=39 // pred_check
        %p2447 = pneg %p147
      $region42: #{down_forward.4} parent=39 // pred_check_branch
        %2449 = sbr.rel (%p2447) target = $region44
      $region43: #{down_forward.4} parent=39 // pred_region
        %s2450 = smul.u32 16, %s19
      $region44: #{down_forward.4} parent=39 // pred_fallthru
        _
      // Predicated region
      $region45: #{down_forward.4} parent=39 // pred_check
        %p2451 = pneg %p173
      $region46: #{down_forward.4} parent=39 // pred_check_branch
        %2453 = sbr.rel (%p2451) target = $region48
      $region47: #{down_forward.4} parent=39 // pred_region
        _
      $region48: #{down_forward.4} parent=39 // pred_fallthru
        _
      // Predicated region
      $region49: #{down_forward.4} parent=39 // pred_check
        %p2454 = pneg %p199
      $region50: #{down_forward.4} parent=39 // pred_check_branch
        %2456 = sbr.rel (%p2454) target = $region52
      $region51: #{down_forward.4} parent=39 // pred_region
        _
      $region52: #{down_forward.4} parent=39 // pred_fallthru
        _
    $region40: #{down_forward.4} parent=5 // pred_fallthru
      _
    %p2457 = scmp.le.s32.totalorder 2, %s14
    // Predicated region
    $region53: #{down_forward.4} parent=5 // pred_check
      %p2458 = pneg %p2457
    $region54: #{down_forward.4} parent=5 // pred_check_branch
      %2460 = sbr.rel (%p2458) target = $region56
    $region55: #{down_forward.4} parent=5 // pred_region
      %s2461 = ssub.s32 %s14, 2
      // Predicated region
      $region57: #{down_forward.4} parent=55 // pred_check
        %p2462 = pneg %p153
      $region58: #{down_forward.4} parent=55 // pred_check_branch
        %2464 = sbr.rel (%p2462) target = $region60
      $region59: #{down_forward.4} parent=55 // pred_region
        %s2465 = smul.u32 16, %s20
        %p2466 = scmp.lt.s32.totalorder %s2465, 31
        %s2467 = scalar_select %p2466, %s2465, 31
        %s2468 = smul.addr %s2467, 8
        %s2469 = scalar_lea.vmem %s5, %s2468
      $region60: #{down_forward.4} parent=55 // pred_fallthru
        _
      // Predicated region
      $region61: #{down_forward.4} parent=55 // pred_check
        %p2470 = pneg %p179
      $region62: #{down_forward.4} parent=55 // pred_check_branch
        %2472 = sbr.rel (%p2470) target = $region64
      $region63: #{down_forward.4} parent=55 // pred_region
        %p2473 = scmp.lt.s32.totalorder %s20, 1
        %s2474 = scalar_select %p2473, %s20, 1
        %s2475 = scalar_lea.vmem %s6, %s2474
      $region64: #{down_forward.4} parent=55 // pred_fallthru
        _
      // Predicated region
      $region65: #{down_forward.4} parent=55 // pred_check
        %p2476 = pneg %p205
      $region66: #{down_forward.4} parent=55 // pred_check_branch
        %2478 = sbr.rel (%p2476) target = $region68
      $region67: #{down_forward.4} parent=55 // pred_region
        %p2479 = scmp.lt.s32.totalorder %s20, 1
        %s2480 = scalar_select %p2479, %s20, 1
        %s2481 = scalar_lea.vmem %s7, %s2480
      $region68: #{down_forward.4} parent=55 // pred_fallthru
        _
    $region56: #{down_forward.4} parent=5 // pred_fallthru
      _
  $region6: #{down_forward.4} parent=0 // loop_footer
    %s18 = sadd.s32 1, %s14
  $region7: #{down_forward.4} parent=0 // loop_footer_branch
    %13 = sbr.rel target = $region3
  $region8: #{down_forward.4} parent=0 // loop_exit
    _

// kernel: down_forward.3
$region0: #{down_forward.3}
  #allocation0 [shape = 'u32[]', space=smem, size = 0x4, offset = 0x4, fixed_abs, tag = 'smem constant byte address 0x4 - core index']
  #allocation1 [shape = 'u32[144,128]{1,0:T(1,128)}', space=vmem, size = 0x12000, scoped, tag = 'internal scratch']
  #allocation2 [shape = 'bf16[176,4]{1,0:T(16,128)(2,1)}', space=vmem, size = 0xb000, scoped, tag = 'scratch operand']
  %s0 = inlined_call_operand.vmem [shape: f32[16,2,8,2,4], index: 0, kind: input, shape index: {}]
  %s1 = inlined_call_operand.vmem [shape: bf16[9,4,8], index: 1, kind: input, shape index: {}]
  %s2 = inlined_call_operand.vmem [shape: f32[1,8], index: 2, kind: input, shape index: {}]
  %s3 = inlined_call_operand.vmem [shape: f32[256,8], index: 3, kind: output, shape index: {0}]
  %s4 = inlined_call_operand.vmem [shape: f32[2,1,8], index: 4, kind: output, shape index: {1}]
  %s5 = inlined_call_operand.vmem [shape: f32[2,1,8], index: 5, kind: output, shape index: {2}]
  %6 = xla_tuple %s3, %s4, %s5
  %s7 = sld [smem:[#allocation0]]
  $region61: #{down_forward.3} parent=0
    _
  %s9 = ssub.s32 1, %s7
  %s10 = scalar_select 0, %s9, %s7
  loop: start=0, step=1, limit=4
  $region2: #{down_forward.3} parent=0 // loop_pre_header
    _
  $region3: #{down_forward.3} parent=0 // loop_header
    %s12 = sphi 0, %s16
    %p13 = scmp.ge.s32.totalorder %s12, 4
    %s22 = sphi 0, %s24
    %s25 = sphi 0, %s22
    %s26 = sphi 0, %s25
    %s42 = sphi 0, %s26
    %s46 = sphi 0, %s46
    %s48 = sphi 0, %s46
    %s49 = sphi 0, %s48
    %s63 = sphi 0, %s49
    %s67 = sphi 0, %s67
    %s69 = sphi 0, %s67
    %s70 = sphi 0, %s69
    %s84 = sphi 0, %s70
    %s90 = sphi 0, %s92
    %s93 = sphi 0, %s90
    %s94 = sphi 0, %s93
    %s110 = sphi 0, %s94
    %s116 = sphi 0, %s118
    %s119 = sphi 0, %s116
    %s120 = sphi 0, %s119
    %s136 = sphi 0, %s120
    %s142 = sphi 0, %s144
    %s145 = sphi 0, %s142
    %s146 = sphi 0, %s145
    %s162 = sphi 0, %s146
  $region4: #{down_forward.3} parent=0 // loop_header_branch
    %15 = sbr.rel (%p13) target = $region8
  $region5: #{down_forward.3} parent=0 // loop_body
    %s17 = ssub.s32 %s12, 1
    %s18 = ssub.s32 %s12, 2
    %s19 = sadd.s32 %s12, 1
    %s20 = ssub.s32 %s12, %s19
    %p21 = scmp.eq.s32.totalorder %s20, 0
    %s23 = sadd.s32 %s22, 1
    %s24 = scalar_select %p21, %s22, %s23
    %p27 = pneg %p21
    %p28 = scmp.eq.s32.totalorder %s12, 1
    %p29 = por %p27, %p28
    %p30 = scmp.ne.s32.totalorder %s22, %s25
    %p31 = scmp.eq.s32.totalorder %s12, 0
    %p32 = por %p30, %p31
    %p33 = scmp.ne.s32.totalorder %s22, %s25
    %p34 = scmp.eq.s32.totalorder %s17, 1
    %p35 = por %p33, %p34
    %p36 = scmp.ne.s32.totalorder %s25, %s26
    %p37 = scmp.eq.s32.totalorder %s17, 0
    %p38 = por %p36, %p37
    %p39 = scmp.ne.s32.totalorder %s25, %s26
    %p40 = scmp.eq.s32.totalorder %s18, 1
    %p41 = por %p39, %p40
    %p43 = scmp.ne.s32.totalorder %s26, %s42
    %p44 = scmp.eq.s32.totalorder %s18, 0
    %p45 = por %p43, %p44
    %s47 = sadd.s32 %s46, 1
    %p50 = scmp.eq.s32.totalorder %s12, 1
    %p51 = scmp.ne.s32.totalorder %s46, %s48
    %p52 = scmp.eq.s32.totalorder %s12, 0
    %p53 = por %p51, %p52
    %p54 = scmp.ne.s32.totalorder %s46, %s48
    %p55 = scmp.eq.s32.totalorder %s17, 1
    %p56 = por %p54, %p55
    %p57 = scmp.ne.s32.totalorder %s48, %s49
    %p58 = scmp.eq.s32.totalorder %s17, 0
    %p59 = por %p57, %p58
    %p60 = scmp.ne.s32.totalorder %s48, %s49
    %p61 = scmp.eq.s32.totalorder %s18, 1
    %p62 = por %p60, %p61
    %p64 = scmp.ne.s32.totalorder %s49, %s63
    %p65 = scmp.eq.s32.totalorder %s18, 0
    %p66 = por %p64, %p65
    %s68 = sadd.s32 %s67, 1
    %p71 = scmp.eq.s32.totalorder %s12, 1
    %p72 = scmp.ne.s32.totalorder %s67, %s69
    %p73 = scmp.eq.s32.totalorder %s12, 0
    %p74 = por %p72, %p73
    %p75 = scmp.ne.s32.totalorder %s67, %s69
    %p76 = scmp.eq.s32.totalorder %s17, 1
    %p77 = por %p75, %p76
    %p78 = scmp.ne.s32.totalorder %s69, %s70
    %p79 = scmp.eq.s32.totalorder %s17, 0
    %p80 = por %p78, %p79
    %p81 = scmp.ne.s32.totalorder %s69, %s70
    %p82 = scmp.eq.s32.totalorder %s18, 1
    %p83 = por %p81, %p82
    %p85 = scmp.ne.s32.totalorder %s70, %s84
    %p86 = scmp.eq.s32.totalorder %s18, 0
    %p87 = por %p85, %p86
    %s88 = ssub.s32 %s12, %s19
    %p89 = scmp.eq.s32.totalorder %s88, 0
    %s91 = sadd.s32 %s90, 1
    %s92 = scalar_select %p89, %s90, %s91
    %p95 = pneg %p89
    %p96 = scmp.eq.s32.totalorder %s12, 1
    %p97 = por %p95, %p96
    %p98 = scmp.ne.s32.totalorder %s90, %s93
    %p99 = scmp.eq.s32.totalorder %s12, 0
    %p100 = por %p98, %p99
    %p101 = scmp.ne.s32.totalorder %s90, %s93
    %p102 = scmp.eq.s32.totalorder %s17, 1
    %p103 = por %p101, %p102
    %p104 = scmp.ne.s32.totalorder %s93, %s94
    %p105 = scmp.eq.s32.totalorder %s17, 0
    %p106 = por %p104, %p105
    %p107 = scmp.ne.s32.totalorder %s93, %s94
    %p108 = scmp.eq.s32.totalorder %s18, 1
    %p109 = por %p107, %p108
    %p111 = scmp.ne.s32.totalorder %s94, %s110
    %p112 = scmp.eq.s32.totalorder %s18, 0
    %p113 = por %p111, %p112
    %s114 = ssub.s32 %s12, %s19
    %p115 = scmp.eq.s32.totalorder %s114, 0
    %s117 = sadd.s32 %s116, 1
    %s118 = scalar_select %p115, %s116, %s117
    %p121 = pneg %p115
    %p122 = scmp.eq.s32.totalorder %s12, 1
    %p123 = por %p121, %p122
    %p124 = scmp.ne.s32.totalorder %s116, %s119
    %p125 = scmp.eq.s32.totalorder %s12, 0
    %p126 = por %p124, %p125
    %p127 = scmp.ne.s32.totalorder %s116, %s119
    %p128 = scmp.eq.s32.totalorder %s17, 1
    %p129 = por %p127, %p128
    %p130 = scmp.ne.s32.totalorder %s119, %s120
    %p131 = scmp.eq.s32.totalorder %s17, 0
    %p132 = por %p130, %p131
    %p133 = scmp.ne.s32.totalorder %s119, %s120
    %p134 = scmp.eq.s32.totalorder %s18, 1
    %p135 = por %p133, %p134
    %p137 = scmp.ne.s32.totalorder %s120, %s136
    %p138 = scmp.eq.s32.totalorder %s18, 0
    %p139 = por %p137, %p138
    %s140 = ssub.s32 %s12, %s19
    %p141 = scmp.eq.s32.totalorder %s140, 0
    %s143 = sadd.s32 %s142, 1
    %s144 = scalar_select %p141, %s142, %s143
    %p147 = pneg %p141
    %p148 = scmp.eq.s32.totalorder %s12, 1
    %p149 = por %p147, %p148
    %p150 = scmp.ne.s32.totalorder %s142, %s145
    %p151 = scmp.eq.s32.totalorder %s12, 0
    %p152 = por %p150, %p151
    %p153 = scmp.ne.s32.totalorder %s142, %s145
    %p154 = scmp.eq.s32.totalorder %s17, 1
    %p155 = por %p153, %p154
    %p156 = scmp.ne.s32.totalorder %s145, %s146
    %p157 = scmp.eq.s32.totalorder %s17, 0
    %p158 = por %p156, %p157
    %p159 = scmp.ne.s32.totalorder %s145, %s146
    %p160 = scmp.eq.s32.totalorder %s18, 1
    %p161 = por %p159, %p160
    %p163 = scmp.ne.s32.totalorder %s146, %s162
    %p164 = scmp.eq.s32.totalorder %s18, 0
    %p165 = por %p163, %p164
    %p166 = scmp.le.s32.totalorder 1, %s12
    %p167 = scmp.lt.s32.totalorder %s12, 3
    %p168 = pnand %p166, %p167
    %p169 = pneg %p168
    // Predicated region
    $region9: #{down_forward.3} parent=5 // pred_check
      _
    $region10: #{down_forward.3} parent=5 // pred_check_branch
      %171 = sbr.rel (%p168) target = $region12
    $region11: #{down_forward.3} parent=5 // pred_region
      %s172 = ssub.s32 %s12, 1
      // Predicated region
      $region13: #{down_forward.3} parent=11 // pred_check
        %p173 = pneg %p59
      $region14: #{down_forward.3} parent=11 // pred_check_branch
        %175 = sbr.rel (%p173) target = $region16
      $region15: #{down_forward.3} parent=11 // pred_region
        _
      $region16: #{down_forward.3} parent=11 // pred_fallthru
        _
      // Predicated region
      $region17: #{down_forward.3} parent=11 // pred_check
        %p176 = pneg %p80
      $region18: #{down_forward.3} parent=11 // pred_check_branch
        %178 = sbr.rel (%p176) target = $region20
      $region19: #{down_forward.3} parent=11 // pred_region
        _
      $region20: #{down_forward.3} parent=11 // pred_fallthru
        _
    $region12: #{down_forward.3} parent=5 // pred_fallthru
      _
    %p179 = scmp.lt.s32.totalorder %s12, 2
    // Predicated region
    $region21: #{down_forward.3} parent=5 // pred_check
      %p180 = pneg %p179
    $region22: #{down_forward.3} parent=5 // pred_check_branch
      %182 = sbr.rel (%p180) target = $region24
    $region23: #{down_forward.3} parent=5 // pred_region
      // Predicated region
      $region25: #{down_forward.3} parent=23 // pred_check
        %p183 = pneg %p32
      $region26: #{down_forward.3} parent=23 // pred_check_branch
        %185 = sbr.rel (%p183) target = $region28
      $region27: #{down_forward.3} parent=23 // pred_region
        %s186 = smul.u32 8, %s12
        %p187 = scmp.lt.s32.totalorder %s186, 15
        %s188 = scalar_select %p187, %s186, 15
        %s189 = smul.addr %s188, 16
        %s190 = smul.addr %s189, 2
        %s191 = scalar_lea.vmem %s0, %s190
        %s192 = smul.u32 8, %s12
      $region28: #{down_forward.3} parent=23 // pred_fallthru
        _
    $region24: #{down_forward.3} parent=5 // pred_fallthru
      _
    %p193 = scmp.le.s32.totalorder 1, %s12
    %p194 = scmp.lt.s32.totalorder %s12, 3
    %p195 = pnand %p193, %p194
    %p196 = pneg %p195
    // Predicated region
    $region29: #{down_forward.3} parent=5 // pred_check
      _
    $region30: #{down_forward.3} parent=5 // pred_check_branch
      %198 = sbr.rel (%p195) target = $region32
    $region31: #{down_forward.3} parent=5 // pred_region
      %s199 = ssub.s32 %s12, 1
      %s200 = smul.u32 8, %s17
      %p201 = scmp.lt.s32.totalorder %s200, 15
      %s202 = scalar_select %p201, %s200, 15
      %s203 = smul.addr %s202, 16
      %s204 = smul.addr %s203, 2
      %s205 = scalar_lea.vmem %s0, %s204
      %p206 = pneg %p38
      %p207 = pneg %p35
      %p208 = pneg %p59
      %p209 = pneg %p56
      %p210 = pneg %p80
      %p211 = pneg %p77
      %p212 = pneg %p106
      %p213 = pneg %p103
      %s214 = smul.u32 16, %s17
      %p215 = scmp.lt.s32.totalorder %s214, 31
      %s216 = scalar_select %p215, %s214, 31
      %s217 = smul.addr %s216, 8
      %s218 = scalar_lea.vmem %s3, %s217
      %p219 = pneg %p132
      %p220 = pneg %p129
      %p221 = scmp.lt.s32.totalorder %s17, 1
      %s222 = scalar_select %p221, %s17, 1
      %s223 = scalar_lea.vmem %s4, %s222
      %p224 = pneg %p158
      %p225 = pneg %p155
      %p226 = scmp.lt.s32.totalorder %s17, 1
      %s227 = scalar_select %p226, %s17, 1
      %s228 = scalar_lea.vmem %s5, %s227
      %s229 = smul.u32 8, %s17
      %p230 = scmp.lt.s32.totalorder %s229, 15
      %s231 = scalar_select %p230, %s229, 15
      %s232 = smul.addr %s231, 16
      %s233 = smul.addr %s232, 2
      %s234 = scalar_lea.vmem %s0, %s233
      %s235 = smul.u32 8, %s17
      %s236 = smul.u32 16, %s17
      %p237 = scmp.lt.s32.totalorder %s236, 31
      %s238 = scalar_select %p237, %s236, 31
      %s239 = smul.addr %s238, 8
      %s240 = scalar_lea.vmem %s3, %s239
      %s241 = smul.u32 16, %s17
      %p242 = scmp.lt.s32.totalorder %s17, 1
      %s243 = scalar_select %p242, %s17, 1
      %s244 = scalar_lea.vmem %s4, %s243
      %p245 = scmp.lt.s32.totalorder %s17, 1
      %s246 = scalar_select %p245, %s17, 1
      %s247 = scalar_lea.vmem %s5, %s246
      %v249 = vld [vmem:[%s234] sm:$0x3]
      %v250 = vld [vmem:[%s234 + $0x2] sm:$0x3]
      %v251 = vld [vmem:[%s234 + $0x4] sm:$0x3]
      %v252 = vld [vmem:[%s234 + $0x6] sm:$0x3]
      %v253 = vld [vmem:[%s234 + $0x8] sm:$0x3]
      %v254 = vld [vmem:[%s234 + $0xa] sm:$0x3]
      %v255 = vld [vmem:[%s234 + $0xc] sm:$0x3]
      %v256 = vld [vmem:[%s234 + $0xe] sm:$0x3]
      %v257 = vld [vmem:[%s234 + $0x10] sm:$0x3]
      %v258 = vld [vmem:[%s234 + $0x12] sm:$0x3]
      %v259 = vld [vmem:[%s234 + $0x14] sm:$0x3]
      %v260 = vld [vmem:[%s234 + $0x16] sm:$0x3]
      %v261 = vld [vmem:[%s234 + $0x18] sm:$0x3]
      %v262 = vld [vmem:[%s234 + $0x1a] sm:$0x3]
      %v263 = vld [vmem:[%s234 + $0x1c] sm:$0x3]
      %v264 = vld [vmem:[%s234 + $0x1e] sm:$0x3]
      %v265 = vld [vmem:[%s234 + $0x20] sm:$0x3]
      %v266 = vld [vmem:[%s234 + $0x22] sm:$0x3]
      %v267 = vld [vmem:[%s234 + $0x24] sm:$0x3]
      %v268 = vld [vmem:[%s234 + $0x26] sm:$0x3]
      %v269 = vld [vmem:[%s234 + $0x28] sm:$0x3]
      %v270 = vld [vmem:[%s234 + $0x2a] sm:$0x3]
      %v271 = vld [vmem:[%s234 + $0x2c] sm:$0x3]
      %v272 = vld [vmem:[%s234 + $0x2e] sm:$0x3]
      %v273 = vld [vmem:[%s234 + $0x30] sm:$0x3]
      %v274 = vld [vmem:[%s234 + $0x32] sm:$0x3]
      %v275 = vld [vmem:[%s234 + $0x34] sm:$0x3]
      %v276 = vld [vmem:[%s234 + $0x36] sm:$0x3]
      %v277 = vld [vmem:[%s234 + $0x38] sm:$0x3]
      %v278 = vld [vmem:[%s234 + $0x3a] sm:$0x3]
      %v279 = vld [vmem:[%s234 + $0x3c] sm:$0x3]
      %v280 = vld [vmem:[%s234 + $0x3e] sm:$0x3]
      %v281 = vld [vmem:[%s234 + $0x40] sm:$0x3]
      %v282 = vld [vmem:[%s234 + $0x42] sm:$0x3]
      %v283 = vld [vmem:[%s234 + $0x44] sm:$0x3]
      %v284 = vld [vmem:[%s234 + $0x46] sm:$0x3]
      %v285 = vld [vmem:[%s234 + $0x48] sm:$0x3]
      %v286 = vld [vmem:[%s234 + $0x4a] sm:$0x3]
      %v287 = vld [vmem:[%s234 + $0x4c] sm:$0x3]
      %v288 = vld [vmem:[%s234 + $0x4e] sm:$0x3]
      %v289 = vld [vmem:[%s234 + $0x50] sm:$0x3]
      %v290 = vld [vmem:[%s234 + $0x52] sm:$0x3]
      %v291 = vld [vmem:[%s234 + $0x54] sm:$0x3]
      %v292 = vld [vmem:[%s234 + $0x56] sm:$0x3]
      %v293 = vld [vmem:[%s234 + $0x58] sm:$0x3]
      %v294 = vld [vmem:[%s234 + $0x5a] sm:$0x3]
      %v295 = vld [vmem:[%s234 + $0x5c] sm:$0x3]
      %v296 = vld [vmem:[%s234 + $0x5e] sm:$0x3]
      %v297 = vld [vmem:[%s234 + $0x60] sm:$0x3]
      %v298 = vld [vmem:[%s234 + $0x62] sm:$0x3]
      %v299 = vld [vmem:[%s234 + $0x64] sm:$0x3]
      %v300 = vld [vmem:[%s234 + $0x66] sm:$0x3]
      %v301 = vld [vmem:[%s234 + $0x68] sm:$0x3]
      %v302 = vld [vmem:[%s234 + $0x6a] sm:$0x3]
      %v303 = vld [vmem:[%s234 + $0x6c] sm:$0x3]
      %v304 = vld [vmem:[%s234 + $0x6e] sm:$0x3]
      %v305 = vld [vmem:[%s234 + $0x70] sm:$0x3]
      %v306 = vld [vmem:[%s234 + $0x72] sm:$0x3]
      %v307 = vld [vmem:[%s234 + $0x74] sm:$0x3]
      %v308 = vld [vmem:[%s234 + $0x76] sm:$0x3]
      %v309 = vld [vmem:[%s234 + $0x78] sm:$0x3]
      %v310 = vld [vmem:[%s234 + $0x7a] sm:$0x3]
      %v311 = vld [vmem:[%s234 + $0x7c] sm:$0x3]
      %v312 = vld [vmem:[%s234 + $0x7e] sm:$0x3]
      %v313 = vld [vmem:[%s234 + $0x80] sm:$0x3]
      %v314 = vld [vmem:[%s234 + $0x82] sm:$0x3]
      %v315 = vld [vmem:[%s234 + $0x84] sm:$0x3]
      %v316 = vld [vmem:[%s234 + $0x86] sm:$0x3]
      %v317 = vld [vmem:[%s234 + $0x88] sm:$0x3]
      %v318 = vld [vmem:[%s234 + $0x8a] sm:$0x3]
      %v319 = vld [vmem:[%s234 + $0x8c] sm:$0x3]
      %v320 = vld [vmem:[%s234 + $0x8e] sm:$0x3]
      %v321 = vld [vmem:[%s234 + $0x90] sm:$0x3]
      %v322 = vld [vmem:[%s234 + $0x92] sm:$0x3]
      %v323 = vld [vmem:[%s234 + $0x94] sm:$0x3]
      %v324 = vld [vmem:[%s234 + $0x96] sm:$0x3]
      %v325 = vld [vmem:[%s234 + $0x98] sm:$0x3]
      %v326 = vld [vmem:[%s234 + $0x9a] sm:$0x3]
      %v327 = vld [vmem:[%s234 + $0x9c] sm:$0x3]
      %v328 = vld [vmem:[%s234 + $0x9e] sm:$0x3]
      %v329 = vld [vmem:[%s234 + $0xa0] sm:$0x3]
      %v330 = vld [vmem:[%s234 + $0xa2] sm:$0x3]
      %v331 = vld [vmem:[%s234 + $0xa4] sm:$0x3]
      %v332 = vld [vmem:[%s234 + $0xa6] sm:$0x3]
      %v333 = vld [vmem:[%s234 + $0xa8] sm:$0x3]
      %v334 = vld [vmem:[%s234 + $0xaa] sm:$0x3]
      %v335 = vld [vmem:[%s234 + $0xac] sm:$0x3]
      %v336 = vld [vmem:[%s234 + $0xae] sm:$0x3]
      %v337 = vld [vmem:[%s234 + $0xb0] sm:$0x3]
      %v338 = vld [vmem:[%s234 + $0xb2] sm:$0x3]
      %v339 = vld [vmem:[%s234 + $0xb4] sm:$0x3]
      %v340 = vld [vmem:[%s234 + $0xb6] sm:$0x3]
      %v341 = vld [vmem:[%s234 + $0xb8] sm:$0x3]
      %v342 = vld [vmem:[%s234 + $0xba] sm:$0x3]
      %v343 = vld [vmem:[%s234 + $0xbc] sm:$0x3]
      %v344 = vld [vmem:[%s234 + $0xbe] sm:$0x3]
      %v345 = vld [vmem:[%s234 + $0xc0] sm:$0x3]
      %v346 = vld [vmem:[%s234 + $0xc2] sm:$0x3]
      %v347 = vld [vmem:[%s234 + $0xc4] sm:$0x3]
      %v348 = vld [vmem:[%s234 + $0xc6] sm:$0x3]
      %v349 = vld [vmem:[%s234 + $0xc8] sm:$0x3]
      %v350 = vld [vmem:[%s234 + $0xca] sm:$0x3]
      %v351 = vld [vmem:[%s234 + $0xcc] sm:$0x3]
      %v352 = vld [vmem:[%s234 + $0xce] sm:$0x3]
      %v353 = vld [vmem:[%s234 + $0xd0] sm:$0x3]
      %v354 = vld [vmem:[%s234 + $0xd2] sm:$0x3]
      %v355 = vld [vmem:[%s234 + $0xd4] sm:$0x3]
      %v356 = vld [vmem:[%s234 + $0xd6] sm:$0x3]
      %v357 = vld [vmem:[%s234 + $0xd8] sm:$0x3]
      %v358 = vld [vmem:[%s234 + $0xda] sm:$0x3]
      %v359 = vld [vmem:[%s234 + $0xdc] sm:$0x3]
      %v360 = vld [vmem:[%s234 + $0xde] sm:$0x3]
      %v361 = vld [vmem:[%s234 + $0xe0] sm:$0x3]
      %v362 = vld [vmem:[%s234 + $0xe2] sm:$0x3]
      %v363 = vld [vmem:[%s234 + $0xe4] sm:$0x3]
      %v364 = vld [vmem:[%s234 + $0xe6] sm:$0x3]
      %v365 = vld [vmem:[%s234 + $0xe8] sm:$0x3]
      %v366 = vld [vmem:[%s234 + $0xea] sm:$0x3]
      %v367 = vld [vmem:[%s234 + $0xec] sm:$0x3]
      %v368 = vld [vmem:[%s234 + $0xee] sm:$0x3]
      %v369 = vld [vmem:[%s234 + $0xf0] sm:$0x3]
      %v370 = vld [vmem:[%s234 + $0xf2] sm:$0x3]
      %v371 = vld [vmem:[%s234 + $0xf4] sm:$0x3]
      %v372 = vld [vmem:[%s234 + $0xf6] sm:$0x3]
      %v373 = vld [vmem:[%s234 + $0xf8] sm:$0x3]
      %v374 = vld [vmem:[%s234 + $0xfa] sm:$0x3]
      %v375 = vld [vmem:[%s234 + $0xfc] sm:$0x3]
      %v376 = vld [vmem:[%s234 + $0xfe] sm:$0x3]
      %vm377 = vcmask 25600
      %v378 = vsel %vm377, %v249, -inf
      %v379 = vrot.slane %v378, 4
      %v380 = vmax.f32 %v378, %v379
      %v381 = vrot.slane %v380, 2
      %v382 = vmax.f32 %v380, %v381
      %v383 = vrot.slane %v382, 1
      %v384 = vmax.f32 %v382, %v383
      %v385 = vsel %vm377, %v250, -inf
      %v386 = vrot.slane %v385, 4
      %v387 = vmax.f32 %v385, %v386
      %v388 = vrot.slane %v387, 2
      %v389 = vmax.f32 %v387, %v388
      %v390 = vrot.slane %v389, 1
      %v391 = vmax.f32 %v389, %v390
      %v392 = vsel %vm377, %v251, -inf
      %v393 = vrot.slane %v392, 4
      %v394 = vmax.f32 %v392, %v393
      %v395 = vrot.slane %v394, 2
      %v396 = vmax.f32 %v394, %v395
      %v397 = vrot.slane %v396, 1
      %v398 = vmax.f32 %v396, %v397
      %v399 = vsel %vm377, %v252, -inf
      %v400 = vrot.slane %v399, 4
      %v401 = vmax.f32 %v399, %v400
      %v402 = vrot.slane %v401, 2
      %v403 = vmax.f32 %v401, %v402
      %v404 = vrot.slane %v403, 1
      %v405 = vmax.f32 %v403, %v404
      %v406 = vsel %vm377, %v253, -inf
      %v407 = vrot.slane %v406, 4
      %v408 = vmax.f32 %v406, %v407
      %v409 = vrot.slane %v408, 2
      %v410 = vmax.f32 %v408, %v409
      %v411 = vrot.slane %v410, 1
      %v412 = vmax.f32 %v410, %v411
      %v413 = vsel %vm377, %v254, -inf
      %v414 = vrot.slane %v413, 4
      %v415 = vmax.f32 %v413, %v414
      %v416 = vrot.slane %v415, 2
      %v417 = vmax.f32 %v415, %v416
      %v418 = vrot.slane %v417, 1
      %v419 = vmax.f32 %v417, %v418
      %v420 = vsel %vm377, %v255, -inf
      %v421 = vrot.slane %v420, 4
      %v422 = vmax.f32 %v420, %v421
      %v423 = vrot.slane %v422, 2
      %v424 = vmax.f32 %v422, %v423
      %v425 = vrot.slane %v424, 1
      %v426 = vmax.f32 %v424, %v425
      %v427 = vsel %vm377, %v256, -inf
      %v428 = vrot.slane %v427, 4
      %v429 = vmax.f32 %v427, %v428
      %v430 = vrot.slane %v429, 2
      %v431 = vmax.f32 %v429, %v430
      %v432 = vrot.slane %v431, 1
      %v433 = vmax.f32 %v431, %v432
      %v434 = vsel %vm377, %v257, -inf
      %v435 = vrot.slane %v434, 4
      %v436 = vmax.f32 %v434, %v435
      %v437 = vrot.slane %v436, 2
      %v438 = vmax.f32 %v436, %v437
      %v439 = vrot.slane %v438, 1
      %v440 = vmax.f32 %v438, %v439
      %v441 = vsel %vm377, %v258, -inf
      %v442 = vrot.slane %v441, 4
      %v443 = vmax.f32 %v441, %v442
      %v444 = vrot.slane %v443, 2
      %v445 = vmax.f32 %v443, %v444
      %v446 = vrot.slane %v445, 1
      %v447 = vmax.f32 %v445, %v446
      %v448 = vsel %vm377, %v259, -inf
      %v449 = vrot.slane %v448, 4
      %v450 = vmax.f32 %v448, %v449
      %v451 = vrot.slane %v450, 2
      %v452 = vmax.f32 %v450, %v451
      %v453 = vrot.slane %v452, 1
      %v454 = vmax.f32 %v452, %v453
      %v455 = vsel %vm377, %v260, -inf
      %v456 = vrot.slane %v455, 4
      %v457 = vmax.f32 %v455, %v456
      %v458 = vrot.slane %v457, 2
      %v459 = vmax.f32 %v457, %v458
      %v460 = vrot.slane %v459, 1
      %v461 = vmax.f32 %v459, %v460
      %v462 = vsel %vm377, %v261, -inf
      %v463 = vrot.slane %v462, 4
      %v464 = vmax.f32 %v462, %v463
      %v465 = vrot.slane %v464, 2
      %v466 = vmax.f32 %v464, %v465
      %v467 = vrot.slane %v466, 1
      %v468 = vmax.f32 %v466, %v467
      %v469 = vsel %vm377, %v262, -inf
      %v470 = vrot.slane %v469, 4
      %v471 = vmax.f32 %v469, %v470
      %v472 = vrot.slane %v471, 2
      %v473 = vmax.f32 %v471, %v472
      %v474 = vrot.slane %v473, 1
      %v475 = vmax.f32 %v473, %v474
      %v476 = vsel %vm377, %v263, -inf
      %v477 = vrot.slane %v476, 4
      %v478 = vmax.f32 %v476, %v477
      %v479 = vrot.slane %v478, 2
      %v480 = vmax.f32 %v478, %v479
      %v481 = vrot.slane %v480, 1
      %v482 = vmax.f32 %v480, %v481
      %v483 = vsel %vm377, %v264, -inf
      %v484 = vrot.slane %v483, 4
      %v485 = vmax.f32 %v483, %v484
      %v486 = vrot.slane %v485, 2
      %v487 = vmax.f32 %v485, %v486
      %v488 = vrot.slane %v487, 1
      %v489 = vmax.f32 %v487, %v488
      %v490 = vsel %vm377, %v265, -inf
      %v491 = vrot.slane %v490, 4
      %v492 = vmax.f32 %v490, %v491
      %v493 = vrot.slane %v492, 2
      %v494 = vmax.f32 %v492, %v493
      %v495 = vrot.slane %v494, 1
      %v496 = vmax.f32 %v494, %v495
      %v497 = vsel %vm377, %v266, -inf
      %v498 = vrot.slane %v497, 4
      %v499 = vmax.f32 %v497, %v498
      %v500 = vrot.slane %v499, 2
      %v501 = vmax.f32 %v499, %v500
      %v502 = vrot.slane %v501, 1
      %v503 = vmax.f32 %v501, %v502
      %v504 = vsel %vm377, %v267, -inf
      %v505 = vrot.slane %v504, 4
      %v506 = vmax.f32 %v504, %v505
      %v507 = vrot.slane %v506, 2
      %v508 = vmax.f32 %v506, %v507
      %v509 = vrot.slane %v508, 1
      %v510 = vmax.f32 %v508, %v509
      %v511 = vsel %vm377, %v268, -inf
      %v512 = vrot.slane %v511, 4
      %v513 = vmax.f32 %v511, %v512
      %v514 = vrot.slane %v513, 2
      %v515 = vmax.f32 %v513, %v514
      %v516 = vrot.slane %v515, 1
      %v517 = vmax.f32 %v515, %v516
      %v518 = vsel %vm377, %v269, -inf
      %v519 = vrot.slane %v518, 4
      %v520 = vmax.f32 %v518, %v519
      %v521 = vrot.slane %v520, 2
      %v522 = vmax.f32 %v520, %v521
      %v523 = vrot.slane %v522, 1
      %v524 = vmax.f32 %v522, %v523
      %v525 = vsel %vm377, %v270, -inf
      %v526 = vrot.slane %v525, 4
      %v527 = vmax.f32 %v525, %v526
      %v528 = vrot.slane %v527, 2
      %v529 = vmax.f32 %v527, %v528
      %v530 = vrot.slane %v529, 1
      %v531 = vmax.f32 %v529, %v530
      %v532 = vsel %vm377, %v271, -inf
      %v533 = vrot.slane %v532, 4
      %v534 = vmax.f32 %v532, %v533
      %v535 = vrot.slane %v534, 2
      %v536 = vmax.f32 %v534, %v535
      %v537 = vrot.slane %v536, 1
      %v538 = vmax.f32 %v536, %v537
      %v539 = vsel %vm377, %v272, -inf
      %v540 = vrot.slane %v539, 4
      %v541 = vmax.f32 %v539, %v540
      %v542 = vrot.slane %v541, 2
      %v543 = vmax.f32 %v541, %v542
      %v544 = vrot.slane %v543, 1
      %v545 = vmax.f32 %v543, %v544
      %v546 = vsel %vm377, %v273, -inf
      %v547 = vrot.slane %v546, 4
      %v548 = vmax.f32 %v546, %v547
      %v549 = vrot.slane %v548, 2
      %v550 = vmax.f32 %v548, %v549
      %v551 = vrot.slane %v550, 1
      %v552 = vmax.f32 %v550, %v551
      %v553 = vsel %vm377, %v274, -inf
      %v554 = vrot.slane %v553, 4
      %v555 = vmax.f32 %v553, %v554
      %v556 = vrot.slane %v555, 2
      %v557 = vmax.f32 %v555, %v556
      %v558 = vrot.slane %v557, 1
      %v559 = vmax.f32 %v557, %v558
      %v560 = vsel %vm377, %v275, -inf
      %v561 = vrot.slane %v560, 4
      %v562 = vmax.f32 %v560, %v561
      %v563 = vrot.slane %v562, 2
      %v564 = vmax.f32 %v562, %v563
      %v565 = vrot.slane %v564, 1
      %v566 = vmax.f32 %v564, %v565
      %v567 = vsel %vm377, %v276, -inf
      %v568 = vrot.slane %v567, 4
      %v569 = vmax.f32 %v567, %v568
      %v570 = vrot.slane %v569, 2
      %v571 = vmax.f32 %v569, %v570
      %v572 = vrot.slane %v571, 1
      %v573 = vmax.f32 %v571, %v572
      %v574 = vsel %vm377, %v277, -inf
      %v575 = vrot.slane %v574, 4
      %v576 = vmax.f32 %v574, %v575
      %v577 = vrot.slane %v576, 2
      %v578 = vmax.f32 %v576, %v577
      %v579 = vrot.slane %v578, 1
      %v580 = vmax.f32 %v578, %v579
      %v581 = vsel %vm377, %v278, -inf
      %v582 = vrot.slane %v581, 4
      %v583 = vmax.f32 %v581, %v582
      %v584 = vrot.slane %v583, 2
      %v585 = vmax.f32 %v583, %v584
      %v586 = vrot.slane %v585, 1
      %v587 = vmax.f32 %v585, %v586
      %v588 = vsel %vm377, %v279, -inf
      %v589 = vrot.slane %v588, 4
      %v590 = vmax.f32 %v588, %v589
      %v591 = vrot.slane %v590, 2
      %v592 = vmax.f32 %v590, %v591
      %v593 = vrot.slane %v592, 1
      %v594 = vmax.f32 %v592, %v593
      %v595 = vsel %vm377, %v280, -inf
      %v596 = vrot.slane %v595, 4
      %v597 = vmax.f32 %v595, %v596
      %v598 = vrot.slane %v597, 2
      %v599 = vmax.f32 %v597, %v598
      %v600 = vrot.slane %v599, 1
      %v601 = vmax.f32 %v599, %v600
      %v602 = vsel %vm377, %v281, -inf
      %v603 = vrot.slane %v602, 4
      %v604 = vmax.f32 %v602, %v603
      %v605 = vrot.slane %v604, 2
      %v606 = vmax.f32 %v604, %v605
      %v607 = vrot.slane %v606, 1
      %v608 = vmax.f32 %v606, %v607
      %v609 = vsel %vm377, %v282, -inf
      %v610 = vrot.slane %v609, 4
      %v611 = vmax.f32 %v609, %v610
      %v612 = vrot.slane %v611, 2
      %v613 = vmax.f32 %v611, %v612
      %v614 = vrot.slane %v613, 1
      %v615 = vmax.f32 %v613, %v614
      %v616 = vsel %vm377, %v283, -inf
      %v617 = vrot.slane %v616, 4
      %v618 = vmax.f32 %v616, %v617
      %v619 = vrot.slane %v618, 2
      %v620 = vmax.f32 %v618, %v619
      %v621 = vrot.slane %v620, 1
      %v622 = vmax.f32 %v620, %v621
      %v623 = vsel %vm377, %v284, -inf
      %v624 = vrot.slane %v623, 4
      %v625 = vmax.f32 %v623, %v624
      %v626 = vrot.slane %v625, 2
      %v627 = vmax.f32 %v625, %v626
      %v628 = vrot.slane %v627, 1
      %v629 = vmax.f32 %v627, %v628
      %v630 = vsel %vm377, %v285, -inf
      %v631 = vrot.slane %v630, 4
      %v632 = vmax.f32 %v630, %v631
      %v633 = vrot.slane %v632, 2
      %v634 = vmax.f32 %v632, %v633
      %v635 = vrot.slane %v634, 1
      %v636 = vmax.f32 %v634, %v635
      %v637 = vsel %vm377, %v286, -inf
      %v638 = vrot.slane %v637, 4
      %v639 = vmax.f32 %v637, %v638
      %v640 = vrot.slane %v639, 2
      %v641 = vmax.f32 %v639, %v640
      %v642 = vrot.slane %v641, 1
      %v643 = vmax.f32 %v641, %v642
      %v644 = vsel %vm377, %v287, -inf
      %v645 = vrot.slane %v644, 4
      %v646 = vmax.f32 %v644, %v645
      %v647 = vrot.slane %v646, 2
      %v648 = vmax.f32 %v646, %v647
      %v649 = vrot.slane %v648, 1
      %v650 = vmax.f32 %v648, %v649
      %v651 = vsel %vm377, %v288, -inf
      %v652 = vrot.slane %v651, 4
      %v653 = vmax.f32 %v651, %v652
      %v654 = vrot.slane %v653, 2
      %v655 = vmax.f32 %v653, %v654
      %v656 = vrot.slane %v655, 1
      %v657 = vmax.f32 %v655, %v656
      %v658 = vsel %vm377, %v289, -inf
      %v659 = vrot.slane %v658, 4
      %v660 = vmax.f32 %v658, %v659
      %v661 = vrot.slane %v660, 2
      %v662 = vmax.f32 %v660, %v661
      %v663 = vrot.slane %v662, 1
      %v664 = vmax.f32 %v662, %v663
      %v665 = vsel %vm377, %v290, -inf
      %v666 = vrot.slane %v665, 4
      %v667 = vmax.f32 %v665, %v666
      %v668 = vrot.slane %v667, 2
      %v669 = vmax.f32 %v667, %v668
      %v670 = vrot.slane %v669, 1
      %v671 = vmax.f32 %v669, %v670
      %v672 = vsel %vm377, %v291, -inf
      %v673 = vrot.slane %v672, 4
      %v674 = vmax.f32 %v672, %v673
      %v675 = vrot.slane %v674, 2
      %v676 = vmax.f32 %v674, %v675
      %v677 = vrot.slane %v676, 1
      %v678 = vmax.f32 %v676, %v677
      %v679 = vsel %vm377, %v292, -inf
      %v680 = vrot.slane %v679, 4
      %v681 = vmax.f32 %v679, %v680
      %v682 = vrot.slane %v681, 2
      %v683 = vmax.f32 %v681, %v682
      %v684 = vrot.slane %v683, 1
      %v685 = vmax.f32 %v683, %v684
      %v686 = vsel %vm377, %v293, -inf
      %v687 = vrot.slane %v686, 4
      %v688 = vmax.f32 %v686, %v687
      %v689 = vrot.slane %v688, 2
      %v690 = vmax.f32 %v688, %v689
      %v691 = vrot.slane %v690, 1
      %v692 = vmax.f32 %v690, %v691
      %v693 = vsel %vm377, %v294, -inf
      %v694 = vrot.slane %v693, 4
      %v695 = vmax.f32 %v693, %v694
      %v696 = vrot.slane %v695, 2
      %v697 = vmax.f32 %v695, %v696
      %v698 = vrot.slane %v697, 1
      %v699 = vmax.f32 %v697, %v698
      %v700 = vsel %vm377, %v295, -inf
      %v701 = vrot.slane %v700, 4
      %v702 = vmax.f32 %v700, %v701
      %v703 = vrot.slane %v702, 2
      %v704 = vmax.f32 %v702, %v703
      %v705 = vrot.slane %v704, 1
      %v706 = vmax.f32 %v704, %v705
      %v707 = vsel %vm377, %v296, -inf
      %v708 = vrot.slane %v707, 4
      %v709 = vmax.f32 %v707, %v708
      %v710 = vrot.slane %v709, 2
      %v711 = vmax.f32 %v709, %v710
      %v712 = vrot.slane %v711, 1
      %v713 = vmax.f32 %v711, %v712
      %v714 = vsel %vm377, %v297, -inf
      %v715 = vrot.slane %v714, 4
      %v716 = vmax.f32 %v714, %v715
      %v717 = vrot.slane %v716, 2
      %v718 = vmax.f32 %v716, %v717
      %v719 = vrot.slane %v718, 1
      %v720 = vmax.f32 %v718, %v719
      %v721 = vsel %vm377, %v298, -inf
      %v722 = vrot.slane %v721, 4
      %v723 = vmax.f32 %v721, %v722
      %v724 = vrot.slane %v723, 2
      %v725 = vmax.f32 %v723, %v724
      %v726 = vrot.slane %v725, 1
      %v727 = vmax.f32 %v725, %v726
      %v728 = vsel %vm377, %v299, -inf
      %v729 = vrot.slane %v728, 4
      %v730 = vmax.f32 %v728, %v729
      %v731 = vrot.slane %v730, 2
      %v732 = vmax.f32 %v730, %v731
      %v733 = vrot.slane %v732, 1
      %v734 = vmax.f32 %v732, %v733
      %v735 = vsel %vm377, %v300, -inf
      %v736 = vrot.slane %v735, 4
      %v737 = vmax.f32 %v735, %v736
      %v738 = vrot.slane %v737, 2
      %v739 = vmax.f32 %v737, %v738
      %v740 = vrot.slane %v739, 1
      %v741 = vmax.f32 %v739, %v740
      %v742 = vsel %vm377, %v301, -inf
      %v743 = vrot.slane %v742, 4
      %v744 = vmax.f32 %v742, %v743
      %v745 = vrot.slane %v744, 2
      %v746 = vmax.f32 %v744, %v745
      %v747 = vrot.slane %v746, 1
      %v748 = vmax.f32 %v746, %v747
      %v749 = vsel %vm377, %v302, -inf
      %v750 = vrot.slane %v749, 4
      %v751 = vmax.f32 %v749, %v750
      %v752 = vrot.slane %v751, 2
      %v753 = vmax.f32 %v751, %v752
      %v754 = vrot.slane %v753, 1
      %v755 = vmax.f32 %v753, %v754
      %v756 = vsel %vm377, %v303, -inf
      %v757 = vrot.slane %v756, 4
      %v758 = vmax.f32 %v756, %v757
      %v759 = vrot.slane %v758, 2
      %v760 = vmax.f32 %v758, %v759
      %v761 = vrot.slane %v760, 1
      %v762 = vmax.f32 %v760, %v761
      %v763 = vsel %vm377, %v304, -inf
      %v764 = vrot.slane %v763, 4
      %v765 = vmax.f32 %v763, %v764
      %v766 = vrot.slane %v765, 2
      %v767 = vmax.f32 %v765, %v766
      %v768 = vrot.slane %v767, 1
      %v769 = vmax.f32 %v767, %v768
      %v770 = vsel %vm377, %v305, -inf
      %v771 = vrot.slane %v770, 4
      %v772 = vmax.f32 %v770, %v771
      %v773 = vrot.slane %v772, 2
      %v774 = vmax.f32 %v772, %v773
      %v775 = vrot.slane %v774, 1
      %v776 = vmax.f32 %v774, %v775
      %v777 = vsel %vm377, %v306, -inf
      %v778 = vrot.slane %v777, 4
      %v779 = vmax.f32 %v777, %v778
      %v780 = vrot.slane %v779, 2
      %v781 = vmax.f32 %v779, %v780
      %v782 = vrot.slane %v781, 1
      %v783 = vmax.f32 %v781, %v782
      %v784 = vsel %vm377, %v307, -inf
      %v785 = vrot.slane %v784, 4
      %v786 = vmax.f32 %v784, %v785
      %v787 = vrot.slane %v786, 2
      %v788 = vmax.f32 %v786, %v787
      %v789 = vrot.slane %v788, 1
      %v790 = vmax.f32 %v788, %v789
      %v791 = vsel %vm377, %v308, -inf
      %v792 = vrot.slane %v791, 4
      %v793 = vmax.f32 %v791, %v792
      %v794 = vrot.slane %v793, 2
      %v795 = vmax.f32 %v793, %v794
      %v796 = vrot.slane %v795, 1
      %v797 = vmax.f32 %v795, %v796
      %v798 = vsel %vm377, %v309, -inf
      %v799 = vrot.slane %v798, 4
      %v800 = vmax.f32 %v798, %v799
      %v801 = vrot.slane %v800, 2
      %v802 = vmax.f32 %v800, %v801
      %v803 = vrot.slane %v802, 1
      %v804 = vmax.f32 %v802, %v803
      %v805 = vsel %vm377, %v310, -inf
      %v806 = vrot.slane %v805, 4
      %v807 = vmax.f32 %v805, %v806
      %v808 = vrot.slane %v807, 2
      %v809 = vmax.f32 %v807, %v808
      %v810 = vrot.slane %v809, 1
      %v811 = vmax.f32 %v809, %v810
      %v812 = vsel %vm377, %v311, -inf
      %v813 = vrot.slane %v812, 4
      %v814 = vmax.f32 %v812, %v813
      %v815 = vrot.slane %v814, 2
      %v816 = vmax.f32 %v814, %v815
      %v817 = vrot.slane %v816, 1
      %v818 = vmax.f32 %v816, %v817
      %v819 = vsel %vm377, %v312, -inf
      %v820 = vrot.slane %v819, 4
      %v821 = vmax.f32 %v819, %v820
      %v822 = vrot.slane %v821, 2
      %v823 = vmax.f32 %v821, %v822
      %v824 = vrot.slane %v823, 1
      %v825 = vmax.f32 %v823, %v824
      %v826 = vsel %vm377, %v313, -inf
      %v827 = vrot.slane %v826, 4
      %v828 = vmax.f32 %v826, %v827
      %v829 = vrot.slane %v828, 2
      %v830 = vmax.f32 %v828, %v829
      %v831 = vrot.slane %v830, 1
      %v832 = vmax.f32 %v830, %v831
      %v833 = vsel %vm377, %v314, -inf
      %v834 = vrot.slane %v833, 4
      %v835 = vmax.f32 %v833, %v834
      %v836 = vrot.slane %v835, 2
      %v837 = vmax.f32 %v835, %v836
      %v838 = vrot.slane %v837, 1
      %v839 = vmax.f32 %v837, %v838
      %v840 = vsel %vm377, %v315, -inf
      %v841 = vrot.slane %v840, 4
      %v842 = vmax.f32 %v840, %v841
      %v843 = vrot.slane %v842, 2
      %v844 = vmax.f32 %v842, %v843
      %v845 = vrot.slane %v844, 1
      %v846 = vmax.f32 %v844, %v845
      %v847 = vsel %vm377, %v316, -inf
      %v848 = vrot.slane %v847, 4
      %v849 = vmax.f32 %v847, %v848
      %v850 = vrot.slane %v849, 2
      %v851 = vmax.f32 %v849, %v850
      %v852 = vrot.slane %v851, 1
      %v853 = vmax.f32 %v851, %v852
      %v854 = vsel %vm377, %v317, -inf
      %v855 = vrot.slane %v854, 4
      %v856 = vmax.f32 %v854, %v855
      %v857 = vrot.slane %v856, 2
      %v858 = vmax.f32 %v856, %v857
      %v859 = vrot.slane %v858, 1
      %v860 = vmax.f32 %v858, %v859
      %v861 = vsel %vm377, %v318, -inf
      %v862 = vrot.slane %v861, 4
      %v863 = vmax.f32 %v861, %v862
      %v864 = vrot.slane %v863, 2
      %v865 = vmax.f32 %v863, %v864
      %v866 = vrot.slane %v865, 1
      %v867 = vmax.f32 %v865, %v866
      %v868 = vsel %vm377, %v319, -inf
      %v869 = vrot.slane %v868, 4
      %v870 = vmax.f32 %v868, %v869
      %v871 = vrot.slane %v870, 2
      %v872 = vmax.f32 %v870, %v871
      %v873 = vrot.slane %v872, 1
      %v874 = vmax.f32 %v872, %v873
      %v875 = vsel %vm377, %v320, -inf
      %v876 = vrot.slane %v875, 4
      %v877 = vmax.f32 %v875, %v876
      %v878 = vrot.slane %v877, 2
      %v879 = vmax.f32 %v877, %v878
      %v880 = vrot.slane %v879, 1
      %v881 = vmax.f32 %v879, %v880
      %v882 = vsel %vm377, %v321, -inf
      %v883 = vrot.slane %v882, 4
      %v884 = vmax.f32 %v882, %v883
      %v885 = vrot.slane %v884, 2
      %v886 = vmax.f32 %v884, %v885
      %v887 = vrot.slane %v886, 1
      %v888 = vmax.f32 %v886, %v887
      %v889 = vsel %vm377, %v322, -inf
      %v890 = vrot.slane %v889, 4
      %v891 = vmax.f32 %v889, %v890
      %v892 = vrot.slane %v891, 2
      %v893 = vmax.f32 %v891, %v892
      %v894 = vrot.slane %v893, 1
      %v895 = vmax.f32 %v893, %v894
      %v896 = vsel %vm377, %v323, -inf
      %v897 = vrot.slane %v896, 4
      %v898 = vmax.f32 %v896, %v897
      %v899 = vrot.slane %v898, 2
      %v900 = vmax.f32 %v898, %v899
      %v901 = vrot.slane %v900, 1
      %v902 = vmax.f32 %v900, %v901
      %v903 = vsel %vm377, %v324, -inf
      %v904 = vrot.slane %v903, 4
      %v905 = vmax.f32 %v903, %v904
      %v906 = vrot.slane %v905, 2
      %v907 = vmax.f32 %v905, %v906
      %v908 = vrot.slane %v907, 1
      %v909 = vmax.f32 %v907, %v908
      %v910 = vsel %vm377, %v325, -inf
      %v911 = vrot.slane %v910, 4
      %v912 = vmax.f32 %v910, %v911
      %v913 = vrot.slane %v912, 2
      %v914 = vmax.f32 %v912, %v913
      %v915 = vrot.slane %v914, 1
      %v916 = vmax.f32 %v914, %v915
      %v917 = vsel %vm377, %v326, -inf
      %v918 = vrot.slane %v917, 4
      %v919 = vmax.f32 %v917, %v918
      %v920 = vrot.slane %v919, 2
      %v921 = vmax.f32 %v919, %v920
      %v922 = vrot.slane %v921, 1
      %v923 = vmax.f32 %v921, %v922
      %v924 = vsel %vm377, %v327, -inf
      %v925 = vrot.slane %v924, 4
      %v926 = vmax.f32 %v924, %v925
      %v927 = vrot.slane %v926, 2
      %v928 = vmax.f32 %v926, %v927
      %v929 = vrot.slane %v928, 1
      %v930 = vmax.f32 %v928, %v929
      %v931 = vsel %vm377, %v328, -inf
      %v932 = vrot.slane %v931, 4
      %v933 = vmax.f32 %v931, %v932
      %v934 = vrot.slane %v933, 2
      %v935 = vmax.f32 %v933, %v934
      %v936 = vrot.slane %v935, 1
      %v937 = vmax.f32 %v935, %v936
      %v938 = vsel %vm377, %v329, -inf
      %v939 = vrot.slane %v938, 4
      %v940 = vmax.f32 %v938, %v939
      %v941 = vrot.slane %v940, 2
      %v942 = vmax.f32 %v940, %v941
      %v943 = vrot.slane %v942, 1
      %v944 = vmax.f32 %v942, %v943
      %v945 = vsel %vm377, %v330, -inf
      %v946 = vrot.slane %v945, 4
      %v947 = vmax.f32 %v945, %v946
      %v948 = vrot.slane %v947, 2
      %v949 = vmax.f32 %v947, %v948
      %v950 = vrot.slane %v949, 1
      %v951 = vmax.f32 %v949, %v950
      %v952 = vsel %vm377, %v331, -inf
      %v953 = vrot.slane %v952, 4
      %v954 = vmax.f32 %v952, %v953
      %v955 = vrot.slane %v954, 2
      %v956 = vmax.f32 %v954, %v955
      %v957 = vrot.slane %v956, 1
      %v958 = vmax.f32 %v956, %v957
      %v959 = vsel %vm377, %v332, -inf
      %v960 = vrot.slane %v959, 4
      %v961 = vmax.f32 %v959, %v960
      %v962 = vrot.slane %v961, 2
      %v963 = vmax.f32 %v961, %v962
      %v964 = vrot.slane %v963, 1
      %v965 = vmax.f32 %v963, %v964
      %v966 = vsel %vm377, %v333, -inf
      %v967 = vrot.slane %v966, 4
      %v968 = vmax.f32 %v966, %v967
      %v969 = vrot.slane %v968, 2
      %v970 = vmax.f32 %v968, %v969
      %v971 = vrot.slane %v970, 1
      %v972 = vmax.f32 %v970, %v971
      %v973 = vsel %vm377, %v334, -inf
      %v974 = vrot.slane %v973, 4
      %v975 = vmax.f32 %v973, %v974
      %v976 = vrot.slane %v975, 2
      %v977 = vmax.f32 %v975, %v976
      %v978 = vrot.slane %v977, 1
      %v979 = vmax.f32 %v977, %v978
      %v980 = vsel %vm377, %v335, -inf
      %v981 = vrot.slane %v980, 4
      %v982 = vmax.f32 %v980, %v981
      %v983 = vrot.slane %v982, 2
      %v984 = vmax.f32 %v982, %v983
      %v985 = vrot.slane %v984, 1
      %v986 = vmax.f32 %v984, %v985
      %v987 = vsel %vm377, %v336, -inf
      %v988 = vrot.slane %v987, 4
      %v989 = vmax.f32 %v987, %v988
      %v990 = vrot.slane %v989, 2
      %v991 = vmax.f32 %v989, %v990
      %v992 = vrot.slane %v991, 1
      %v993 = vmax.f32 %v991, %v992
      %v994 = vsel %vm377, %v337, -inf
      %v995 = vrot.slane %v994, 4
      %v996 = vmax.f32 %v994, %v995
      %v997 = vrot.slane %v996, 2
      %v998 = vmax.f32 %v996, %v997
      %v999 = vrot.slane %v998, 1
      %v1000 = vmax.f32 %v998, %v999
      %v1001 = vsel %vm377, %v338, -inf
      %v1002 = vrot.slane %v1001, 4
      %v1003 = vmax.f32 %v1001, %v1002
      %v1004 = vrot.slane %v1003, 2
      %v1005 = vmax.f32 %v1003, %v1004
      %v1006 = vrot.slane %v1005, 1
      %v1007 = vmax.f32 %v1005, %v1006
      %v1008 = vsel %vm377, %v339, -inf
      %v1009 = vrot.slane %v1008, 4
      %v1010 = vmax.f32 %v1008, %v1009
      %v1011 = vrot.slane %v1010, 2
      %v1012 = vmax.f32 %v1010, %v1011
      %v1013 = vrot.slane %v1012, 1
      %v1014 = vmax.f32 %v1012, %v1013
      %v1015 = vsel %vm377, %v340, -inf
      %v1016 = vrot.slane %v1015, 4
      %v1017 = vmax.f32 %v1015, %v1016
      %v1018 = vrot.slane %v1017, 2
      %v1019 = vmax.f32 %v1017, %v1018
      %v1020 = vrot.slane %v1019, 1
      %v1021 = vmax.f32 %v1019, %v1020
      %v1022 = vsel %vm377, %v341, -inf
      %v1023 = vrot.slane %v1022, 4
      %v1024 = vmax.f32 %v1022, %v1023
      %v1025 = vrot.slane %v1024, 2
      %v1026 = vmax.f32 %v1024, %v1025
      %v1027 = vrot.slane %v1026, 1
      %v1028 = vmax.f32 %v1026, %v1027
      %v1029 = vsel %vm377, %v342, -inf
      %v1030 = vrot.slane %v1029, 4
      %v1031 = vmax.f32 %v1029, %v1030
      %v1032 = vrot.slane %v1031, 2
      %v1033 = vmax.f32 %v1031, %v1032
      %v1034 = vrot.slane %v1033, 1
      %v1035 = vmax.f32 %v1033, %v1034
      %v1036 = vsel %vm377, %v343, -inf
      %v1037 = vrot.slane %v1036, 4
      %v1038 = vmax.f32 %v1036, %v1037
      %v1039 = vrot.slane %v1038, 2
      %v1040 = vmax.f32 %v1038, %v1039
      %v1041 = vrot.slane %v1040, 1
      %v1042 = vmax.f32 %v1040, %v1041
      %v1043 = vsel %vm377, %v344, -inf
      %v1044 = vrot.slane %v1043, 4
      %v1045 = vmax.f32 %v1043, %v1044
      %v1046 = vrot.slane %v1045, 2
      %v1047 = vmax.f32 %v1045, %v1046
      %v1048 = vrot.slane %v1047, 1
      %v1049 = vmax.f32 %v1047, %v1048
      %v1050 = vsel %vm377, %v345, -inf
      %v1051 = vrot.slane %v1050, 4
      %v1052 = vmax.f32 %v1050, %v1051
      %v1053 = vrot.slane %v1052, 2
      %v1054 = vmax.f32 %v1052, %v1053
      %v1055 = vrot.slane %v1054, 1
      %v1056 = vmax.f32 %v1054, %v1055
      %v1057 = vsel %vm377, %v346, -inf
      %v1058 = vrot.slane %v1057, 4
      %v1059 = vmax.f32 %v1057, %v1058
      %v1060 = vrot.slane %v1059, 2
      %v1061 = vmax.f32 %v1059, %v1060
      %v1062 = vrot.slane %v1061, 1
      %v1063 = vmax.f32 %v1061, %v1062
      %v1064 = vsel %vm377, %v347, -inf
      %v1065 = vrot.slane %v1064, 4
      %v1066 = vmax.f32 %v1064, %v1065
      %v1067 = vrot.slane %v1066, 2
      %v1068 = vmax.f32 %v1066, %v1067
      %v1069 = vrot.slane %v1068, 1
      %v1070 = vmax.f32 %v1068, %v1069
      %v1071 = vsel %vm377, %v348, -inf
      %v1072 = vrot.slane %v1071, 4
      %v1073 = vmax.f32 %v1071, %v1072
      %v1074 = vrot.slane %v1073, 2
      %v1075 = vmax.f32 %v1073, %v1074
      %v1076 = vrot.slane %v1075, 1
      %v1077 = vmax.f32 %v1075, %v1076
      %v1078 = vsel %vm377, %v349, -inf
      %v1079 = vrot.slane %v1078, 4
      %v1080 = vmax.f32 %v1078, %v1079
      %v1081 = vrot.slane %v1080, 2
      %v1082 = vmax.f32 %v1080, %v1081
      %v1083 = vrot.slane %v1082, 1
      %v1084 = vmax.f32 %v1082, %v1083
      %v1085 = vsel %vm377, %v350, -inf
      %v1086 = vrot.slane %v1085, 4
      %v1087 = vmax.f32 %v1085, %v1086
      %v1088 = vrot.slane %v1087, 2
      %v1089 = vmax.f32 %v1087, %v1088
      %v1090 = vrot.slane %v1089, 1
      %v1091 = vmax.f32 %v1089, %v1090
      %v1092 = vsel %vm377, %v351, -inf
      %v1093 = vrot.slane %v1092, 4
      %v1094 = vmax.f32 %v1092, %v1093
      %v1095 = vrot.slane %v1094, 2
      %v1096 = vmax.f32 %v1094, %v1095
      %v1097 = vrot.slane %v1096, 1
      %v1098 = vmax.f32 %v1096, %v1097
      %v1099 = vsel %vm377, %v352, -inf
      %v1100 = vrot.slane %v1099, 4
      %v1101 = vmax.f32 %v1099, %v1100
      %v1102 = vrot.slane %v1101, 2
      %v1103 = vmax.f32 %v1101, %v1102
      %v1104 = vrot.slane %v1103, 1
      %v1105 = vmax.f32 %v1103, %v1104
      %v1106 = vsel %vm377, %v353, -inf
      %v1107 = vrot.slane %v1106, 4
      %v1108 = vmax.f32 %v1106, %v1107
      %v1109 = vrot.slane %v1108, 2
      %v1110 = vmax.f32 %v1108, %v1109
      %v1111 = vrot.slane %v1110, 1
      %v1112 = vmax.f32 %v1110, %v1111
      %v1113 = vsel %vm377, %v354, -inf
      %v1114 = vrot.slane %v1113, 4
      %v1115 = vmax.f32 %v1113, %v1114
      %v1116 = vrot.slane %v1115, 2
      %v1117 = vmax.f32 %v1115, %v1116
      %v1118 = vrot.slane %v1117, 1
      %v1119 = vmax.f32 %v1117, %v1118
      %v1120 = vsel %vm377, %v355, -inf
      %v1121 = vrot.slane %v1120, 4
      %v1122 = vmax.f32 %v1120, %v1121
      %v1123 = vrot.slane %v1122, 2
      %v1124 = vmax.f32 %v1122, %v1123
      %v1125 = vrot.slane %v1124, 1
      %v1126 = vmax.f32 %v1124, %v1125
      %v1127 = vsel %vm377, %v356, -inf
      %v1128 = vrot.slane %v1127, 4
      %v1129 = vmax.f32 %v1127, %v1128
      %v1130 = vrot.slane %v1129, 2
      %v1131 = vmax.f32 %v1129, %v1130
      %v1132 = vrot.slane %v1131, 1
      %v1133 = vmax.f32 %v1131, %v1132
      %v1134 = vsel %vm377, %v357, -inf
      %v1135 = vrot.slane %v1134, 4
      %v1136 = vmax.f32 %v1134, %v1135
      %v1137 = vrot.slane %v1136, 2
      %v1138 = vmax.f32 %v1136, %v1137
      %v1139 = vrot.slane %v1138, 1
      %v1140 = vmax.f32 %v1138, %v1139
      %v1141 = vsel %vm377, %v358, -inf
      %v1142 = vrot.slane %v1141, 4
      %v1143 = vmax.f32 %v1141, %v1142
      %v1144 = vrot.slane %v1143, 2
      %v1145 = vmax.f32 %v1143, %v1144
      %v1146 = vrot.slane %v1145, 1
      %v1147 = vmax.f32 %v1145, %v1146
      %v1148 = vsel %vm377, %v359, -inf
      %v1149 = vrot.slane %v1148, 4
      %v1150 = vmax.f32 %v1148, %v1149
      %v1151 = vrot.slane %v1150, 2
      %v1152 = vmax.f32 %v1150, %v1151
      %v1153 = vrot.slane %v1152, 1
      %v1154 = vmax.f32 %v1152, %v1153
      %v1155 = vsel %vm377, %v360, -inf
      %v1156 = vrot.slane %v1155, 4
      %v1157 = vmax.f32 %v1155, %v1156
      %v1158 = vrot.slane %v1157, 2
      %v1159 = vmax.f32 %v1157, %v1158
      %v1160 = vrot.slane %v1159, 1
      %v1161 = vmax.f32 %v1159, %v1160
      %v1162 = vsel %vm377, %v361, -inf
      %v1163 = vrot.slane %v1162, 4
      %v1164 = vmax.f32 %v1162, %v1163
      %v1165 = vrot.slane %v1164, 2
      %v1166 = vmax.f32 %v1164, %v1165
      %v1167 = vrot.slane %v1166, 1
      %v1168 = vmax.f32 %v1166, %v1167
      %v1169 = vsel %vm377, %v362, -inf
      %v1170 = vrot.slane %v1169, 4
      %v1171 = vmax.f32 %v1169, %v1170
      %v1172 = vrot.slane %v1171, 2
      %v1173 = vmax.f32 %v1171, %v1172
      %v1174 = vrot.slane %v1173, 1
      %v1175 = vmax.f32 %v1173, %v1174
      %v1176 = vsel %vm377, %v363, -inf
      %v1177 = vrot.slane %v1176, 4
      %v1178 = vmax.f32 %v1176, %v1177
      %v1179 = vrot.slane %v1178, 2
      %v1180 = vmax.f32 %v1178, %v1179
      %v1181 = vrot.slane %v1180, 1
      %v1182 = vmax.f32 %v1180, %v1181
      %v1183 = vsel %vm377, %v364, -inf
      %v1184 = vrot.slane %v1183, 4
      %v1185 = vmax.f32 %v1183, %v1184
      %v1186 = vrot.slane %v1185, 2
      %v1187 = vmax.f32 %v1185, %v1186
      %v1188 = vrot.slane %v1187, 1
      %v1189 = vmax.f32 %v1187, %v1188
      %v1190 = vsel %vm377, %v365, -inf
      %v1191 = vrot.slane %v1190, 4
      %v1192 = vmax.f32 %v1190, %v1191
      %v1193 = vrot.slane %v1192, 2
      %v1194 = vmax.f32 %v1192, %v1193
      %v1195 = vrot.slane %v1194, 1
      %v1196 = vmax.f32 %v1194, %v1195
      %v1197 = vsel %vm377, %v366, -inf
      %v1198 = vrot.slane %v1197, 4
      %v1199 = vmax.f32 %v1197, %v1198
      %v1200 = vrot.slane %v1199, 2
      %v1201 = vmax.f32 %v1199, %v1200
      %v1202 = vrot.slane %v1201, 1
      %v1203 = vmax.f32 %v1201, %v1202
      %v1204 = vsel %vm377, %v367, -inf
      %v1205 = vrot.slane %v1204, 4
      %v1206 = vmax.f32 %v1204, %v1205
      %v1207 = vrot.slane %v1206, 2
      %v1208 = vmax.f32 %v1206, %v1207
      %v1209 = vrot.slane %v1208, 1
      %v1210 = vmax.f32 %v1208, %v1209
      %v1211 = vsel %vm377, %v368, -inf
      %v1212 = vrot.slane %v1211, 4
      %v1213 = vmax.f32 %v1211, %v1212
      %v1214 = vrot.slane %v1213, 2
      %v1215 = vmax.f32 %v1213, %v1214
      %v1216 = vrot.slane %v1215, 1
      %v1217 = vmax.f32 %v1215, %v1216
      %v1218 = vsel %vm377, %v369, -inf
      %v1219 = vrot.slane %v1218, 4
      %v1220 = vmax.f32 %v1218, %v1219
      %v1221 = vrot.slane %v1220, 2
      %v1222 = vmax.f32 %v1220, %v1221
      %v1223 = vrot.slane %v1222, 1
      %v1224 = vmax.f32 %v1222, %v1223
      %v1225 = vsel %vm377, %v370, -inf
      %v1226 = vrot.slane %v1225, 4
      %v1227 = vmax.f32 %v1225, %v1226
      %v1228 = vrot.slane %v1227, 2
      %v1229 = vmax.f32 %v1227, %v1228
      %v1230 = vrot.slane %v1229, 1
      %v1231 = vmax.f32 %v1229, %v1230
      %v1232 = vsel %vm377, %v371, -inf
      %v1233 = vrot.slane %v1232, 4
      %v1234 = vmax.f32 %v1232, %v1233
      %v1235 = vrot.slane %v1234, 2
      %v1236 = vmax.f32 %v1234, %v1235
      %v1237 = vrot.slane %v1236, 1
      %v1238 = vmax.f32 %v1236, %v1237
      %v1239 = vsel %vm377, %v372, -inf
      %v1240 = vrot.slane %v1239, 4
      %v1241 = vmax.f32 %v1239, %v1240
      %v1242 = vrot.slane %v1241, 2
      %v1243 = vmax.f32 %v1241, %v1242
      %v1244 = vrot.slane %v1243, 1
      %v1245 = vmax.f32 %v1243, %v1244
      %v1246 = vsel %vm377, %v373, -inf
      %v1247 = vrot.slane %v1246, 4
      %v1248 = vmax.f32 %v1246, %v1247
      %v1249 = vrot.slane %v1248, 2
      %v1250 = vmax.f32 %v1248, %v1249
      %v1251 = vrot.slane %v1250, 1
      %v1252 = vmax.f32 %v1250, %v1251
      %v1253 = vsel %vm377, %v374, -inf
      %v1254 = vrot.slane %v1253, 4
      %v1255 = vmax.f32 %v1253, %v1254
      %v1256 = vrot.slane %v1255, 2
      %v1257 = vmax.f32 %v1255, %v1256
      %v1258 = vrot.slane %v1257, 1
      %v1259 = vmax.f32 %v1257, %v1258
      %v1260 = vsel %vm377, %v375, -inf
      %v1261 = vrot.slane %v1260, 4
      %v1262 = vmax.f32 %v1260, %v1261
      %v1263 = vrot.slane %v1262, 2
      %v1264 = vmax.f32 %v1262, %v1263
      %v1265 = vrot.slane %v1264, 1
      %v1266 = vmax.f32 %v1264, %v1265
      %v1267 = vsel %vm377, %v376, -inf
      %v1268 = vrot.slane %v1267, 4
      %v1269 = vmax.f32 %v1267, %v1268
      %v1270 = vrot.slane %v1269, 2
      %v1271 = vmax.f32 %v1269, %v1270
      %v1272 = vrot.slane %v1271, 1
      %v1273 = vmax.f32 %v1271, %v1272
      %vm1274 = vcmask 31744
      %v1275 = vsel %vm1274, %v384, -inf
      %v1276 = vsel %vm1274, %v440, -inf
      %v1277 = vmax.f32 %v1275, %v1276
      %v1278 = vsel %vm1274, %v391, -inf
      %v1279 = vsel %vm1274, %v447, -inf
      %v1280 = vmax.f32 %v1278, %v1279
      %v1281 = vsel %vm1274, %v398, -inf
      %v1282 = vsel %vm1274, %v454, -inf
      %v1283 = vmax.f32 %v1281, %v1282
      %v1284 = vsel %vm1274, %v405, -inf
      %v1285 = vsel %vm1274, %v461, -inf
      %v1286 = vmax.f32 %v1284, %v1285
      %v1287 = vsel %vm1274, %v412, -inf
      %v1288 = vsel %vm1274, %v468, -inf
      %v1289 = vmax.f32 %v1287, %v1288
      %v1290 = vsel %vm1274, %v419, -inf
      %v1291 = vsel %vm1274, %v475, -inf
      %v1292 = vmax.f32 %v1290, %v1291
      %v1293 = vsel %vm1274, %v426, -inf
      %v1294 = vsel %vm1274, %v482, -inf
      %v1295 = vmax.f32 %v1293, %v1294
      %v1296 = vsel %vm1274, %v433, -inf
      %v1297 = vsel %vm1274, %v489, -inf
      %v1298 = vmax.f32 %v1296, %v1297
      %v1299 = vsel %vm1274, %v496, -inf
      %v1300 = vsel %vm1274, %v552, -inf
      %v1301 = vmax.f32 %v1299, %v1300
      %v1302 = vsel %vm1274, %v503, -inf
      %v1303 = vsel %vm1274, %v559, -inf
      %v1304 = vmax.f32 %v1302, %v1303
      %v1305 = vsel %vm1274, %v510, -inf
      %v1306 = vsel %vm1274, %v566, -inf
      %v1307 = vmax.f32 %v1305, %v1306
      %v1308 = vsel %vm1274, %v517, -inf
      %v1309 = vsel %vm1274, %v573, -inf
      %v1310 = vmax.f32 %v1308, %v1309
      %v1311 = vsel %vm1274, %v524, -inf
      %v1312 = vsel %vm1274, %v580, -inf
      %v1313 = vmax.f32 %v1311, %v1312
      %v1314 = vsel %vm1274, %v531, -inf
      %v1315 = vsel %vm1274, %v587, -inf
      %v1316 = vmax.f32 %v1314, %v1315
      %v1317 = vsel %vm1274, %v538, -inf
      %v1318 = vsel %vm1274, %v594, -inf
      %v1319 = vmax.f32 %v1317, %v1318
      %v1320 = vsel %vm1274, %v545, -inf
      %v1321 = vsel %vm1274, %v601, -inf
      %v1322 = vmax.f32 %v1320, %v1321
      %v1323 = vsel %vm1274, %v608, -inf
      %v1324 = vsel %vm1274, %v664, -inf
      %v1325 = vmax.f32 %v1323, %v1324
      %v1326 = vsel %vm1274, %v615, -inf
      %v1327 = vsel %vm1274, %v671, -inf
      %v1328 = vmax.f32 %v1326, %v1327
      %v1329 = vsel %vm1274, %v622, -inf
      %v1330 = vsel %vm1274, %v678, -inf
      %v1331 = vmax.f32 %v1329, %v1330
      %v1332 = vsel %vm1274, %v629, -inf
      %v1333 = vsel %vm1274, %v685, -inf
      %v1334 = vmax.f32 %v1332, %v1333
      %v1335 = vsel %vm1274, %v636, -inf
      %v1336 = vsel %vm1274, %v692, -inf
      %v1337 = vmax.f32 %v1335, %v1336
      %v1338 = vsel %vm1274, %v643, -inf
      %v1339 = vsel %vm1274, %v699, -inf
      %v1340 = vmax.f32 %v1338, %v1339
      %v1341 = vsel %vm1274, %v650, -inf
      %v1342 = vsel %vm1274, %v706, -inf
      %v1343 = vmax.f32 %v1341, %v1342
      %v1344 = vsel %vm1274, %v657, -inf
      %v1345 = vsel %vm1274, %v713, -inf
      %v1346 = vmax.f32 %v1344, %v1345
      %v1347 = vsel %vm1274, %v720, -inf
      %v1348 = vsel %vm1274, %v776, -inf
      %v1349 = vmax.f32 %v1347, %v1348
      %v1350 = vsel %vm1274, %v727, -inf
      %v1351 = vsel %vm1274, %v783, -inf
      %v1352 = vmax.f32 %v1350, %v1351
      %v1353 = vsel %vm1274, %v734, -inf
      %v1354 = vsel %vm1274, %v790, -inf
      %v1355 = vmax.f32 %v1353, %v1354
      %v1356 = vsel %vm1274, %v741, -inf
      %v1357 = vsel %vm1274, %v797, -inf
      %v1358 = vmax.f32 %v1356, %v1357
      %v1359 = vsel %vm1274, %v748, -inf
      %v1360 = vsel %vm1274, %v804, -inf
      %v1361 = vmax.f32 %v1359, %v1360
      %v1362 = vsel %vm1274, %v755, -inf
      %v1363 = vsel %vm1274, %v811, -inf
      %v1364 = vmax.f32 %v1362, %v1363
      %v1365 = vsel %vm1274, %v762, -inf
      %v1366 = vsel %vm1274, %v818, -inf
      %v1367 = vmax.f32 %v1365, %v1366
      %v1368 = vsel %vm1274, %v769, -inf
      %v1369 = vsel %vm1274, %v825, -inf
      %v1370 = vmax.f32 %v1368, %v1369
      %v1371 = vsel %vm1274, %v832, -inf
      %v1372 = vsel %vm1274, %v888, -inf
      %v1373 = vmax.f32 %v1371, %v1372
      %v1374 = vsel %vm1274, %v839, -inf
      %v1375 = vsel %vm1274, %v895, -inf
      %v1376 = vmax.f32 %v1374, %v1375
      %v1377 = vsel %vm1274, %v846, -inf
      %v1378 = vsel %vm1274, %v902, -inf
      %v1379 = vmax.f32 %v1377, %v1378
      %v1380 = vsel %vm1274, %v853, -inf
      %v1381 = vsel %vm1274, %v909, -inf
      %v1382 = vmax.f32 %v1380, %v1381
      %v1383 = vsel %vm1274, %v860, -inf
      %v1384 = vsel %vm1274, %v916, -inf
      %v1385 = vmax.f32 %v1383, %v1384
      %v1386 = vsel %vm1274, %v867, -inf
      %v1387 = vsel %vm1274, %v923, -inf
      %v1388 = vmax.f32 %v1386, %v1387
      %v1389 = vsel %vm1274, %v874, -inf
      %v1390 = vsel %vm1274, %v930, -inf
      %v1391 = vmax.f32 %v1389, %v1390
      %v1392 = vsel %vm1274, %v881, -inf
      %v1393 = vsel %vm1274, %v937, -inf
      %v1394 = vmax.f32 %v1392, %v1393
      %v1395 = vsel %vm1274, %v944, -inf
      %v1396 = vsel %vm1274, %v1000, -inf
      %v1397 = vmax.f32 %v1395, %v1396
      %v1398 = vsel %vm1274, %v951, -inf
      %v1399 = vsel %vm1274, %v1007, -inf
      %v1400 = vmax.f32 %v1398, %v1399
      %v1401 = vsel %vm1274, %v958, -inf
      %v1402 = vsel %vm1274, %v1014, -inf
      %v1403 = vmax.f32 %v1401, %v1402
      %v1404 = vsel %vm1274, %v965, -inf
      %v1405 = vsel %vm1274, %v1021, -inf
      %v1406 = vmax.f32 %v1404, %v1405
      %v1407 = vsel %vm1274, %v972, -inf
      %v1408 = vsel %vm1274, %v1028, -inf
      %v1409 = vmax.f32 %v1407, %v1408
      %v1410 = vsel %vm1274, %v979, -inf
      %v1411 = vsel %vm1274, %v1035, -inf
      %v1412 = vmax.f32 %v1410, %v1411
      %v1413 = vsel %vm1274, %v986, -inf
      %v1414 = vsel %vm1274, %v1042, -inf
      %v1415 = vmax.f32 %v1413, %v1414
      %v1416 = vsel %vm1274, %v993, -inf
      %v1417 = vsel %vm1274, %v1049, -inf
      %v1418 = vmax.f32 %v1416, %v1417
      %v1419 = vsel %vm1274, %v1056, -inf
      %v1420 = vsel %vm1274, %v1112, -inf
      %v1421 = vmax.f32 %v1419, %v1420
      %v1422 = vsel %vm1274, %v1063, -inf
      %v1423 = vsel %vm1274, %v1119, -inf
      %v1424 = vmax.f32 %v1422, %v1423
      %v1425 = vsel %vm1274, %v1070, -inf
      %v1426 = vsel %vm1274, %v1126, -inf
      %v1427 = vmax.f32 %v1425, %v1426
      %v1428 = vsel %vm1274, %v1077, -inf
      %v1429 = vsel %vm1274, %v1133, -inf
      %v1430 = vmax.f32 %v1428, %v1429
      %v1431 = vsel %vm1274, %v1084, -inf
      %v1432 = vsel %vm1274, %v1140, -inf
      %v1433 = vmax.f32 %v1431, %v1432
      %v1434 = vsel %vm1274, %v1091, -inf
      %v1435 = vsel %vm1274, %v1147, -inf
      %v1436 = vmax.f32 %v1434, %v1435
      %v1437 = vsel %vm1274, %v1098, -inf
      %v1438 = vsel %vm1274, %v1154, -inf
      %v1439 = vmax.f32 %v1437, %v1438
      %v1440 = vsel %vm1274, %v1105, -inf
      %v1441 = vsel %vm1274, %v1161, -inf
      %v1442 = vmax.f32 %v1440, %v1441
      %v1443 = vsel %vm1274, %v1168, -inf
      %v1444 = vsel %vm1274, %v1224, -inf
      %v1445 = vmax.f32 %v1443, %v1444
      %v1446 = vsel %vm1274, %v1175, -inf
      %v1447 = vsel %vm1274, %v1231, -inf
      %v1448 = vmax.f32 %v1446, %v1447
      %v1449 = vsel %vm1274, %v1182, -inf
      %v1450 = vsel %vm1274, %v1238, -inf
      %v1451 = vmax.f32 %v1449, %v1450
      %v1452 = vsel %vm1274, %v1189, -inf
      %v1453 = vsel %vm1274, %v1245, -inf
      %v1454 = vmax.f32 %v1452, %v1453
      %v1455 = vsel %vm1274, %v1196, -inf
      %v1456 = vsel %vm1274, %v1252, -inf
      %v1457 = vmax.f32 %v1455, %v1456
      %v1458 = vsel %vm1274, %v1203, -inf
      %v1459 = vsel %vm1274, %v1259, -inf
      %v1460 = vmax.f32 %v1458, %v1459
      %v1461 = vsel %vm1274, %v1210, -inf
      %v1462 = vsel %vm1274, %v1266, -inf
      %v1463 = vmax.f32 %v1461, %v1462
      %v1464 = vsel %vm1274, %v1217, -inf
      %v1465 = vsel %vm1274, %v1273, -inf
      %v1466 = vmax.f32 %v1464, %v1465
      %v1467 = vpack.c.bf16 %v1277, %v1277
      %v1468 = vpack.c.bf16 %v1280, %v1280
      %v1469 = vpack.c.bf16 %v1283, %v1283
      %v1470 = vpack.c.bf16 %v1286, %v1286
      %v1471 = vpack.c.bf16 %v1289, %v1289
      %v1472 = vpack.c.bf16 %v1292, %v1292
      %v1473 = vpack.c.bf16 %v1295, %v1295
      %v1474 = vpack.c.bf16 %v1298, %v1298
      %v1475 = vpack.c.bf16 %v1301, %v1301
      %v1476 = vpack.c.bf16 %v1304, %v1304
      %v1477 = vpack.c.bf16 %v1307, %v1307
      %v1478 = vpack.c.bf16 %v1310, %v1310
      %v1479 = vpack.c.bf16 %v1313, %v1313
      %v1480 = vpack.c.bf16 %v1316, %v1316
      %v1481 = vpack.c.bf16 %v1319, %v1319
      %v1482 = vpack.c.bf16 %v1322, %v1322
      %v1483 = vpack.c.bf16 %v1325, %v1325
      %v1484 = vpack.c.bf16 %v1328, %v1328
      %v1485 = vpack.c.bf16 %v1331, %v1331
      %v1486 = vpack.c.bf16 %v1334, %v1334
      %v1487 = vpack.c.bf16 %v1337, %v1337
      %v1488 = vpack.c.bf16 %v1340, %v1340
      %v1489 = vpack.c.bf16 %v1343, %v1343
      %v1490 = vpack.c.bf16 %v1346, %v1346
      %v1491 = vpack.c.bf16 %v1349, %v1349
      %v1492 = vpack.c.bf16 %v1352, %v1352
      %v1493 = vpack.c.bf16 %v1355, %v1355
      %v1494 = vpack.c.bf16 %v1358, %v1358
      %v1495 = vpack.c.bf16 %v1361, %v1361
      %v1496 = vpack.c.bf16 %v1364, %v1364
      %v1497 = vpack.c.bf16 %v1367, %v1367
      %v1498 = vpack.c.bf16 %v1370, %v1370
      %v1499 = vpack.c.bf16 %v1373, %v1373
      %v1500 = vpack.c.bf16 %v1376, %v1376
      %v1501 = vpack.c.bf16 %v1379, %v1379
      %v1502 = vpack.c.bf16 %v1382, %v1382
      %v1503 = vpack.c.bf16 %v1385, %v1385
      %v1504 = vpack.c.bf16 %v1388, %v1388
      %v1505 = vpack.c.bf16 %v1391, %v1391
      %v1506 = vpack.c.bf16 %v1394, %v1394
      %v1507 = vpack.c.bf16 %v1397, %v1397
      %v1508 = vpack.c.bf16 %v1400, %v1400
      %v1509 = vpack.c.bf16 %v1403, %v1403
      %v1510 = vpack.c.bf16 %v1406, %v1406
      %v1511 = vpack.c.bf16 %v1409, %v1409
      %v1512 = vpack.c.bf16 %v1412, %v1412
      %v1513 = vpack.c.bf16 %v1415, %v1415
      %v1514 = vpack.c.bf16 %v1418, %v1418
      %v1515 = vpack.c.bf16 %v1421, %v1421
      %v1516 = vpack.c.bf16 %v1424, %v1424
      %v1517 = vpack.c.bf16 %v1427, %v1427
      %v1518 = vpack.c.bf16 %v1430, %v1430
      %v1519 = vpack.c.bf16 %v1433, %v1433
      %v1520 = vpack.c.bf16 %v1436, %v1436
      %v1521 = vpack.c.bf16 %v1439, %v1439
      %v1522 = vpack.c.bf16 %v1442, %v1442
      %v1523 = vpack.c.bf16 %v1445, %v1445
      %v1524 = vpack.c.bf16 %v1448, %v1448
      %v1525 = vpack.c.bf16 %v1451, %v1451
      %v1526 = vpack.c.bf16 %v1454, %v1454
      %v1527 = vpack.c.bf16 %v1457, %v1457
      %v1528 = vpack.c.bf16 %v1460, %v1460
      %v1529 = vpack.c.bf16 %v1463, %v1463
      %v1530 = vpack.c.bf16 %v1466, %v1466
      %1531 = vst.msk [vmem:[#allocation2] sm:$0xff] %vm1274, 0
      %1532 = vst.msk [vmem:[#allocation2 + $0x8] sm:$0xff] %vm1274, 0
      %1533 = vst.msk [vmem:[#allocation2 + $0x10] sm:$0xff] %vm1274, 0
      %1534 = vst.msk [vmem:[#allocation2 + $0x18] sm:$0xff] %vm1274, 0
      %1535 = vst.msk [vmem:[#allocation2 + $0x20] sm:$0xff] %vm1274, 0
      %1536 = vst.msk [vmem:[#allocation2 + $0x28] sm:$0xff] %vm1274, 0
      %1537 = vst.msk [vmem:[#allocation2 + $0x30] sm:$0xff] %vm1274, 0
      %1538 = vst.msk [vmem:[#allocation2 + $0x38] sm:$0xff] %vm1274, 0
      %1539 = vst.msk [vmem:[#allocation2 + $0x40] sm:$0xff] %vm1274, 0
      %1540 = vst.msk [vmem:[#allocation2 + $0x48] sm:$0xff] %vm1274, 0
      %1541 = vst.msk [vmem:[#allocation2 + $0x50] sm:$0xff] %vm1274, 0
      %v1550 = vunpack.c.l.b16 %v1467
      %v1551 = vunpack.c.l.b16 %v1468
      %v1552 = vunpack.c.l.b16 %v1469
      %v1553 = vunpack.c.l.b16 %v1470
      %v1554 = vunpack.c.l.b16 %v1471
      %v1555 = vunpack.c.l.b16 %v1472
      %v1556 = vunpack.c.l.b16 %v1473
      %v1557 = vunpack.c.l.b16 %v1474
      %vm1558 = vcmask 1042434
      %v1559 = vsel %vm1558, %v1551, %v1550
      %vm1560 = vcmask 1043459
      %v1561 = vsel %vm1560, %v1552, %v1559
      %vm1562 = vcmask 1044484
      %v1563 = vsel %vm1562, %v1553, %v1561
      %vm1564 = vcmask 1045509
      %v1565 = vsel %vm1564, %v1554, %v1563
      %vm1566 = vcmask 1046534
      %v1567 = vsel %vm1566, %v1555, %v1565
      %vm1568 = vcmask 1047559
      %v1569 = vsel %vm1568, %v1556, %v1567
      %v1570 = vpack.c.b16 %v1557, %v1569
      %vm1572 = vcmask 28672
      %vm1573 = vsmask.f32 4354
      %vm1574 = vmand %vm1572, %vm1573
      %v1575 = vld [vmem:[#allocation2 + $0x8] sm:$0x1f]
      %v1576 = vsel %vm1574, %v1570, %v1575
      %1577 = vst [vmem:[#allocation2 + $0x8] sm:$0x1f] %v1576
      %v1586 = vunpack.c.l.b16 %v1475
      %v1587 = vunpack.c.l.b16 %v1476
      %v1588 = vunpack.c.l.b16 %v1477
      %v1589 = vunpack.c.l.b16 %v1478
      %v1590 = vunpack.c.l.b16 %v1479
      %v1591 = vunpack.c.l.b16 %v1480
      %v1592 = vunpack.c.l.b16 %v1481
      %v1593 = vunpack.c.l.b16 %v1482
      %v1594 = vsel %vm1558, %v1587, %v1586
      %v1595 = vsel %vm1560, %v1588, %v1594
      %v1596 = vsel %vm1562, %v1589, %v1595
      %v1597 = vsel %vm1564, %v1590, %v1596
      %v1598 = vsel %vm1566, %v1591, %v1597
      %v1599 = vsel %vm1568, %v1592, %v1598
      %v1600 = vpack.c.b16 %v1593, %v1599
      %v1602 = vld [vmem:[#allocation2 + $0x10] sm:$0x1f]
      %v1603 = vsel %vm1574, %v1600, %v1602
      %1604 = vst [vmem:[#allocation2 + $0x10] sm:$0x1f] %v1603
      %v1613 = vunpack.c.l.b16 %v1483
      %v1614 = vunpack.c.l.b16 %v1484
      %v1615 = vunpack.c.l.b16 %v1485
      %v1616 = vunpack.c.l.b16 %v1486
      %v1617 = vunpack.c.l.b16 %v1487
      %v1618 = vunpack.c.l.b16 %v1488
      %v1619 = vunpack.c.l.b16 %v1489
      %v1620 = vunpack.c.l.b16 %v1490
      %v1621 = vsel %vm1558, %v1614, %v1613
      %v1622 = vsel %vm1560, %v1615, %v1621
      %v1623 = vsel %vm1562, %v1616, %v1622
      %v1624 = vsel %vm1564, %v1617, %v1623
      %v1625 = vsel %vm1566, %v1618, %v1624
      %v1626 = vsel %vm1568, %v1619, %v1625
      %v1627 = vpack.c.b16 %v1620, %v1626
      %v1629 = vld [vmem:[#allocation2 + $0x18] sm:$0x1f]
      %v1630 = vsel %vm1574, %v1627, %v1629
      %1631 = vst [vmem:[#allocation2 + $0x18] sm:$0x1f] %v1630
      %v1640 = vunpack.c.l.b16 %v1491
      %v1641 = vunpack.c.l.b16 %v1492
      %v1642 = vunpack.c.l.b16 %v1493
      %v1643 = vunpack.c.l.b16 %v1494
      %v1644 = vunpack.c.l.b16 %v1495
      %v1645 = vunpack.c.l.b16 %v1496
      %v1646 = vunpack.c.l.b16 %v1497
      %v1647 = vunpack.c.l.b16 %v1498
      %v1648 = vsel %vm1558, %v1641, %v1640
      %v1649 = vsel %vm1560, %v1642, %v1648
      %v1650 = vsel %vm1562, %v1643, %v1649
      %v1651 = vsel %vm1564, %v1644, %v1650
      %v1652 = vsel %vm1566, %v1645, %v1651
      %v1653 = vsel %vm1568, %v1646, %v1652
      %v1654 = vpack.c.b16 %v1647, %v1653
      %v1656 = vld [vmem:[#allocation2 + $0x20] sm:$0x1f]
      %v1657 = vsel %vm1574, %v1654, %v1656
      %1658 = vst [vmem:[#allocation2 + $0x20] sm:$0x1f] %v1657
      %v1667 = vunpack.c.l.b16 %v1499
      %v1668 = vunpack.c.l.b16 %v1500
      %v1669 = vunpack.c.l.b16 %v1501
      %v1670 = vunpack.c.l.b16 %v1502
      %v1671 = vunpack.c.l.b16 %v1503
      %v1672 = vunpack.c.l.b16 %v1504
      %v1673 = vunpack.c.l.b16 %v1505
      %v1674 = vunpack.c.l.b16 %v1506
      %v1675 = vsel %vm1558, %v1668, %v1667
      %v1676 = vsel %vm1560, %v1669, %v1675
      %v1677 = vsel %vm1562, %v1670, %v1676
      %v1678 = vsel %vm1564, %v1671, %v1677
      %v1679 = vsel %vm1566, %v1672, %v1678
      %v1680 = vsel %vm1568, %v1673, %v1679
      %v1681 = vpack.c.b16 %v1674, %v1680
      %v1683 = vld [vmem:[#allocation2 + $0x28] sm:$0x1f]
      %v1684 = vsel %vm1574, %v1681, %v1683
      %1685 = vst [vmem:[#allocation2 + $0x28] sm:$0x1f] %v1684
      %v1694 = vunpack.c.l.b16 %v1507
      %v1695 = vunpack.c.l.b16 %v1508
      %v1696 = vunpack.c.l.b16 %v1509
      %v1697 = vunpack.c.l.b16 %v1510
      %v1698 = vunpack.c.l.b16 %v1511
      %v1699 = vunpack.c.l.b16 %v1512
      %v1700 = vunpack.c.l.b16 %v1513
      %v1701 = vunpack.c.l.b16 %v1514
      %v1702 = vsel %vm1558, %v1695, %v1694
      %v1703 = vsel %vm1560, %v1696, %v1702
      %v1704 = vsel %vm1562, %v1697, %v1703
      %v1705 = vsel %vm1564, %v1698, %v1704
      %v1706 = vsel %vm1566, %v1699, %v1705
      %v1707 = vsel %vm1568, %v1700, %v1706
      %v1708 = vpack.c.b16 %v1701, %v1707
      %v1710 = vld [vmem:[#allocation2 + $0x30] sm:$0x1f]
      %v1711 = vsel %vm1574, %v1708, %v1710
      %1712 = vst [vmem:[#allocation2 + $0x30] sm:$0x1f] %v1711
      %v1721 = vunpack.c.l.b16 %v1515
      %v1722 = vunpack.c.l.b16 %v1516
      %v1723 = vunpack.c.l.b16 %v1517
      %v1724 = vunpack.c.l.b16 %v1518
      %v1725 = vunpack.c.l.b16 %v1519
      %v1726 = vunpack.c.l.b16 %v1520
      %v1727 = vunpack.c.l.b16 %v1521
      %v1728 = vunpack.c.l.b16 %v1522
      %v1729 = vsel %vm1558, %v1722, %v1721
      %v1730 = vsel %vm1560, %v1723, %v1729
      %v1731 = vsel %vm1562, %v1724, %v1730
      %v1732 = vsel %vm1564, %v1725, %v1731
      %v1733 = vsel %vm1566, %v1726, %v1732
      %v1734 = vsel %vm1568, %v1727, %v1733
      %v1735 = vpack.c.b16 %v1728, %v1734
      %v1737 = vld [vmem:[#allocation2 + $0x38] sm:$0x1f]
      %v1738 = vsel %vm1574, %v1735, %v1737
      %1739 = vst [vmem:[#allocation2 + $0x38] sm:$0x1f] %v1738
      %v1748 = vunpack.c.l.b16 %v1523
      %v1749 = vunpack.c.l.b16 %v1524
      %v1750 = vunpack.c.l.b16 %v1525
      %v1751 = vunpack.c.l.b16 %v1526
      %v1752 = vunpack.c.l.b16 %v1527
      %v1753 = vunpack.c.l.b16 %v1528
      %v1754 = vunpack.c.l.b16 %v1529
      %v1755 = vunpack.c.l.b16 %v1530
      %v1756 = vsel %vm1558, %v1749, %v1748
      %v1757 = vsel %vm1560, %v1750, %v1756
      %v1758 = vsel %vm1562, %v1751, %v1757
      %v1759 = vsel %vm1564, %v1752, %v1758
      %v1760 = vsel %vm1566, %v1753, %v1759
      %v1761 = vsel %vm1568, %v1754, %v1760
      %v1762 = vpack.c.b16 %v1755, %v1761
      %v1764 = vld [vmem:[#allocation2 + $0x40] sm:$0x1f]
      %v1765 = vsel %vm1574, %v1762, %v1764
      %1766 = vst [vmem:[#allocation2 + $0x40] sm:$0x1f] %v1765
      %v1767 = vld [vmem:[#allocation2] sm:$0xff]
      %v1768 = vld [vmem:[#allocation2 + $0x8] sm:$0xff]
      %v1769 = vld [vmem:[#allocation2 + $0x10] sm:$0xff]
      %v1770 = vld [vmem:[#allocation2 + $0x18] sm:$0xff]
      %v1771 = vld [vmem:[#allocation2 + $0x20] sm:$0xff]
      %v1772 = vld [vmem:[#allocation2 + $0x28] sm:$0xff]
      %v1773 = vld [vmem:[#allocation2 + $0x30] sm:$0xff]
      %v1774 = vld [vmem:[#allocation2 + $0x38] sm:$0xff]
      %v1775 = vld [vmem:[%s1] sm:$0x3]
      %v1776 = vld [vmem:[#allocation2 + $0x40] sm:$0x1]
      %s1777 = scalar_lea.vmem %s1, 2
      %v1778 = vld [vmem:[%s1777] sm:$0x3]
      %vm1779 = vsmask.f32 7424
      %v1781 = vshrl.u32 %v1767, 16
      %v1783 = vshll.u32 %v1767, 16
      %v1785 = vrot.slane %v1783, 1
      %v1786 = vor.u32 %v1781, %v1785
      %v1788 = vshll.u32 %v1768, 16
      %v1790 = vrot.slane %v1788, 1
      %v1791 = vsel %vm1779, %v1786, %v1790
      %v1792 = vshrl.u32 %v1768, 16
      %v1794 = vor.u32 %v1792, %v1790
      %v1796 = vshll.u32 %v1769, 16
      %v1798 = vrot.slane %v1796, 1
      %v1799 = vsel %vm1779, %v1794, %v1798
      %v1800 = vshrl.u32 %v1769, 16
      %v1802 = vor.u32 %v1800, %v1798
      %v1804 = vshll.u32 %v1770, 16
      %v1806 = vrot.slane %v1804, 1
      %v1807 = vsel %vm1779, %v1802, %v1806
      %v1808 = vshrl.u32 %v1770, 16
      %v1810 = vor.u32 %v1808, %v1806
      %v1812 = vshll.u32 %v1771, 16
      %v1814 = vrot.slane %v1812, 1
      %v1815 = vsel %vm1779, %v1810, %v1814
      %v1816 = vshrl.u32 %v1771, 16
      %v1818 = vor.u32 %v1816, %v1814
      %v1820 = vshll.u32 %v1772, 16
      %v1822 = vrot.slane %v1820, 1
      %v1823 = vsel %vm1779, %v1818, %v1822
      %v1824 = vshrl.u32 %v1772, 16
      %v1826 = vor.u32 %v1824, %v1822
      %v1828 = vshll.u32 %v1773, 16
      %v1830 = vrot.slane %v1828, 1
      %v1831 = vsel %vm1779, %v1826, %v1830
      %v1832 = vshrl.u32 %v1773, 16
      %v1834 = vor.u32 %v1832, %v1830
      %v1836 = vshll.u32 %v1774, 16
      %v1838 = vrot.slane %v1836, 1
      %v1839 = vsel %vm1779, %v1834, %v1838
      %v1840 = vshrl.u32 %v1774, 16
      %v1842 = vor.u32 %v1840, %v1838
      %v1844 = vshll.u32 %v1776, 16
      %v1846 = vrot.slane %v1844, 1
      %v1847 = vsel %vm1779, %v1842, %v1846
      %v1849 = vsel %vm1274, %v1791, 0
      %v1852 = vsel %vm1274, %v1799, 0
      %v1855 = vsel %vm1274, %v1807, 0
      %v1858 = vsel %vm1274, %v1815, 0
      %v1861 = vsel %vm1274, %v1823, 0
      %v1864 = vsel %vm1274, %v1831, 0
      %v1867 = vsel %vm1274, %v1839, 0
      %v1870 = vsel %vm1274, %v1847, 0
      %vm1872 = vcmask 1041408
      %v1874 = vsel %vm1872, %v1778, 0
      %1876 = vmatprep.subr.bf16.mxu0 0
      %1877 = vmatpush1.bf16.msra.mxu0 %v1874
      %1878 = vmatprep.subr.bf16.mxu0 0
      %1879 = vmatpush1.bf16.msra.mxu0 0
      %1880 = vmatprep.subr.bf16.mxu0 0
      %1881 = vmatpush1.bf16.msra.mxu0 0
      %1882 = vmatprep.subr.bf16.mxu0 0
      %1883 = vmatpush1.bf16.msra.mxu0 0
      %1884 = vmatprep.subr.bf16.mxu0 0
      %1885 = vmatpush1.bf16.msra.mxu0 0
      %1886 = vmatprep.subr.bf16.mxu0 0
      %1887 = vmatpush1.bf16.msra.mxu0 0
      %1888 = vmatprep.subr.bf16.mxu0 0
      %1889 = vmatpush1.bf16.msra.mxu0 0
      %1890 = vmatprep.subr.bf16.mxu0 0
      %1891 = vmatpush1.bf16.msra.mxu0 0
      %1892 = vmatprep.subr.bf16.mxu0 0
      %1893 = vmatpush1.bf16.msra.mxu0 0
      %1894 = vmatprep.subr.bf16.mxu0 0
      %1895 = vmatpush1.bf16.msra.mxu0 0
      %1896 = vmatprep.subr.bf16.mxu0 0
      %1897 = vmatpush1.bf16.msra.mxu0 0
      %1898 = vmatprep.subr.bf16.mxu0 0
      %1899 = vmatpush1.bf16.msra.mxu0 0
      %1900 = vmatprep.subr.bf16.mxu0 0
      %1901 = vmatpush1.bf16.msra.mxu0 0
      %1902 = vmatprep.subr.bf16.mxu0 0
      %1903 = vmatpush1.bf16.msra.mxu0 0
      %1904 = vmatprep.subr.bf16.mxu0 0
      %1905 = vmatpush1.bf16.msra.mxu0 0
      %1906 = vmatprep.subr.bf16.mxu0 0
      %1907 = vmatpush1.bf16.msra.mxu0 0
      %1908 = vmatprep.mubr.bf16.mxu0 0
      %1909 = vmatmul.mubr.bf16.gmra.mrb[0].mxu0 %v1849
      %v1910 = vpop.f32.mrb[0].mxu0
      %v1911 = vadd.f32 0.0, %v1910
      %v1912 = vpop.f32.mrb[0].mxu0
      %v1913 = vpop.f32.mrb[0].mxu0
      %v1914 = vadd.f32 0.0, %v1913
      %v1915 = vpop.f32.mrb[0].mxu0
      %1916 = vmatprep.mubr.bf16.mxu0 0
      %1917 = vmatmul.mubr.bf16.gmra.mrb[0].mxu0 %v1852
      %v1918 = vpop.f32.mrb[0].mxu0
      %v1919 = vadd.f32 0.0, %v1918
      %v1920 = vpop.f32.mrb[0].mxu0
      %v1921 = vpop.f32.mrb[0].mxu0
      %v1922 = vadd.f32 0.0, %v1921
      %v1923 = vpop.f32.mrb[0].mxu0
      %1924 = vmatprep.mubr.bf16.mxu0 0
      %1925 = vmatmul.mubr.bf16.gmra.mrb[0].mxu0 %v1855
      %v1926 = vpop.f32.mrb[0].mxu0
      %v1927 = vadd.f32 0.0, %v1926
      %v1928 = vpop.f32.mrb[0].mxu0
      %v1929 = vpop.f32.mrb[0].mxu0
      %v1930 = vadd.f32 0.0, %v1929
      %v1931 = vpop.f32.mrb[0].mxu0
      %1932 = vmatprep.mubr.bf16.mxu0 0
      %1933 = vmatmul.mubr.bf16.gmra.mrb[0].mxu0 %v1858
      %v1934 = vpop.f32.mrb[0].mxu0
      %v1935 = vadd.f32 0.0, %v1934
      %v1936 = vpop.f32.mrb[0].mxu0
      %v1937 = vpop.f32.mrb[0].mxu0
      %v1938 = vadd.f32 0.0, %v1937
      %v1939 = vpop.f32.mrb[0].mxu0
      %1940 = vmatprep.mubr.bf16.mxu0 0
      %1941 = vmatmul.mubr.bf16.gmra.mrb[0].mxu0 %v1861
      %v1942 = vpop.f32.mrb[0].mxu0
      %v1943 = vadd.f32 0.0, %v1942
      %v1944 = vpop.f32.mrb[0].mxu0
      %v1945 = vpop.f32.mrb[0].mxu0
      %v1946 = vadd.f32 0.0, %v1945
      %v1947 = vpop.f32.mrb[0].mxu0
      %1948 = vmatprep.mubr.bf16.mxu0 0
      %1949 = vmatmul.mubr.bf16.gmra.mrb[0].mxu0 %v1864
      %v1950 = vpop.f32.mrb[0].mxu0
      %v1951 = vadd.f32 0.0, %v1950
      %v1952 = vpop.f32.mrb[0].mxu0
      %v1953 = vpop.f32.mrb[0].mxu0
      %v1954 = vadd.f32 0.0, %v1953
      %v1955 = vpop.f32.mrb[0].mxu0
      %1956 = vmatprep.mubr.bf16.mxu0 0
      %1957 = vmatmul.mubr.bf16.gmra.mrb[0].mxu0 %v1867
      %v1958 = vpop.f32.mrb[0].mxu0
      %v1959 = vadd.f32 0.0, %v1958
      %v1960 = vpop.f32.mrb[0].mxu0
      %v1961 = vpop.f32.mrb[0].mxu0
      %v1962 = vadd.f32 0.0, %v1961
      %v1963 = vpop.f32.mrb[0].mxu0
      %1964 = vmatprep.mubr.bf16.mxu0 0
      %1965 = vmatmul.mubr.bf16.gmra.mrb[0].mxu0 %v1870
      %v1966 = vpop.f32.mrb[0].mxu0
      %v1967 = vadd.f32 0.0, %v1966
      %v1968 = vpop.f32.mrb[0].mxu0
      %v1969 = vpop.f32.mrb[0].mxu0
      %v1970 = vadd.f32 0.0, %v1969
      %v1971 = vpop.f32.mrb[0].mxu0
      %1972 = vdwg.mxu0
      %v1973 = vsel %vm1274, %v1767, 0
      %v1975 = vsel %vm1274, %v1768, 0
      %v1977 = vsel %vm1274, %v1769, 0
      %v1979 = vsel %vm1274, %v1770, 0
      %v1981 = vsel %vm1274, %v1771, 0
      %v1983 = vsel %vm1274, %v1772, 0
      %v1985 = vsel %vm1274, %v1773, 0
      %v1987 = vsel %vm1274, %v1774, 0
      %v1990 = vsel %vm1872, %v1775, 0
      %1992 = vmatprep.subr.bf16.mxu0 0
      %1993 = vmatpush1.bf16.msra.mxu0 %v1990
      %1994 = vmatprep.subr.bf16.mxu0 0
      %1995 = vmatpush1.bf16.msra.mxu0 0
      %1996 = vmatprep.subr.bf16.mxu0 0
      %1997 = vmatpush1.bf16.msra.mxu0 0
      %1998 = vmatprep.subr.bf16.mxu0 0
      %1999 = vmatpush1.bf16.msra.mxu0 0
      %2000 = vmatprep.subr.bf16.mxu0 0
      %2001 = vmatpush1.bf16.msra.mxu0 0
      %2002 = vmatprep.subr.bf16.mxu0 0
      %2003 = vmatpush1.bf16.msra.mxu0 0
      %2004 = vmatprep.subr.bf16.mxu0 0
      %2005 = vmatpush1.bf16.msra.mxu0 0
      %2006 = vmatprep.subr.bf16.mxu0 0
      %2007 = vmatpush1.bf16.msra.mxu0 0
      %2008 = vmatprep.subr.bf16.mxu0 0
      %2009 = vmatpush1.bf16.msra.mxu0 0
      %2010 = vmatprep.subr.bf16.mxu0 0
      %2011 = vmatpush1.bf16.msra.mxu0 0
      %2012 = vmatprep.subr.bf16.mxu0 0
      %2013 = vmatpush1.bf16.msra.mxu0 0
      %2014 = vmatprep.subr.bf16.mxu0 0
      %2015 = vmatpush1.bf16.msra.mxu0 0
      %2016 = vmatprep.subr.bf16.mxu0 0
      %2017 = vmatpush1.bf16.msra.mxu0 0
      %2018 = vmatprep.subr.bf16.mxu0 0
      %2019 = vmatpush1.bf16.msra.mxu0 0
      %2020 = vmatprep.subr.bf16.mxu0 0
      %2021 = vmatpush1.bf16.msra.mxu0 0
      %2022 = vmatprep.subr.bf16.mxu0 0
      %2023 = vmatpush1.bf16.msra.mxu0 0
      %2024 = vmatprep.mubr.bf16.mxu0 0
      %2025 = vmatmul.mubr.bf16.gmra.mrb[0].mxu0 %v1973
      %v2026 = vpop.f32.mrb[0].mxu0
      %v2027 = vadd.f32 %v1911, %v2026
      %v2028 = vpop.f32.mrb[0].mxu0
      %v2029 = vpop.f32.mrb[0].mxu0
      %v2030 = vadd.f32 %v1914, %v2029
      %v2031 = vpop.f32.mrb[0].mxu0
      %2032 = vmatprep.mubr.bf16.mxu0 0
      %2033 = vmatmul.mubr.bf16.gmra.mrb[0].mxu0 %v1975
      %v2034 = vpop.f32.mrb[0].mxu0
      %v2035 = vadd.f32 %v1919, %v2034
      %v2036 = vpop.f32.mrb[0].mxu0
      %v2037 = vpop.f32.mrb[0].mxu0
      %v2038 = vadd.f32 %v1922, %v2037
      %v2039 = vpop.f32.mrb[0].mxu0
      %2040 = vmatprep.mubr.bf16.mxu0 0
      %2041 = vmatmul.mubr.bf16.gmra.mrb[0].mxu0 %v1977
      %v2042 = vpop.f32.mrb[0].mxu0
      %v2043 = vadd.f32 %v1927, %v2042
      %v2044 = vpop.f32.mrb[0].mxu0
      %v2045 = vpop.f32.mrb[0].mxu0
      %v2046 = vadd.f32 %v1930, %v2045
      %v2047 = vpop.f32.mrb[0].mxu0
      %2048 = vmatprep.mubr.bf16.mxu0 0
      %2049 = vmatmul.mubr.bf16.gmra.mrb[0].mxu0 %v1979
      %v2050 = vpop.f32.mrb[0].mxu0
      %v2051 = vadd.f32 %v1935, %v2050
      %v2052 = vpop.f32.mrb[0].mxu0
      %v2053 = vpop.f32.mrb[0].mxu0
      %v2054 = vadd.f32 %v1938, %v2053
      %v2055 = vpop.f32.mrb[0].mxu0
      %2056 = vmatprep.mubr.bf16.mxu0 0
      %2057 = vmatmul.mubr.bf16.gmra.mrb[0].mxu0 %v1981
      %v2058 = vpop.f32.mrb[0].mxu0
      %v2059 = vadd.f32 %v1943, %v2058
      %v2060 = vpop.f32.mrb[0].mxu0
      %v2061 = vpop.f32.mrb[0].mxu0
      %v2062 = vadd.f32 %v1946, %v2061
      %v2063 = vpop.f32.mrb[0].mxu0
      %2064 = vmatprep.mubr.bf16.mxu0 0
      %2065 = vmatmul.mubr.bf16.gmra.mrb[0].mxu0 %v1983
      %v2066 = vpop.f32.mrb[0].mxu0
      %v2067 = vadd.f32 %v1951, %v2066
      %v2068 = vpop.f32.mrb[0].mxu0
      %v2069 = vpop.f32.mrb[0].mxu0
      %v2070 = vadd.f32 %v1954, %v2069
      %v2071 = vpop.f32.mrb[0].mxu0
      %2072 = vmatprep.mubr.bf16.mxu0 0
      %2073 = vmatmul.mubr.bf16.gmra.mrb[0].mxu0 %v1985
      %v2074 = vpop.f32.mrb[0].mxu0
      %v2075 = vadd.f32 %v1959, %v2074
      %v2076 = vpop.f32.mrb[0].mxu0
      %v2077 = vpop.f32.mrb[0].mxu0
      %v2078 = vadd.f32 %v1962, %v2077
      %v2079 = vpop.f32.mrb[0].mxu0
      %2080 = vmatprep.mubr.bf16.mxu0 0
      %2081 = vmatmul.mubr.bf16.gmra.mrb[0].mxu0 %v1987
      %v2082 = vpop.f32.mrb[0].mxu0
      %v2083 = vadd.f32 %v1967, %v2082
      %v2084 = vpop.f32.mrb[0].mxu0
      %v2085 = vpop.f32.mrb[0].mxu0
      %v2086 = vadd.f32 %v1970, %v2085
      %v2087 = vpop.f32.mrb[0].mxu0
      %2088 = vdwg.mxu0
      %v2089 = vld [vmem:[#allocation2] sm:$0xfe]
      %s2090 = scalar_lea.vmem %s1, 4
      %v2091 = vld [vmem:[%s2090] sm:$0x3]
      %vm2101 = vcmask 1046528
      %v2102 = vrot.slane %v2089, 1
      %v2103 = vrot.slane %v1768, 1
      %v2104 = vsel %vm2101, %v2102, %v2103
      %v2105 = vrot.slane %v1769, 1
      %v2106 = vsel %vm2101, %v2103, %v2105
      %v2107 = vrot.slane %v1770, 1
      %v2108 = vsel %vm2101, %v2105, %v2107
      %v2109 = vrot.slane %v1771, 1
      %v2110 = vsel %vm2101, %v2107, %v2109
      %v2111 = vrot.slane %v1772, 1
      %v2112 = vsel %vm2101, %v2109, %v2111
      %v2113 = vrot.slane %v1773, 1
      %v2114 = vsel %vm2101, %v2111, %v2113
      %v2115 = vrot.slane %v1774, 1
      %v2116 = vsel %vm2101, %v2113, %v2115
      %v2117 = vrot.slane %v1776, 1
      %v2118 = vsel %vm2101, %v2115, %v2117
      %v2120 = vsel %vm1274, %v2104, 0
      %v2123 = vsel %vm1274, %v2106, 0
      %v2126 = vsel %vm1274, %v2108, 0
      %v2129 = vsel %vm1274, %v2110, 0
      %v2132 = vsel %vm1274, %v2112, 0
      %v2135 = vsel %vm1274, %v2114, 0
      %v2138 = vsel %vm1274, %v2116, 0
      %v2141 = vsel %vm1274, %v2118, 0
      %v2144 = vsel %vm1872, %v2091, 0
      %2146 = vmatprep.subr.bf16.mxu0 0
      %2147 = vmatpush1.bf16.msra.mxu0 %v2144
      %2148 = vmatprep.subr.bf16.mxu0 0
      %2149 = vmatpush1.bf16.msra.mxu0 0
      %2150 = vmatprep.subr.bf16.mxu0 0
      %2151 = vmatpush1.bf16.msra.mxu0 0
      %2152 = vmatprep.subr.bf16.mxu0 0
      %2153 = vmatpush1.bf16.msra.mxu0 0
      %2154 = vmatprep.subr.bf16.mxu0 0
      %2155 = vmatpush1.bf16.msra.mxu0 0
      %2156 = vmatprep.subr.bf16.mxu0 0
      %2157 = vmatpush1.bf16.msra.mxu0 0
      %2158 = vmatprep.subr.bf16.mxu0 0
      %2159 = vmatpush1.bf16.msra.mxu0 0
      %2160 = vmatprep.subr.bf16.mxu0 0
      %2161 = vmatpush1.bf16.msra.mxu0 0
      %2162 = vmatprep.subr.bf16.mxu0 0
      %2163 = vmatpush1.bf16.msra.mxu0 0
      %2164 = vmatprep.subr.bf16.mxu0 0
      %2165 = vmatpush1.bf16.msra.mxu0 0
      %2166 = vmatprep.subr.bf16.mxu0 0
      %2167 = vmatpush1.bf16.msra.mxu0 0
      %2168 = vmatprep.subr.bf16.mxu0 0
      %2169 = vmatpush1.bf16.msra.mxu0 0
      %2170 = vmatprep.subr.bf16.mxu0 0
      %2171 = vmatpush1.bf16.msra.mxu0 0
      %2172 = vmatprep.subr.bf16.mxu0 0
      %2173 = vmatpush1.bf16.msra.mxu0 0
      %2174 = vmatprep.subr.bf16.mxu0 0
      %2175 = vmatpush1.bf16.msra.mxu0 0
      %2176 = vmatprep.subr.bf16.mxu0 0
      %2177 = vmatpush1.bf16.msra.mxu0 0
      %2178 = vmatprep.mubr.bf16.mxu0 0
      %2179 = vmatmul.mubr.bf16.gmra.mrb[0].mxu0 %v2120
      %v2180 = vpop.f32.mrb[0].mxu0
      %v2181 = vadd.f32 0.0, %v2180
      %v2182 = vpop.f32.mrb[0].mxu0
      %v2183 = vpop.f32.mrb[0].mxu0
      %v2184 = vadd.f32 0.0, %v2183
      %v2185 = vpop.f32.mrb[0].mxu0
      %2186 = vmatprep.mubr.bf16.mxu0 0
      %2187 = vmatmul.mubr.bf16.gmra.mrb[0].mxu0 %v2123
      %v2188 = vpop.f32.mrb[0].mxu0
      %v2189 = vadd.f32 0.0, %v2188
      %v2190 = vpop.f32.mrb[0].mxu0
      %v2191 = vpop.f32.mrb[0].mxu0
      %v2192 = vadd.f32 0.0, %v2191
      %v2193 = vpop.f32.mrb[0].mxu0
      %2194 = vmatprep.mubr.bf16.mxu0 0
      %2195 = vmatmul.mubr.bf16.gmra.mrb[0].mxu0 %v2126
      %v2196 = vpop.f32.mrb[0].mxu0
      %v2197 = vadd.f32 0.0, %v2196
      %v2198 = vpop.f32.mrb[0].mxu0
      %v2199 = vpop.f32.mrb[0].mxu0
      %v2200 = vadd.f32 0.0, %v2199
      %v2201 = vpop.f32.mrb[0].mxu0
      %2202 = vmatprep.mubr.bf16.mxu0 0
      %2203 = vmatmul.mubr.bf16.gmra.mrb[0].mxu0 %v2129
      %v2204 = vpop.f32.mrb[0].mxu0
      %v2205 = vadd.f32 0.0, %v2204
      %v2206 = vpop.f32.mrb[0].mxu0
      %v2207 = vpop.f32.mrb[0].mxu0
      %v2208 = vadd.f32 0.0, %v2207
      %v2209 = vpop.f32.mrb[0].mxu0
      %2210 = vmatprep.mubr.bf16.mxu0 0
      %2211 = vmatmul.mubr.bf16.gmra.mrb[0].mxu0 %v2132
      %v2212 = vpop.f32.mrb[0].mxu0
      %v2213 = vadd.f32 0.0, %v2212
      %v2214 = vpop.f32.mrb[0].mxu0
      %v2215 = vpop.f32.mrb[0].mxu0
      %v2216 = vadd.f32 0.0, %v2215
      %v2217 = vpop.f32.mrb[0].mxu0
      %2218 = vmatprep.mubr.bf16.mxu0 0
      %2219 = vmatmul.mubr.bf16.gmra.mrb[0].mxu0 %v2135
      %v2220 = vpop.f32.mrb[0].mxu0
      %v2221 = vadd.f32 0.0, %v2220
      %v2222 = vpop.f32.mrb[0].mxu0
      %v2223 = vpop.f32.mrb[0].mxu0
      %v2224 = vadd.f32 0.0, %v2223
      %v2225 = vpop.f32.mrb[0].mxu0
      %2226 = vmatprep.mubr.bf16.mxu0 0
      %2227 = vmatmul.mubr.bf16.gmra.mrb[0].mxu0 %v2138
      %v2228 = vpop.f32.mrb[0].mxu0
      %v2229 = vadd.f32 0.0, %v2228
      %v2230 = vpop.f32.mrb[0].mxu0
      %v2231 = vpop.f32.mrb[0].mxu0
      %v2232 = vadd.f32 0.0, %v2231
      %v2233 = vpop.f32.mrb[0].mxu0
      %2234 = vmatprep.mubr.bf16.mxu0 0
      %2235 = vmatmul.mubr.bf16.gmra.mrb[0].mxu0 %v2141
      %v2236 = vpop.f32.mrb[0].mxu0
      %v2237 = vadd.f32 0.0, %v2236
      %v2238 = vpop.f32.mrb[0].mxu0
      %v2239 = vpop.f32.mrb[0].mxu0
      %v2240 = vadd.f32 0.0, %v2239
      %v2241 = vpop.f32.mrb[0].mxu0
      %2242 = vdwg.mxu0
      %v2243 = vadd.f32 %v2027, %v2181
      %v2244 = vadd.f32 %v2030, %v2184
      %v2245 = vadd.f32 %v2035, %v2189
      %v2246 = vadd.f32 %v2038, %v2192
      %v2247 = vadd.f32 %v2043, %v2197
      %v2248 = vadd.f32 %v2046, %v2200
      %v2249 = vadd.f32 %v2051, %v2205
      %v2250 = vadd.f32 %v2054, %v2208
      %v2251 = vadd.f32 %v2059, %v2213
      %v2252 = vadd.f32 %v2062, %v2216
      %v2253 = vadd.f32 %v2067, %v2221
      %v2254 = vadd.f32 %v2070, %v2224
      %v2255 = vadd.f32 %v2075, %v2229
      %v2256 = vadd.f32 %v2078, %v2232
      %v2257 = vadd.f32 %v2083, %v2237
      %v2258 = vadd.f32 %v2086, %v2240
      %v2259 = vld [vmem:[#allocation2 + $0x40] sm:$0xff]
      %s2260 = scalar_lea.vmem %s1, 6
      %v2261 = vld [vmem:[%s2260] sm:$0x3]
      %v2263 = vsel %vm1274, %v2259, 0
      %v2266 = vsel %vm1872, %v2261, 0
      %2268 = vmatprep.subr.bf16.mxu0 0
      %2269 = vmatpush1.bf16.msra.mxu0 %v2266
      %2270 = vmatprep.subr.bf16.mxu0 0
      %2271 = vmatpush1.bf16.msra.mxu0 0
      %2272 = vmatprep.subr.bf16.mxu0 0
      %2273 = vmatpush1.bf16.msra.mxu0 0
      %2274 = vmatprep.subr.bf16.mxu0 0
      %2275 = vmatpush1.bf16.msra.mxu0 0
      %2276 = vmatprep.subr.bf16.mxu0 0
      %2277 = vmatpush1.bf16.msra.mxu0 0
      %2278 = vmatprep.subr.bf16.mxu0 0
      %2279 = vmatpush1.bf16.msra.mxu0 0
      %2280 = vmatprep.subr.bf16.mxu0 0
      %2281 = vmatpush1.bf16.msra.mxu0 0
      %2282 = vmatprep.subr.bf16.mxu0 0
      %2283 = vmatpush1.bf16.msra.mxu0 0
      %2284 = vmatprep.subr.bf16.mxu0 0
      %2285 = vmatpush1.bf16.msra.mxu0 0
      %2286 = vmatprep.subr.bf16.mxu0 0
      %2287 = vmatpush1.bf16.msra.mxu0 0
      %2288 = vmatprep.subr.bf16.mxu0 0
      %2289 = vmatpush1.bf16.msra.mxu0 0
      %2290 = vmatprep.subr.bf16.mxu0 0
      %2291 = vmatpush1.bf16.msra.mxu0 0
      %2292 = vmatprep.subr.bf16.mxu0 0
      %2293 = vmatpush1.bf16.msra.mxu0 0
      %2294 = vmatprep.subr.bf16.mxu0 0
      %2295 = vmatpush1.bf16.msra.mxu0 0
      %2296 = vmatprep.subr.bf16.mxu0 0
      %2297 = vmatpush1.bf16.msra.mxu0 0
      %2298 = vmatprep.subr.bf16.mxu0 0
      %2299 = vmatpush1.bf16.msra.mxu0 0
      %2300 = vmatprep.mubr.bf16.mxu0 0
      %2301 = vmatmul.mubr.bf16.gmra.mrb[0].mxu0 %v1975
      %v2302 = vpop.f32.mrb[0].mxu0
      %v2303 = vadd.f32 0.0, %v2302
      %v2304 = vpop.f32.mrb[0].mxu0
      %v2305 = vpop.f32.mrb[0].mxu0
      %v2306 = vadd.f32 0.0, %v2305
      %v2307 = vpop.f32.mrb[0].mxu0
      %2308 = vmatprep.mubr.bf16.mxu0 0
      %2309 = vmatmul.mubr.bf16.gmra.mrb[0].mxu0 %v1977
      %v2310 = vpop.f32.mrb[0].mxu0
      %v2311 = vadd.f32 0.0, %v2310
      %v2312 = vpop.f32.mrb[0].mxu0
      %v2313 = vpop.f32.mrb[0].mxu0
      %v2314 = vadd.f32 0.0, %v2313
      %v2315 = vpop.f32.mrb[0].mxu0
      %2316 = vmatprep.mubr.bf16.mxu0 0
      %2317 = vmatmul.mubr.bf16.gmra.mrb[0].mxu0 %v1979
      %v2318 = vpop.f32.mrb[0].mxu0
      %v2319 = vadd.f32 0.0, %v2318
      %v2320 = vpop.f32.mrb[0].mxu0
      %v2321 = vpop.f32.mrb[0].mxu0
      %v2322 = vadd.f32 0.0, %v2321
      %v2323 = vpop.f32.mrb[0].mxu0
      %2324 = vmatprep.mubr.bf16.mxu0 0
      %2325 = vmatmul.mubr.bf16.gmra.mrb[0].mxu0 %v1981
      %v2326 = vpop.f32.mrb[0].mxu0
      %v2327 = vadd.f32 0.0, %v2326
      %v2328 = vpop.f32.mrb[0].mxu0
      %v2329 = vpop.f32.mrb[0].mxu0
      %v2330 = vadd.f32 0.0, %v2329
      %v2331 = vpop.f32.mrb[0].mxu0
      %2332 = vmatprep.mubr.bf16.mxu0 0
      %2333 = vmatmul.mubr.bf16.gmra.mrb[0].mxu0 %v1983
      %v2334 = vpop.f32.mrb[0].mxu0
      %v2335 = vadd.f32 0.0, %v2334
      %v2336 = vpop.f32.mrb[0].mxu0
      %v2337 = vpop.f32.mrb[0].mxu0
      %v2338 = vadd.f32 0.0, %v2337
      %v2339 = vpop.f32.mrb[0].mxu0
      %2340 = vmatprep.mubr.bf16.mxu0 0
      %2341 = vmatmul.mubr.bf16.gmra.mrb[0].mxu0 %v1985
      %v2342 = vpop.f32.mrb[0].mxu0
      %v2343 = vadd.f32 0.0, %v2342
      %v2344 = vpop.f32.mrb[0].mxu0
      %v2345 = vpop.f32.mrb[0].mxu0
      %v2346 = vadd.f32 0.0, %v2345
      %v2347 = vpop.f32.mrb[0].mxu0
      %2348 = vmatprep.mubr.bf16.mxu0 0
      %2349 = vmatmul.mubr.bf16.gmra.mrb[0].mxu0 %v1987
      %v2350 = vpop.f32.mrb[0].mxu0
      %v2351 = vadd.f32 0.0, %v2350
      %v2352 = vpop.f32.mrb[0].mxu0
      %v2353 = vpop.f32.mrb[0].mxu0
      %v2354 = vadd.f32 0.0, %v2353
      %v2355 = vpop.f32.mrb[0].mxu0
      %2356 = vmatprep.mubr.bf16.mxu0 0
      %2357 = vmatmul.mubr.bf16.gmra.mrb[0].mxu0 %v2263
      %v2358 = vpop.f32.mrb[0].mxu0
      %v2359 = vadd.f32 0.0, %v2358
      %v2360 = vpop.f32.mrb[0].mxu0
      %v2361 = vpop.f32.mrb[0].mxu0
      %v2362 = vadd.f32 0.0, %v2361
      %v2363 = vpop.f32.mrb[0].mxu0
      %2364 = vdwg.mxu0
      %v2365 = vadd.f32 %v2243, %v2303
      %v2366 = vadd.f32 %v2244, %v2306
      %v2367 = vadd.f32 %v2245, %v2311
      %v2368 = vadd.f32 %v2246, %v2314
      %v2369 = vadd.f32 %v2247, %v2319
      %v2370 = vadd.f32 %v2248, %v2322
      %v2371 = vadd.f32 %v2249, %v2327
      %v2372 = vadd.f32 %v2250, %v2330
      %v2373 = vadd.f32 %v2251, %v2335
      %v2374 = vadd.f32 %v2252, %v2338
      %v2375 = vadd.f32 %v2253, %v2343
      %v2376 = vadd.f32 %v2254, %v2346
      %v2377 = vadd.f32 %v2255, %v2351
      %v2378 = vadd.f32 %v2256, %v2354
      %v2379 = vadd.f32 %v2257, %v2359
      %v2380 = vadd.f32 %v2258, %v2362
      %v2381 = vld [vmem:[#allocation2 + $0x8] sm:$0xff]
      %v2382 = vld [vmem:[#allocation2 + $0x10] sm:$0xff]
      %v2383 = vld [vmem:[#allocation2 + $0x18] sm:$0xff]
      %v2384 = vld [vmem:[#allocation2 + $0x20] sm:$0xff]
      %v2385 = vld [vmem:[#allocation2 + $0x28] sm:$0xff]
      %v2386 = vld [vmem:[#allocation2 + $0x30] sm:$0xff]
      %v2387 = vld [vmem:[#allocation2 + $0x38] sm:$0xff]
      %v2388 = vld [vmem:[#allocation2 + $0x40] sm:$0xff]
      %v2389 = vld [vmem:[#allocation2 + $0x48] sm:$0x1]
      %s2390 = scalar_lea.vmem %s1, 8
      %v2391 = vld [vmem:[%s2390] sm:$0x3]
      %v2393 = vshrl.u32 %v2381, 16
      %v2395 = vshll.u32 %v2381, 16
      %v2397 = vrot.slane %v2395, 1
      %v2398 = vor.u32 %v2393, %v2397
      %v2400 = vshll.u32 %v2382, 16
      %v2402 = vrot.slane %v2400, 1
      %v2403 = vsel %vm1779, %v2398, %v2402
      %v2404 = vshrl.u32 %v2382, 16
      %v2406 = vor.u32 %v2404, %v2402
      %v2408 = vshll.u32 %v2383, 16
      %v2410 = vrot.slane %v2408, 1
      %v2411 = vsel %vm1779, %v2406, %v2410
      %v2412 = vshrl.u32 %v2383, 16
      %v2414 = vor.u32 %v2412, %v2410
      %v2416 = vshll.u32 %v2384, 16
      %v2418 = vrot.slane %v2416, 1
      %v2419 = vsel %vm1779, %v2414, %v2418
      %v2420 = vshrl.u32 %v2384, 16
      %v2422 = vor.u32 %v2420, %v2418
      %v2424 = vshll.u32 %v2385, 16
      %v2426 = vrot.slane %v2424, 1
      %v2427 = vsel %vm1779, %v2422, %v2426
      %v2428 = vshrl.u32 %v2385, 16
      %v2430 = vor.u32 %v2428, %v2426
      %v2432 = vshll.u32 %v2386, 16
      %v2434 = vrot.slane %v2432, 1
      %v2435 = vsel %vm1779, %v2430, %v2434
      %v2436 = vshrl.u32 %v2386, 16
      %v2438 = vor.u32 %v2436, %v2434
      %v2440 = vshll.u32 %v2387, 16
      %v2442 = vrot.slane %v2440, 1
      %v2443 = vsel %vm1779, %v2438, %v2442
      %v2444 = vshrl.u32 %v2387, 16
      %v2446 = vor.u32 %v2444, %v2442
      %v2448 = vshll.u32 %v2388, 16
      %v2450 = vrot.slane %v2448, 1
      %v2451 = vsel %vm1779, %v2446, %v2450
      %v2452 = vshrl.u32 %v2388, 16
      %v2454 = vor.u32 %v2452, %v2450
      %v2456 = vshll.u32 %v2389, 16
      %v2458 = vrot.slane %v2456, 1
      %v2459 = vsel %vm1779, %v2454, %v2458
      %v2461 = vsel %vm1274, %v2403, 0
      %v2464 = vsel %vm1274, %v2411, 0
      %v2467 = vsel %vm1274, %v2419, 0
      %v2470 = vsel %vm1274, %v2427, 0
      %v2473 = vsel %vm1274, %v2435, 0
      %v2476 = vsel %vm1274, %v2443, 0
      %v2479 = vsel %vm1274, %v2451, 0
      %v2482 = vsel %vm1274, %v2459, 0
      %v2485 = vsel %vm1872, %v2391, 0
      %2487 = vmatprep.subr.bf16.mxu0 0
      %2488 = vmatpush1.bf16.msra.mxu0 %v2485
      %2489 = vmatprep.subr.bf16.mxu0 0
      %2490 = vmatpush1.bf16.msra.mxu0 0
      %2491 = vmatprep.subr.bf16.mxu0 0
      %2492 = vmatpush1.bf16.msra.mxu0 0
      %2493 = vmatprep.subr.bf16.mxu0 0
      %2494 = vmatpush1.bf16.msra.mxu0 0
      %2495 = vmatprep.subr.bf16.mxu0 0
      %2496 = vmatpush1.bf16.msra.mxu0 0
      %2497 = vmatprep.subr.bf16.mxu0 0
      %2498 = vmatpush1.bf16.msra.mxu0 0
      %2499 = vmatprep.subr.bf16.mxu0 0
      %2500 = vmatpush1.bf16.msra.mxu0 0
      %2501 = vmatprep.subr.bf16.mxu0 0
      %2502 = vmatpush1.bf16.msra.mxu0 0
      %2503 = vmatprep.subr.bf16.mxu0 0
      %2504 = vmatpush1.bf16.msra.mxu0 0
      %2505 = vmatprep.subr.bf16.mxu0 0
      %2506 = vmatpush1.bf16.msra.mxu0 0
      %2507 = vmatprep.subr.bf16.mxu0 0
      %2508 = vmatpush1.bf16.msra.mxu0 0
      %2509 = vmatprep.subr.bf16.mxu0 0
      %2510 = vmatpush1.bf16.msra.mxu0 0
      %2511 = vmatprep.subr.bf16.mxu0 0
      %2512 = vmatpush1.bf16.msra.mxu0 0
      %2513 = vmatprep.subr.bf16.mxu0 0
      %2514 = vmatpush1.bf16.msra.mxu0 0
      %2515 = vmatprep.subr.bf16.mxu0 0
      %2516 = vmatpush1.bf16.msra.mxu0 0
      %2517 = vmatprep.subr.bf16.mxu0 0
      %2518 = vmatpush1.bf16.msra.mxu0 0
      %2519 = vmatprep.mubr.bf16.mxu0 0
      %2520 = vmatmul.mubr.bf16.gmra.mrb[0].mxu0 %v2461
      %v2521 = vpop.f32.mrb[0].mxu0
      %v2522 = vadd.f32 0.0, %v2521
      %v2523 = vpop.f32.mrb[0].mxu0
      %v2524 = vpop.f32.mrb[0].mxu0
      %v2525 = vadd.f32 0.0, %v2524
      %v2526 = vpop.f32.mrb[0].mxu0
      %2527 = vmatprep.mubr.bf16.mxu0 0
      %2528 = vmatmul.mubr.bf16.gmra.mrb[0].mxu0 %v2464
      %v2529 = vpop.f32.mrb[0].mxu0
      %v2530 = vadd.f32 0.0, %v2529
      %v2531 = vpop.f32.mrb[0].mxu0
      %v2532 = vpop.f32.mrb[0].mxu0
      %v2533 = vadd.f32 0.0, %v2532
      %v2534 = vpop.f32.mrb[0].mxu0
      %2535 = vmatprep.mubr.bf16.mxu0 0
      %2536 = vmatmul.mubr.bf16.gmra.mrb[0].mxu0 %v2467
      %v2537 = vpop.f32.mrb[0].mxu0
      %v2538 = vadd.f32 0.0, %v2537
      %v2539 = vpop.f32.mrb[0].mxu0
      %v2540 = vpop.f32.mrb[0].mxu0
      %v2541 = vadd.f32 0.0, %v2540
      %v2542 = vpop.f32.mrb[0].mxu0
      %2543 = vmatprep.mubr.bf16.mxu0 0
      %2544 = vmatmul.mubr.bf16.gmra.mrb[0].mxu0 %v2470
      %v2545 = vpop.f32.mrb[0].mxu0
      %v2546 = vadd.f32 0.0, %v2545
      %v2547 = vpop.f32.mrb[0].mxu0
      %v2548 = vpop.f32.mrb[0].mxu0
      %v2549 = vadd.f32 0.0, %v2548
      %v2550 = vpop.f32.mrb[0].mxu0
      %2551 = vmatprep.mubr.bf16.mxu0 0
      %2552 = vmatmul.mubr.bf16.gmra.mrb[0].mxu0 %v2473
      %v2553 = vpop.f32.mrb[0].mxu0
      %v2554 = vadd.f32 0.0, %v2553
      %v2555 = vpop.f32.mrb[0].mxu0
      %v2556 = vpop.f32.mrb[0].mxu0
      %v2557 = vadd.f32 0.0, %v2556
      %v2558 = vpop.f32.mrb[0].mxu0
      %2559 = vmatprep.mubr.bf16.mxu0 0
      %2560 = vmatmul.mubr.bf16.gmra.mrb[0].mxu0 %v2476
      %v2561 = vpop.f32.mrb[0].mxu0
      %v2562 = vadd.f32 0.0, %v2561
      %v2563 = vpop.f32.mrb[0].mxu0
      %v2564 = vpop.f32.mrb[0].mxu0
      %v2565 = vadd.f32 0.0, %v2564
      %v2566 = vpop.f32.mrb[0].mxu0
      %2567 = vmatprep.mubr.bf16.mxu0 0
      %2568 = vmatmul.mubr.bf16.gmra.mrb[0].mxu0 %v2479
      %v2569 = vpop.f32.mrb[0].mxu0
      %v2570 = vadd.f32 0.0, %v2569
      %v2571 = vpop.f32.mrb[0].mxu0
      %v2572 = vpop.f32.mrb[0].mxu0
      %v2573 = vadd.f32 0.0, %v2572
      %v2574 = vpop.f32.mrb[0].mxu0
      %2575 = vmatprep.mubr.bf16.mxu0 0
      %2576 = vmatmul.mubr.bf16.gmra.mrb[0].mxu0 %v2482
      %v2577 = vpop.f32.mrb[0].mxu0
      %v2578 = vadd.f32 0.0, %v2577
      %v2579 = vpop.f32.mrb[0].mxu0
      %v2580 = vpop.f32.mrb[0].mxu0
      %v2581 = vadd.f32 0.0, %v2580
      %v2582 = vpop.f32.mrb[0].mxu0
      %2583 = vdwg.mxu0
      %v2584 = vadd.f32 %v2365, %v2522
      %v2585 = vadd.f32 %v2366, %v2525
      %v2586 = vadd.f32 %v2367, %v2530
      %v2587 = vadd.f32 %v2368, %v2533
      %v2588 = vadd.f32 %v2369, %v2538
      %v2589 = vadd.f32 %v2370, %v2541
      %v2590 = vadd.f32 %v2371, %v2546
      %v2591 = vadd.f32 %v2372, %v2549
      %v2592 = vadd.f32 %v2373, %v2554
      %v2593 = vadd.f32 %v2374, %v2557
      %v2594 = vadd.f32 %v2375, %v2562
      %v2595 = vadd.f32 %v2376, %v2565
      %v2596 = vadd.f32 %v2377, %v2570
      %v2597 = vadd.f32 %v2378, %v2573
      %v2598 = vadd.f32 %v2379, %v2578
      %v2599 = vadd.f32 %v2380, %v2581
      %v2600 = vld [vmem:[#allocation2 + $0x8] sm:$0xfe]
      %s2601 = scalar_lea.vmem %s1, 10
      %v2602 = vld [vmem:[%s2601] sm:$0x3]
      %v2612 = vrot.slane %v2600, 1
      %v2613 = vrot.slane %v2382, 1
      %v2614 = vsel %vm2101, %v2612, %v2613
      %v2615 = vrot.slane %v2383, 1
      %v2616 = vsel %vm2101, %v2613, %v2615
      %v2617 = vrot.slane %v2384, 1
      %v2618 = vsel %vm2101, %v2615, %v2617
      %v2619 = vrot.slane %v2385, 1
      %v2620 = vsel %vm2101, %v2617, %v2619
      %v2621 = vrot.slane %v2386, 1
      %v2622 = vsel %vm2101, %v2619, %v2621
      %v2623 = vrot.slane %v2387, 1
      %v2624 = vsel %vm2101, %v2621, %v2623
      %v2625 = vrot.slane %v2388, 1
      %v2626 = vsel %vm2101, %v2623, %v2625
      %v2627 = vrot.slane %v2389, 1
      %v2628 = vsel %vm2101, %v2625, %v2627
      %v2630 = vsel %vm1274, %v2614, 0
      %v2633 = vsel %vm1274, %v2616, 0
      %v2636 = vsel %vm1274, %v2618, 0
      %v2639 = vsel %vm1274, %v2620, 0
      %v2642 = vsel %vm1274, %v2622, 0
      %v2645 = vsel %vm1274, %v2624, 0
      %v2648 = vsel %vm1274, %v2626, 0
      %v2651 = vsel %vm1274, %v2628, 0
      %v2654 = vsel %vm1872, %v2602, 0
      %2656 = vmatprep.subr.bf16.mxu0 0
      %2657 = vmatpush1.bf16.msra.mxu0 %v2654
      %2658 = vmatprep.subr.bf16.mxu0 0
      %2659 = vmatpush1.bf16.msra.mxu0 0
      %2660 = vmatprep.subr.bf16.mxu0 0
      %2661 = vmatpush1.bf16.msra.mxu0 0
      %2662 = vmatprep.subr.bf16.mxu0 0
      %2663 = vmatpush1.bf16.msra.mxu0 0
      %2664 = vmatprep.subr.bf16.mxu0 0
      %2665 = vmatpush1.bf16.msra.mxu0 0
      %2666 = vmatprep.subr.bf16.mxu0 0
      %2667 = vmatpush1.bf16.msra.mxu0 0
      %2668 = vmatprep.subr.bf16.mxu0 0
      %2669 = vmatpush1.bf16.msra.mxu0 0
      %2670 = vmatprep.subr.bf16.mxu0 0
      %2671 = vmatpush1.bf16.msra.mxu0 0
      %2672 = vmatprep.subr.bf16.mxu0 0
      %2673 = vmatpush1.bf16.msra.mxu0 0
      %2674 = vmatprep.subr.bf16.mxu0 0
      %2675 = vmatpush1.bf16.msra.mxu0 0
      %2676 = vmatprep.subr.bf16.mxu0 0
      %2677 = vmatpush1.bf16.msra.mxu0 0
      %2678 = vmatprep.subr.bf16.mxu0 0
      %2679 = vmatpush1.bf16.msra.mxu0 0
      %2680 = vmatprep.subr.bf16.mxu0 0
      %2681 = vmatpush1.bf16.msra.mxu0 0
      %2682 = vmatprep.subr.bf16.mxu0 0
      %2683 = vmatpush1.bf16.msra.mxu0 0
      %2684 = vmatprep.subr.bf16.mxu0 0
      %2685 = vmatpush1.bf16.msra.mxu0 0
      %2686 = vmatprep.subr.bf16.mxu0 0
      %2687 = vmatpush1.bf16.msra.mxu0 0
      %2688 = vmatprep.mubr.bf16.mxu0 0
      %2689 = vmatmul.mubr.bf16.gmra.mrb[0].mxu0 %v2630
      %v2690 = vpop.f32.mrb[0].mxu0
      %v2691 = vadd.f32 0.0, %v2690
      %v2692 = vpop.f32.mrb[0].mxu0
      %v2693 = vpop.f32.mrb[0].mxu0
      %v2694 = vadd.f32 0.0, %v2693
      %v2695 = vpop.f32.mrb[0].mxu0
      %2696 = vmatprep.mubr.bf16.mxu0 0
      %2697 = vmatmul.mubr.bf16.gmra.mrb[0].mxu0 %v2633
      %v2698 = vpop.f32.mrb[0].mxu0
      %v2699 = vadd.f32 0.0, %v2698
      %v2700 = vpop.f32.mrb[0].mxu0
      %v2701 = vpop.f32.mrb[0].mxu0
      %v2702 = vadd.f32 0.0, %v2701
      %v2703 = vpop.f32.mrb[0].mxu0
      %2704 = vmatprep.mubr.bf16.mxu0 0
      %2705 = vmatmul.mubr.bf16.gmra.mrb[0].mxu0 %v2636
      %v2706 = vpop.f32.mrb[0].mxu0
      %v2707 = vadd.f32 0.0, %v2706
      %v2708 = vpop.f32.mrb[0].mxu0
      %v2709 = vpop.f32.mrb[0].mxu0
      %v2710 = vadd.f32 0.0, %v2709
      %v2711 = vpop.f32.mrb[0].mxu0
      %2712 = vmatprep.mubr.bf16.mxu0 0
      %2713 = vmatmul.mubr.bf16.gmra.mrb[0].mxu0 %v2639
      %v2714 = vpop.f32.mrb[0].mxu0
      %v2715 = vadd.f32 0.0, %v2714
      %v2716 = vpop.f32.mrb[0].mxu0
      %v2717 = vpop.f32.mrb[0].mxu0
      %v2718 = vadd.f32 0.0, %v2717
      %v2719 = vpop.f32.mrb[0].mxu0
      %2720 = vmatprep.mubr.bf16.mxu0 0
      %2721 = vmatmul.mubr.bf16.gmra.mrb[0].mxu0 %v2642
      %v2722 = vpop.f32.mrb[0].mxu0
      %v2723 = vadd.f32 0.0, %v2722
      %v2724 = vpop.f32.mrb[0].mxu0
      %v2725 = vpop.f32.mrb[0].mxu0
      %v2726 = vadd.f32 0.0, %v2725
      %v2727 = vpop.f32.mrb[0].mxu0
      %2728 = vmatprep.mubr.bf16.mxu0 0
      %2729 = vmatmul.mubr.bf16.gmra.mrb[0].mxu0 %v2645
      %v2730 = vpop.f32.mrb[0].mxu0
      %v2731 = vadd.f32 0.0, %v2730
      %v2732 = vpop.f32.mrb[0].mxu0
      %v2733 = vpop.f32.mrb[0].mxu0
      %v2734 = vadd.f32 0.0, %v2733
      %v2735 = vpop.f32.mrb[0].mxu0
      %2736 = vmatprep.mubr.bf16.mxu0 0
      %2737 = vmatmul.mubr.bf16.gmra.mrb[0].mxu0 %v2648
      %v2738 = vpop.f32.mrb[0].mxu0
      %v2739 = vadd.f32 0.0, %v2738
      %v2740 = vpop.f32.mrb[0].mxu0
      %v2741 = vpop.f32.mrb[0].mxu0
      %v2742 = vadd.f32 0.0, %v2741
      %v2743 = vpop.f32.mrb[0].mxu0
      %2744 = vmatprep.mubr.bf16.mxu0 0
      %2745 = vmatmul.mubr.bf16.gmra.mrb[0].mxu0 %v2651
      %v2746 = vpop.f32.mrb[0].mxu0
      %v2747 = vadd.f32 0.0, %v2746
      %v2748 = vpop.f32.mrb[0].mxu0
      %v2749 = vpop.f32.mrb[0].mxu0
      %v2750 = vadd.f32 0.0, %v2749
      %v2751 = vpop.f32.mrb[0].mxu0
      %2752 = vdwg.mxu0
      %v2753 = vadd.f32 %v2584, %v2691
      %v2754 = vadd.f32 %v2585, %v2694
      %v2755 = vadd.f32 %v2586, %v2699
      %v2756 = vadd.f32 %v2587, %v2702
      %v2757 = vadd.f32 %v2588, %v2707
      %v2758 = vadd.f32 %v2589, %v2710
      %v2759 = vadd.f32 %v2590, %v2715
      %v2760 = vadd.f32 %v2591, %v2718
      %v2761 = vadd.f32 %v2592, %v2723
      %v2762 = vadd.f32 %v2593, %v2726
      %v2763 = vadd.f32 %v2594, %v2731
      %v2764 = vadd.f32 %v2595, %v2734
      %v2765 = vadd.f32 %v2596, %v2739
      %v2766 = vadd.f32 %v2597, %v2742
      %v2767 = vadd.f32 %v2598, %v2747
      %v2768 = vadd.f32 %v2599, %v2750
      %v2769 = vld [vmem:[#allocation2 + $0x48] sm:$0xff]
      %s2770 = scalar_lea.vmem %s1, 12
      %v2771 = vld [vmem:[%s2770] sm:$0x3]
      %v2772 = vsel %vm1274, %v2382, 0
      %v2774 = vsel %vm1274, %v2383, 0
      %v2776 = vsel %vm1274, %v2384, 0
      %v2778 = vsel %vm1274, %v2385, 0
      %v2780 = vsel %vm1274, %v2386, 0
      %v2782 = vsel %vm1274, %v2387, 0
      %v2784 = vsel %vm1274, %v2388, 0
      %v2787 = vsel %vm1274, %v2769, 0
      %v2790 = vsel %vm1872, %v2771, 0
      %2792 = vmatprep.subr.bf16.mxu0 0
      %2793 = vmatpush1.bf16.msra.mxu0 %v2790
      %2794 = vmatprep.subr.bf16.mxu0 0
      %2795 = vmatpush1.bf16.msra.mxu0 0
      %2796 = vmatprep.subr.bf16.mxu0 0
      %2797 = vmatpush1.bf16.msra.mxu0 0
      %2798 = vmatprep.subr.bf16.mxu0 0
      %2799 = vmatpush1.bf16.msra.mxu0 0
      %2800 = vmatprep.subr.bf16.mxu0 0
      %2801 = vmatpush1.bf16.msra.mxu0 0
      %2802 = vmatprep.subr.bf16.mxu0 0
      %2803 = vmatpush1.bf16.msra.mxu0 0
      %2804 = vmatprep.subr.bf16.mxu0 0
      %2805 = vmatpush1.bf16.msra.mxu0 0
      %2806 = vmatprep.subr.bf16.mxu0 0
      %2807 = vmatpush1.bf16.msra.mxu0 0
      %2808 = vmatprep.subr.bf16.mxu0 0
      %2809 = vmatpush1.bf16.msra.mxu0 0
      %2810 = vmatprep.subr.bf16.mxu0 0
      %2811 = vmatpush1.bf16.msra.mxu0 0
      %2812 = vmatprep.subr.bf16.mxu0 0
      %2813 = vmatpush1.bf16.msra.mxu0 0
      %2814 = vmatprep.subr.bf16.mxu0 0
      %2815 = vmatpush1.bf16.msra.mxu0 0
      %2816 = vmatprep.subr.bf16.mxu0 0
      %2817 = vmatpush1.bf16.msra.mxu0 0
      %2818 = vmatprep.subr.bf16.mxu0 0
      %2819 = vmatpush1.bf16.msra.mxu0 0
      %2820 = vmatprep.subr.bf16.mxu0 0
      %2821 = vmatpush1.bf16.msra.mxu0 0
      %2822 = vmatprep.subr.bf16.mxu0 0
      %2823 = vmatpush1.bf16.msra.mxu0 0
      %2824 = vmatprep.mubr.bf16.mxu0 0
      %2825 = vmatmul.mubr.bf16.gmra.mrb[0].mxu0 %v2772
      %v2826 = vpop.f32.mrb[0].mxu0
      %v2827 = vadd.f32 0.0, %v2826
      %v2828 = vpop.f32.mrb[0].mxu0
      %v2829 = vpop.f32.mrb[0].mxu0
      %v2830 = vadd.f32 0.0, %v2829
      %v2831 = vpop.f32.mrb[0].mxu0
      %2832 = vmatprep.mubr.bf16.mxu0 0
      %2833 = vmatmul.mubr.bf16.gmra.mrb[0].mxu0 %v2774
      %v2834 = vpop.f32.mrb[0].mxu0
      %v2835 = vadd.f32 0.0, %v2834
      %v2836 = vpop.f32.mrb[0].mxu0
      %v2837 = vpop.f32.mrb[0].mxu0
      %v2838 = vadd.f32 0.0, %v2837
      %v2839 = vpop.f32.mrb[0].mxu0
      %2840 = vmatprep.mubr.bf16.mxu0 0
      %2841 = vmatmul.mubr.bf16.gmra.mrb[0].mxu0 %v2776
      %v2842 = vpop.f32.mrb[0].mxu0
      %v2843 = vadd.f32 0.0, %v2842
      %v2844 = vpop.f32.mrb[0].mxu0
      %v2845 = vpop.f32.mrb[0].mxu0
      %v2846 = vadd.f32 0.0, %v2845
      %v2847 = vpop.f32.mrb[0].mxu0
      %2848 = vmatprep.mubr.bf16.mxu0 0
      %2849 = vmatmul.mubr.bf16.gmra.mrb[0].mxu0 %v2778
      %v2850 = vpop.f32.mrb[0].mxu0
      %v2851 = vadd.f32 0.0, %v2850
      %v2852 = vpop.f32.mrb[0].mxu0
      %v2853 = vpop.f32.mrb[0].mxu0
      %v2854 = vadd.f32 0.0, %v2853
      %v2855 = vpop.f32.mrb[0].mxu0
      %2856 = vmatprep.mubr.bf16.mxu0 0
      %2857 = vmatmul.mubr.bf16.gmra.mrb[0].mxu0 %v2780
      %v2858 = vpop.f32.mrb[0].mxu0
      %v2859 = vadd.f32 0.0, %v2858
      %v2860 = vpop.f32.mrb[0].mxu0
      %v2861 = vpop.f32.mrb[0].mxu0
      %v2862 = vadd.f32 0.0, %v2861
      %v2863 = vpop.f32.mrb[0].mxu0
      %2864 = vmatprep.mubr.bf16.mxu0 0
      %2865 = vmatmul.mubr.bf16.gmra.mrb[0].mxu0 %v2782
      %v2866 = vpop.f32.mrb[0].mxu0
      %v2867 = vadd.f32 0.0, %v2866
      %v2868 = vpop.f32.mrb[0].mxu0
      %v2869 = vpop.f32.mrb[0].mxu0
      %v2870 = vadd.f32 0.0, %v2869
      %v2871 = vpop.f32.mrb[0].mxu0
      %2872 = vmatprep.mubr.bf16.mxu0 0
      %2873 = vmatmul.mubr.bf16.gmra.mrb[0].mxu0 %v2784
      %v2874 = vpop.f32.mrb[0].mxu0
      %v2875 = vadd.f32 0.0, %v2874
      %v2876 = vpop.f32.mrb[0].mxu0
      %v2877 = vpop.f32.mrb[0].mxu0
      %v2878 = vadd.f32 0.0, %v2877
      %v2879 = vpop.f32.mrb[0].mxu0
      %2880 = vmatprep.mubr.bf16.mxu0 0
      %2881 = vmatmul.mubr.bf16.gmra.mrb[0].mxu0 %v2787
      %v2882 = vpop.f32.mrb[0].mxu0
      %v2883 = vadd.f32 0.0, %v2882
      %v2884 = vpop.f32.mrb[0].mxu0
      %v2885 = vpop.f32.mrb[0].mxu0
      %v2886 = vadd.f32 0.0, %v2885
      %v2887 = vpop.f32.mrb[0].mxu0
      %2888 = vdwg.mxu0
      %v2889 = vadd.f32 %v2753, %v2827
      %v2890 = vadd.f32 %v2754, %v2830
      %v2891 = vadd.f32 %v2755, %v2835
      %v2892 = vadd.f32 %v2756, %v2838
      %v2893 = vadd.f32 %v2757, %v2843
      %v2894 = vadd.f32 %v2758, %v2846
      %v2895 = vadd.f32 %v2759, %v2851
      %v2896 = vadd.f32 %v2760, %v2854
      %v2897 = vadd.f32 %v2761, %v2859
      %v2898 = vadd.f32 %v2762, %v2862
      %v2899 = vadd.f32 %v2763, %v2867
      %v2900 = vadd.f32 %v2764, %v2870
      %v2901 = vadd.f32 %v2765, %v2875
      %v2902 = vadd.f32 %v2766, %v2878
      %v2903 = vadd.f32 %v2767, %v2883
      %v2904 = vadd.f32 %v2768, %v2886
      %v2905 = vld [vmem:[#allocation2 + $0x10] sm:$0xff]
      %v2906 = vld [vmem:[#allocation2 + $0x18] sm:$0xff]
      %v2907 = vld [vmem:[#allocation2 + $0x20] sm:$0xff]
      %v2908 = vld [vmem:[#allocation2 + $0x28] sm:$0xff]
      %v2909 = vld [vmem:[#allocation2 + $0x30] sm:$0xff]
      %v2910 = vld [vmem:[#allocation2 + $0x38] sm:$0xff]
      %v2911 = vld [vmem:[#allocation2 + $0x40] sm:$0xff]
      %v2912 = vld [vmem:[#allocation2 + $0x48] sm:$0xff]
      %v2913 = vld [vmem:[#allocation2 + $0x50] sm:$0x1]
      %s2914 = scalar_lea.vmem %s1, 14
      %v2915 = vld [vmem:[%s2914] sm:$0x3]
      %v2917 = vshrl.u32 %v2905, 16
      %v2919 = vshll.u32 %v2905, 16
      %v2921 = vrot.slane %v2919, 1
      %v2922 = vor.u32 %v2917, %v2921
      %v2924 = vshll.u32 %v2906, 16
      %v2926 = vrot.slane %v2924, 1
      %v2927 = vsel %vm1779, %v2922, %v2926
      %v2928 = vshrl.u32 %v2906, 16
      %v2930 = vor.u32 %v2928, %v2926
      %v2932 = vshll.u32 %v2907, 16
      %v2934 = vrot.slane %v2932, 1
      %v2935 = vsel %vm1779, %v2930, %v2934
      %v2936 = vshrl.u32 %v2907, 16
      %v2938 = vor.u32 %v2936, %v2934
      %v2940 = vshll.u32 %v2908, 16
      %v2942 = vrot.slane %v2940, 1
      %v2943 = vsel %vm1779, %v2938, %v2942
      %v2944 = vshrl.u32 %v2908, 16
      %v2946 = vor.u32 %v2944, %v2942
      %v2948 = vshll.u32 %v2909, 16
      %v2950 = vrot.slane %v2948, 1
      %v2951 = vsel %vm1779, %v2946, %v2950
      %v2952 = vshrl.u32 %v2909, 16
      %v2954 = vor.u32 %v2952, %v2950
      %v2956 = vshll.u32 %v2910, 16
      %v2958 = vrot.slane %v2956, 1
      %v2959 = vsel %vm1779, %v2954, %v2958
      %v2960 = vshrl.u32 %v2910, 16
      %v2962 = vor.u32 %v2960, %v2958
      %v2964 = vshll.u32 %v2911, 16
      %v2966 = vrot.slane %v2964, 1
      %v2967 = vsel %vm1779, %v2962, %v2966
      %v2968 = vshrl.u32 %v2911, 16
      %v2970 = vor.u32 %v2968, %v2966
      %v2972 = vshll.u32 %v2912, 16
      %v2974 = vrot.slane %v2972, 1
      %v2975 = vsel %vm1779, %v2970, %v2974
      %v2976 = vshrl.u32 %v2912, 16
      %v2978 = vor.u32 %v2976, %v2974
      %v2980 = vshll.u32 %v2913, 16
      %v2982 = vrot.slane %v2980, 1
      %v2983 = vsel %vm1779, %v2978, %v2982
      %v2985 = vsel %vm1274, %v2927, 0
      %v2988 = vsel %vm1274, %v2935, 0
      %v2991 = vsel %vm1274, %v2943, 0
      %v2994 = vsel %vm1274, %v2951, 0
      %v2997 = vsel %vm1274, %v2959, 0
      %v3000 = vsel %vm1274, %v2967, 0
      %v3003 = vsel %vm1274, %v2975, 0
      %v3006 = vsel %vm1274, %v2983, 0
      %v3009 = vsel %vm1872, %v2915, 0
      %3011 = vmatprep.subr.bf16.mxu0 0
      %3012 = vmatpush1.bf16.msra.mxu0 %v3009
      %3013 = vmatprep.subr.bf16.mxu0 0
      %3014 = vmatpush1.bf16.msra.mxu0 0
      %3015 = vmatprep.subr.bf16.mxu0 0
      %3016 = vmatpush1.bf16.msra.mxu0 0
      %3017 = vmatprep.subr.bf16.mxu0 0
      %3018 = vmatpush1.bf16.msra.mxu0 0
      %3019 = vmatprep.subr.bf16.mxu0 0
      %3020 = vmatpush1.bf16.msra.mxu0 0
      %3021 = vmatprep.subr.bf16.mxu0 0
      %3022 = vmatpush1.bf16.msra.mxu0 0
      %3023 = vmatprep.subr.bf16.mxu0 0
      %3024 = vmatpush1.bf16.msra.mxu0 0
      %3025 = vmatprep.subr.bf16.mxu0 0
      %3026 = vmatpush1.bf16.msra.mxu0 0
      %3027 = vmatprep.subr.bf16.mxu0 0
      %3028 = vmatpush1.bf16.msra.mxu0 0
      %3029 = vmatprep.subr.bf16.mxu0 0
      %3030 = vmatpush1.bf16.msra.mxu0 0
      %3031 = vmatprep.subr.bf16.mxu0 0
      %3032 = vmatpush1.bf16.msra.mxu0 0
      %3033 = vmatprep.subr.bf16.mxu0 0
      %3034 = vmatpush1.bf16.msra.mxu0 0
      %3035 = vmatprep.subr.bf16.mxu0 0
      %3036 = vmatpush1.bf16.msra.mxu0 0
      %3037 = vmatprep.subr.bf16.mxu0 0
      %3038 = vmatpush1.bf16.msra.mxu0 0
      %3039 = vmatprep.subr.bf16.mxu0 0
      %3040 = vmatpush1.bf16.msra.mxu0 0
      %3041 = vmatprep.subr.bf16.mxu0 0
      %3042 = vmatpush1.bf16.msra.mxu0 0
      %3043 = vmatprep.mubr.bf16.mxu0 0
      %3044 = vmatmul.mubr.bf16.gmra.mrb[0].mxu0 %v2985
      %v3045 = vpop.f32.mrb[0].mxu0
      %v3046 = vadd.f32 0.0, %v3045
      %v3047 = vpop.f32.mrb[0].mxu0
      %v3048 = vpop.f32.mrb[0].mxu0
      %v3049 = vadd.f32 0.0, %v3048
      %v3050 = vpop.f32.mrb[0].mxu0
      %3051 = vmatprep.mubr.bf16.mxu0 0
      %3052 = vmatmul.mubr.bf16.gmra.mrb[0].mxu0 %v2988
      %v3053 = vpop.f32.mrb[0].mxu0
      %v3054 = vadd.f32 0.0, %v3053
      %v3055 = vpop.f32.mrb[0].mxu0
      %v3056 = vpop.f32.mrb[0].mxu0
      %v3057 = vadd.f32 0.0, %v3056
      %v3058 = vpop.f32.mrb[0].mxu0
      %3059 = vmatprep.mubr.bf16.mxu0 0
      %3060 = vmatmul.mubr.bf16.gmra.mrb[0].mxu0 %v2991
      %v3061 = vpop.f32.mrb[0].mxu0
      %v3062 = vadd.f32 0.0, %v3061
      %v3063 = vpop.f32.mrb[0].mxu0
      %v3064 = vpop.f32.mrb[0].mxu0
      %v3065 = vadd.f32 0.0, %v3064
      %v3066 = vpop.f32.mrb[0].mxu0
      %3067 = vmatprep.mubr.bf16.mxu0 0
      %3068 = vmatmul.mubr.bf16.gmra.mrb[0].mxu0 %v2994
      %v3069 = vpop.f32.mrb[0].mxu0
      %v3070 = vadd.f32 0.0, %v3069
      %v3071 = vpop.f32.mrb[0].mxu0
      %v3072 = vpop.f32.mrb[0].mxu0
      %v3073 = vadd.f32 0.0, %v3072
      %v3074 = vpop.f32.mrb[0].mxu0
      %3075 = vmatprep.mubr.bf16.mxu0 0
      %3076 = vmatmul.mubr.bf16.gmra.mrb[0].mxu0 %v2997
      %v3077 = vpop.f32.mrb[0].mxu0
      %v3078 = vadd.f32 0.0, %v3077
      %v3079 = vpop.f32.mrb[0].mxu0
      %v3080 = vpop.f32.mrb[0].mxu0
      %v3081 = vadd.f32 0.0, %v3080
      %v3082 = vpop.f32.mrb[0].mxu0
      %3083 = vmatprep.mubr.bf16.mxu0 0
      %3084 = vmatmul.mubr.bf16.gmra.mrb[0].mxu0 %v3000
      %v3085 = vpop.f32.mrb[0].mxu0
      %v3086 = vadd.f32 0.0, %v3085
      %v3087 = vpop.f32.mrb[0].mxu0
      %v3088 = vpop.f32.mrb[0].mxu0
      %v3089 = vadd.f32 0.0, %v3088
      %v3090 = vpop.f32.mrb[0].mxu0
      %3091 = vmatprep.mubr.bf16.mxu0 0
      %3092 = vmatmul.mubr.bf16.gmra.mrb[0].mxu0 %v3003
      %v3093 = vpop.f32.mrb[0].mxu0
      %v3094 = vadd.f32 0.0, %v3093
      %v3095 = vpop.f32.mrb[0].mxu0
      %v3096 = vpop.f32.mrb[0].mxu0
      %v3097 = vadd.f32 0.0, %v3096
      %v3098 = vpop.f32.mrb[0].mxu0
      %3099 = vmatprep.mubr.bf16.mxu0 0
      %3100 = vmatmul.mubr.bf16.gmra.mrb[0].mxu0 %v3006
      %v3101 = vpop.f32.mrb[0].mxu0
      %v3102 = vadd.f32 0.0, %v3101
      %v3103 = vpop.f32.mrb[0].mxu0
      %v3104 = vpop.f32.mrb[0].mxu0
      %v3105 = vadd.f32 0.0, %v3104
      %v3106 = vpop.f32.mrb[0].mxu0
      %3107 = vdwg.mxu0
      %v3108 = vadd.f32 %v2889, %v3046
      %v3109 = vadd.f32 %v2890, %v3049
      %v3110 = vadd.f32 %v2891, %v3054
      %v3111 = vadd.f32 %v2892, %v3057
      %v3112 = vadd.f32 %v2893, %v3062
      %v3113 = vadd.f32 %v2894, %v3065
      %v3114 = vadd.f32 %v2895, %v3070
      %v3115 = vadd.f32 %v2896, %v3073
      %v3116 = vadd.f32 %v2897, %v3078
      %v3117 = vadd.f32 %v2898, %v3081
      %v3118 = vadd.f32 %v2899, %v3086
      %v3119 = vadd.f32 %v2900, %v3089
      %v3120 = vadd.f32 %v2901, %v3094
      %v3121 = vadd.f32 %v2902, %v3097
      %v3122 = vadd.f32 %v2903, %v3102
      %v3123 = vadd.f32 %v2904, %v3105
      %v3124 = vld [vmem:[#allocation2 + $0x10] sm:$0xfe]
      %s3125 = scalar_lea.vmem %s1, 16
      %v3126 = vld [vmem:[%s3125] sm:$0x3]
      %v3136 = vrot.slane %v3124, 1
      %v3137 = vrot.slane %v2906, 1
      %v3138 = vsel %vm2101, %v3136, %v3137
      %v3139 = vrot.slane %v2907, 1
      %v3140 = vsel %vm2101, %v3137, %v3139
      %v3141 = vrot.slane %v2908, 1
      %v3142 = vsel %vm2101, %v3139, %v3141
      %v3143 = vrot.slane %v2909, 1
      %v3144 = vsel %vm2101, %v3141, %v3143
      %v3145 = vrot.slane %v2910, 1
      %v3146 = vsel %vm2101, %v3143, %v3145
      %v3147 = vrot.slane %v2911, 1
      %v3148 = vsel %vm2101, %v3145, %v3147
      %v3149 = vrot.slane %v2912, 1
      %v3150 = vsel %vm2101, %v3147, %v3149
      %v3151 = vrot.slane %v2913, 1
      %v3152 = vsel %vm2101, %v3149, %v3151
      %v3154 = vsel %vm1274, %v3138, 0
      %v3157 = vsel %vm1274, %v3140, 0
      %v3160 = vsel %vm1274, %v3142, 0
      %v3163 = vsel %vm1274, %v3144, 0
      %v3166 = vsel %vm1274, %v3146, 0
      %v3169 = vsel %vm1274, %v3148, 0
      %v3172 = vsel %vm1274, %v3150, 0
      %v3175 = vsel %vm1274, %v3152, 0
      %v3178 = vsel %vm1872, %v3126, 0
      %3180 = vmatprep.subr.bf16.mxu0 0
      %3181 = vmatpush1.bf16.msra.mxu0 %v3178
      %3182 = vmatprep.subr.bf16.mxu0 0
      %3183 = vmatpush1.bf16.msra.mxu0 0
      %3184 = vmatprep.subr.bf16.mxu0 0
      %3185 = vmatpush1.bf16.msra.mxu0 0
      %3186 = vmatprep.subr.bf16.mxu0 0
      %3187 = vmatpush1.bf16.msra.mxu0 0
      %3188 = vmatprep.subr.bf16.mxu0 0
      %3189 = vmatpush1.bf16.msra.mxu0 0
      %3190 = vmatprep.subr.bf16.mxu0 0
      %3191 = vmatpush1.bf16.msra.mxu0 0
      %3192 = vmatprep.subr.bf16.mxu0 0
      %3193 = vmatpush1.bf16.msra.mxu0 0
      %3194 = vmatprep.subr.bf16.mxu0 0
      %3195 = vmatpush1.bf16.msra.mxu0 0
      %3196 = vmatprep.subr.bf16.mxu0 0
      %3197 = vmatpush1.bf16.msra.mxu0 0
      %3198 = vmatprep.subr.bf16.mxu0 0
      %3199 = vmatpush1.bf16.msra.mxu0 0
      %3200 = vmatprep.subr.bf16.mxu0 0
      %3201 = vmatpush1.bf16.msra.mxu0 0
      %3202 = vmatprep.subr.bf16.mxu0 0
      %3203 = vmatpush1.bf16.msra.mxu0 0
      %3204 = vmatprep.subr.bf16.mxu0 0
      %3205 = vmatpush1.bf16.msra.mxu0 0
      %3206 = vmatprep.subr.bf16.mxu0 0
      %3207 = vmatpush1.bf16.msra.mxu0 0
      %3208 = vmatprep.subr.bf16.mxu0 0
      %3209 = vmatpush1.bf16.msra.mxu0 0
      %3210 = vmatprep.subr.bf16.mxu0 0
      %3211 = vmatpush1.bf16.msra.mxu0 0
      %3212 = vmatprep.mubr.bf16.mxu0 0
      %3213 = vmatmul.mubr.bf16.gmra.mrb[0].mxu0 %v3154
      %v3214 = vpop.f32.mrb[0].mxu0
      %v3215 = vadd.f32 0.0, %v3214
      %v3216 = vpop.f32.mrb[0].mxu0
      %v3217 = vpop.f32.mrb[0].mxu0
      %v3218 = vadd.f32 0.0, %v3217
      %v3219 = vpop.f32.mrb[0].mxu0
      %3220 = vmatprep.mubr.bf16.mxu0 0
      %3221 = vmatmul.mubr.bf16.gmra.mrb[0].mxu0 %v3157
      %v3222 = vpop.f32.mrb[0].mxu0
      %v3223 = vadd.f32 0.0, %v3222
      %v3224 = vpop.f32.mrb[0].mxu0
      %v3225 = vpop.f32.mrb[0].mxu0
      %v3226 = vadd.f32 0.0, %v3225
      %v3227 = vpop.f32.mrb[0].mxu0
      %3228 = vmatprep.mubr.bf16.mxu0 0
      %3229 = vmatmul.mubr.bf16.gmra.mrb[0].mxu0 %v3160
      %v3230 = vpop.f32.mrb[0].mxu0
      %v3231 = vadd.f32 0.0, %v3230
      %v3232 = vpop.f32.mrb[0].mxu0
      %v3233 = vpop.f32.mrb[0].mxu0
      %v3234 = vadd.f32 0.0, %v3233
      %v3235 = vpop.f32.mrb[0].mxu0
      %3236 = vmatprep.mubr.bf16.mxu0 0
      %3237 = vmatmul.mubr.bf16.gmra.mrb[0].mxu0 %v3163
      %v3238 = vpop.f32.mrb[0].mxu0
      %v3239 = vadd.f32 0.0, %v3238
      %v3240 = vpop.f32.mrb[0].mxu0
      %v3241 = vpop.f32.mrb[0].mxu0
      %v3242 = vadd.f32 0.0, %v3241
      %v3243 = vpop.f32.mrb[0].mxu0
      %3244 = vmatprep.mubr.bf16.mxu0 0
      %3245 = vmatmul.mubr.bf16.gmra.mrb[0].mxu0 %v3166
      %v3246 = vpop.f32.mrb[0].mxu0
      %v3247 = vadd.f32 0.0, %v3246
      %v3248 = vpop.f32.mrb[0].mxu0
      %v3249 = vpop.f32.mrb[0].mxu0
      %v3250 = vadd.f32 0.0, %v3249
      %v3251 = vpop.f32.mrb[0].mxu0
      %3252 = vmatprep.mubr.bf16.mxu0 0
      %3253 = vmatmul.mubr.bf16.gmra.mrb[0].mxu0 %v3169
      %v3254 = vpop.f32.mrb[0].mxu0
      %v3255 = vadd.f32 0.0, %v3254
      %v3256 = vpop.f32.mrb[0].mxu0
      %v3257 = vpop.f32.mrb[0].mxu0
      %v3258 = vadd.f32 0.0, %v3257
      %v3259 = vpop.f32.mrb[0].mxu0
      %3260 = vmatprep.mubr.bf16.mxu0 0
      %3261 = vmatmul.mubr.bf16.gmra.mrb[0].mxu0 %v3172
      %v3262 = vpop.f32.mrb[0].mxu0
      %v3263 = vadd.f32 0.0, %v3262
      %v3264 = vpop.f32.mrb[0].mxu0
      %v3265 = vpop.f32.mrb[0].mxu0
      %v3266 = vadd.f32 0.0, %v3265
      %v3267 = vpop.f32.mrb[0].mxu0
      %3268 = vmatprep.mubr.bf16.mxu0 0
      %3269 = vmatmul.mubr.bf16.gmra.mrb[0].mxu0 %v3175
      %v3270 = vpop.f32.mrb[0].mxu0
      %v3271 = vadd.f32 0.0, %v3270
      %v3272 = vpop.f32.mrb[0].mxu0
      %v3273 = vpop.f32.mrb[0].mxu0
      %v3274 = vadd.f32 0.0, %v3273
      %v3275 = vpop.f32.mrb[0].mxu0
      %3276 = vdwg.mxu0
      %v3277 = vadd.f32 %v3108, %v3215
      %v3278 = vadd.f32 %v3109, %v3218
      %v3279 = vadd.f32 %v3110, %v3223
      %v3280 = vadd.f32 %v3111, %v3226
      %v3281 = vadd.f32 %v3112, %v3231
      %v3282 = vadd.f32 %v3113, %v3234
      %v3283 = vadd.f32 %v3114, %v3239
      %v3284 = vadd.f32 %v3115, %v3242
      %v3285 = vadd.f32 %v3116, %v3247
      %v3286 = vadd.f32 %v3117, %v3250
      %v3287 = vadd.f32 %v3118, %v3255
      %v3288 = vadd.f32 %v3119, %v3258
      %v3289 = vadd.f32 %v3120, %v3263
      %v3290 = vadd.f32 %v3121, %v3266
      %v3291 = vadd.f32 %v3122, %v3271
      %v3292 = vadd.f32 %v3123, %v3274
      %v3293 = vld [vmem:[%s2] sm:$0x1]
      %v3295 = vlaneseq
      %v3296 = vshrl.u32 %v3295, 7
      %v3297 = vsub.s32 0, %v3296
      %v3298 = vrot.slane %v3293, %v3297
      %v3300 = vadd.f32 %v3277, %v3298
      %v3301 = vadd.f32 %v3278, %v3298
      %v3302 = vadd.f32 %v3279, %v3298
      %v3303 = vadd.f32 %v3280, %v3298
      %v3304 = vadd.f32 %v3281, %v3298
      %v3305 = vadd.f32 %v3282, %v3298
      %v3306 = vadd.f32 %v3283, %v3298
      %v3307 = vadd.f32 %v3284, %v3298
      %v3308 = vadd.f32 %v3285, %v3298
      %v3309 = vadd.f32 %v3286, %v3298
      %v3310 = vadd.f32 %v3287, %v3298
      %v3311 = vadd.f32 %v3288, %v3298
      %v3312 = vadd.f32 %v3289, %v3298
      %v3313 = vadd.f32 %v3290, %v3298
      %v3314 = vadd.f32 %v3291, %v3298
      %v3315 = vadd.f32 %v3292, %v3298
      %vm3316 = vcmask 64512
      %3317 = vst.msk [vmem:[%s240] sm:$0xff] %vm3316, %v3300
      %3318 = vst.msk [vmem:[%s240 + $0x8] sm:$0xff] %vm3316, %v3301
      %3319 = vst.msk [vmem:[%s240 + $0x10] sm:$0xff] %vm3316, %v3302
      %3320 = vst.msk [vmem:[%s240 + $0x18] sm:$0xff] %vm3316, %v3303
      %3321 = vst.msk [vmem:[%s240 + $0x20] sm:$0xff] %vm3316, %v3304
      %3322 = vst.msk [vmem:[%s240 + $0x28] sm:$0xff] %vm3316, %v3305
      %3323 = vst.msk [vmem:[%s240 + $0x30] sm:$0xff] %vm3316, %v3306
      %3324 = vst.msk [vmem:[%s240 + $0x38] sm:$0xff] %vm3316, %v3307
      %3325 = vst.msk [vmem:[%s240 + $0x40] sm:$0xff] %vm3316, %v3308
      %3326 = vst.msk [vmem:[%s240 + $0x48] sm:$0xff] %vm3316, %v3309
      %3327 = vst.msk [vmem:[%s240 + $0x50] sm:$0xff] %vm3316, %v3310
      %3328 = vst.msk [vmem:[%s240 + $0x58] sm:$0xff] %vm3316, %v3311
      %3329 = vst.msk [vmem:[%s240 + $0x60] sm:$0xff] %vm3316, %v3312
      %3330 = vst.msk [vmem:[%s240 + $0x68] sm:$0xff] %vm3316, %v3313
      %3331 = vst.msk [vmem:[%s240 + $0x70] sm:$0xff] %vm3316, %v3314
      %3332 = vst.msk [vmem:[%s240 + $0x78] sm:$0xff] %vm3316, %v3315
      %v3333 = vlaneseq
      %v3334 = vshrl.u32 %v3333, 7
      %v3335 = vadd.s32 %v3334, 8
      %v3336 = vadd.s32 %v3334, 16
      %v3337 = vadd.s32 %v3334, 24
      %v3338 = vadd.s32 %v3334, 32
      %v3339 = vadd.s32 %v3334, 40
      %v3340 = vadd.s32 %v3334, 48
      %v3341 = vadd.s32 %v3334, 56
      %v3342 = vadd.s32 %v3334, 64
      %v3343 = vadd.s32 %v3334, 72
      %v3344 = vadd.s32 %v3334, 80
      %v3345 = vadd.s32 %v3334, 88
      %v3346 = vadd.s32 %v3334, 96
      %v3347 = vadd.s32 %v3334, 104
      %v3348 = vadd.s32 %v3334, 112
      %v3349 = vadd.s32 %v3334, 120
      %vm3350 = vcmp.lt.s32.totalorder %v3334, 0
      %v3351 = vsub.s32 0, %v3334
      %v3352 = vsel %vm3350, %v3351, %v3334
      %v3353 = vshrl.u32 %v3352, 4
      %v3354 = vand.u32 %v3352, 15
      %v3355 = vsub.s32 0, %v3354
      %v3356 = vsel %vm3350, %v3355, %v3354
      %vm3357 = vcmp.lt.s32.totalorder %v3335, 0
      %v3358 = vsub.s32 0, %v3335
      %v3359 = vsel %vm3357, %v3358, %v3335
      %v3360 = vshrl.u32 %v3359, 4
      %v3361 = vand.u32 %v3359, 15
      %v3362 = vsub.s32 0, %v3361
      %v3363 = vsel %vm3357, %v3362, %v3361
      %vm3364 = vcmp.lt.s32.totalorder %v3336, 0
      %v3365 = vsub.s32 0, %v3336
      %v3366 = vsel %vm3364, %v3365, %v3336
      %v3367 = vshrl.u32 %v3366, 4
      %v3368 = vand.u32 %v3366, 15
      %v3369 = vsub.s32 0, %v3368
      %v3370 = vsel %vm3364, %v3369, %v3368
      %vm3371 = vcmp.lt.s32.totalorder %v3337, 0
      %v3372 = vsub.s32 0, %v3337
      %v3373 = vsel %vm3371, %v3372, %v3337
      %v3374 = vshrl.u32 %v3373, 4
      %v3375 = vand.u32 %v3373, 15
      %v3376 = vsub.s32 0, %v3375
      %v3377 = vsel %vm3371, %v3376, %v3375
      %vm3378 = vcmp.lt.s32.totalorder %v3338, 0
      %v3379 = vsub.s32 0, %v3338
      %v3380 = vsel %vm3378, %v3379, %v3338
      %v3381 = vshrl.u32 %v3380, 4
      %v3382 = vand.u32 %v3380, 15
      %v3383 = vsub.s32 0, %v3382
      %v3384 = vsel %vm3378, %v3383, %v3382
      %vm3385 = vcmp.lt.s32.totalorder %v3339, 0
      %v3386 = vsub.s32 0, %v3339
      %v3387 = vsel %vm3385, %v3386, %v3339
      %v3388 = vshrl.u32 %v3387, 4
      %v3389 = vand.u32 %v3387, 15
      %v3390 = vsub.s32 0, %v3389
      %v3391 = vsel %vm3385, %v3390, %v3389
      %vm3392 = vcmp.lt.s32.totalorder %v3340, 0
      %v3393 = vsub.s32 0, %v3340
      %v3394 = vsel %vm3392, %v3393, %v3340
      %v3395 = vshrl.u32 %v3394, 4
      %v3396 = vand.u32 %v3394, 15
      %v3397 = vsub.s32 0, %v3396
      %v3398 = vsel %vm3392, %v3397, %v3396
      %vm3399 = vcmp.lt.s32.totalorder %v3341, 0
      %v3400 = vsub.s32 0, %v3341
      %v3401 = vsel %vm3399, %v3400, %v3341
      %v3402 = vshrl.u32 %v3401, 4
      %v3403 = vand.u32 %v3401, 15
      %v3404 = vsub.s32 0, %v3403
      %v3405 = vsel %vm3399, %v3404, %v3403
      %vm3406 = vcmp.lt.s32.totalorder %v3342, 0
      %v3407 = vsub.s32 0, %v3342
      %v3408 = vsel %vm3406, %v3407, %v3342
      %v3409 = vshrl.u32 %v3408, 4
      %v3410 = vand.u32 %v3408, 15
      %v3411 = vsub.s32 0, %v3410
      %v3412 = vsel %vm3406, %v3411, %v3410
      %vm3413 = vcmp.lt.s32.totalorder %v3343, 0
      %v3414 = vsub.s32 0, %v3343
      %v3415 = vsel %vm3413, %v3414, %v3343
      %v3416 = vshrl.u32 %v3415, 4
      %v3417 = vand.u32 %v3415, 15
      %v3418 = vsub.s32 0, %v3417
      %v3419 = vsel %vm3413, %v3418, %v3417
      %vm3420 = vcmp.lt.s32.totalorder %v3344, 0
      %v3421 = vsub.s32 0, %v3344
      %v3422 = vsel %vm3420, %v3421, %v3344
      %v3423 = vshrl.u32 %v3422, 4
      %v3424 = vand.u32 %v3422, 15
      %v3425 = vsub.s32 0, %v3424
      %v3426 = vsel %vm3420, %v3425, %v3424
      %vm3427 = vcmp.lt.s32.totalorder %v3345, 0
      %v3428 = vsub.s32 0, %v3345
      %v3429 = vsel %vm3427, %v3428, %v3345
      %v3430 = vshrl.u32 %v3429, 4
      %v3431 = vand.u32 %v3429, 15
      %v3432 = vsub.s32 0, %v3431
      %v3433 = vsel %vm3427, %v3432, %v3431
      %vm3434 = vcmp.lt.s32.totalorder %v3346, 0
      %v3435 = vsub.s32 0, %v3346
      %v3436 = vsel %vm3434, %v3435, %v3346
      %v3437 = vshrl.u32 %v3436, 4
      %v3438 = vand.u32 %v3436, 15
      %v3439 = vsub.s32 0, %v3438
      %v3440 = vsel %vm3434, %v3439, %v3438
      %vm3441 = vcmp.lt.s32.totalorder %v3347, 0
      %v3442 = vsub.s32 0, %v3347
      %v3443 = vsel %vm3441, %v3442, %v3347
      %v3444 = vshrl.u32 %v3443, 4
      %v3445 = vand.u32 %v3443, 15
      %v3446 = vsub.s32 0, %v3445
      %v3447 = vsel %vm3441, %v3446, %v3445
      %vm3448 = vcmp.lt.s32.totalorder %v3348, 0
      %v3449 = vsub.s32 0, %v3348
      %v3450 = vsel %vm3448, %v3449, %v3348
      %v3451 = vshrl.u32 %v3450, 4
      %v3452 = vand.u32 %v3450, 15
      %v3453 = vsub.s32 0, %v3452
      %v3454 = vsel %vm3448, %v3453, %v3452
      %vm3455 = vcmp.lt.s32.totalorder %v3349, 0
      %v3456 = vsub.s32 0, %v3349
      %v3457 = vsel %vm3455, %v3456, %v3349
      %v3458 = vshrl.u32 %v3457, 4
      %v3459 = vand.u32 %v3457, 15
      %v3460 = vsub.s32 0, %v3459
      %v3461 = vsel %vm3455, %v3460, %v3459
      %vm3462 = vcmp.ne.s32.totalorder %v3356, 0
      %vm3463 = vcmp.ne.s32.totalorder %v3363, 0
      %vm3464 = vcmp.ne.s32.totalorder %v3370, 0
      %vm3465 = vcmp.ne.s32.totalorder %v3377, 0
      %vm3466 = vcmp.ne.s32.totalorder %v3384, 0
      %vm3467 = vcmp.ne.s32.totalorder %v3391, 0
      %vm3468 = vcmp.ne.s32.totalorder %v3398, 0
      %vm3469 = vcmp.ne.s32.totalorder %v3405, 0
      %vm3470 = vcmp.ne.s32.totalorder %v3412, 0
      %vm3471 = vcmp.ne.s32.totalorder %v3419, 0
      %vm3472 = vcmp.ne.s32.totalorder %v3426, 0
      %vm3473 = vcmp.ne.s32.totalorder %v3433, 0
      %vm3474 = vcmp.ne.s32.totalorder %v3440, 0
      %vm3475 = vcmp.ne.s32.totalorder %v3447, 0
      %vm3476 = vcmp.ne.s32.totalorder %v3454, 0
      %vm3477 = vcmp.ne.s32.totalorder %v3461, 0
      %vm3478 = vcmp.lt.s32.totalorder %v3356, 0
      %vm3479 = vcmp.lt.s32.totalorder %v3363, 0
      %vm3480 = vcmp.lt.s32.totalorder %v3370, 0
      %vm3481 = vcmp.lt.s32.totalorder %v3377, 0
      %vm3482 = vcmp.lt.s32.totalorder %v3384, 0
      %vm3483 = vcmp.lt.s32.totalorder %v3391, 0
      %vm3484 = vcmp.lt.s32.totalorder %v3398, 0
      %vm3485 = vcmp.lt.s32.totalorder %v3405, 0
      %vm3486 = vcmp.lt.s32.totalorder %v3412, 0
      %vm3487 = vcmp.lt.s32.totalorder %v3419, 0
      %vm3488 = vcmp.lt.s32.totalorder %v3426, 0
      %vm3489 = vcmp.lt.s32.totalorder %v3433, 0
      %vm3490 = vcmp.lt.s32.totalorder %v3440, 0
      %vm3491 = vcmp.lt.s32.totalorder %v3447, 0
      %vm3492 = vcmp.lt.s32.totalorder %v3454, 0
      %vm3493 = vcmp.lt.s32.totalorder %v3461, 0
      %vm3494 = vmand %vm3478, %vm3462
      %vm3495 = vmand %vm3479, %vm3463
      %vm3496 = vmand %vm3480, %vm3464
      %vm3497 = vmand %vm3481, %vm3465
      %vm3498 = vmand %vm3482, %vm3466
      %vm3499 = vmand %vm3483, %vm3467
      %vm3500 = vmand %vm3484, %vm3468
      %vm3501 = vmand %vm3485, %vm3469
      %vm3502 = vmand %vm3486, %vm3470
      %vm3503 = vmand %vm3487, %vm3471
      %vm3504 = vmand %vm3488, %vm3472
      %vm3505 = vmand %vm3489, %vm3473
      %vm3506 = vmand %vm3490, %vm3474
      %vm3507 = vmand %vm3491, %vm3475
      %vm3508 = vmand %vm3492, %vm3476
      %vm3509 = vmand %vm3493, %vm3477
      %v3510 = vadd.s32 %v3356, 16
      %v3511 = vadd.s32 %v3363, 16
      %v3512 = vadd.s32 %v3370, 16
      %v3513 = vadd.s32 %v3377, 16
      %v3514 = vadd.s32 %v3384, 16
      %v3515 = vadd.s32 %v3391, 16
      %v3516 = vadd.s32 %v3398, 16
      %v3517 = vadd.s32 %v3405, 16
      %v3518 = vadd.s32 %v3412, 16
      %v3519 = vadd.s32 %v3419, 16
      %v3520 = vadd.s32 %v3426, 16
      %v3521 = vadd.s32 %v3433, 16
      %v3522 = vadd.s32 %v3440, 16
      %v3523 = vadd.s32 %v3447, 16
      %v3524 = vadd.s32 %v3454, 16
      %v3525 = vadd.s32 %v3461, 16
      %v3526 = vsel %vm3494, %v3510, %v3356
      %v3527 = vsel %vm3495, %v3511, %v3363
      %v3528 = vsel %vm3496, %v3512, %v3370
      %v3529 = vsel %vm3497, %v3513, %v3377
      %v3530 = vsel %vm3498, %v3514, %v3384
      %v3531 = vsel %vm3499, %v3515, %v3391
      %v3532 = vsel %vm3500, %v3516, %v3398
      %v3533 = vsel %vm3501, %v3517, %v3405
      %v3534 = vsel %vm3502, %v3518, %v3412
      %v3535 = vsel %vm3503, %v3519, %v3419
      %v3536 = vsel %vm3504, %v3520, %v3426
      %v3537 = vsel %vm3505, %v3521, %v3433
      %v3538 = vsel %vm3506, %v3522, %v3440
      %v3539 = vsel %vm3507, %v3523, %v3447
      %v3540 = vsel %vm3508, %v3524, %v3454
      %v3541 = vsel %vm3509, %v3525, %v3461
      %vm3542 = vcmp.lt.s32.totalorder %v3526, 8
      %vm3543 = vcmp.lt.s32.totalorder %v3527, 8
      %vm3544 = vcmp.lt.s32.totalorder %v3528, 8
      %vm3545 = vcmp.lt.s32.totalorder %v3529, 8
      %vm3546 = vcmp.lt.s32.totalorder %v3530, 8
      %vm3547 = vcmp.lt.s32.totalorder %v3531, 8
      %vm3548 = vcmp.lt.s32.totalorder %v3532, 8
      %vm3549 = vcmp.lt.s32.totalorder %v3533, 8
      %vm3550 = vcmp.lt.s32.totalorder %v3534, 8
      %vm3551 = vcmp.lt.s32.totalorder %v3535, 8
      %vm3552 = vcmp.lt.s32.totalorder %v3536, 8
      %vm3553 = vcmp.lt.s32.totalorder %v3537, 8
      %vm3554 = vcmp.lt.s32.totalorder %v3538, 8
      %vm3555 = vcmp.lt.s32.totalorder %v3539, 8
      %vm3556 = vcmp.lt.s32.totalorder %v3540, 8
      %vm3557 = vcmp.lt.s32.totalorder %v3541, 8
      %v3558 = vsel %vm3542, 1, 0
      %v3559 = vsel %vm3543, 1, 0
      %v3560 = vsel %vm3544, 1, 0
      %v3561 = vsel %vm3545, 1, 0
      %v3562 = vsel %vm3546, 1, 0
      %v3563 = vsel %vm3547, 1, 0
      %v3564 = vsel %vm3548, 1, 0
      %v3565 = vsel %vm3549, 1, 0
      %v3566 = vsel %vm3550, 1, 0
      %v3567 = vsel %vm3551, 1, 0
      %v3568 = vsel %vm3552, 1, 0
      %v3569 = vsel %vm3553, 1, 0
      %v3570 = vsel %vm3554, 1, 0
      %v3571 = vsel %vm3555, 1, 0
      %v3572 = vsel %vm3556, 1, 0
      %v3573 = vsel %vm3557, 1, 0
      %vm3574 = vcmp.eq.s32.totalorder %v3558, 1
      %vm3575 = vcmp.eq.s32.totalorder %v3559, 1
      %vm3576 = vcmp.eq.s32.totalorder %v3560, 1
      %vm3577 = vcmp.eq.s32.totalorder %v3561, 1
      %vm3578 = vcmp.eq.s32.totalorder %v3562, 1
      %vm3579 = vcmp.eq.s32.totalorder %v3563, 1
      %vm3580 = vcmp.eq.s32.totalorder %v3564, 1
      %vm3581 = vcmp.eq.s32.totalorder %v3565, 1
      %vm3582 = vcmp.eq.s32.totalorder %v3566, 1
      %vm3583 = vcmp.eq.s32.totalorder %v3567, 1
      %vm3584 = vcmp.eq.s32.totalorder %v3568, 1
      %vm3585 = vcmp.eq.s32.totalorder %v3569, 1
      %vm3586 = vcmp.eq.s32.totalorder %v3570, 1
      %vm3587 = vcmp.eq.s32.totalorder %v3571, 1
      %vm3588 = vcmp.eq.s32.totalorder %v3572, 1
      %vm3589 = vcmp.eq.s32.totalorder %v3573, 1
      %v3590 = vsel %vm3574, %v3300, 0.0
      %v3591 = vsel %vm3575, %v3301, 0.0
      %v3592 = vsel %vm3576, %v3302, 0.0
      %v3593 = vsel %vm3577, %v3303, 0.0
      %v3594 = vsel %vm3578, %v3304, 0.0
      %v3595 = vsel %vm3579, %v3305, 0.0
      %v3596 = vsel %vm3580, %v3306, 0.0
      %v3597 = vsel %vm3581, %v3307, 0.0
      %v3598 = vsel %vm3582, %v3308, 0.0
      %v3599 = vsel %vm3583, %v3309, 0.0
      %v3600 = vsel %vm3584, %v3310, 0.0
      %v3601 = vsel %vm3585, %v3311, 0.0
      %v3602 = vsel %vm3586, %v3312, 0.0
      %v3603 = vsel %vm3587, %v3313, 0.0
      %v3604 = vsel %vm3588, %v3314, 0.0
      %v3605 = vsel %vm3589, %v3315, 0.0
      %v3606 = vsel %vm3316, %v3590, 0.0
      %v3607 = vsel %vm3316, %v3591, 0.0
      %v3608 = vadd.f32 %v3606, %v3607
      %v3609 = vsel %vm3316, %v3592, 0.0
      %v3610 = vadd.f32 %v3608, %v3609
      %v3611 = vsel %vm3316, %v3593, 0.0
      %v3612 = vadd.f32 %v3610, %v3611
      %v3613 = vsel %vm3316, %v3594, 0.0
      %v3614 = vadd.f32 %v3612, %v3613
      %v3615 = vsel %vm3316, %v3595, 0.0
      %v3616 = vadd.f32 %v3614, %v3615
      %v3617 = vsel %vm3316, %v3596, 0.0
      %v3618 = vadd.f32 %v3616, %v3617
      %v3619 = vsel %vm3316, %v3597, 0.0
      %v3620 = vadd.f32 %v3618, %v3619
      %v3621 = vsel %vm3316, %v3598, 0.0
      %v3622 = vadd.f32 %v3620, %v3621
      %v3623 = vsel %vm3316, %v3599, 0.0
      %v3624 = vadd.f32 %v3622, %v3623
      %v3625 = vsel %vm3316, %v3600, 0.0
      %v3626 = vadd.f32 %v3624, %v3625
      %v3627 = vsel %vm3316, %v3601, 0.0
      %v3628 = vadd.f32 %v3626, %v3627
      %v3629 = vsel %vm3316, %v3602, 0.0
      %v3630 = vadd.f32 %v3628, %v3629
      %v3631 = vsel %vm3316, %v3603, 0.0
      %v3632 = vadd.f32 %v3630, %v3631
      %v3633 = vsel %vm3316, %v3604, 0.0
      %v3634 = vadd.f32 %v3632, %v3633
      %v3635 = vsel %vm3316, %v3605, 0.0
      %v3636 = vadd.f32 %v3634, %v3635
      %v3637 = vrot.slane %v3636, 4
      %v3638 = vadd.f32 %v3636, %v3637
      %v3639 = vrot.slane %v3638, 2
      %v3640 = vadd.f32 %v3638, %v3639
      %v3641 = vrot.slane %v3640, 1
      %v3642 = vadd.f32 %v3640, %v3641
      %vm3643 = vcmask 57344
      %3644 = vst.msk [vmem:[%s244] sm:$0x1] %vm3643, %v3642
      %v3645 = vmul.f32 %v3590, %v3590
      %v3646 = vmul.f32 %v3591, %v3591
      %v3647 = vmul.f32 %v3592, %v3592
      %v3648 = vmul.f32 %v3593, %v3593
      %v3649 = vmul.f32 %v3594, %v3594
      %v3650 = vmul.f32 %v3595, %v3595
      %v3651 = vmul.f32 %v3596, %v3596
      %v3652 = vmul.f32 %v3597, %v3597
      %v3653 = vmul.f32 %v3598, %v3598
      %v3654 = vmul.f32 %v3599, %v3599
      %v3655 = vmul.f32 %v3600, %v3600
      %v3656 = vmul.f32 %v3601, %v3601
      %v3657 = vmul.f32 %v3602, %v3602
      %v3658 = vmul.f32 %v3603, %v3603
      %v3659 = vmul.f32 %v3604, %v3604
      %v3660 = vmul.f32 %v3605, %v3605
      %v3661 = vsel %vm3316, %v3645, 0.0
      %v3662 = vsel %vm3316, %v3646, 0.0
      %v3663 = vadd.f32 %v3661, %v3662
      %v3664 = vsel %vm3316, %v3647, 0.0
      %v3665 = vadd.f32 %v3663, %v3664
      %v3666 = vsel %vm3316, %v3648, 0.0
      %v3667 = vadd.f32 %v3665, %v3666
      %v3668 = vsel %vm3316, %v3649, 0.0
      %v3669 = vadd.f32 %v3667, %v3668
      %v3670 = vsel %vm3316, %v3650, 0.0
      %v3671 = vadd.f32 %v3669, %v3670
      %v3672 = vsel %vm3316, %v3651, 0.0
      %v3673 = vadd.f32 %v3671, %v3672
      %v3674 = vsel %vm3316, %v3652, 0.0
      %v3675 = vadd.f32 %v3673, %v3674
      %v3676 = vsel %vm3316, %v3653, 0.0
      %v3677 = vadd.f32 %v3675, %v3676
      %v3678 = vsel %vm3316, %v3654, 0.0
      %v3679 = vadd.f32 %v3677, %v3678
      %v3680 = vsel %vm3316, %v3655, 0.0
      %v3681 = vadd.f32 %v3679, %v3680
      %v3682 = vsel %vm3316, %v3656, 0.0
      %v3683 = vadd.f32 %v3681, %v3682
      %v3684 = vsel %vm3316, %v3657, 0.0
      %v3685 = vadd.f32 %v3683, %v3684
      %v3686 = vsel %vm3316, %v3658, 0.0
      %v3687 = vadd.f32 %v3685, %v3686
      %v3688 = vsel %vm3316, %v3659, 0.0
      %v3689 = vadd.f32 %v3687, %v3688
      %v3690 = vsel %vm3316, %v3660, 0.0
      %v3691 = vadd.f32 %v3689, %v3690
      %v3692 = vrot.slane %v3691, 4
      %v3693 = vadd.f32 %v3691, %v3692
      %v3694 = vrot.slane %v3693, 2
      %v3695 = vadd.f32 %v3693, %v3694
      %v3696 = vrot.slane %v3695, 1
      %v3697 = vadd.f32 %v3695, %v3696
      %3698 = vst.msk [vmem:[%s247] sm:$0x1] %vm3643, %v3697
      %s3699 = smul.u32 16, %s17
      %p3700 = scmp.lt.s32.totalorder %s3699, 31
      %s3701 = scalar_select %p3700, %s3699, 31
      %s3702 = smul.addr %s3701, 8
      %s3703 = scalar_lea.vmem %s3, %s3702
      %p3704 = scmp.lt.s32.totalorder %s17, 1
      %s3705 = scalar_select %p3704, %s17, 1
      %s3706 = scalar_lea.vmem %s4, %s3705
      %p3707 = scmp.lt.s32.totalorder %s17, 1
      %s3708 = scalar_select %p3707, %s17, 1
      %s3709 = scalar_lea.vmem %s5, %s3708
      // Predicated region
      $region33: #{down_forward.3} parent=31 // pred_check
        %p3710 = pneg %p103
      $region34: #{down_forward.3} parent=31 // pred_check_branch
        %3712 = sbr.rel (%p3710) target = $region36
      $region35: #{down_forward.3} parent=31 // pred_region
        %s3713 = smul.u32 16, %s17
      $region36: #{down_forward.3} parent=31 // pred_fallthru
        _
      // Predicated region
      $region37: #{down_forward.3} parent=31 // pred_check
        %p3714 = pneg %p129
      $region38: #{down_forward.3} parent=31 // pred_check_branch
        %3716 = sbr.rel (%p3714) target = $region40
      $region39: #{down_forward.3} parent=31 // pred_region
        _
      $region40: #{down_forward.3} parent=31 // pred_fallthru
        _
      // Predicated region
      $region41: #{down_forward.3} parent=31 // pred_check
        %p3717 = pneg %p155
      $region42: #{down_forward.3} parent=31 // pred_check_branch
        %3719 = sbr.rel (%p3717) target = $region44
      $region43: #{down_forward.3} parent=31 // pred_region
        _
      $region44: #{down_forward.3} parent=31 // pred_fallthru
        _
    $region32: #{down_forward.3} parent=5 // pred_fallthru
      _
    %p3720 = scmp.le.s32.totalorder 2, %s12
    // Predicated region
    $region45: #{down_forward.3} parent=5 // pred_check
      %p3721 = pneg %p3720
    $region46: #{down_forward.3} parent=5 // pred_check_branch
      %3723 = sbr.rel (%p3721) target = $region48
    $region47: #{down_forward.3} parent=5 // pred_region
      %s3724 = ssub.s32 %s12, 2
      // Predicated region
      $region49: #{down_forward.3} parent=47 // pred_check
        %p3725 = pneg %p109
      $region50: #{down_forward.3} parent=47 // pred_check_branch
        %3727 = sbr.rel (%p3725) target = $region52
      $region51: #{down_forward.3} parent=47 // pred_region
        %s3728 = smul.u32 16, %s18
        %p3729 = scmp.lt.s32.totalorder %s3728, 31
        %s3730 = scalar_select %p3729, %s3728, 31
        %s3731 = smul.addr %s3730, 8
        %s3732 = scalar_lea.vmem %s3, %s3731
      $region52: #{down_forward.3} parent=47 // pred_fallthru
        _
      // Predicated region
      $region53: #{down_forward.3} parent=47 // pred_check
        %p3733 = pneg %p135
      $region54: #{down_forward.3} parent=47 // pred_check_branch
        %3735 = sbr.rel (%p3733) target = $region56
      $region55: #{down_forward.3} parent=47 // pred_region
        %p3736 = scmp.lt.s32.totalorder %s18, 1
        %s3737 = scalar_select %p3736, %s18, 1
        %s3738 = scalar_lea.vmem %s4, %s3737
      $region56: #{down_forward.3} parent=47 // pred_fallthru
        _
      // Predicated region
      $region57: #{down_forward.3} parent=47 // pred_check
        %p3739 = pneg %p161
      $region58: #{down_forward.3} parent=47 // pred_check_branch
        %3741 = sbr.rel (%p3739) target = $region60
      $region59: #{down_forward.3} parent=47 // pred_region
        %p3742 = scmp.lt.s32.totalorder %s18, 1
        %s3743 = scalar_select %p3742, %s18, 1
        %s3744 = scalar_lea.vmem %s5, %s3743
      $region60: #{down_forward.3} parent=47 // pred_fallthru
        _
    $region48: #{down_forward.3} parent=5 // pred_fallthru
      _
  $region6: #{down_forward.3} parent=0 // loop_footer
    %s16 = sadd.s32 1, %s12
  $region7: #{down_forward.3} parent=0 // loop_footer_branch
    %11 = sbr.rel target = $region3
  $region8: #{down_forward.3} parent=0 // loop_exit
    _

</llo_original>
